<compile_context>
chip_gen: v6e
topology: v6e:2x2x1
jax: 0.10.0
libtpu: 0.0.40
codegen_flags: <defaults>
</compile_context>

<pallas_src>
import functools

import jax
import jax.numpy as jnp
from jax.experimental import pallas as pl
from jax.experimental.pallas import tpu as pltpu

F32 = jnp.float32
BF16 = jnp.bfloat16


# ----------------------------------------------------------------------------
# Helpers
# ----------------------------------------------------------------------------

def _store_padded(buf_ref, y, pad):
    """Store y (Ho, Wo, C) into buf_ref (Ho+2p, Wo+2p, C) with a zero border.

    All stores are full-width (Wp, C) row slabs: top/bottom zero rows plus interior rows
    built with a sublane concat, so there are no masked sublane-offset stores and the
    border is (re)written every grid step (safe under megacore grid partitioning).
    """
    Ho, Wo, C = y.shape
    Wp = Wo + 2 * pad
    zrows = jnp.zeros((pad, Wp, C), y.dtype)
    zcols = jnp.zeros((Ho, pad, C), y.dtype)
    buf_ref[0:pad, :, :] = zrows
    buf_ref[pad + Ho:pad + Ho + pad, :, :] = zrows
    buf_ref[pad:pad + Ho, :, :] = jnp.concatenate([zcols, y, zcols], axis=1)


# ----------------------------------------------------------------------------
# Fused DwonStage kernel (one grid step per batch element)
# ----------------------------------------------------------------------------

def _dwon_stage_kernel(
    ph_ref,                                   # (4, Hh, Wh, Cin) stride-2 phase views
    pe_dw_w_ref, pe_dw_b_ref,                 # (49, Cin), (1, Cin)
    pe_pw_w_ref, pe_pw_b_ref,                 # (Cin, C) bf16, (1, C)
    cpe_w_ref, cpe_b_ref,                     # (9, C), (1, C)
    ln_g_ref, ln_b_ref,                       # (1, C), (1, C)
    qkv_w_ref,                                # (C, 3C) bf16 (q-scale folded in)
    proj_w_ref, proj_b_ref,                   # (C, C) bf16, (1, C)
    ffn_dw_w_ref, bn_s_ref, bn_t_ref,         # (49, C), (1, C), (1, C)
    ffn_w1_ref, ffn_b1_ref,                   # (C, mid) bf16, (1, mid)
    ffn_w2_ref, ffn_b2_ref,                   # (mid, C) bf16, (1, C)
    o_ref,                                    # (N, C) output tokens of this image
    pe_pad_ref,                               # VMEM scratch (Ho+2, Wo+2, C) f32
    tm_pad_ref,                               # VMEM scratch (Ho+6, Wo+6, C) f32
    *, K, Ho, Wo, Cin, C, num_heads, head_dim, eps,
):
    N = Ho * Wo

    # ---------- patch_embed: dw7x7 stride-2 + bias + ReLU -> 1x1 conv + bias + ReLU ----
    # Tap (kh, kw) of the stride-2 conv is a contiguous window of phase (kh%2, kw%2).
    pe_w = pe_dw_w_ref[...].astype(F32)                      # hoisted single weight load
    acc = jnp.zeros((Ho, Wo, Cin), F32)
    for kh in range(K):
        for kw in range(K):
            ph_i = (kh % 2) * 2 + (kw % 2)
            a, b = kh // 2, kw // 2
            tap = ph_ref[ph_i, a:a + Ho, b:b + Wo, :].astype(F32)
            acc = acc + tap * pe_w[kh * K + kw:kh * K + kw + 1]
    acc = jnp.maximum(acc + pe_dw_b_ref[...].astype(F32), 0.0)              # ReLU

    x1 = jnp.dot(acc.reshape(N, Cin).astype(BF16), pe_pw_w_ref[...],
                 preferred_element_type=F32)
    x1 = jnp.maximum(x1 + pe_pw_b_ref[...].astype(F32), 0.0)                # (N, C) ReLU

    # Stash zero-padded (pad=1) for the CPE dw3x3 -- stays in VMEM, no HBM round trip.
    _store_padded(pe_pad_ref, x1.reshape(Ho, Wo, C), 1)

    # ---------- token mixer: CPE dw3x3 + bias -> LayerNorm -> MHSA -> proj -------------
    cpe_w = cpe_w_ref[...].astype(F32)
    acc2 = jnp.zeros((Ho, Wo, C), F32)
    for kh in range(3):
        for kw in range(3):
            tap = pe_pad_ref[kh:kh + Ho, kw:kw + Wo, :]
            acc2 = acc2 + tap * cpe_w[kh * 3 + kw:kh * 3 + kw + 1]
    acc2 = acc2 + cpe_b_ref[...].astype(F32)                 # Identity activation

    # LayerNorm over channels (token layout n = h*Wo + w).
    t = acc2.reshape(N, C)
    mean = jnp.mean(t, axis=-1, keepdims=True)
    var = jnp.mean(jnp.square(t - mean), axis=-1, keepdims=True)
    t = (t - mean) * jax.lax.rsqrt(var + eps)
    t = t * ln_g_ref[...].astype(F32) + ln_b_ref[...].astype(F32)
    tb = t.astype(BF16)

    # One wide QKV matmul; attention scale is already folded into the q columns.
    qkv = jnp.dot(tb, qkv_w_ref[...], preferred_element_type=F32)           # (N, 3C)
    heads = []
    for h in range(num_heads):
        lo = h * head_dim
        q = qkv[:, lo:lo + head_dim]
        k = qkv[:, C + lo:C + lo + head_dim]
        v = qkv[:, 2 * C + lo:2 * C + lo + head_dim]
        # q @ k^T without materializing a transpose of k.
        s = jax.lax.dot_general(q, k, (((1,), (1,)), ((), ())),
                                preferred_element_type=F32)                 # (N, N)
        s = s - jnp.max(s, axis=-1, keepdims=True)
        p = jnp.exp(s)
        p = p * pl.reciprocal(jnp.sum(p, axis=-1, keepdims=True), approx=True)
        heads.append(jnp.dot(p.astype(BF16), v.astype(BF16),
                             preferred_element_type=F32))                   # (N, head_dim)
    # Single wide output projection after a lane concat of the per-head outputs.
    o_cat = jnp.concatenate(heads, axis=-1).astype(BF16)                    # (N, C)
    y_tm = jnp.dot(o_cat, proj_w_ref[...], preferred_element_type=F32)
    y_tm = y_tm + proj_b_ref[...].astype(F32)                               # (N, C)

    # Stash zero-padded (pad=3) for conv_ffn's dw7x7; y_tm also stays live as residual.
    _store_padded(tm_pad_ref, y_tm.reshape(Ho, Wo, C), K // 2)

    # ---------- conv_ffn: dw7x7 (+ folded BN) -> 1x1 + ReLU -> 1x1 ; + residual --------
    ffn_w = ffn_dw_w_ref[...].astype(F32)
    acc3 = jnp.zeros((Ho, Wo, C), F32)
    for kh in range(K):
        for kw in range(K):
            tap = tm_pad_ref[kh:kh + Ho, kw:kw + Wo, :]
            acc3 = acc3 + tap * ffn_w[kh * K + kw:kh * K + kw + 1]
    acc3 = acc3 * bn_s_ref[...].astype(F32) + bn_t_ref[...].astype(F32)     # folded BN

    h1 = jnp.dot(acc3.reshape(N, C).astype(BF16), ffn_w1_ref[...],
                 preferred_element_type=F32)
    h1 = jnp.maximum(h1 + ffn_b1_ref[...].astype(F32), 0.0)                 # ReLU
    y = jnp.dot(h1.astype(BF16), ffn_w2_ref[...], preferred_element_type=F32)
    y = y + ffn_b2_ref[...].astype(F32) + y_tm                              # + residual

    o_ref[...] = y.astype(o_ref.dtype)


# ----------------------------------------------------------------------------
# Wrapper: NCHW in, NCHW out (PyTorch convention)
# ----------------------------------------------------------------------------

def dwon_stage_forward(x_nchw, kp, *, num_heads):
    x = jnp.transpose(x_nchw, (0, 2, 3, 1))                  # NCHW -> NHWC
    B, H, W, Cin = x.shape
    K = 7
    pad = K // 2
    Ho = (H + 2 * pad - K) // 2 + 1
    Wo = (W + 2 * pad - K) // 2 + 1
    N = Ho * Wo
    C = kp['pe_pw_w'].shape[1]
    mid = kp['ffn_w1'].shape[1]

    # Stride-2 tap gather as 4 phase views (one tiny XLA fusion on the input only).
    # TODO(synk): read taps in-kernel with pl.ds(..., stride=2) on the padded input to
    #             drop this prep; kept the phase views for safe lowering.
    xp = jnp.pad(x, ((0, 0), (pad, pad), (pad, pad), (0, 0)))
    phases = jnp.stack([xp[:, i::2, j::2, :] for i in range(2) for j in range(2)], axis=1)
    Hh, Wh = phases.shape[2], phases.shape[3]

    kern = functools.partial(
        _dwon_stage_kernel, K=K, Ho=Ho, Wo=Wo, Cin=Cin, C=C,
        num_heads=num_heads, head_dim=C // num_heads, eps=1e-5)

    rep = lambda b: (0, 0)                                   # replicated weight blocks
    out = pl.pallas_call(
        kern,
        grid=(B,),   # one image per step; "parallel" lets v7x shard over its 2 TCs
        in_specs=[
            pl.BlockSpec((None, 4, Hh, Wh, Cin), lambda b: (b, 0, 0, 0, 0)),
            pl.BlockSpec((K * K, Cin), rep), pl.BlockSpec((1, Cin), rep),
            pl.BlockSpec((Cin, C), rep), pl.BlockSpec((1, C), rep),
            pl.BlockSpec((9, C), rep), pl.BlockSpec((1, C), rep),
            pl.BlockSpec((1, C), rep), pl.BlockSpec((1, C), rep),
            pl.BlockSpec((C, 3 * C), rep),
            pl.BlockSpec((C, C), rep), pl.BlockSpec((1, C), rep),
            pl.BlockSpec((K * K, C), rep), pl.BlockSpec((1, C), rep),
            pl.BlockSpec((1, C), rep),
            pl.BlockSpec((C, mid), rep), pl.BlockSpec((1, mid), rep),
            pl.BlockSpec((mid, C), rep), pl.BlockSpec((1, C), rep),
        ],
        out_specs=pl.BlockSpec((None, N, C), lambda b: (b, 0, 0)),
        out_shape=jax.ShapeDtypeStruct((B, N, C), x.dtype),
        scratch_shapes=[pltpu.VMEM((Ho + 2, Wo + 2, C), F32),          # CPE pad buffer
                        pltpu.VMEM((Ho + 2 * pad, Wo + 2 * pad, C), F32)],  # FFN pad buffer
        compiler_params=pltpu.CompilerParams(dimension_semantics=("parallel",)),
    )(phases, kp['pe_dw_w'], kp['pe_dw_b'], kp['pe_pw_w'], kp['pe_pw_b'],
      kp['cpe_w'], kp['cpe_b'], kp['ln_g'], kp['ln_b'], kp['qkv_w'],
      kp['proj_w'], kp['proj_b'], kp['ffn_dw_w'], kp['bn_s'], kp['bn_t'],
      kp['ffn_w1'], kp['ffn_b1'], kp['ffn_w2'], kp['ffn_b2'])

    # Tokens (B, N, C) -> NCHW (B, C, Ho, Wo).
    return out.reshape(B, Ho, Wo, C).transpose(0, 3, 1, 2)


# ----------------------------------------------------------------------------
# Parameters (deterministic, synthetic) + one-time kernel-ready preparation
# ----------------------------------------------------------------------------

def init_params(key, in_chans, out_chans, num_heads, expand_ratio):
    keys = iter(jax.random.split(key, 32))

    def nrm(shape, scl=0.1):
        return jax.random.normal(next(keys), shape, F32) * scl

    mid = out_chans * expand_ratio
    p = {}
    # patch_embed[0]: RepBlock (inference) = depthwise 7x7 stride-2 conv + bias, ReLU
    p['pe0_w'] = nrm((7, 7, in_chans))
    p['pe0_b'] = nrm((in_chans,))
    # patch_embed[1]: RepBlock (inference) = 1x1 conv in->out + bias, ReLU
    p['pe1_w'] = nrm((in_chans, out_chans))
    p['pe1_b'] = nrm((out_chans,))
    # block 0, AttnTokenMixer.CPE: RepBlock (inference) = dw 3x3 conv + bias (Identity act)
    p['cpe_w'] = nrm((3, 3, out_chans))
    p['cpe_b'] = nrm((out_chans,))
    # LayerNorm
    p['ln_g'] = 1.0 + nrm((out_chans,))
    p['ln_b'] = nrm((out_chans,))
    # Attention: qkv (no bias), proj (with bias)
    p['qkv_w'] = nrm((out_chans, 3 * out_chans))
    p['proj_w'] = nrm((out_chans, out_chans))
    p['proj_b'] = nrm((out_chans,))
    # conv_ffn: dw7x7 (no bias) -> BN -> 1x1 (C->mid, bias, ReLU) -> 1x1 (mid->C, bias)
    p['ffn_dw_w'] = nrm((7, 7, out_chans))
    p['bn_g'] = 1.0 + nrm((out_chans,))
    p['bn_b'] = nrm((out_chans,))
    p['bn_mean'] = nrm((out_chans,))
    p['bn_var'] = 1.0 + jnp.abs(nrm((out_chans,)))
    p['ffn_w1'] = nrm((out_chans, mid))
    p['ffn_b1'] = nrm((mid,))
    p['ffn_w2'] = nrm((mid, out_chans))
    p['ffn_b2'] = nrm((out_chans,))
    return p


def prepare_params(p, *, num_heads):
    """One-time preprocessing (outside the hot path): reshapes, BN folding, attention
    scale folded into the q columns of the qkv weight, bf16 casts of matmul weights."""
    C = p['pe1_w'].shape[1]
    head_dim = C // num_heads
    eps = 1e-5
    bn_scale = p['bn_g'] / jnp.sqrt(p['bn_var'] + eps)
    bn_shift = p['bn_b'] - p['bn_mean'] * bn_scale
    qkv_w = p['qkv_w'].at[:, :C].multiply(head_dim ** (-0.5))   # fold attention scale

    return {
        'pe_dw_w': p['pe0_w'].reshape(49, -1),
        'pe_dw_b': p['pe0_b'].reshape(1, -1),
        'pe_pw_w': p['pe1_w'].astype(BF16),
        'pe_pw_b': p['pe1_b'].reshape(1, -1),
        'cpe_w': p['cpe_w'].reshape(9, -1),
        'cpe_b': p['cpe_b'].reshape(1, -1),
        'ln_g': p['ln_g'].reshape(1, -1),
        'ln_b': p['ln_b'].reshape(1, -1),
        'qkv_w': qkv_w.astype(BF16),
        'proj_w': p['proj_w'].astype(BF16),
        'proj_b': p['proj_b'].reshape(1, -1),
        'ffn_dw_w': p['ffn_dw_w'].reshape(49, -1),
        'bn_s': bn_scale.reshape(1, -1),
        'bn_t': bn_shift.reshape(1, -1),
        'ffn_w1': p['ffn_w1'].astype(BF16),
        'ffn_b1': p['ffn_b1'].reshape(1, -1),
        'ffn_w2': p['ffn_w2'].astype(BF16),
        'ffn_b2': p['ffn_b2'].reshape(1, -1),
    }


if __name__ == "__main__":
    key = jax.random.PRNGKey(0)
    kx, kparam = jax.random.split(key)

    B, in_chans, H, W = 2, 16, 16, 16
    out_chans, num_heads, expand_ratio = 32, 4, 2

    x = jax.random.normal(kx, (B, in_chans, H, W), F32)
    params = init_params(kparam, in_chans, out_chans, num_heads, expand_ratio)
    kparams = prepare_params(params, num_heads=num_heads)

    fwd = jax.jit(functools.partial(dwon_stage_forward, num_heads=num_heads))
    out = fwd(x, kparams)
    jax.block_until_ready(out)

    assert out.shape == (B, out_chans, H // 2, W // 2), out.shape
    assert bool(jnp.all(jnp.isfinite(out)))
    print("KERNEL_OK")
</pallas_src>

<mosaic_0001>
module attributes {stable_mosaic.version = 11 : i64} {
  func.func @_dwon_stage_kernel(%arg0: i32, %arg1: memref<1x4x11x11x16xf32, #tpu.memory_space<vmem>>, %arg2: memref<49x16xf32, #tpu.memory_space<vmem>>, %arg3: memref<1x16xf32, #tpu.memory_space<vmem>>, %arg4: memref<16x32xbf16, #tpu.memory_space<vmem>>, %arg5: memref<1x32xf32, #tpu.memory_space<vmem>>, %arg6: memref<9x32xf32, #tpu.memory_space<vmem>>, %arg7: memref<1x32xf32, #tpu.memory_space<vmem>>, %arg8: memref<1x32xf32, #tpu.memory_space<vmem>>, %arg9: memref<1x32xf32, #tpu.memory_space<vmem>>, %arg10: memref<32x96xbf16, #tpu.memory_space<vmem>>, %arg11: memref<32x32xbf16, #tpu.memory_space<vmem>>, %arg12: memref<1x32xf32, #tpu.memory_space<vmem>>, %arg13: memref<49x32xf32, #tpu.memory_space<vmem>>, %arg14: memref<1x32xf32, #tpu.memory_space<vmem>>, %arg15: memref<1x32xf32, #tpu.memory_space<vmem>>, %arg16: memref<32x64xbf16, #tpu.memory_space<vmem>>, %arg17: memref<1x64xf32, #tpu.memory_space<vmem>>, %arg18: memref<64x32xbf16, #tpu.memory_space<vmem>>, %arg19: memref<1x32xf32, #tpu.memory_space<vmem>>, %arg20: memref<1x64x32xf32, #tpu.memory_space<vmem>>, %arg21: memref<10x10x32xf32, #tpu.memory_space<vmem>>, %arg22: memref<14x14x32xf32, #tpu.memory_space<vmem>>) attributes {dimension_semantics = [#tpu.dimension_semantics<parallel>], iteration_bounds = array<i64: 2>, scalar_prefetch = 0 : i64, scratch_operands = 2 : i64, tpu.core_type = #tpu.core_type<tc>, window_params = [{transform_indices = @transform_0, window_bounds = array<i64: 1, 4, 11, 11, 16>}, {pipeline_mode = #tpu.pipeline_mode<synchronous>, transform_indices = @transform_1, window_bounds = array<i64: 49, 16>}, {pipeline_mode = #tpu.pipeline_mode<synchronous>, transform_indices = @transform_2, window_bounds = array<i64: 1, 16>}, {pipeline_mode = #tpu.pipeline_mode<synchronous>, transform_indices = @transform_3, window_bounds = array<i64: 16, 32>}, {pipeline_mode = #tpu.pipeline_mode<synchronous>, transform_indices = @transform_4, window_bounds = array<i64: 1, 32>}, {pipeline_mode = #tpu.pipeline_mode<synchronous>, transform_indices = @transform_5, window_bounds = array<i64: 9, 32>}, {pipeline_mode = #tpu.pipeline_mode<synchronous>, transform_indices = @transform_6, window_bounds = array<i64: 1, 32>}, {pipeline_mode = #tpu.pipeline_mode<synchronous>, transform_indices = @transform_7, window_bounds = array<i64: 1, 32>}, {pipeline_mode = #tpu.pipeline_mode<synchronous>, transform_indices = @transform_8, window_bounds = array<i64: 1, 32>}, {pipeline_mode = #tpu.pipeline_mode<synchronous>, transform_indices = @transform_9, window_bounds = array<i64: 32, 96>}, {pipeline_mode = #tpu.pipeline_mode<synchronous>, transform_indices = @transform_10, window_bounds = array<i64: 32, 32>}, {pipeline_mode = #tpu.pipeline_mode<synchronous>, transform_indices = @transform_11, window_bounds = array<i64: 1, 32>}, {pipeline_mode = #tpu.pipeline_mode<synchronous>, transform_indices = @transform_12, window_bounds = array<i64: 49, 32>}, {pipeline_mode = #tpu.pipeline_mode<synchronous>, transform_indices = @transform_13, window_bounds = array<i64: 1, 32>}, {pipeline_mode = #tpu.pipeline_mode<synchronous>, transform_indices = @transform_14, window_bounds = array<i64: 1, 32>}, {pipeline_mode = #tpu.pipeline_mode<synchronous>, transform_indices = @transform_15, window_bounds = array<i64: 32, 64>}, {pipeline_mode = #tpu.pipeline_mode<synchronous>, transform_indices = @transform_16, window_bounds = array<i64: 1, 64>}, {pipeline_mode = #tpu.pipeline_mode<synchronous>, transform_indices = @transform_17, window_bounds = array<i64: 64, 32>}, {pipeline_mode = #tpu.pipeline_mode<synchronous>, transform_indices = @transform_18, window_bounds = array<i64: 1, 32>}, {transform_indices = @transform_19, window_bounds = array<i64: 1, 64, 32>}]} {
    %c0 = arith.constant 0 : index
    %c0_0 = arith.constant 0 : index
    %0 = vector.load %arg2[%c0, %c0_0] : memref<49x16xf32, #tpu.memory_space<vmem>>, vector<49x16xf32>
    %cst = arith.constant 0.000000e+00 : f32
    %1 = vector.broadcast %cst : f32 to vector<8x8x16xf32>
    %c0_1 = arith.constant 0 : index
    %c0_2 = arith.constant 0 : index
    %c0_3 = arith.constant 0 : index
    %c0_4 = arith.constant 0 : index
    %c0_5 = arith.constant 0 : index
    %2 = vector.load %arg1[%c0_1, %c0_2, %c0_3, %c0_4, %c0_5] : memref<1x4x11x11x16xf32, #tpu.memory_space<vmem>>, vector<1x1x8x8x16xf32>
    %3 = vector.shape_cast %2 : vector<1x1x8x8x16xf32> to vector<8x8x16xf32>
    %4 = vector.extract_strided_slice %0 {offsets = [0, 0], sizes = [1, 16], strides = [1, 1]} : vector<49x16xf32> to vector<1x16xf32>
    %5 = vector.shape_cast %4 : vector<1x16xf32> to vector<1x1x16xf32>
    %6 = vector.broadcast %5 : vector<1x1x16xf32> to vector<8x8x16xf32>
    %7 = arith.mulf %3, %6 : vector<8x8x16xf32>
    %8 = arith.addf %1, %7 : vector<8x8x16xf32>
    %c0_6 = arith.constant 0 : index
    %c1 = arith.constant 1 : index
    %c0_7 = arith.constant 0 : index
    %c0_8 = arith.constant 0 : index
    %c0_9 = arith.constant 0 : index
    %9 = vector.load %arg1[%c0_6, %c1, %c0_7, %c0_8, %c0_9] : memref<1x4x11x11x16xf32, #tpu.memory_space<vmem>>, vector<1x1x8x8x16xf32>
    %10 = vector.shape_cast %9 : vector<1x1x8x8x16xf32> to vector<8x8x16xf32>
    %11 = vector.extract_strided_slice %0 {offsets = [1, 0], sizes = [1, 16], strides = [1, 1]} : vector<49x16xf32> to vector<1x16xf32>
    %12 = vector.shape_cast %11 : vector<1x16xf32> to vector<1x1x16xf32>
    %13 = vector.broadcast %12 : vector<1x1x16xf32> to vector<8x8x16xf32>
    %14 = arith.mulf %10, %13 : vector<8x8x16xf32>
    %15 = arith.addf %8, %14 : vector<8x8x16xf32>
    %c0_10 = arith.constant 0 : index
    %c0_11 = arith.constant 0 : index
    %c0_12 = arith.constant 0 : index
    %c1_13 = arith.constant 1 : index
    %c0_14 = arith.constant 0 : index
    %16 = vector.load %arg1[%c0_10, %c0_11, %c0_12, %c1_13, %c0_14] : memref<1x4x11x11x16xf32, #tpu.memory_space<vmem>>, vector<1x1x8x8x16xf32>
    %17 = vector.shape_cast %16 : vector<1x1x8x8x16xf32> to vector<8x8x16xf32>
    %18 = vector.extract_strided_slice %0 {offsets = [2, 0], sizes = [1, 16], strides = [1, 1]} : vector<49x16xf32> to vector<1x16xf32>
    %19 = vector.shape_cast %18 : vector<1x16xf32> to vector<1x1x16xf32>
    %20 = vector.broadcast %19 : vector<1x1x16xf32> to vector<8x8x16xf32>
    %21 = arith.mulf %17, %20 : vector<8x8x16xf32>
    %22 = arith.addf %15, %21 : vector<8x8x16xf32>
    %c0_15 = arith.constant 0 : index
    %c1_16 = arith.constant 1 : index
    %c0_17 = arith.constant 0 : index
    %c1_18 = arith.constant 1 : index
    %c0_19 = arith.constant 0 : index
    %23 = vector.load %arg1[%c0_15, %c1_16, %c0_17, %c1_18, %c0_19] : memref<1x4x11x11x16xf32, #tpu.memory_space<vmem>>, vector<1x1x8x8x16xf32>
    %24 = vector.shape_cast %23 : vector<1x1x8x8x16xf32> to vector<8x8x16xf32>
    %25 = vector.extract_strided_slice %0 {offsets = [3, 0], sizes = [1, 16], strides = [1, 1]} : vector<49x16xf32> to vector<1x16xf32>
    %26 = vector.shape_cast %25 : vector<1x16xf32> to vector<1x1x16xf32>
    %27 = vector.broadcast %26 : vector<1x1x16xf32> to vector<8x8x16xf32>
    %28 = arith.mulf %24, %27 : vector<8x8x16xf32>
    %29 = arith.addf %22, %28 : vector<8x8x16xf32>
    %c0_20 = arith.constant 0 : index
    %c0_21 = arith.constant 0 : index
    %c0_22 = arith.constant 0 : index
    %c2 = arith.constant 2 : index
    %c0_23 = arith.constant 0 : index
    %30 = vector.load %arg1[%c0_20, %c0_21, %c0_22, %c2, %c0_23] : memref<1x4x11x11x16xf32, #tpu.memory_space<vmem>>, vector<1x1x8x8x16xf32>
    %31 = vector.shape_cast %30 : vector<1x1x8x8x16xf32> to vector<8x8x16xf32>
    %32 = vector.extract_strided_slice %0 {offsets = [4, 0], sizes = [1, 16], strides = [1, 1]} : vector<49x16xf32> to vector<1x16xf32>
    %33 = vector.shape_cast %32 : vector<1x16xf32> to vector<1x1x16xf32>
    %34 = vector.broadcast %33 : vector<1x1x16xf32> to vector<8x8x16xf32>
    %35 = arith.mulf %31, %34 : vector<8x8x16xf32>
    %36 = arith.addf %29, %35 : vector<8x8x16xf32>
    %c0_24 = arith.constant 0 : index
    %c1_25 = arith.constant 1 : index
    %c0_26 = arith.constant 0 : index
    %c2_27 = arith.constant 2 : index
    %c0_28 = arith.constant 0 : index
    %37 = vector.load %arg1[%c0_24, %c1_25, %c0_26, %c2_27, %c0_28] : memref<1x4x11x11x16xf32, #tpu.memory_space<vmem>>, vector<1x1x8x8x16xf32>
    %38 = vector.shape_cast %37 : vector<1x1x8x8x16xf32> to vector<8x8x16xf32>
    %39 = vector.extract_strided_slice %0 {offsets = [5, 0], sizes = [1, 16], strides = [1, 1]} : vector<49x16xf32> to vector<1x16xf32>
    %40 = vector.shape_cast %39 : vector<1x16xf32> to vector<1x1x16xf32>
    %41 = vector.broadcast %40 : vector<1x1x16xf32> to vector<8x8x16xf32>
    %42 = arith.mulf %38, %41 : vector<8x8x16xf32>
    %43 = arith.addf %36, %42 : vector<8x8x16xf32>
    %c0_29 = arith.constant 0 : index
    %c0_30 = arith.constant 0 : index
    %c0_31 = arith.constant 0 : index
    %c3 = arith.constant 3 : index
    %c0_32 = arith.constant 0 : index
    %44 = vector.load %arg1[%c0_29, %c0_30, %c0_31, %c3, %c0_32] : memref<1x4x11x11x16xf32, #tpu.memory_space<vmem>>, vector<1x1x8x8x16xf32>
    %45 = vector.shape_cast %44 : vector<1x1x8x8x16xf32> to vector<8x8x16xf32>
    %46 = vector.extract_strided_slice %0 {offsets = [6, 0], sizes = [1, 16], strides = [1, 1]} : vector<49x16xf32> to vector<1x16xf32>
    %47 = vector.shape_cast %46 : vector<1x16xf32> to vector<1x1x16xf32>
    %48 = vector.broadcast %47 : vector<1x1x16xf32> to vector<8x8x16xf32>
    %49 = arith.mulf %45, %48 : vector<8x8x16xf32>
    %50 = arith.addf %43, %49 : vector<8x8x16xf32>
    %c0_33 = arith.constant 0 : index
    %c2_34 = arith.constant 2 : index
    %c0_35 = arith.constant 0 : index
    %c0_36 = arith.constant 0 : index
    %c0_37 = arith.constant 0 : index
    %51 = vector.load %arg1[%c0_33, %c2_34, %c0_35, %c0_36, %c0_37] : memref<1x4x11x11x16xf32, #tpu.memory_space<vmem>>, vector<1x1x8x8x16xf32>
    %52 = vector.shape_cast %51 : vector<1x1x8x8x16xf32> to vector<8x8x16xf32>
    %53 = vector.extract_strided_slice %0 {offsets = [7, 0], sizes = [1, 16], strides = [1, 1]} : vector<49x16xf32> to vector<1x16xf32>
    %54 = vector.shape_cast %53 : vector<1x16xf32> to vector<1x1x16xf32>
    %55 = vector.broadcast %54 : vector<1x1x16xf32> to vector<8x8x16xf32>
    %56 = arith.mulf %52, %55 : vector<8x8x16xf32>
    %57 = arith.addf %50, %56 : vector<8x8x16xf32>
    %c0_38 = arith.constant 0 : index
    %c3_39 = arith.constant 3 : index
    %c0_40 = arith.constant 0 : index
    %c0_41 = arith.constant 0 : index
    %c0_42 = arith.constant 0 : index
    %58 = vector.load %arg1[%c0_38, %c3_39, %c0_40, %c0_41, %c0_42] : memref<1x4x11x11x16xf32, #tpu.memory_space<vmem>>, vector<1x1x8x8x16xf32>
    %59 = vector.shape_cast %58 : vector<1x1x8x8x16xf32> to vector<8x8x16xf32>
    %60 = vector.extract_strided_slice %0 {offsets = [8, 0], sizes = [1, 16], strides = [1, 1]} : vector<49x16xf32> to vector<1x16xf32>
    %61 = vector.shape_cast %60 : vector<1x16xf32> to vector<1x1x16xf32>
    %62 = vector.broadcast %61 : vector<1x1x16xf32> to vector<8x8x16xf32>
    %63 = arith.mulf %59, %62 : vector<8x8x16xf32>
    %64 = arith.addf %57, %63 : vector<8x8x16xf32>
    %c0_43 = arith.constant 0 : index
    %c2_44 = arith.constant 2 : index
    %c0_45 = arith.constant 0 : index
    %c1_46 = arith.constant 1 : index
    %c0_47 = arith.constant 0 : index
    %65 = vector.load %arg1[%c0_43, %c2_44, %c0_45, %c1_46, %c0_47] : memref<1x4x11x11x16xf32, #tpu.memory_space<vmem>>, vector<1x1x8x8x16xf32>
    %66 = vector.shape_cast %65 : vector<1x1x8x8x16xf32> to vector<8x8x16xf32>
    %67 = vector.extract_strided_slice %0 {offsets = [9, 0], sizes = [1, 16], strides = [1, 1]} : vector<49x16xf32> to vector<1x16xf32>
    %68 = vector.shape_cast %67 : vector<1x16xf32> to vector<1x1x16xf32>
    %69 = vector.broadcast %68 : vector<1x1x16xf32> to vector<8x8x16xf32>
    %70 = arith.mulf %66, %69 : vector<8x8x16xf32>
    %71 = arith.addf %64, %70 : vector<8x8x16xf32>
    %c0_48 = arith.constant 0 : index
    %c3_49 = arith.constant 3 : index
    %c0_50 = arith.constant 0 : index
    %c1_51 = arith.constant 1 : index
    %c0_52 = arith.constant 0 : index
    %72 = vector.load %arg1[%c0_48, %c3_49, %c0_50, %c1_51, %c0_52] : memref<1x4x11x11x16xf32, #tpu.memory_space<vmem>>, vector<1x1x8x8x16xf32>
    %73 = vector.shape_cast %72 : vector<1x1x8x8x16xf32> to vector<8x8x16xf32>
    %74 = vector.extract_strided_slice %0 {offsets = [10, 0], sizes = [1, 16], strides = [1, 1]} : vector<49x16xf32> to vector<1x16xf32>
    %75 = vector.shape_cast %74 : vector<1x16xf32> to vector<1x1x16xf32>
    %76 = vector.broadcast %75 : vector<1x1x16xf32> to vector<8x8x16xf32>
    %77 = arith.mulf %73, %76 : vector<8x8x16xf32>
    %78 = arith.addf %71, %77 : vector<8x8x16xf32>
    %c0_53 = arith.constant 0 : index
    %c2_54 = arith.constant 2 : index
    %c0_55 = arith.constant 0 : index
    %c2_56 = arith.constant 2 : index
    %c0_57 = arith.constant 0 : index
    %79 = vector.load %arg1[%c0_53, %c2_54, %c0_55, %c2_56, %c0_57] : memref<1x4x11x11x16xf32, #tpu.memory_space<vmem>>, vector<1x1x8x8x16xf32>
    %80 = vector.shape_cast %79 : vector<1x1x8x8x16xf32> to vector<8x8x16xf32>
    %81 = vector.extract_strided_slice %0 {offsets = [11, 0], sizes = [1, 16], strides = [1, 1]} : vector<49x16xf32> to vector<1x16xf32>
    %82 = vector.shape_cast %81 : vector<1x16xf32> to vector<1x1x16xf32>
    %83 = vector.broadcast %82 : vector<1x1x16xf32> to vector<8x8x16xf32>
    %84 = arith.mulf %80, %83 : vector<8x8x16xf32>
    %85 = arith.addf %78, %84 : vector<8x8x16xf32>
    %c0_58 = arith.constant 0 : index
    %c3_59 = arith.constant 3 : index
    %c0_60 = arith.constant 0 : index
    %c2_61 = arith.constant 2 : index
    %c0_62 = arith.constant 0 : index
    %86 = vector.load %arg1[%c0_58, %c3_59, %c0_60, %c2_61, %c0_62] : memref<1x4x11x11x16xf32, #tpu.memory_space<vmem>>, vector<1x1x8x8x16xf32>
    %87 = vector.shape_cast %86 : vector<1x1x8x8x16xf32> to vector<8x8x16xf32>
    %88 = vector.extract_strided_slice %0 {offsets = [12, 0], sizes = [1, 16], strides = [1, 1]} : vector<49x16xf32> to vector<1x16xf32>
    %89 = vector.shape_cast %88 : vector<1x16xf32> to vector<1x1x16xf32>
    %90 = vector.broadcast %89 : vector<1x1x16xf32> to vector<8x8x16xf32>
    %91 = arith.mulf %87, %90 : vector<8x8x16xf32>
    %92 = arith.addf %85, %91 : vector<8x8x16xf32>
    %c0_63 = arith.constant 0 : index
    %c2_64 = arith.constant 2 : index
    %c0_65 = arith.constant 0 : index
    %c3_66 = arith.constant 3 : index
    %c0_67 = arith.constant 0 : index
    %93 = vector.load %arg1[%c0_63, %c2_64, %c0_65, %c3_66, %c0_67] : memref<1x4x11x11x16xf32, #tpu.memory_space<vmem>>, vector<1x1x8x8x16xf32>
    %94 = vector.shape_cast %93 : vector<1x1x8x8x16xf32> to vector<8x8x16xf32>
    %95 = vector.extract_strided_slice %0 {offsets = [13, 0], sizes = [1, 16], strides = [1, 1]} : vector<49x16xf32> to vector<1x16xf32>
    %96 = vector.shape_cast %95 : vector<1x16xf32> to vector<1x1x16xf32>
    %97 = vector.broadcast %96 : vector<1x1x16xf32> to vector<8x8x16xf32>
    %98 = arith.mulf %94, %97 : vector<8x8x16xf32>
    %99 = arith.addf %92, %98 : vector<8x8x16xf32>
    %c0_68 = arith.constant 0 : index
    %c0_69 = arith.constant 0 : index
    %c1_70 = arith.constant 1 : index
    %c0_71 = arith.constant 0 : index
    %c0_72 = arith.constant 0 : index
    %100 = vector.load %arg1[%c0_68, %c0_69, %c1_70, %c0_71, %c0_72] : memref<1x4x11x11x16xf32, #tpu.memory_space<vmem>>, vector<1x1x8x8x16xf32>
    %101 = vector.shape_cast %100 : vector<1x1x8x8x16xf32> to vector<8x8x16xf32>
    %102 = vector.extract_strided_slice %0 {offsets = [14, 0], sizes = [1, 16], strides = [1, 1]} : vector<49x16xf32> to vector<1x16xf32>
    %103 = vector.shape_cast %102 : vector<1x16xf32> to vector<1x1x16xf32>
    %104 = vector.broadcast %103 : vector<1x1x16xf32> to vector<8x8x16xf32>
    %105 = arith.mulf %101, %104 : vector<8x8x16xf32>
    %106 = arith.addf %99, %105 : vector<8x8x16xf32>
    %c0_73 = arith.constant 0 : index
    %c1_74 = arith.constant 1 : index
    %c1_75 = arith.constant 1 : index
    %c0_76 = arith.constant 0 : index
    %c0_77 = arith.constant 0 : index
    %107 = vector.load %arg1[%c0_73, %c1_74, %c1_75, %c0_76, %c0_77] : memref<1x4x11x11x16xf32, #tpu.memory_space<vmem>>, vector<1x1x8x8x16xf32>
    %108 = vector.shape_cast %107 : vector<1x1x8x8x16xf32> to vector<8x8x16xf32>
    %109 = vector.extract_strided_slice %0 {offsets = [15, 0], sizes = [1, 16], strides = [1, 1]} : vector<49x16xf32> to vector<1x16xf32>
    %110 = vector.shape_cast %109 : vector<1x16xf32> to vector<1x1x16xf32>
    %111 = vector.broadcast %110 : vector<1x1x16xf32> to vector<8x8x16xf32>
    %112 = arith.mulf %108, %111 : vector<8x8x16xf32>
    %113 = arith.addf %106, %112 : vector<8x8x16xf32>
    %c0_78 = arith.constant 0 : index
    %c0_79 = arith.constant 0 : index
    %c1_80 = arith.constant 1 : index
    %c1_81 = arith.constant 1 : index
    %c0_82 = arith.constant 0 : index
    %114 = vector.load %arg1[%c0_78, %c0_79, %c1_80, %c1_81, %c0_82] : memref<1x4x11x11x16xf32, #tpu.memory_space<vmem>>, vector<1x1x8x8x16xf32>
    %115 = vector.shape_cast %114 : vector<1x1x8x8x16xf32> to vector<8x8x16xf32>
    %116 = vector.extract_strided_slice %0 {offsets = [16, 0], sizes = [1, 16], strides = [1, 1]} : vector<49x16xf32> to vector<1x16xf32>
    %117 = vector.shape_cast %116 : vector<1x16xf32> to vector<1x1x16xf32>
    %118 = vector.broadcast %117 : vector<1x1x16xf32> to vector<8x8x16xf32>
    %119 = arith.mulf %115, %118 : vector<8x8x16xf32>
    %120 = arith.addf %113, %119 : vector<8x8x16xf32>
    %c0_83 = arith.constant 0 : index
    %c1_84 = arith.constant 1 : index
    %c1_85 = arith.constant 1 : index
    %c1_86 = arith.constant 1 : index
    %c0_87 = arith.constant 0 : index
    %121 = vector.load %arg1[%c0_83, %c1_84, %c1_85, %c1_86, %c0_87] : memref<1x4x11x11x16xf32, #tpu.memory_space<vmem>>, vector<1x1x8x8x16xf32>
    %122 = vector.shape_cast %121 : vector<1x1x8x8x16xf32> to vector<8x8x16xf32>
    %123 = vector.extract_strided_slice %0 {offsets = [17, 0], sizes = [1, 16], strides = [1, 1]} : vector<49x16xf32> to vector<1x16xf32>
    %124 = vector.shape_cast %123 : vector<1x16xf32> to vector<1x1x16xf32>
    %125 = vector.broadcast %124 : vector<1x1x16xf32> to vector<8x8x16xf32>
    %126 = arith.mulf %122, %125 : vector<8x8x16xf32>
    %127 = arith.addf %120, %126 : vector<8x8x16xf32>
    %c0_88 = arith.constant 0 : index
    %c0_89 = arith.constant 0 : index
    %c1_90 = arith.constant 1 : index
    %c2_91 = arith.constant 2 : index
    %c0_92 = arith.constant 0 : index
    %128 = vector.load %arg1[%c0_88, %c0_89, %c1_90, %c2_91, %c0_92] : memref<1x4x11x11x16xf32, #tpu.memory_space<vmem>>, vector<1x1x8x8x16xf32>
    %129 = vector.shape_cast %128 : vector<1x1x8x8x16xf32> to vector<8x8x16xf32>
    %130 = vector.extract_strided_slice %0 {offsets = [18, 0], sizes = [1, 16], strides = [1, 1]} : vector<49x16xf32> to vector<1x16xf32>
    %131 = vector.shape_cast %130 : vector<1x16xf32> to vector<1x1x16xf32>
    %132 = vector.broadcast %131 : vector<1x1x16xf32> to vector<8x8x16xf32>
    %133 = arith.mulf %129, %132 : vector<8x8x16xf32>
    %134 = arith.addf %127, %133 : vector<8x8x16xf32>
    %c0_93 = arith.constant 0 : index
    %c1_94 = arith.constant 1 : index
    %c1_95 = arith.constant 1 : index
    %c2_96 = arith.constant 2 : index
    %c0_97 = arith.constant 0 : index
    %135 = vector.load %arg1[%c0_93, %c1_94, %c1_95, %c2_96, %c0_97] : memref<1x4x11x11x16xf32, #tpu.memory_space<vmem>>, vector<1x1x8x8x16xf32>
    %136 = vector.shape_cast %135 : vector<1x1x8x8x16xf32> to vector<8x8x16xf32>
    %137 = vector.extract_strided_slice %0 {offsets = [19, 0], sizes = [1, 16], strides = [1, 1]} : vector<49x16xf32> to vector<1x16xf32>
    %138 = vector.shape_cast %137 : vector<1x16xf32> to vector<1x1x16xf32>
    %139 = vector.broadcast %138 : vector<1x1x16xf32> to vector<8x8x16xf32>
    %140 = arith.mulf %136, %139 : vector<8x8x16xf32>
    %141 = arith.addf %134, %140 : vector<8x8x16xf32>
    %c0_98 = arith.constant 0 : index
    %c0_99 = arith.constant 0 : index
    %c1_100 = arith.constant 1 : index
    %c3_101 = arith.constant 3 : index
    %c0_102 = arith.constant 0 : index
    %142 = vector.load %arg1[%c0_98, %c0_99, %c1_100, %c3_101, %c0_102] : memref<1x4x11x11x16xf32, #tpu.memory_space<vmem>>, vector<1x1x8x8x16xf32>
    %143 = vector.shape_cast %142 : vector<1x1x8x8x16xf32> to vector<8x8x16xf32>
    %144 = vector.extract_strided_slice %0 {offsets = [20, 0], sizes = [1, 16], strides = [1, 1]} : vector<49x16xf32> to vector<1x16xf32>
    %145 = vector.shape_cast %144 : vector<1x16xf32> to vector<1x1x16xf32>
    %146 = vector.broadcast %145 : vector<1x1x16xf32> to vector<8x8x16xf32>
    %147 = arith.mulf %143, %146 : vector<8x8x16xf32>
    %148 = arith.addf %141, %147 : vector<8x8x16xf32>
    %c0_103 = arith.constant 0 : index
    %c2_104 = arith.constant 2 : index
    %c1_105 = arith.constant 1 : index
    %c0_106 = arith.constant 0 : index
    %c0_107 = arith.constant 0 : index
    %149 = vector.load %arg1[%c0_103, %c2_104, %c1_105, %c0_106, %c0_107] : memref<1x4x11x11x16xf32, #tpu.memory_space<vmem>>, vector<1x1x8x8x16xf32>
    %150 = vector.shape_cast %149 : vector<1x1x8x8x16xf32> to vector<8x8x16xf32>
    %151 = vector.extract_strided_slice %0 {offsets = [21, 0], sizes = [1, 16], strides = [1, 1]} : vector<49x16xf32> to vector<1x16xf32>
    %152 = vector.shape_cast %151 : vector<1x16xf32> to vector<1x1x16xf32>
    %153 = vector.broadcast %152 : vector<1x1x16xf32> to vector<8x8x16xf32>
    %154 = arith.mulf %150, %153 : vector<8x8x16xf32>
    %155 = arith.addf %148, %154 : vector<8x8x16xf32>
    %c0_108 = arith.constant 0 : index
    %c3_109 = arith.constant 3 : index
    %c1_110 = arith.constant 1 : index
    %c0_111 = arith.constant 0 : index
    %c0_112 = arith.constant 0 : index
    %156 = vector.load %arg1[%c0_108, %c3_109, %c1_110, %c0_111, %c0_112] : memref<1x4x11x11x16xf32, #tpu.memory_space<vmem>>, vector<1x1x8x8x16xf32>
    %157 = vector.shape_cast %156 : vector<1x1x8x8x16xf32> to vector<8x8x16xf32>
    %158 = vector.extract_strided_slice %0 {offsets = [22, 0], sizes = [1, 16], strides = [1, 1]} : vector<49x16xf32> to vector<1x16xf32>
    %159 = vector.shape_cast %158 : vector<1x16xf32> to vector<1x1x16xf32>
    %160 = vector.broadcast %159 : vector<1x1x16xf32> to vector<8x8x16xf32>
    %161 = arith.mulf %157, %160 : vector<8x8x16xf32>
    %162 = arith.addf %155, %161 : vector<8x8x16xf32>
    %c0_113 = arith.constant 0 : index
    %c2_114 = arith.constant 2 : index
    %c1_115 = arith.constant 1 : index
    %c1_116 = arith.constant 1 : index
    %c0_117 = arith.constant 0 : index
    %163 = vector.load %arg1[%c0_113, %c2_114, %c1_115, %c1_116, %c0_117] : memref<1x4x11x11x16xf32, #tpu.memory_space<vmem>>, vector<1x1x8x8x16xf32>
    %164 = vector.shape_cast %163 : vector<1x1x8x8x16xf32> to vector<8x8x16xf32>
    %165 = vector.extract_strided_slice %0 {offsets = [23, 0], sizes = [1, 16], strides = [1, 1]} : vector<49x16xf32> to vector<1x16xf32>
    %166 = vector.shape_cast %165 : vector<1x16xf32> to vector<1x1x16xf32>
    %167 = vector.broadcast %166 : vector<1x1x16xf32> to vector<8x8x16xf32>
    %168 = arith.mulf %164, %167 : vector<8x8x16xf32>
    %169 = arith.addf %162, %168 : vector<8x8x16xf32>
    %c0_118 = arith.constant 0 : index
    %c3_119 = arith.constant 3 : index
    %c1_120 = arith.constant 1 : index
    %c1_121 = arith.constant 1 : index
    %c0_122 = arith.constant 0 : index
    %170 = vector.load %arg1[%c0_118, %c3_119, %c1_120, %c1_121, %c0_122] : memref<1x4x11x11x16xf32, #tpu.memory_space<vmem>>, vector<1x1x8x8x16xf32>
    %171 = vector.shape_cast %170 : vector<1x1x8x8x16xf32> to vector<8x8x16xf32>
    %172 = vector.extract_strided_slice %0 {offsets = [24, 0], sizes = [1, 16], strides = [1, 1]} : vector<49x16xf32> to vector<1x16xf32>
    %173 = vector.shape_cast %172 : vector<1x16xf32> to vector<1x1x16xf32>
    %174 = vector.broadcast %173 : vector<1x1x16xf32> to vector<8x8x16xf32>
    %175 = arith.mulf %171, %174 : vector<8x8x16xf32>
    %176 = arith.addf %169, %175 : vector<8x8x16xf32>
    %c0_123 = arith.constant 0 : index
    %c2_124 = arith.constant 2 : index
    %c1_125 = arith.constant 1 : index
    %c2_126 = arith.constant 2 : index
    %c0_127 = arith.constant 0 : index
    %177 = vector.load %arg1[%c0_123, %c2_124, %c1_125, %c2_126, %c0_127] : memref<1x4x11x11x16xf32, #tpu.memory_space<vmem>>, vector<1x1x8x8x16xf32>
    %178 = vector.shape_cast %177 : vector<1x1x8x8x16xf32> to vector<8x8x16xf32>
    %179 = vector.extract_strided_slice %0 {offsets = [25, 0], sizes = [1, 16], strides = [1, 1]} : vector<49x16xf32> to vector<1x16xf32>
    %180 = vector.shape_cast %179 : vector<1x16xf32> to vector<1x1x16xf32>
    %181 = vector.broadcast %180 : vector<1x1x16xf32> to vector<8x8x16xf32>
    %182 = arith.mulf %178, %181 : vector<8x8x16xf32>
    %183 = arith.addf %176, %182 : vector<8x8x16xf32>
    %c0_128 = arith.constant 0 : index
    %c3_129 = arith.constant 3 : index
    %c1_130 = arith.constant 1 : index
    %c2_131 = arith.constant 2 : index
    %c0_132 = arith.constant 0 : index
    %184 = vector.load %arg1[%c0_128, %c3_129, %c1_130, %c2_131, %c0_132] : memref<1x4x11x11x16xf32, #tpu.memory_space<vmem>>, vector<1x1x8x8x16xf32>
    %185 = vector.shape_cast %184 : vector<1x1x8x8x16xf32> to vector<8x8x16xf32>
    %186 = vector.extract_strided_slice %0 {offsets = [26, 0], sizes = [1, 16], strides = [1, 1]} : vector<49x16xf32> to vector<1x16xf32>
    %187 = vector.shape_cast %186 : vector<1x16xf32> to vector<1x1x16xf32>
    %188 = vector.broadcast %187 : vector<1x1x16xf32> to vector<8x8x16xf32>
    %189 = arith.mulf %185, %188 : vector<8x8x16xf32>
    %190 = arith.addf %183, %189 : vector<8x8x16xf32>
    %c0_133 = arith.constant 0 : index
    %c2_134 = arith.constant 2 : index
    %c1_135 = arith.constant 1 : index
    %c3_136 = arith.constant 3 : index
    %c0_137 = arith.constant 0 : index
    %191 = vector.load %arg1[%c0_133, %c2_134, %c1_135, %c3_136, %c0_137] : memref<1x4x11x11x16xf32, #tpu.memory_space<vmem>>, vector<1x1x8x8x16xf32>
    %192 = vector.shape_cast %191 : vector<1x1x8x8x16xf32> to vector<8x8x16xf32>
    %193 = vector.extract_strided_slice %0 {offsets = [27, 0], sizes = [1, 16], strides = [1, 1]} : vector<49x16xf32> to vector<1x16xf32>
    %194 = vector.shape_cast %193 : vector<1x16xf32> to vector<1x1x16xf32>
    %195 = vector.broadcast %194 : vector<1x1x16xf32> to vector<8x8x16xf32>
    %196 = arith.mulf %192, %195 : vector<8x8x16xf32>
    %197 = arith.addf %190, %196 : vector<8x8x16xf32>
    %c0_138 = arith.constant 0 : index
    %c0_139 = arith.constant 0 : index
    %c2_140 = arith.constant 2 : index
    %c0_141 = arith.constant 0 : index
    %c0_142 = arith.constant 0 : index
    %198 = vector.load %arg1[%c0_138, %c0_139, %c2_140, %c0_141, %c0_142] : memref<1x4x11x11x16xf32, #tpu.memory_space<vmem>>, vector<1x1x8x8x16xf32>
    %199 = vector.shape_cast %198 : vector<1x1x8x8x16xf32> to vector<8x8x16xf32>
    %200 = vector.extract_strided_slice %0 {offsets = [28, 0], sizes = [1, 16], strides = [1, 1]} : vector<49x16xf32> to vector<1x16xf32>
    %201 = vector.shape_cast %200 : vector<1x16xf32> to vector<1x1x16xf32>
    %202 = vector.broadcast %201 : vector<1x1x16xf32> to vector<8x8x16xf32>
    %203 = arith.mulf %199, %202 : vector<8x8x16xf32>
    %204 = arith.addf %197, %203 : vector<8x8x16xf32>
    %c0_143 = arith.constant 0 : index
    %c1_144 = arith.constant 1 : index
    %c2_145 = arith.constant 2 : index
    %c0_146 = arith.constant 0 : index
    %c0_147 = arith.constant 0 : index
    %205 = vector.load %arg1[%c0_143, %c1_144, %c2_145, %c0_146, %c0_147] : memref<1x4x11x11x16xf32, #tpu.memory_space<vmem>>, vector<1x1x8x8x16xf32>
    %206 = vector.shape_cast %205 : vector<1x1x8x8x16xf32> to vector<8x8x16xf32>
    %207 = vector.extract_strided_slice %0 {offsets = [29, 0], sizes = [1, 16], strides = [1, 1]} : vector<49x16xf32> to vector<1x16xf32>
    %208 = vector.shape_cast %207 : vector<1x16xf32> to vector<1x1x16xf32>
    %209 = vector.broadcast %208 : vector<1x1x16xf32> to vector<8x8x16xf32>
    %210 = arith.mulf %206, %209 : vector<8x8x16xf32>
    %211 = arith.addf %204, %210 : vector<8x8x16xf32>
    %c0_148 = arith.constant 0 : index
    %c0_149 = arith.constant 0 : index
    %c2_150 = arith.constant 2 : index
    %c1_151 = arith.constant 1 : index
    %c0_152 = arith.constant 0 : index
    %212 = vector.load %arg1[%c0_148, %c0_149, %c2_150, %c1_151, %c0_152] : memref<1x4x11x11x16xf32, #tpu.memory_space<vmem>>, vector<1x1x8x8x16xf32>
    %213 = vector.shape_cast %212 : vector<1x1x8x8x16xf32> to vector<8x8x16xf32>
    %214 = vector.extract_strided_slice %0 {offsets = [30, 0], sizes = [1, 16], strides = [1, 1]} : vector<49x16xf32> to vector<1x16xf32>
    %215 = vector.shape_cast %214 : vector<1x16xf32> to vector<1x1x16xf32>
    %216 = vector.broadcast %215 : vector<1x1x16xf32> to vector<8x8x16xf32>
    %217 = arith.mulf %213, %216 : vector<8x8x16xf32>
    %218 = arith.addf %211, %217 : vector<8x8x16xf32>
    %c0_153 = arith.constant 0 : index
    %c1_154 = arith.constant 1 : index
    %c2_155 = arith.constant 2 : index
    %c1_156 = arith.constant 1 : index
    %c0_157 = arith.constant 0 : index
    %219 = vector.load %arg1[%c0_153, %c1_154, %c2_155, %c1_156, %c0_157] : memref<1x4x11x11x16xf32, #tpu.memory_space<vmem>>, vector<1x1x8x8x16xf32>
    %220 = vector.shape_cast %219 : vector<1x1x8x8x16xf32> to vector<8x8x16xf32>
    %221 = vector.extract_strided_slice %0 {offsets = [31, 0], sizes = [1, 16], strides = [1, 1]} : vector<49x16xf32> to vector<1x16xf32>
    %222 = vector.shape_cast %221 : vector<1x16xf32> to vector<1x1x16xf32>
    %223 = vector.broadcast %222 : vector<1x1x16xf32> to vector<8x8x16xf32>
    %224 = arith.mulf %220, %223 : vector<8x8x16xf32>
    %225 = arith.addf %218, %224 : vector<8x8x16xf32>
    %c0_158 = arith.constant 0 : index
    %c0_159 = arith.constant 0 : index
    %c2_160 = arith.constant 2 : index
    %c2_161 = arith.constant 2 : index
    %c0_162 = arith.constant 0 : index
    %226 = vector.load %arg1[%c0_158, %c0_159, %c2_160, %c2_161, %c0_162] : memref<1x4x11x11x16xf32, #tpu.memory_space<vmem>>, vector<1x1x8x8x16xf32>
    %227 = vector.shape_cast %226 : vector<1x1x8x8x16xf32> to vector<8x8x16xf32>
    %228 = vector.extract_strided_slice %0 {offsets = [32, 0], sizes = [1, 16], strides = [1, 1]} : vector<49x16xf32> to vector<1x16xf32>
    %229 = vector.shape_cast %228 : vector<1x16xf32> to vector<1x1x16xf32>
    %230 = vector.broadcast %229 : vector<1x1x16xf32> to vector<8x8x16xf32>
    %231 = arith.mulf %227, %230 : vector<8x8x16xf32>
    %232 = arith.addf %225, %231 : vector<8x8x16xf32>
    %c0_163 = arith.constant 0 : index
    %c1_164 = arith.constant 1 : index
    %c2_165 = arith.constant 2 : index
    %c2_166 = arith.constant 2 : index
    %c0_167 = arith.constant 0 : index
    %233 = vector.load %arg1[%c0_163, %c1_164, %c2_165, %c2_166, %c0_167] : memref<1x4x11x11x16xf32, #tpu.memory_space<vmem>>, vector<1x1x8x8x16xf32>
    %234 = vector.shape_cast %233 : vector<1x1x8x8x16xf32> to vector<8x8x16xf32>
    %235 = vector.extract_strided_slice %0 {offsets = [33, 0], sizes = [1, 16], strides = [1, 1]} : vector<49x16xf32> to vector<1x16xf32>
    %236 = vector.shape_cast %235 : vector<1x16xf32> to vector<1x1x16xf32>
    %237 = vector.broadcast %236 : vector<1x1x16xf32> to vector<8x8x16xf32>
    %238 = arith.mulf %234, %237 : vector<8x8x16xf32>
    %239 = arith.addf %232, %238 : vector<8x8x16xf32>
    %c0_168 = arith.constant 0 : index
    %c0_169 = arith.constant 0 : index
    %c2_170 = arith.constant 2 : index
    %c3_171 = arith.constant 3 : index
    %c0_172 = arith.constant 0 : index
    %240 = vector.load %arg1[%c0_168, %c0_169, %c2_170, %c3_171, %c0_172] : memref<1x4x11x11x16xf32, #tpu.memory_space<vmem>>, vector<1x1x8x8x16xf32>
    %241 = vector.shape_cast %240 : vector<1x1x8x8x16xf32> to vector<8x8x16xf32>
    %242 = vector.extract_strided_slice %0 {offsets = [34, 0], sizes = [1, 16], strides = [1, 1]} : vector<49x16xf32> to vector<1x16xf32>
    %243 = vector.shape_cast %242 : vector<1x16xf32> to vector<1x1x16xf32>
    %244 = vector.broadcast %243 : vector<1x1x16xf32> to vector<8x8x16xf32>
    %245 = arith.mulf %241, %244 : vector<8x8x16xf32>
    %246 = arith.addf %239, %245 : vector<8x8x16xf32>
    %c0_173 = arith.constant 0 : index
    %c2_174 = arith.constant 2 : index
    %c2_175 = arith.constant 2 : index
    %c0_176 = arith.constant 0 : index
    %c0_177 = arith.constant 0 : index
    %247 = vector.load %arg1[%c0_173, %c2_174, %c2_175, %c0_176, %c0_177] : memref<1x4x11x11x16xf32, #tpu.memory_space<vmem>>, vector<1x1x8x8x16xf32>
    %248 = vector.shape_cast %247 : vector<1x1x8x8x16xf32> to vector<8x8x16xf32>
    %249 = vector.extract_strided_slice %0 {offsets = [35, 0], sizes = [1, 16], strides = [1, 1]} : vector<49x16xf32> to vector<1x16xf32>
    %250 = vector.shape_cast %249 : vector<1x16xf32> to vector<1x1x16xf32>
    %251 = vector.broadcast %250 : vector<1x1x16xf32> to vector<8x8x16xf32>
    %252 = arith.mulf %248, %251 : vector<8x8x16xf32>
    %253 = arith.addf %246, %252 : vector<8x8x16xf32>
    %c0_178 = arith.constant 0 : index
    %c3_179 = arith.constant 3 : index
    %c2_180 = arith.constant 2 : index
    %c0_181 = arith.constant 0 : index
    %c0_182 = arith.constant 0 : index
    %254 = vector.load %arg1[%c0_178, %c3_179, %c2_180, %c0_181, %c0_182] : memref<1x4x11x11x16xf32, #tpu.memory_space<vmem>>, vector<1x1x8x8x16xf32>
    %255 = vector.shape_cast %254 : vector<1x1x8x8x16xf32> to vector<8x8x16xf32>
    %256 = vector.extract_strided_slice %0 {offsets = [36, 0], sizes = [1, 16], strides = [1, 1]} : vector<49x16xf32> to vector<1x16xf32>
    %257 = vector.shape_cast %256 : vector<1x16xf32> to vector<1x1x16xf32>
    %258 = vector.broadcast %257 : vector<1x1x16xf32> to vector<8x8x16xf32>
    %259 = arith.mulf %255, %258 : vector<8x8x16xf32>
    %260 = arith.addf %253, %259 : vector<8x8x16xf32>
    %c0_183 = arith.constant 0 : index
    %c2_184 = arith.constant 2 : index
    %c2_185 = arith.constant 2 : index
    %c1_186 = arith.constant 1 : index
    %c0_187 = arith.constant 0 : index
    %261 = vector.load %arg1[%c0_183, %c2_184, %c2_185, %c1_186, %c0_187] : memref<1x4x11x11x16xf32, #tpu.memory_space<vmem>>, vector<1x1x8x8x16xf32>
    %262 = vector.shape_cast %261 : vector<1x1x8x8x16xf32> to vector<8x8x16xf32>
    %263 = vector.extract_strided_slice %0 {offsets = [37, 0], sizes = [1, 16], strides = [1, 1]} : vector<49x16xf32> to vector<1x16xf32>
    %264 = vector.shape_cast %263 : vector<1x16xf32> to vector<1x1x16xf32>
    %265 = vector.broadcast %264 : vector<1x1x16xf32> to vector<8x8x16xf32>
    %266 = arith.mulf %262, %265 : vector<8x8x16xf32>
    %267 = arith.addf %260, %266 : vector<8x8x16xf32>
    %c0_188 = arith.constant 0 : index
    %c3_189 = arith.constant 3 : index
    %c2_190 = arith.constant 2 : index
    %c1_191 = arith.constant 1 : index
    %c0_192 = arith.constant 0 : index
    %268 = vector.load %arg1[%c0_188, %c3_189, %c2_190, %c1_191, %c0_192] : memref<1x4x11x11x16xf32, #tpu.memory_space<vmem>>, vector<1x1x8x8x16xf32>
    %269 = vector.shape_cast %268 : vector<1x1x8x8x16xf32> to vector<8x8x16xf32>
    %270 = vector.extract_strided_slice %0 {offsets = [38, 0], sizes = [1, 16], strides = [1, 1]} : vector<49x16xf32> to vector<1x16xf32>
    %271 = vector.shape_cast %270 : vector<1x16xf32> to vector<1x1x16xf32>
    %272 = vector.broadcast %271 : vector<1x1x16xf32> to vector<8x8x16xf32>
    %273 = arith.mulf %269, %272 : vector<8x8x16xf32>
    %274 = arith.addf %267, %273 : vector<8x8x16xf32>
    %c0_193 = arith.constant 0 : index
    %c2_194 = arith.constant 2 : index
    %c2_195 = arith.constant 2 : index
    %c2_196 = arith.constant 2 : index
    %c0_197 = arith.constant 0 : index
    %275 = vector.load %arg1[%c0_193, %c2_194, %c2_195, %c2_196, %c0_197] : memref<1x4x11x11x16xf32, #tpu.memory_space<vmem>>, vector<1x1x8x8x16xf32>
    %276 = vector.shape_cast %275 : vector<1x1x8x8x16xf32> to vector<8x8x16xf32>
    %277 = vector.extract_strided_slice %0 {offsets = [39, 0], sizes = [1, 16], strides = [1, 1]} : vector<49x16xf32> to vector<1x16xf32>
    %278 = vector.shape_cast %277 : vector<1x16xf32> to vector<1x1x16xf32>
    %279 = vector.broadcast %278 : vector<1x1x16xf32> to vector<8x8x16xf32>
    %280 = arith.mulf %276, %279 : vector<8x8x16xf32>
    %281 = arith.addf %274, %280 : vector<8x8x16xf32>
    %c0_198 = arith.constant 0 : index
    %c3_199 = arith.constant 3 : index
    %c2_200 = arith.constant 2 : index
    %c2_201 = arith.constant 2 : index
    %c0_202 = arith.constant 0 : index
    %282 = vector.load %arg1[%c0_198, %c3_199, %c2_200, %c2_201, %c0_202] : memref<1x4x11x11x16xf32, #tpu.memory_space<vmem>>, vector<1x1x8x8x16xf32>
    %283 = vector.shape_cast %282 : vector<1x1x8x8x16xf32> to vector<8x8x16xf32>
    %284 = vector.extract_strided_slice %0 {offsets = [40, 0], sizes = [1, 16], strides = [1, 1]} : vector<49x16xf32> to vector<1x16xf32>
    %285 = vector.shape_cast %284 : vector<1x16xf32> to vector<1x1x16xf32>
    %286 = vector.broadcast %285 : vector<1x1x16xf32> to vector<8x8x16xf32>
    %287 = arith.mulf %283, %286 : vector<8x8x16xf32>
    %288 = arith.addf %281, %287 : vector<8x8x16xf32>
    %c0_203 = arith.constant 0 : index
    %c2_204 = arith.constant 2 : index
    %c2_205 = arith.constant 2 : index
    %c3_206 = arith.constant 3 : index
    %c0_207 = arith.constant 0 : index
    %289 = vector.load %arg1[%c0_203, %c2_204, %c2_205, %c3_206, %c0_207] : memref<1x4x11x11x16xf32, #tpu.memory_space<vmem>>, vector<1x1x8x8x16xf32>
    %290 = vector.shape_cast %289 : vector<1x1x8x8x16xf32> to vector<8x8x16xf32>
    %291 = vector.extract_strided_slice %0 {offsets = [41, 0], sizes = [1, 16], strides = [1, 1]} : vector<49x16xf32> to vector<1x16xf32>
    %292 = vector.shape_cast %291 : vector<1x16xf32> to vector<1x1x16xf32>
    %293 = vector.broadcast %292 : vector<1x1x16xf32> to vector<8x8x16xf32>
    %294 = arith.mulf %290, %293 : vector<8x8x16xf32>
    %295 = arith.addf %288, %294 : vector<8x8x16xf32>
    %c0_208 = arith.constant 0 : index
    %c0_209 = arith.constant 0 : index
    %c3_210 = arith.constant 3 : index
    %c0_211 = arith.constant 0 : index
    %c0_212 = arith.constant 0 : index
    %296 = vector.load %arg1[%c0_208, %c0_209, %c3_210, %c0_211, %c0_212] : memref<1x4x11x11x16xf32, #tpu.memory_space<vmem>>, vector<1x1x8x8x16xf32>
    %297 = vector.shape_cast %296 : vector<1x1x8x8x16xf32> to vector<8x8x16xf32>
    %298 = vector.extract_strided_slice %0 {offsets = [42, 0], sizes = [1, 16], strides = [1, 1]} : vector<49x16xf32> to vector<1x16xf32>
    %299 = vector.shape_cast %298 : vector<1x16xf32> to vector<1x1x16xf32>
    %300 = vector.broadcast %299 : vector<1x1x16xf32> to vector<8x8x16xf32>
    %301 = arith.mulf %297, %300 : vector<8x8x16xf32>
    %302 = arith.addf %295, %301 : vector<8x8x16xf32>
    %c0_213 = arith.constant 0 : index
    %c1_214 = arith.constant 1 : index
    %c3_215 = arith.constant 3 : index
    %c0_216 = arith.constant 0 : index
    %c0_217 = arith.constant 0 : index
    %303 = vector.load %arg1[%c0_213, %c1_214, %c3_215, %c0_216, %c0_217] : memref<1x4x11x11x16xf32, #tpu.memory_space<vmem>>, vector<1x1x8x8x16xf32>
    %304 = vector.shape_cast %303 : vector<1x1x8x8x16xf32> to vector<8x8x16xf32>
    %305 = vector.extract_strided_slice %0 {offsets = [43, 0], sizes = [1, 16], strides = [1, 1]} : vector<49x16xf32> to vector<1x16xf32>
    %306 = vector.shape_cast %305 : vector<1x16xf32> to vector<1x1x16xf32>
    %307 = vector.broadcast %306 : vector<1x1x16xf32> to vector<8x8x16xf32>
    %308 = arith.mulf %304, %307 : vector<8x8x16xf32>
    %309 = arith.addf %302, %308 : vector<8x8x16xf32>
    %c0_218 = arith.constant 0 : index
    %c0_219 = arith.constant 0 : index
    %c3_220 = arith.constant 3 : index
    %c1_221 = arith.constant 1 : index
    %c0_222 = arith.constant 0 : index
    %310 = vector.load %arg1[%c0_218, %c0_219, %c3_220, %c1_221, %c0_222] : memref<1x4x11x11x16xf32, #tpu.memory_space<vmem>>, vector<1x1x8x8x16xf32>
    %311 = vector.shape_cast %310 : vector<1x1x8x8x16xf32> to vector<8x8x16xf32>
    %312 = vector.extract_strided_slice %0 {offsets = [44, 0], sizes = [1, 16], strides = [1, 1]} : vector<49x16xf32> to vector<1x16xf32>
    %313 = vector.shape_cast %312 : vector<1x16xf32> to vector<1x1x16xf32>
    %314 = vector.broadcast %313 : vector<1x1x16xf32> to vector<8x8x16xf32>
    %315 = arith.mulf %311, %314 : vector<8x8x16xf32>
    %316 = arith.addf %309, %315 : vector<8x8x16xf32>
    %c0_223 = arith.constant 0 : index
    %c1_224 = arith.constant 1 : index
    %c3_225 = arith.constant 3 : index
    %c1_226 = arith.constant 1 : index
    %c0_227 = arith.constant 0 : index
    %317 = vector.load %arg1[%c0_223, %c1_224, %c3_225, %c1_226, %c0_227] : memref<1x4x11x11x16xf32, #tpu.memory_space<vmem>>, vector<1x1x8x8x16xf32>
    %318 = vector.shape_cast %317 : vector<1x1x8x8x16xf32> to vector<8x8x16xf32>
    %319 = vector.extract_strided_slice %0 {offsets = [45, 0], sizes = [1, 16], strides = [1, 1]} : vector<49x16xf32> to vector<1x16xf32>
    %320 = vector.shape_cast %319 : vector<1x16xf32> to vector<1x1x16xf32>
    %321 = vector.broadcast %320 : vector<1x1x16xf32> to vector<8x8x16xf32>
    %322 = arith.mulf %318, %321 : vector<8x8x16xf32>
    %323 = arith.addf %316, %322 : vector<8x8x16xf32>
    %c0_228 = arith.constant 0 : index
    %c0_229 = arith.constant 0 : index
    %c3_230 = arith.constant 3 : index
    %c2_231 = arith.constant 2 : index
    %c0_232 = arith.constant 0 : index
    %324 = vector.load %arg1[%c0_228, %c0_229, %c3_230, %c2_231, %c0_232] : memref<1x4x11x11x16xf32, #tpu.memory_space<vmem>>, vector<1x1x8x8x16xf32>
    %325 = vector.shape_cast %324 : vector<1x1x8x8x16xf32> to vector<8x8x16xf32>
    %326 = vector.extract_strided_slice %0 {offsets = [46, 0], sizes = [1, 16], strides = [1, 1]} : vector<49x16xf32> to vector<1x16xf32>
    %327 = vector.shape_cast %326 : vector<1x16xf32> to vector<1x1x16xf32>
    %328 = vector.broadcast %327 : vector<1x1x16xf32> to vector<8x8x16xf32>
    %329 = arith.mulf %325, %328 : vector<8x8x16xf32>
    %330 = arith.addf %323, %329 : vector<8x8x16xf32>
    %c0_233 = arith.constant 0 : index
    %c1_234 = arith.constant 1 : index
    %c3_235 = arith.constant 3 : index
    %c2_236 = arith.constant 2 : index
    %c0_237 = arith.constant 0 : index
    %331 = vector.load %arg1[%c0_233, %c1_234, %c3_235, %c2_236, %c0_237] : memref<1x4x11x11x16xf32, #tpu.memory_space<vmem>>, vector<1x1x8x8x16xf32>
    %332 = vector.shape_cast %331 : vector<1x1x8x8x16xf32> to vector<8x8x16xf32>
    %333 = vector.extract_strided_slice %0 {offsets = [47, 0], sizes = [1, 16], strides = [1, 1]} : vector<49x16xf32> to vector<1x16xf32>
    %334 = vector.shape_cast %333 : vector<1x16xf32> to vector<1x1x16xf32>
    %335 = vector.broadcast %334 : vector<1x1x16xf32> to vector<8x8x16xf32>
    %336 = arith.mulf %332, %335 : vector<8x8x16xf32>
    %337 = arith.addf %330, %336 : vector<8x8x16xf32>
    %c0_238 = arith.constant 0 : index
    %c0_239 = arith.constant 0 : index
    %c3_240 = arith.constant 3 : index
    %c3_241 = arith.constant 3 : index
    %c0_242 = arith.constant 0 : index
    %338 = vector.load %arg1[%c0_238, %c0_239, %c3_240, %c3_241, %c0_242] : memref<1x4x11x11x16xf32, #tpu.memory_space<vmem>>, vector<1x1x8x8x16xf32>
    %339 = vector.shape_cast %338 : vector<1x1x8x8x16xf32> to vector<8x8x16xf32>
    %340 = vector.extract_strided_slice %0 {offsets = [48, 0], sizes = [1, 16], strides = [1, 1]} : vector<49x16xf32> to vector<1x16xf32>
    %341 = vector.shape_cast %340 : vector<1x16xf32> to vector<1x1x16xf32>
    %342 = vector.broadcast %341 : vector<1x1x16xf32> to vector<8x8x16xf32>
    %343 = arith.mulf %339, %342 : vector<8x8x16xf32>
    %344 = arith.addf %337, %343 : vector<8x8x16xf32>
    %c0_243 = arith.constant 0 : index
    %c0_244 = arith.constant 0 : index
    %345 = vector.load %arg3[%c0_243, %c0_244] : memref<1x16xf32, #tpu.memory_space<vmem>>, vector<1x16xf32>
    %346 = vector.shape_cast %345 : vector<1x16xf32> to vector<1x1x16xf32>
    %347 = vector.broadcast %346 : vector<1x1x16xf32> to vector<8x8x16xf32>
    %348 = arith.addf %344, %347 : vector<8x8x16xf32>
    %cst_245 = arith.constant 0.000000e+00 : f32
    %349 = vector.broadcast %cst_245 : f32 to vector<8x8x16xf32>
    %350 = arith.maximumf %348, %349 : vector<8x8x16xf32>
    %351 = vector.shape_cast %350 : vector<8x8x16xf32> to vector<64x16xf32>
    %352 = arith.truncf %351 : vector<64x16xf32> to vector<64x16xbf16>
    %c0_246 = arith.constant 0 : index
    %c0_247 = arith.constant 0 : index
    %353 = vector.load %arg4[%c0_246, %c0_247] : memref<16x32xbf16, #tpu.memory_space<vmem>>, vector<16x32xbf16>
    %cst_248 = arith.constant dense<0.000000e+00> : vector<64x32xf32>
    %354 = tpu.matmul %352, %353, %cst_248 {dimension_numbers = #tpu.dot_dimension_numbers<[1], [0], [0], [1], [0, 0, 1, 1], [], []>} : vector<64x16xbf16>, vector<16x32xbf16>, vector<64x32xf32> -> vector<64x32xf32>
    %c0_249 = arith.constant 0 : index
    %c0_250 = arith.constant 0 : index
    %355 = vector.load %arg5[%c0_249, %c0_250] : memref<1x32xf32, #tpu.memory_space<vmem>>, vector<1x32xf32>
    %356 = vector.broadcast %355 : vector<1x32xf32> to vector<64x32xf32>
    %357 = arith.addf %354, %356 : vector<64x32xf32>
    %cst_251 = arith.constant 0.000000e+00 : f32
    %358 = vector.broadcast %cst_251 : f32 to vector<64x32xf32>
    %359 = arith.maximumf %357, %358 : vector<64x32xf32>
    %360 = vector.shape_cast %359 : vector<64x32xf32> to vector<8x8x32xf32>
    %cst_252 = arith.constant 0.000000e+00 : f32
    %361 = vector.broadcast %cst_252 : f32 to vector<1x10x32xf32>
    %cst_253 = arith.constant 0.000000e+00 : f32
    %362 = vector.broadcast %cst_253 : f32 to vector<8x1x32xf32>
    %c0_254 = arith.constant 0 : index
    %c0_255 = arith.constant 0 : index
    %c0_256 = arith.constant 0 : index
    %363 = vector.load %arg21[%c0_254, %c0_255, %c0_256] : memref<10x10x32xf32, #tpu.memory_space<vmem>>, vector<1x10x32xf32>
    tpu.vector_store %arg21[%c0_254, %c0_255, %c0_256], %361 {strides = array<i32>} : memref<10x10x32xf32, #tpu.memory_space<vmem>>, vector<1x10x32xf32>,
    %c9 = arith.constant 9 : index
    %c0_257 = arith.constant 0 : index
    %c0_258 = arith.constant 0 : index
    %364 = vector.load %arg21[%c9, %c0_257, %c0_258] : memref<10x10x32xf32, #tpu.memory_space<vmem>>, vector<1x10x32xf32>
    tpu.vector_store %arg21[%c9, %c0_257, %c0_258], %361 {strides = array<i32>} : memref<10x10x32xf32, #tpu.memory_space<vmem>>, vector<1x10x32xf32>,
    %365 = tpu.concatenate %362, %360, %362 in 1 : vector<8x1x32xf32>, vector<8x8x32xf32>, vector<8x1x32xf32> -> vector<8x10x32xf32>
    %c1_259 = arith.constant 1 : index
    %c0_260 = arith.constant 0 : index
    %c0_261 = arith.constant 0 : index
    %366 = vector.load %arg21[%c1_259, %c0_260, %c0_261] : memref<10x10x32xf32, #tpu.memory_space<vmem>>, vector<8x10x32xf32>
    tpu.vector_store %arg21[%c1_259, %c0_260, %c0_261], %365 {strides = array<i32>} : memref<10x10x32xf32, #tpu.memory_space<vmem>>, vector<8x10x32xf32>,
    %c0_262 = arith.constant 0 : index
    %c0_263 = arith.constant 0 : index
    %367 = vector.load %arg6[%c0_262, %c0_263] : memref<9x32xf32, #tpu.memory_space<vmem>>, vector<9x32xf32>
    %cst_264 = arith.constant 0.000000e+00 : f32
    %368 = vector.broadcast %cst_264 : f32 to vector<8x8x32xf32>
    %c0_265 = arith.constant 0 : index
    %c0_266 = arith.constant 0 : index
    %c0_267 = arith.constant 0 : index
    %369 = vector.load %arg21[%c0_265, %c0_266, %c0_267] : memref<10x10x32xf32, #tpu.memory_space<vmem>>, vector<8x8x32xf32>
    %370 = vector.extract_strided_slice %367 {offsets = [0, 0], sizes = [1, 32], strides = [1, 1]} : vector<9x32xf32> to vector<1x32xf32>
    %371 = vector.shape_cast %370 : vector<1x32xf32> to vector<1x1x32xf32>
    %372 = vector.broadcast %371 : vector<1x1x32xf32> to vector<8x8x32xf32>
    %373 = arith.mulf %369, %372 : vector<8x8x32xf32>
    %374 = arith.addf %368, %373 : vector<8x8x32xf32>
    %c0_268 = arith.constant 0 : index
    %c1_269 = arith.constant 1 : index
    %c0_270 = arith.constant 0 : index
    %375 = vector.load %arg21[%c0_268, %c1_269, %c0_270] : memref<10x10x32xf32, #tpu.memory_space<vmem>>, vector<8x8x32xf32>
    %376 = vector.extract_strided_slice %367 {offsets = [1, 0], sizes = [1, 32], strides = [1, 1]} : vector<9x32xf32> to vector<1x32xf32>
    %377 = vector.shape_cast %376 : vector<1x32xf32> to vector<1x1x32xf32>
    %378 = vector.broadcast %377 : vector<1x1x32xf32> to vector<8x8x32xf32>
    %379 = arith.mulf %375, %378 : vector<8x8x32xf32>
    %380 = arith.addf %374, %379 : vector<8x8x32xf32>
    %c0_271 = arith.constant 0 : index
    %c2_272 = arith.constant 2 : index
    %c0_273 = arith.constant 0 : index
    %381 = vector.load %arg21[%c0_271, %c2_272, %c0_273] : memref<10x10x32xf32, #tpu.memory_space<vmem>>, vector<8x8x32xf32>
    %382 = vector.extract_strided_slice %367 {offsets = [2, 0], sizes = [1, 32], strides = [1, 1]} : vector<9x32xf32> to vector<1x32xf32>
    %383 = vector.shape_cast %382 : vector<1x32xf32> to vector<1x1x32xf32>
    %384 = vector.broadcast %383 : vector<1x1x32xf32> to vector<8x8x32xf32>
    %385 = arith.mulf %381, %384 : vector<8x8x32xf32>
    %386 = arith.addf %380, %385 : vector<8x8x32xf32>
    %c1_274 = arith.constant 1 : index
    %c0_275 = arith.constant 0 : index
    %c0_276 = arith.constant 0 : index
    %387 = vector.load %arg21[%c1_274, %c0_275, %c0_276] : memref<10x10x32xf32, #tpu.memory_space<vmem>>, vector<8x8x32xf32>
    %388 = vector.extract_strided_slice %367 {offsets = [3, 0], sizes = [1, 32], strides = [1, 1]} : vector<9x32xf32> to vector<1x32xf32>
    %389 = vector.shape_cast %388 : vector<1x32xf32> to vector<1x1x32xf32>
    %390 = vector.broadcast %389 : vector<1x1x32xf32> to vector<8x8x32xf32>
    %391 = arith.mulf %387, %390 : vector<8x8x32xf32>
    %392 = arith.addf %386, %391 : vector<8x8x32xf32>
    %c1_277 = arith.constant 1 : index
    %c1_278 = arith.constant 1 : index
    %c0_279 = arith.constant 0 : index
    %393 = vector.load %arg21[%c1_277, %c1_278, %c0_279] : memref<10x10x32xf32, #tpu.memory_space<vmem>>, vector<8x8x32xf32>
    %394 = vector.extract_strided_slice %367 {offsets = [4, 0], sizes = [1, 32], strides = [1, 1]} : vector<9x32xf32> to vector<1x32xf32>
    %395 = vector.shape_cast %394 : vector<1x32xf32> to vector<1x1x32xf32>
    %396 = vector.broadcast %395 : vector<1x1x32xf32> to vector<8x8x32xf32>
    %397 = arith.mulf %393, %396 : vector<8x8x32xf32>
    %398 = arith.addf %392, %397 : vector<8x8x32xf32>
    %c1_280 = arith.constant 1 : index
    %c2_281 = arith.constant 2 : index
    %c0_282 = arith.constant 0 : index
    %399 = vector.load %arg21[%c1_280, %c2_281, %c0_282] : memref<10x10x32xf32, #tpu.memory_space<vmem>>, vector<8x8x32xf32>
    %400 = vector.extract_strided_slice %367 {offsets = [5, 0], sizes = [1, 32], strides = [1, 1]} : vector<9x32xf32> to vector<1x32xf32>
    %401 = vector.shape_cast %400 : vector<1x32xf32> to vector<1x1x32xf32>
    %402 = vector.broadcast %401 : vector<1x1x32xf32> to vector<8x8x32xf32>
    %403 = arith.mulf %399, %402 : vector<8x8x32xf32>
    %404 = arith.addf %398, %403 : vector<8x8x32xf32>
    %c2_283 = arith.constant 2 : index
    %c0_284 = arith.constant 0 : index
    %c0_285 = arith.constant 0 : index
    %405 = vector.load %arg21[%c2_283, %c0_284, %c0_285] : memref<10x10x32xf32, #tpu.memory_space<vmem>>, vector<8x8x32xf32>
    %406 = vector.extract_strided_slice %367 {offsets = [6, 0], sizes = [1, 32], strides = [1, 1]} : vector<9x32xf32> to vector<1x32xf32>
    %407 = vector.shape_cast %406 : vector<1x32xf32> to vector<1x1x32xf32>
    %408 = vector.broadcast %407 : vector<1x1x32xf32> to vector<8x8x32xf32>
    %409 = arith.mulf %405, %408 : vector<8x8x32xf32>
    %410 = arith.addf %404, %409 : vector<8x8x32xf32>
    %c2_286 = arith.constant 2 : index
    %c1_287 = arith.constant 1 : index
    %c0_288 = arith.constant 0 : index
    %411 = vector.load %arg21[%c2_286, %c1_287, %c0_288] : memref<10x10x32xf32, #tpu.memory_space<vmem>>, vector<8x8x32xf32>
    %412 = vector.extract_strided_slice %367 {offsets = [7, 0], sizes = [1, 32], strides = [1, 1]} : vector<9x32xf32> to vector<1x32xf32>
    %413 = vector.shape_cast %412 : vector<1x32xf32> to vector<1x1x32xf32>
    %414 = vector.broadcast %413 : vector<1x1x32xf32> to vector<8x8x32xf32>
    %415 = arith.mulf %411, %414 : vector<8x8x32xf32>
    %416 = arith.addf %410, %415 : vector<8x8x32xf32>
    %c2_289 = arith.constant 2 : index
    %c2_290 = arith.constant 2 : index
    %c0_291 = arith.constant 0 : index
    %417 = vector.load %arg21[%c2_289, %c2_290, %c0_291] : memref<10x10x32xf32, #tpu.memory_space<vmem>>, vector<8x8x32xf32>
    %418 = vector.extract_strided_slice %367 {offsets = [8, 0], sizes = [1, 32], strides = [1, 1]} : vector<9x32xf32> to vector<1x32xf32>
    %419 = vector.shape_cast %418 : vector<1x32xf32> to vector<1x1x32xf32>
    %420 = vector.broadcast %419 : vector<1x1x32xf32> to vector<8x8x32xf32>
    %421 = arith.mulf %417, %420 : vector<8x8x32xf32>
    %422 = arith.addf %416, %421 : vector<8x8x32xf32>
    %c0_292 = arith.constant 0 : index
    %c0_293 = arith.constant 0 : index
    %423 = vector.load %arg7[%c0_292, %c0_293] : memref<1x32xf32, #tpu.memory_space<vmem>>, vector<1x32xf32>
    %424 = vector.shape_cast %423 : vector<1x32xf32> to vector<1x1x32xf32>
    %425 = vector.broadcast %424 : vector<1x1x32xf32> to vector<8x8x32xf32>
    %426 = arith.addf %422, %425 : vector<8x8x32xf32>
    %427 = vector.shape_cast %426 : vector<8x8x32xf32> to vector<64x32xf32>
    %cst_294 = arith.constant dense<0.000000e+00> : vector<64xf32>
    %428 = vector.multi_reduction <add>, %427, %cst_294 [1] : vector<64x32xf32> to vector<64xf32>
    %429 = vector.shape_cast %428 : vector<64xf32> to vector<64x1xf32>
    %cst_295 = arith.constant 3.200000e+01 : f32
    %430 = vector.broadcast %cst_295 : f32 to vector<64x1xf32>
    %431 = arith.divf %429, %430 : vector<64x1xf32>
    %432 = vector.broadcast %431 : vector<64x1xf32> to vector<64x32xf32>
    %433 = arith.subf %427, %432 : vector<64x32xf32>
    %434 = arith.mulf %433, %433 : vector<64x32xf32>
    %cst_296 = arith.constant dense<0.000000e+00> : vector<64xf32>
    %435 = vector.multi_reduction <add>, %434, %cst_296 [1] : vector<64x32xf32> to vector<64xf32>
    %436 = vector.shape_cast %435 : vector<64xf32> to vector<64x1xf32>
    %cst_297 = arith.constant 3.200000e+01 : f32
    %437 = vector.broadcast %cst_297 : f32 to vector<64x1xf32>
    %438 = arith.divf %436, %437 : vector<64x1xf32>
    %439 = vector.broadcast %431 : vector<64x1xf32> to vector<64x32xf32>
    %440 = arith.subf %427, %439 : vector<64x32xf32>
    %cst_298 = arith.constant 9.99999974E-6 : f32
    %441 = vector.broadcast %cst_298 : f32 to vector<64x1xf32>
    %442 = arith.addf %438, %441 : vector<64x1xf32>
    %443 = math.rsqrt %442 : vector<64x1xf32>
    %444 = vector.broadcast %443 : vector<64x1xf32> to vector<64x32xf32>
    %445 = arith.mulf %440, %444 : vector<64x32xf32>
    %c0_299 = arith.constant 0 : index
    %c0_300 = arith.constant 0 : index
    %446 = vector.load %arg8[%c0_299, %c0_300] : memref<1x32xf32, #tpu.memory_space<vmem>>, vector<1x32xf32>
    %447 = vector.broadcast %446 : vector<1x32xf32> to vector<64x32xf32>
    %448 = arith.mulf %445, %447 : vector<64x32xf32>
    %c0_301 = arith.constant 0 : index
    %c0_302 = arith.constant 0 : index
    %449 = vector.load %arg9[%c0_301, %c0_302] : memref<1x32xf32, #tpu.memory_space<vmem>>, vector<1x32xf32>
    %450 = vector.broadcast %449 : vector<1x32xf32> to vector<64x32xf32>
    %451 = arith.addf %448, %450 : vector<64x32xf32>
    %452 = arith.truncf %451 : vector<64x32xf32> to vector<64x32xbf16>
    %c0_303 = arith.constant 0 : index
    %c0_304 = arith.constant 0 : index
    %453 = vector.load %arg10[%c0_303, %c0_304] : memref<32x96xbf16, #tpu.memory_space<vmem>>, vector<32x96xbf16>
    %cst_305 = arith.constant dense<0.000000e+00> : vector<64x96xf32>
    %454 = tpu.matmul %452, %453, %cst_305 {dimension_numbers = #tpu.dot_dimension_numbers<[1], [0], [0], [1], [0, 0, 1, 1], [], []>} : vector<64x32xbf16>, vector<32x96xbf16>, vector<64x96xf32> -> vector<64x96xf32>
    %455 = vector.extract_strided_slice %454 {offsets = [0, 0], sizes = [64, 8], strides = [1, 1]} : vector<64x96xf32> to vector<64x8xf32>
    %456 = vector.extract_strided_slice %454 {offsets = [0, 32], sizes = [64, 8], strides = [1, 1]} : vector<64x96xf32> to vector<64x8xf32>
    %457 = vector.extract_strided_slice %454 {offsets = [0, 64], sizes = [64, 8], strides = [1, 1]} : vector<64x96xf32> to vector<64x8xf32>
    %cst_306 = arith.constant dense<0.000000e+00> : vector<64x64xf32>
    %458 = tpu.matmul %455, %456, %cst_306 {dimension_numbers = #tpu.dot_dimension_numbers<[1], [1], [0], [0], [0, 0, 1, 0], [], []>} : vector<64x8xf32>, vector<64x8xf32>, vector<64x64xf32> -> vector<64x64xf32>
    %cst_307 = arith.constant dense<0xFF800000> : vector<64xf32>
    %459 = vector.multi_reduction <maximumf>, %458, %cst_307 [1] : vector<64x64xf32> to vector<64xf32>
    %460 = vector.shape_cast %459 : vector<64xf32> to vector<64x1xf32>
    %461 = vector.broadcast %460 : vector<64x1xf32> to vector<64x64xf32>
    %462 = arith.subf %458, %461 : vector<64x64xf32>
    %463 = math.exp %462 : vector<64x64xf32>
    %cst_308 = arith.constant dense<0.000000e+00> : vector<64xf32>
    %464 = vector.multi_reduction <add>, %463, %cst_308 [1] : vector<64x64xf32> to vector<64xf32>
    %465 = vector.shape_cast %464 : vector<64xf32> to vector<64x1xf32>
    %466 = tpu.reciprocal %465 {approx = true} : vector<64x1xf32> -> vector<64x1xf32>
    %467 = vector.broadcast %466 : vector<64x1xf32> to vector<64x64xf32>
    %468 = arith.mulf %463, %467 : vector<64x64xf32>
    %469 = arith.truncf %468 : vector<64x64xf32> to vector<64x64xbf16>
    %470 = arith.truncf %457 : vector<64x8xf32> to vector<64x8xbf16>
    %cst_309 = arith.constant dense<0.000000e+00> : vector<64x8xf32>
    %471 = tpu.matmul %469, %470, %cst_309 {dimension_numbers = #tpu.dot_dimension_numbers<[1], [0], [0], [1], [0, 0, 1, 1], [], []>} : vector<64x64xbf16>, vector<64x8xbf16>, vector<64x8xf32> -> vector<64x8xf32>
    %472 = vector.extract_strided_slice %454 {offsets = [0, 8], sizes = [64, 8], strides = [1, 1]} : vector<64x96xf32> to vector<64x8xf32>
    %473 = vector.extract_strided_slice %454 {offsets = [0, 40], sizes = [64, 8], strides = [1, 1]} : vector<64x96xf32> to vector<64x8xf32>
    %474 = vector.extract_strided_slice %454 {offsets = [0, 72], sizes = [64, 8], strides = [1, 1]} : vector<64x96xf32> to vector<64x8xf32>
    %cst_310 = arith.constant dense<0.000000e+00> : vector<64x64xf32>
    %475 = tpu.matmul %472, %473, %cst_310 {dimension_numbers = #tpu.dot_dimension_numbers<[1], [1], [0], [0], [0, 0, 1, 0], [], []>} : vector<64x8xf32>, vector<64x8xf32>, vector<64x64xf32> -> vector<64x64xf32>
    %cst_311 = arith.constant dense<0xFF800000> : vector<64xf32>
    %476 = vector.multi_reduction <maximumf>, %475, %cst_311 [1] : vector<64x64xf32> to vector<64xf32>
    %477 = vector.shape_cast %476 : vector<64xf32> to vector<64x1xf32>
    %478 = vector.broadcast %477 : vector<64x1xf32> to vector<64x64xf32>
    %479 = arith.subf %475, %478 : vector<64x64xf32>
    %480 = math.exp %479 : vector<64x64xf32>
    %cst_312 = arith.constant dense<0.000000e+00> : vector<64xf32>
    %481 = vector.multi_reduction <add>, %480, %cst_312 [1] : vector<64x64xf32> to vector<64xf32>
    %482 = vector.shape_cast %481 : vector<64xf32> to vector<64x1xf32>
    %483 = tpu.reciprocal %482 {approx = true} : vector<64x1xf32> -> vector<64x1xf32>
    %484 = vector.broadcast %483 : vector<64x1xf32> to vector<64x64xf32>
    %485 = arith.mulf %480, %484 : vector<64x64xf32>
    %486 = arith.truncf %485 : vector<64x64xf32> to vector<64x64xbf16>
    %487 = arith.truncf %474 : vector<64x8xf32> to vector<64x8xbf16>
    %cst_313 = arith.constant dense<0.000000e+00> : vector<64x8xf32>
    %488 = tpu.matmul %486, %487, %cst_313 {dimension_numbers = #tpu.dot_dimension_numbers<[1], [0], [0], [1], [0, 0, 1, 1], [], []>} : vector<64x64xbf16>, vector<64x8xbf16>, vector<64x8xf32> -> vector<64x8xf32>
    %489 = vector.extract_strided_slice %454 {offsets = [0, 16], sizes = [64, 8], strides = [1, 1]} : vector<64x96xf32> to vector<64x8xf32>
    %490 = vector.extract_strided_slice %454 {offsets = [0, 48], sizes = [64, 8], strides = [1, 1]} : vector<64x96xf32> to vector<64x8xf32>
    %491 = vector.extract_strided_slice %454 {offsets = [0, 80], sizes = [64, 8], strides = [1, 1]} : vector<64x96xf32> to vector<64x8xf32>
    %cst_314 = arith.constant dense<0.000000e+00> : vector<64x64xf32>
    %492 = tpu.matmul %489, %490, %cst_314 {dimension_numbers = #tpu.dot_dimension_numbers<[1], [1], [0], [0], [0, 0, 1, 0], [], []>} : vector<64x8xf32>, vector<64x8xf32>, vector<64x64xf32> -> vector<64x64xf32>
    %cst_315 = arith.constant dense<0xFF800000> : vector<64xf32>
    %493 = vector.multi_reduction <maximumf>, %492, %cst_315 [1] : vector<64x64xf32> to vector<64xf32>
    %494 = vector.shape_cast %493 : vector<64xf32> to vector<64x1xf32>
    %495 = vector.broadcast %494 : vector<64x1xf32> to vector<64x64xf32>
    %496 = arith.subf %492, %495 : vector<64x64xf32>
    %497 = math.exp %496 : vector<64x64xf32>
    %cst_316 = arith.constant dense<0.000000e+00> : vector<64xf32>
    %498 = vector.multi_reduction <add>, %497, %cst_316 [1] : vector<64x64xf32> to vector<64xf32>
    %499 = vector.shape_cast %498 : vector<64xf32> to vector<64x1xf32>
    %500 = tpu.reciprocal %499 {approx = true} : vector<64x1xf32> -> vector<64x1xf32>
    %501 = vector.broadcast %500 : vector<64x1xf32> to vector<64x64xf32>
    %502 = arith.mulf %497, %501 : vector<64x64xf32>
    %503 = arith.truncf %502 : vector<64x64xf32> to vector<64x64xbf16>
    %504 = arith.truncf %491 : vector<64x8xf32> to vector<64x8xbf16>
    %cst_317 = arith.constant dense<0.000000e+00> : vector<64x8xf32>
    %505 = tpu.matmul %503, %504, %cst_317 {dimension_numbers = #tpu.dot_dimension_numbers<[1], [0], [0], [1], [0, 0, 1, 1], [], []>} : vector<64x64xbf16>, vector<64x8xbf16>, vector<64x8xf32> -> vector<64x8xf32>
    %506 = vector.extract_strided_slice %454 {offsets = [0, 24], sizes = [64, 8], strides = [1, 1]} : vector<64x96xf32> to vector<64x8xf32>
    %507 = vector.extract_strided_slice %454 {offsets = [0, 56], sizes = [64, 8], strides = [1, 1]} : vector<64x96xf32> to vector<64x8xf32>
    %508 = vector.extract_strided_slice %454 {offsets = [0, 88], sizes = [64, 8], strides = [1, 1]} : vector<64x96xf32> to vector<64x8xf32>
    %cst_318 = arith.constant dense<0.000000e+00> : vector<64x64xf32>
    %509 = tpu.matmul %506, %507, %cst_318 {dimension_numbers = #tpu.dot_dimension_numbers<[1], [1], [0], [0], [0, 0, 1, 0], [], []>} : vector<64x8xf32>, vector<64x8xf32>, vector<64x64xf32> -> vector<64x64xf32>
    %cst_319 = arith.constant dense<0xFF800000> : vector<64xf32>
    %510 = vector.multi_reduction <maximumf>, %509, %cst_319 [1] : vector<64x64xf32> to vector<64xf32>
    %511 = vector.shape_cast %510 : vector<64xf32> to vector<64x1xf32>
    %512 = vector.broadcast %511 : vector<64x1xf32> to vector<64x64xf32>
    %513 = arith.subf %509, %512 : vector<64x64xf32>
    %514 = math.exp %513 : vector<64x64xf32>
    %cst_320 = arith.constant dense<0.000000e+00> : vector<64xf32>
    %515 = vector.multi_reduction <add>, %514, %cst_320 [1] : vector<64x64xf32> to vector<64xf32>
    %516 = vector.shape_cast %515 : vector<64xf32> to vector<64x1xf32>
    %517 = tpu.reciprocal %516 {approx = true} : vector<64x1xf32> -> vector<64x1xf32>
    %518 = vector.broadcast %517 : vector<64x1xf32> to vector<64x64xf32>
    %519 = arith.mulf %514, %518 : vector<64x64xf32>
    %520 = arith.truncf %519 : vector<64x64xf32> to vector<64x64xbf16>
    %521 = arith.truncf %508 : vector<64x8xf32> to vector<64x8xbf16>
    %cst_321 = arith.constant dense<0.000000e+00> : vector<64x8xf32>
    %522 = tpu.matmul %520, %521, %cst_321 {dimension_numbers = #tpu.dot_dimension_numbers<[1], [0], [0], [1], [0, 0, 1, 1], [], []>} : vector<64x64xbf16>, vector<64x8xbf16>, vector<64x8xf32> -> vector<64x8xf32>
    %523 = tpu.concatenate %471, %488, %505, %522 in 1 : vector<64x8xf32>, vector<64x8xf32>, vector<64x8xf32>, vector<64x8xf32> -> vector<64x32xf32>
    %524 = arith.truncf %523 : vector<64x32xf32> to vector<64x32xbf16>
    %c0_322 = arith.constant 0 : index
    %c0_323 = arith.constant 0 : index
    %525 = vector.load %arg11[%c0_322, %c0_323] : memref<32x32xbf16, #tpu.memory_space<vmem>>, vector<32x32xbf16>
    %cst_324 = arith.constant dense<0.000000e+00> : vector<64x32xf32>
    %526 = tpu.matmul %524, %525, %cst_324 {dimension_numbers = #tpu.dot_dimension_numbers<[1], [0], [0], [1], [0, 0, 1, 1], [], []>} : vector<64x32xbf16>, vector<32x32xbf16>, vector<64x32xf32> -> vector<64x32xf32>
    %c0_325 = arith.constant 0 : index
    %c0_326 = arith.constant 0 : index
    %527 = vector.load %arg12[%c0_325, %c0_326] : memref<1x32xf32, #tpu.memory_space<vmem>>, vector<1x32xf32>
    %528 = vector.broadcast %527 : vector<1x32xf32> to vector<64x32xf32>
    %529 = arith.addf %526, %528 : vector<64x32xf32>
    %530 = vector.shape_cast %529 : vector<64x32xf32> to vector<8x8x32xf32>
    %cst_327 = arith.constant 0.000000e+00 : f32
    %531 = vector.broadcast %cst_327 : f32 to vector<3x14x32xf32>
    %cst_328 = arith.constant 0.000000e+00 : f32
    %532 = vector.broadcast %cst_328 : f32 to vector<8x3x32xf32>
    %c0_329 = arith.constant 0 : index
    %c0_330 = arith.constant 0 : index
    %c0_331 = arith.constant 0 : index
    %533 = vector.load %arg22[%c0_329, %c0_330, %c0_331] : memref<14x14x32xf32, #tpu.memory_space<vmem>>, vector<3x14x32xf32>
    tpu.vector_store %arg22[%c0_329, %c0_330, %c0_331], %531 {strides = array<i32>} : memref<14x14x32xf32, #tpu.memory_space<vmem>>, vector<3x14x32xf32>,
    %c11 = arith.constant 11 : index
    %c0_332 = arith.constant 0 : index
    %c0_333 = arith.constant 0 : index
    %534 = vector.load %arg22[%c11, %c0_332, %c0_333] : memref<14x14x32xf32, #tpu.memory_space<vmem>>, vector<3x14x32xf32>
    tpu.vector_store %arg22[%c11, %c0_332, %c0_333], %531 {strides = array<i32>} : memref<14x14x32xf32, #tpu.memory_space<vmem>>, vector<3x14x32xf32>,
    %535 = tpu.concatenate %532, %530, %532 in 1 : vector<8x3x32xf32>, vector<8x8x32xf32>, vector<8x3x32xf32> -> vector<8x14x32xf32>
    %c3_334 = arith.constant 3 : index
    %c0_335 = arith.constant 0 : index
    %c0_336 = arith.constant 0 : index
    %536 = vector.load %arg22[%c3_334, %c0_335, %c0_336] : memref<14x14x32xf32, #tpu.memory_space<vmem>>, vector<8x14x32xf32>
    tpu.vector_store %arg22[%c3_334, %c0_335, %c0_336], %535 {strides = array<i32>} : memref<14x14x32xf32, #tpu.memory_space<vmem>>, vector<8x14x32xf32>,
    %c0_337 = arith.constant 0 : index
    %c0_338 = arith.constant 0 : index
    %537 = vector.load %arg13[%c0_337, %c0_338] : memref<49x32xf32, #tpu.memory_space<vmem>>, vector<49x32xf32>
    %cst_339 = arith.constant 0.000000e+00 : f32
    %538 = vector.broadcast %cst_339 : f32 to vector<8x8x32xf32>
    %c0_340 = arith.constant 0 : index
    %c0_341 = arith.constant 0 : index
    %c0_342 = arith.constant 0 : index
    %539 = vector.load %arg22[%c0_340, %c0_341, %c0_342] : memref<14x14x32xf32, #tpu.memory_space<vmem>>, vector<8x8x32xf32>
    %540 = vector.extract_strided_slice %537 {offsets = [0, 0], sizes = [1, 32], strides = [1, 1]} : vector<49x32xf32> to vector<1x32xf32>
    %541 = vector.shape_cast %540 : vector<1x32xf32> to vector<1x1x32xf32>
    %542 = vector.broadcast %541 : vector<1x1x32xf32> to vector<8x8x32xf32>
    %543 = arith.mulf %539, %542 : vector<8x8x32xf32>
    %544 = arith.addf %538, %543 : vector<8x8x32xf32>
    %c0_343 = arith.constant 0 : index
    %c1_344 = arith.constant 1 : index
    %c0_345 = arith.constant 0 : index
    %545 = vector.load %arg22[%c0_343, %c1_344, %c0_345] : memref<14x14x32xf32, #tpu.memory_space<vmem>>, vector<8x8x32xf32>
    %546 = vector.extract_strided_slice %537 {offsets = [1, 0], sizes = [1, 32], strides = [1, 1]} : vector<49x32xf32> to vector<1x32xf32>
    %547 = vector.shape_cast %546 : vector<1x32xf32> to vector<1x1x32xf32>
    %548 = vector.broadcast %547 : vector<1x1x32xf32> to vector<8x8x32xf32>
    %549 = arith.mulf %545, %548 : vector<8x8x32xf32>
    %550 = arith.addf %544, %549 : vector<8x8x32xf32>
    %c0_346 = arith.constant 0 : index
    %c2_347 = arith.constant 2 : index
    %c0_348 = arith.constant 0 : index
    %551 = vector.load %arg22[%c0_346, %c2_347, %c0_348] : memref<14x14x32xf32, #tpu.memory_space<vmem>>, vector<8x8x32xf32>
    %552 = vector.extract_strided_slice %537 {offsets = [2, 0], sizes = [1, 32], strides = [1, 1]} : vector<49x32xf32> to vector<1x32xf32>
    %553 = vector.shape_cast %552 : vector<1x32xf32> to vector<1x1x32xf32>
    %554 = vector.broadcast %553 : vector<1x1x32xf32> to vector<8x8x32xf32>
    %555 = arith.mulf %551, %554 : vector<8x8x32xf32>
    %556 = arith.addf %550, %555 : vector<8x8x32xf32>
    %c0_349 = arith.constant 0 : index
    %c3_350 = arith.constant 3 : index
    %c0_351 = arith.constant 0 : index
    %557 = vector.load %arg22[%c0_349, %c3_350, %c0_351] : memref<14x14x32xf32, #tpu.memory_space<vmem>>, vector<8x8x32xf32>
    %558 = vector.extract_strided_slice %537 {offsets = [3, 0], sizes = [1, 32], strides = [1, 1]} : vector<49x32xf32> to vector<1x32xf32>
    %559 = vector.shape_cast %558 : vector<1x32xf32> to vector<1x1x32xf32>
    %560 = vector.broadcast %559 : vector<1x1x32xf32> to vector<8x8x32xf32>
    %561 = arith.mulf %557, %560 : vector<8x8x32xf32>
    %562 = arith.addf %556, %561 : vector<8x8x32xf32>
    %c0_352 = arith.constant 0 : index
    %c4 = arith.constant 4 : index
    %c0_353 = arith.constant 0 : index
    %563 = vector.load %arg22[%c0_352, %c4, %c0_353] : memref<14x14x32xf32, #tpu.memory_space<vmem>>, vector<8x8x32xf32>
    %564 = vector.extract_strided_slice %537 {offsets = [4, 0], sizes = [1, 32], strides = [1, 1]} : vector<49x32xf32> to vector<1x32xf32>
    %565 = vector.shape_cast %564 : vector<1x32xf32> to vector<1x1x32xf32>
    %566 = vector.broadcast %565 : vector<1x1x32xf32> to vector<8x8x32xf32>
    %567 = arith.mulf %563, %566 : vector<8x8x32xf32>
    %568 = arith.addf %562, %567 : vector<8x8x32xf32>
    %c0_354 = arith.constant 0 : index
    %c5 = arith.constant 5 : index
    %c0_355 = arith.constant 0 : index
    %569 = vector.load %arg22[%c0_354, %c5, %c0_355] : memref<14x14x32xf32, #tpu.memory_space<vmem>>, vector<8x8x32xf32>
    %570 = vector.extract_strided_slice %537 {offsets = [5, 0], sizes = [1, 32], strides = [1, 1]} : vector<49x32xf32> to vector<1x32xf32>
    %571 = vector.shape_cast %570 : vector<1x32xf32> to vector<1x1x32xf32>
    %572 = vector.broadcast %571 : vector<1x1x32xf32> to vector<8x8x32xf32>
    %573 = arith.mulf %569, %572 : vector<8x8x32xf32>
    %574 = arith.addf %568, %573 : vector<8x8x32xf32>
    %c0_356 = arith.constant 0 : index
    %c6 = arith.constant 6 : index
    %c0_357 = arith.constant 0 : index
    %575 = vector.load %arg22[%c0_356, %c6, %c0_357] : memref<14x14x32xf32, #tpu.memory_space<vmem>>, vector<8x8x32xf32>
    %576 = vector.extract_strided_slice %537 {offsets = [6, 0], sizes = [1, 32], strides = [1, 1]} : vector<49x32xf32> to vector<1x32xf32>
    %577 = vector.shape_cast %576 : vector<1x32xf32> to vector<1x1x32xf32>
    %578 = vector.broadcast %577 : vector<1x1x32xf32> to vector<8x8x32xf32>
    %579 = arith.mulf %575, %578 : vector<8x8x32xf32>
    %580 = arith.addf %574, %579 : vector<8x8x32xf32>
    %c1_358 = arith.constant 1 : index
    %c0_359 = arith.constant 0 : index
    %c0_360 = arith.constant 0 : index
    %581 = vector.load %arg22[%c1_358, %c0_359, %c0_360] : memref<14x14x32xf32, #tpu.memory_space<vmem>>, vector<8x8x32xf32>
    %582 = vector.extract_strided_slice %537 {offsets = [7, 0], sizes = [1, 32], strides = [1, 1]} : vector<49x32xf32> to vector<1x32xf32>
    %583 = vector.shape_cast %582 : vector<1x32xf32> to vector<1x1x32xf32>
    %584 = vector.broadcast %583 : vector<1x1x32xf32> to vector<8x8x32xf32>
    %585 = arith.mulf %581, %584 : vector<8x8x32xf32>
    %586 = arith.addf %580, %585 : vector<8x8x32xf32>
    %c1_361 = arith.constant 1 : index
    %c1_362 = arith.constant 1 : index
    %c0_363 = arith.constant 0 : index
    %587 = vector.load %arg22[%c1_361, %c1_362, %c0_363] : memref<14x14x32xf32, #tpu.memory_space<vmem>>, vector<8x8x32xf32>
    %588 = vector.extract_strided_slice %537 {offsets = [8, 0], sizes = [1, 32], strides = [1, 1]} : vector<49x32xf32> to vector<1x32xf32>
    %589 = vector.shape_cast %588 : vector<1x32xf32> to vector<1x1x32xf32>
    %590 = vector.broadcast %589 : vector<1x1x32xf32> to vector<8x8x32xf32>
    %591 = arith.mulf %587, %590 : vector<8x8x32xf32>
    %592 = arith.addf %586, %591 : vector<8x8x32xf32>
    %c1_364 = arith.constant 1 : index
    %c2_365 = arith.constant 2 : index
    %c0_366 = arith.constant 0 : index
    %593 = vector.load %arg22[%c1_364, %c2_365, %c0_366] : memref<14x14x32xf32, #tpu.memory_space<vmem>>, vector<8x8x32xf32>
    %594 = vector.extract_strided_slice %537 {offsets = [9, 0], sizes = [1, 32], strides = [1, 1]} : vector<49x32xf32> to vector<1x32xf32>
    %595 = vector.shape_cast %594 : vector<1x32xf32> to vector<1x1x32xf32>
    %596 = vector.broadcast %595 : vector<1x1x32xf32> to vector<8x8x32xf32>
    %597 = arith.mulf %593, %596 : vector<8x8x32xf32>
    %598 = arith.addf %592, %597 : vector<8x8x32xf32>
    %c1_367 = arith.constant 1 : index
    %c3_368 = arith.constant 3 : index
    %c0_369 = arith.constant 0 : index
    %599 = vector.load %arg22[%c1_367, %c3_368, %c0_369] : memref<14x14x32xf32, #tpu.memory_space<vmem>>, vector<8x8x32xf32>
    %600 = vector.extract_strided_slice %537 {offsets = [10, 0], sizes = [1, 32], strides = [1, 1]} : vector<49x32xf32> to vector<1x32xf32>
    %601 = vector.shape_cast %600 : vector<1x32xf32> to vector<1x1x32xf32>
    %602 = vector.broadcast %601 : vector<1x1x32xf32> to vector<8x8x32xf32>
    %603 = arith.mulf %599, %602 : vector<8x8x32xf32>
    %604 = arith.addf %598, %603 : vector<8x8x32xf32>
    %c1_370 = arith.constant 1 : index
    %c4_371 = arith.constant 4 : index
    %c0_372 = arith.constant 0 : index
    %605 = vector.load %arg22[%c1_370, %c4_371, %c0_372] : memref<14x14x32xf32, #tpu.memory_space<vmem>>, vector<8x8x32xf32>
    %606 = vector.extract_strided_slice %537 {offsets = [11, 0], sizes = [1, 32], strides = [1, 1]} : vector<49x32xf32> to vector<1x32xf32>
    %607 = vector.shape_cast %606 : vector<1x32xf32> to vector<1x1x32xf32>
    %608 = vector.broadcast %607 : vector<1x1x32xf32> to vector<8x8x32xf32>
    %609 = arith.mulf %605, %608 : vector<8x8x32xf32>
    %610 = arith.addf %604, %609 : vector<8x8x32xf32>
    %c1_373 = arith.constant 1 : index
    %c5_374 = arith.constant 5 : index
    %c0_375 = arith.constant 0 : index
    %611 = vector.load %arg22[%c1_373, %c5_374, %c0_375] : memref<14x14x32xf32, #tpu.memory_space<vmem>>, vector<8x8x32xf32>
    %612 = vector.extract_strided_slice %537 {offsets = [12, 0], sizes = [1, 32], strides = [1, 1]} : vector<49x32xf32> to vector<1x32xf32>
    %613 = vector.shape_cast %612 : vector<1x32xf32> to vector<1x1x32xf32>
    %614 = vector.broadcast %613 : vector<1x1x32xf32> to vector<8x8x32xf32>
    %615 = arith.mulf %611, %614 : vector<8x8x32xf32>
    %616 = arith.addf %610, %615 : vector<8x8x32xf32>
    %c1_376 = arith.constant 1 : index
    %c6_377 = arith.constant 6 : index
    %c0_378 = arith.constant 0 : index
    %617 = vector.load %arg22[%c1_376, %c6_377, %c0_378] : memref<14x14x32xf32, #tpu.memory_space<vmem>>, vector<8x8x32xf32>
    %618 = vector.extract_strided_slice %537 {offsets = [13, 0], sizes = [1, 32], strides = [1, 1]} : vector<49x32xf32> to vector<1x32xf32>
    %619 = vector.shape_cast %618 : vector<1x32xf32> to vector<1x1x32xf32>
    %620 = vector.broadcast %619 : vector<1x1x32xf32> to vector<8x8x32xf32>
    %621 = arith.mulf %617, %620 : vector<8x8x32xf32>
    %622 = arith.addf %616, %621 : vector<8x8x32xf32>
    %c2_379 = arith.constant 2 : index
    %c0_380 = arith.constant 0 : index
    %c0_381 = arith.constant 0 : index
    %623 = vector.load %arg22[%c2_379, %c0_380, %c0_381] : memref<14x14x32xf32, #tpu.memory_space<vmem>>, vector<8x8x32xf32>
    %624 = vector.extract_strided_slice %537 {offsets = [14, 0], sizes = [1, 32], strides = [1, 1]} : vector<49x32xf32> to vector<1x32xf32>
    %625 = vector.shape_cast %624 : vector<1x32xf32> to vector<1x1x32xf32>
    %626 = vector.broadcast %625 : vector<1x1x32xf32> to vector<8x8x32xf32>
    %627 = arith.mulf %623, %626 : vector<8x8x32xf32>
    %628 = arith.addf %622, %627 : vector<8x8x32xf32>
    %c2_382 = arith.constant 2 : index
    %c1_383 = arith.constant 1 : index
    %c0_384 = arith.constant 0 : index
    %629 = vector.load %arg22[%c2_382, %c1_383, %c0_384] : memref<14x14x32xf32, #tpu.memory_space<vmem>>, vector<8x8x32xf32>
    %630 = vector.extract_strided_slice %537 {offsets = [15, 0], sizes = [1, 32], strides = [1, 1]} : vector<49x32xf32> to vector<1x32xf32>
    %631 = vector.shape_cast %630 : vector<1x32xf32> to vector<1x1x32xf32>
    %632 = vector.broadcast %631 : vector<1x1x32xf32> to vector<8x8x32xf32>
    %633 = arith.mulf %629, %632 : vector<8x8x32xf32>
    %634 = arith.addf %628, %633 : vector<8x8x32xf32>
    %c2_385 = arith.constant 2 : index
    %c2_386 = arith.constant 2 : index
    %c0_387 = arith.constant 0 : index
    %635 = vector.load %arg22[%c2_385, %c2_386, %c0_387] : memref<14x14x32xf32, #tpu.memory_space<vmem>>, vector<8x8x32xf32>
    %636 = vector.extract_strided_slice %537 {offsets = [16, 0], sizes = [1, 32], strides = [1, 1]} : vector<49x32xf32> to vector<1x32xf32>
    %637 = vector.shape_cast %636 : vector<1x32xf32> to vector<1x1x32xf32>
    %638 = vector.broadcast %637 : vector<1x1x32xf32> to vector<8x8x32xf32>
    %639 = arith.mulf %635, %638 : vector<8x8x32xf32>
    %640 = arith.addf %634, %639 : vector<8x8x32xf32>
    %c2_388 = arith.constant 2 : index
    %c3_389 = arith.constant 3 : index
    %c0_390 = arith.constant 0 : index
    %641 = vector.load %arg22[%c2_388, %c3_389, %c0_390] : memref<14x14x32xf32, #tpu.memory_space<vmem>>, vector<8x8x32xf32>
    %642 = vector.extract_strided_slice %537 {offsets = [17, 0], sizes = [1, 32], strides = [1, 1]} : vector<49x32xf32> to vector<1x32xf32>
    %643 = vector.shape_cast %642 : vector<1x32xf32> to vector<1x1x32xf32>
    %644 = vector.broadcast %643 : vector<1x1x32xf32> to vector<8x8x32xf32>
    %645 = arith.mulf %641, %644 : vector<8x8x32xf32>
    %646 = arith.addf %640, %645 : vector<8x8x32xf32>
    %c2_391 = arith.constant 2 : index
    %c4_392 = arith.constant 4 : index
    %c0_393 = arith.constant 0 : index
    %647 = vector.load %arg22[%c2_391, %c4_392, %c0_393] : memref<14x14x32xf32, #tpu.memory_space<vmem>>, vector<8x8x32xf32>
    %648 = vector.extract_strided_slice %537 {offsets = [18, 0], sizes = [1, 32], strides = [1, 1]} : vector<49x32xf32> to vector<1x32xf32>
    %649 = vector.shape_cast %648 : vector<1x32xf32> to vector<1x1x32xf32>
    %650 = vector.broadcast %649 : vector<1x1x32xf32> to vector<8x8x32xf32>
    %651 = arith.mulf %647, %650 : vector<8x8x32xf32>
    %652 = arith.addf %646, %651 : vector<8x8x32xf32>
    %c2_394 = arith.constant 2 : index
    %c5_395 = arith.constant 5 : index
    %c0_396 = arith.constant 0 : index
    %653 = vector.load %arg22[%c2_394, %c5_395, %c0_396] : memref<14x14x32xf32, #tpu.memory_space<vmem>>, vector<8x8x32xf32>
    %654 = vector.extract_strided_slice %537 {offsets = [19, 0], sizes = [1, 32], strides = [1, 1]} : vector<49x32xf32> to vector<1x32xf32>
    %655 = vector.shape_cast %654 : vector<1x32xf32> to vector<1x1x32xf32>
    %656 = vector.broadcast %655 : vector<1x1x32xf32> to vector<8x8x32xf32>
    %657 = arith.mulf %653, %656 : vector<8x8x32xf32>
    %658 = arith.addf %652, %657 : vector<8x8x32xf32>
    %c2_397 = arith.constant 2 : index
    %c6_398 = arith.constant 6 : index
    %c0_399 = arith.constant 0 : index
    %659 = vector.load %arg22[%c2_397, %c6_398, %c0_399] : memref<14x14x32xf32, #tpu.memory_space<vmem>>, vector<8x8x32xf32>
    %660 = vector.extract_strided_slice %537 {offsets = [20, 0], sizes = [1, 32], strides = [1, 1]} : vector<49x32xf32> to vector<1x32xf32>
    %661 = vector.shape_cast %660 : vector<1x32xf32> to vector<1x1x32xf32>
    %662 = vector.broadcast %661 : vector<1x1x32xf32> to vector<8x8x32xf32>
    %663 = arith.mulf %659, %662 : vector<8x8x32xf32>
    %664 = arith.addf %658, %663 : vector<8x8x32xf32>
    %c3_400 = arith.constant 3 : index
    %c0_401 = arith.constant 0 : index
    %c0_402 = arith.constant 0 : index
    %665 = vector.load %arg22[%c3_400, %c0_401, %c0_402] : memref<14x14x32xf32, #tpu.memory_space<vmem>>, vector<8x8x32xf32>
    %666 = vector.extract_strided_slice %537 {offsets = [21, 0], sizes = [1, 32], strides = [1, 1]} : vector<49x32xf32> to vector<1x32xf32>
    %667 = vector.shape_cast %666 : vector<1x32xf32> to vector<1x1x32xf32>
    %668 = vector.broadcast %667 : vector<1x1x32xf32> to vector<8x8x32xf32>
    %669 = arith.mulf %665, %668 : vector<8x8x32xf32>
    %670 = arith.addf %664, %669 : vector<8x8x32xf32>
    %c3_403 = arith.constant 3 : index
    %c1_404 = arith.constant 1 : index
    %c0_405 = arith.constant 0 : index
    %671 = vector.load %arg22[%c3_403, %c1_404, %c0_405] : memref<14x14x32xf32, #tpu.memory_space<vmem>>, vector<8x8x32xf32>
    %672 = vector.extract_strided_slice %537 {offsets = [22, 0], sizes = [1, 32], strides = [1, 1]} : vector<49x32xf32> to vector<1x32xf32>
    %673 = vector.shape_cast %672 : vector<1x32xf32> to vector<1x1x32xf32>
    %674 = vector.broadcast %673 : vector<1x1x32xf32> to vector<8x8x32xf32>
    %675 = arith.mulf %671, %674 : vector<8x8x32xf32>
    %676 = arith.addf %670, %675 : vector<8x8x32xf32>
    %c3_406 = arith.constant 3 : index
    %c2_407 = arith.constant 2 : index
    %c0_408 = arith.constant 0 : index
    %677 = vector.load %arg22[%c3_406, %c2_407, %c0_408] : memref<14x14x32xf32, #tpu.memory_space<vmem>>, vector<8x8x32xf32>
    %678 = vector.extract_strided_slice %537 {offsets = [23, 0], sizes = [1, 32], strides = [1, 1]} : vector<49x32xf32> to vector<1x32xf32>
    %679 = vector.shape_cast %678 : vector<1x32xf32> to vector<1x1x32xf32>
    %680 = vector.broadcast %679 : vector<1x1x32xf32> to vector<8x8x32xf32>
    %681 = arith.mulf %677, %680 : vector<8x8x32xf32>
    %682 = arith.addf %676, %681 : vector<8x8x32xf32>
    %c3_409 = arith.constant 3 : index
    %c3_410 = arith.constant 3 : index
    %c0_411 = arith.constant 0 : index
    %683 = vector.load %arg22[%c3_409, %c3_410, %c0_411] : memref<14x14x32xf32, #tpu.memory_space<vmem>>, vector<8x8x32xf32>
    %684 = vector.extract_strided_slice %537 {offsets = [24, 0], sizes = [1, 32], strides = [1, 1]} : vector<49x32xf32> to vector<1x32xf32>
    %685 = vector.shape_cast %684 : vector<1x32xf32> to vector<1x1x32xf32>
    %686 = vector.broadcast %685 : vector<1x1x32xf32> to vector<8x8x32xf32>
    %687 = arith.mulf %683, %686 : vector<8x8x32xf32>
    %688 = arith.addf %682, %687 : vector<8x8x32xf32>
    %c3_412 = arith.constant 3 : index
    %c4_413 = arith.constant 4 : index
    %c0_414 = arith.constant 0 : index
    %689 = vector.load %arg22[%c3_412, %c4_413, %c0_414] : memref<14x14x32xf32, #tpu.memory_space<vmem>>, vector<8x8x32xf32>
    %690 = vector.extract_strided_slice %537 {offsets = [25, 0], sizes = [1, 32], strides = [1, 1]} : vector<49x32xf32> to vector<1x32xf32>
    %691 = vector.shape_cast %690 : vector<1x32xf32> to vector<1x1x32xf32>
    %692 = vector.broadcast %691 : vector<1x1x32xf32> to vector<8x8x32xf32>
    %693 = arith.mulf %689, %692 : vector<8x8x32xf32>
    %694 = arith.addf %688, %693 : vector<8x8x32xf32>
    %c3_415 = arith.constant 3 : index
    %c5_416 = arith.constant 5 : index
    %c0_417 = arith.constant 0 : index
    %695 = vector.load %arg22[%c3_415, %c5_416, %c0_417] : memref<14x14x32xf32, #tpu.memory_space<vmem>>, vector<8x8x32xf32>
    %696 = vector.extract_strided_slice %537 {offsets = [26, 0], sizes = [1, 32], strides = [1, 1]} : vector<49x32xf32> to vector<1x32xf32>
    %697 = vector.shape_cast %696 : vector<1x32xf32> to vector<1x1x32xf32>
    %698 = vector.broadcast %697 : vector<1x1x32xf32> to vector<8x8x32xf32>
    %699 = arith.mulf %695, %698 : vector<8x8x32xf32>
    %700 = arith.addf %694, %699 : vector<8x8x32xf32>
    %c3_418 = arith.constant 3 : index
    %c6_419 = arith.constant 6 : index
    %c0_420 = arith.constant 0 : index
    %701 = vector.load %arg22[%c3_418, %c6_419, %c0_420] : memref<14x14x32xf32, #tpu.memory_space<vmem>>, vector<8x8x32xf32>
    %702 = vector.extract_strided_slice %537 {offsets = [27, 0], sizes = [1, 32], strides = [1, 1]} : vector<49x32xf32> to vector<1x32xf32>
    %703 = vector.shape_cast %702 : vector<1x32xf32> to vector<1x1x32xf32>
    %704 = vector.broadcast %703 : vector<1x1x32xf32> to vector<8x8x32xf32>
    %705 = arith.mulf %701, %704 : vector<8x8x32xf32>
    %706 = arith.addf %700, %705 : vector<8x8x32xf32>
    %c4_421 = arith.constant 4 : index
    %c0_422 = arith.constant 0 : index
    %c0_423 = arith.constant 0 : index
    %707 = vector.load %arg22[%c4_421, %c0_422, %c0_423] : memref<14x14x32xf32, #tpu.memory_space<vmem>>, vector<8x8x32xf32>
    %708 = vector.extract_strided_slice %537 {offsets = [28, 0], sizes = [1, 32], strides = [1, 1]} : vector<49x32xf32> to vector<1x32xf32>
    %709 = vector.shape_cast %708 : vector<1x32xf32> to vector<1x1x32xf32>
    %710 = vector.broadcast %709 : vector<1x1x32xf32> to vector<8x8x32xf32>
    %711 = arith.mulf %707, %710 : vector<8x8x32xf32>
    %712 = arith.addf %706, %711 : vector<8x8x32xf32>
    %c4_424 = arith.constant 4 : index
    %c1_425 = arith.constant 1 : index
    %c0_426 = arith.constant 0 : index
    %713 = vector.load %arg22[%c4_424, %c1_425, %c0_426] : memref<14x14x32xf32, #tpu.memory_space<vmem>>, vector<8x8x32xf32>
    %714 = vector.extract_strided_slice %537 {offsets = [29, 0], sizes = [1, 32], strides = [1, 1]} : vector<49x32xf32> to vector<1x32xf32>
    %715 = vector.shape_cast %714 : vector<1x32xf32> to vector<1x1x32xf32>
    %716 = vector.broadcast %715 : vector<1x1x32xf32> to vector<8x8x32xf32>
    %717 = arith.mulf %713, %716 : vector<8x8x32xf32>
    %718 = arith.addf %712, %717 : vector<8x8x32xf32>
    %c4_427 = arith.constant 4 : index
    %c2_428 = arith.constant 2 : index
    %c0_429 = arith.constant 0 : index
    %719 = vector.load %arg22[%c4_427, %c2_428, %c0_429] : memref<14x14x32xf32, #tpu.memory_space<vmem>>, vector<8x8x32xf32>
    %720 = vector.extract_strided_slice %537 {offsets = [30, 0], sizes = [1, 32], strides = [1, 1]} : vector<49x32xf32> to vector<1x32xf32>
    %721 = vector.shape_cast %720 : vector<1x32xf32> to vector<1x1x32xf32>
    %722 = vector.broadcast %721 : vector<1x1x32xf32> to vector<8x8x32xf32>
    %723 = arith.mulf %719, %722 : vector<8x8x32xf32>
    %724 = arith.addf %718, %723 : vector<8x8x32xf32>
    %c4_430 = arith.constant 4 : index
    %c3_431 = arith.constant 3 : index
    %c0_432 = arith.constant 0 : index
    %725 = vector.load %arg22[%c4_430, %c3_431, %c0_432] : memref<14x14x32xf32, #tpu.memory_space<vmem>>, vector<8x8x32xf32>
    %726 = vector.extract_strided_slice %537 {offsets = [31, 0], sizes = [1, 32], strides = [1, 1]} : vector<49x32xf32> to vector<1x32xf32>
    %727 = vector.shape_cast %726 : vector<1x32xf32> to vector<1x1x32xf32>
    %728 = vector.broadcast %727 : vector<1x1x32xf32> to vector<8x8x32xf32>
    %729 = arith.mulf %725, %728 : vector<8x8x32xf32>
    %730 = arith.addf %724, %729 : vector<8x8x32xf32>
    %c4_433 = arith.constant 4 : index
    %c4_434 = arith.constant 4 : index
    %c0_435 = arith.constant 0 : index
    %731 = vector.load %arg22[%c4_433, %c4_434, %c0_435] : memref<14x14x32xf32, #tpu.memory_space<vmem>>, vector<8x8x32xf32>
    %732 = vector.extract_strided_slice %537 {offsets = [32, 0], sizes = [1, 32], strides = [1, 1]} : vector<49x32xf32> to vector<1x32xf32>
    %733 = vector.shape_cast %732 : vector<1x32xf32> to vector<1x1x32xf32>
    %734 = vector.broadcast %733 : vector<1x1x32xf32> to vector<8x8x32xf32>
    %735 = arith.mulf %731, %734 : vector<8x8x32xf32>
    %736 = arith.addf %730, %735 : vector<8x8x32xf32>
    %c4_436 = arith.constant 4 : index
    %c5_437 = arith.constant 5 : index
    %c0_438 = arith.constant 0 : index
    %737 = vector.load %arg22[%c4_436, %c5_437, %c0_438] : memref<14x14x32xf32, #tpu.memory_space<vmem>>, vector<8x8x32xf32>
    %738 = vector.extract_strided_slice %537 {offsets = [33, 0], sizes = [1, 32], strides = [1, 1]} : vector<49x32xf32> to vector<1x32xf32>
    %739 = vector.shape_cast %738 : vector<1x32xf32> to vector<1x1x32xf32>
    %740 = vector.broadcast %739 : vector<1x1x32xf32> to vector<8x8x32xf32>
    %741 = arith.mulf %737, %740 : vector<8x8x32xf32>
    %742 = arith.addf %736, %741 : vector<8x8x32xf32>
    %c4_439 = arith.constant 4 : index
    %c6_440 = arith.constant 6 : index
    %c0_441 = arith.constant 0 : index
    %743 = vector.load %arg22[%c4_439, %c6_440, %c0_441] : memref<14x14x32xf32, #tpu.memory_space<vmem>>, vector<8x8x32xf32>
    %744 = vector.extract_strided_slice %537 {offsets = [34, 0], sizes = [1, 32], strides = [1, 1]} : vector<49x32xf32> to vector<1x32xf32>
    %745 = vector.shape_cast %744 : vector<1x32xf32> to vector<1x1x32xf32>
    %746 = vector.broadcast %745 : vector<1x1x32xf32> to vector<8x8x32xf32>
    %747 = arith.mulf %743, %746 : vector<8x8x32xf32>
    %748 = arith.addf %742, %747 : vector<8x8x32xf32>
    %c5_442 = arith.constant 5 : index
    %c0_443 = arith.constant 0 : index
    %c0_444 = arith.constant 0 : index
    %749 = vector.load %arg22[%c5_442, %c0_443, %c0_444] : memref<14x14x32xf32, #tpu.memory_space<vmem>>, vector<8x8x32xf32>
    %750 = vector.extract_strided_slice %537 {offsets = [35, 0], sizes = [1, 32], strides = [1, 1]} : vector<49x32xf32> to vector<1x32xf32>
    %751 = vector.shape_cast %750 : vector<1x32xf32> to vector<1x1x32xf32>
    %752 = vector.broadcast %751 : vector<1x1x32xf32> to vector<8x8x32xf32>
    %753 = arith.mulf %749, %752 : vector<8x8x32xf32>
    %754 = arith.addf %748, %753 : vector<8x8x32xf32>
    %c5_445 = arith.constant 5 : index
    %c1_446 = arith.constant 1 : index
    %c0_447 = arith.constant 0 : index
    %755 = vector.load %arg22[%c5_445, %c1_446, %c0_447] : memref<14x14x32xf32, #tpu.memory_space<vmem>>, vector<8x8x32xf32>
    %756 = vector.extract_strided_slice %537 {offsets = [36, 0], sizes = [1, 32], strides = [1, 1]} : vector<49x32xf32> to vector<1x32xf32>
    %757 = vector.shape_cast %756 : vector<1x32xf32> to vector<1x1x32xf32>
    %758 = vector.broadcast %757 : vector<1x1x32xf32> to vector<8x8x32xf32>
    %759 = arith.mulf %755, %758 : vector<8x8x32xf32>
    %760 = arith.addf %754, %759 : vector<8x8x32xf32>
    %c5_448 = arith.constant 5 : index
    %c2_449 = arith.constant 2 : index
    %c0_450 = arith.constant 0 : index
    %761 = vector.load %arg22[%c5_448, %c2_449, %c0_450] : memref<14x14x32xf32, #tpu.memory_space<vmem>>, vector<8x8x32xf32>
    %762 = vector.extract_strided_slice %537 {offsets = [37, 0], sizes = [1, 32], strides = [1, 1]} : vector<49x32xf32> to vector<1x32xf32>
    %763 = vector.shape_cast %762 : vector<1x32xf32> to vector<1x1x32xf32>
    %764 = vector.broadcast %763 : vector<1x1x32xf32> to vector<8x8x32xf32>
    %765 = arith.mulf %761, %764 : vector<8x8x32xf32>
    %766 = arith.addf %760, %765 : vector<8x8x32xf32>
    %c5_451 = arith.constant 5 : index
    %c3_452 = arith.constant 3 : index
    %c0_453 = arith.constant 0 : index
    %767 = vector.load %arg22[%c5_451, %c3_452, %c0_453] : memref<14x14x32xf32, #tpu.memory_space<vmem>>, vector<8x8x32xf32>
    %768 = vector.extract_strided_slice %537 {offsets = [38, 0], sizes = [1, 32], strides = [1, 1]} : vector<49x32xf32> to vector<1x32xf32>
    %769 = vector.shape_cast %768 : vector<1x32xf32> to vector<1x1x32xf32>
    %770 = vector.broadcast %769 : vector<1x1x32xf32> to vector<8x8x32xf32>
    %771 = arith.mulf %767, %770 : vector<8x8x32xf32>
    %772 = arith.addf %766, %771 : vector<8x8x32xf32>
    %c5_454 = arith.constant 5 : index
    %c4_455 = arith.constant 4 : index
    %c0_456 = arith.constant 0 : index
    %773 = vector.load %arg22[%c5_454, %c4_455, %c0_456] : memref<14x14x32xf32, #tpu.memory_space<vmem>>, vector<8x8x32xf32>
    %774 = vector.extract_strided_slice %537 {offsets = [39, 0], sizes = [1, 32], strides = [1, 1]} : vector<49x32xf32> to vector<1x32xf32>
    %775 = vector.shape_cast %774 : vector<1x32xf32> to vector<1x1x32xf32>
    %776 = vector.broadcast %775 : vector<1x1x32xf32> to vector<8x8x32xf32>
    %777 = arith.mulf %773, %776 : vector<8x8x32xf32>
    %778 = arith.addf %772, %777 : vector<8x8x32xf32>
    %c5_457 = arith.constant 5 : index
    %c5_458 = arith.constant 5 : index
    %c0_459 = arith.constant 0 : index
    %779 = vector.load %arg22[%c5_457, %c5_458, %c0_459] : memref<14x14x32xf32, #tpu.memory_space<vmem>>, vector<8x8x32xf32>
    %780 = vector.extract_strided_slice %537 {offsets = [40, 0], sizes = [1, 32], strides = [1, 1]} : vector<49x32xf32> to vector<1x32xf32>
    %781 = vector.shape_cast %780 : vector<1x32xf32> to vector<1x1x32xf32>
    %782 = vector.broadcast %781 : vector<1x1x32xf32> to vector<8x8x32xf32>
    %783 = arith.mulf %779, %782 : vector<8x8x32xf32>
    %784 = arith.addf %778, %783 : vector<8x8x32xf32>
    %c5_460 = arith.constant 5 : index
    %c6_461 = arith.constant 6 : index
    %c0_462 = arith.constant 0 : index
    %785 = vector.load %arg22[%c5_460, %c6_461, %c0_462] : memref<14x14x32xf32, #tpu.memory_space<vmem>>, vector<8x8x32xf32>
    %786 = vector.extract_strided_slice %537 {offsets = [41, 0], sizes = [1, 32], strides = [1, 1]} : vector<49x32xf32> to vector<1x32xf32>
    %787 = vector.shape_cast %786 : vector<1x32xf32> to vector<1x1x32xf32>
    %788 = vector.broadcast %787 : vector<1x1x32xf32> to vector<8x8x32xf32>
    %789 = arith.mulf %785, %788 : vector<8x8x32xf32>
    %790 = arith.addf %784, %789 : vector<8x8x32xf32>
    %c6_463 = arith.constant 6 : index
    %c0_464 = arith.constant 0 : index
    %c0_465 = arith.constant 0 : index
    %791 = vector.load %arg22[%c6_463, %c0_464, %c0_465] : memref<14x14x32xf32, #tpu.memory_space<vmem>>, vector<8x8x32xf32>
    %792 = vector.extract_strided_slice %537 {offsets = [42, 0], sizes = [1, 32], strides = [1, 1]} : vector<49x32xf32> to vector<1x32xf32>
    %793 = vector.shape_cast %792 : vector<1x32xf32> to vector<1x1x32xf32>
    %794 = vector.broadcast %793 : vector<1x1x32xf32> to vector<8x8x32xf32>
    %795 = arith.mulf %791, %794 : vector<8x8x32xf32>
    %796 = arith.addf %790, %795 : vector<8x8x32xf32>
    %c6_466 = arith.constant 6 : index
    %c1_467 = arith.constant 1 : index
    %c0_468 = arith.constant 0 : index
    %797 = vector.load %arg22[%c6_466, %c1_467, %c0_468] : memref<14x14x32xf32, #tpu.memory_space<vmem>>, vector<8x8x32xf32>
    %798 = vector.extract_strided_slice %537 {offsets = [43, 0], sizes = [1, 32], strides = [1, 1]} : vector<49x32xf32> to vector<1x32xf32>
    %799 = vector.shape_cast %798 : vector<1x32xf32> to vector<1x1x32xf32>
    %800 = vector.broadcast %799 : vector<1x1x32xf32> to vector<8x8x32xf32>
    %801 = arith.mulf %797, %800 : vector<8x8x32xf32>
    %802 = arith.addf %796, %801 : vector<8x8x32xf32>
    %c6_469 = arith.constant 6 : index
    %c2_470 = arith.constant 2 : index
    %c0_471 = arith.constant 0 : index
    %803 = vector.load %arg22[%c6_469, %c2_470, %c0_471] : memref<14x14x32xf32, #tpu.memory_space<vmem>>, vector<8x8x32xf32>
    %804 = vector.extract_strided_slice %537 {offsets = [44, 0], sizes = [1, 32], strides = [1, 1]} : vector<49x32xf32> to vector<1x32xf32>
    %805 = vector.shape_cast %804 : vector<1x32xf32> to vector<1x1x32xf32>
    %806 = vector.broadcast %805 : vector<1x1x32xf32> to vector<8x8x32xf32>
    %807 = arith.mulf %803, %806 : vector<8x8x32xf32>
    %808 = arith.addf %802, %807 : vector<8x8x32xf32>
    %c6_472 = arith.constant 6 : index
    %c3_473 = arith.constant 3 : index
    %c0_474 = arith.constant 0 : index
    %809 = vector.load %arg22[%c6_472, %c3_473, %c0_474] : memref<14x14x32xf32, #tpu.memory_space<vmem>>, vector<8x8x32xf32>
    %810 = vector.extract_strided_slice %537 {offsets = [45, 0], sizes = [1, 32], strides = [1, 1]} : vector<49x32xf32> to vector<1x32xf32>
    %811 = vector.shape_cast %810 : vector<1x32xf32> to vector<1x1x32xf32>
    %812 = vector.broadcast %811 : vector<1x1x32xf32> to vector<8x8x32xf32>
    %813 = arith.mulf %809, %812 : vector<8x8x32xf32>
    %814 = arith.addf %808, %813 : vector<8x8x32xf32>
    %c6_475 = arith.constant 6 : index
    %c4_476 = arith.constant 4 : index
    %c0_477 = arith.constant 0 : index
    %815 = vector.load %arg22[%c6_475, %c4_476, %c0_477] : memref<14x14x32xf32, #tpu.memory_space<vmem>>, vector<8x8x32xf32>
    %816 = vector.extract_strided_slice %537 {offsets = [46, 0], sizes = [1, 32], strides = [1, 1]} : vector<49x32xf32> to vector<1x32xf32>
    %817 = vector.shape_cast %816 : vector<1x32xf32> to vector<1x1x32xf32>
    %818 = vector.broadcast %817 : vector<1x1x32xf32> to vector<8x8x32xf32>
    %819 = arith.mulf %815, %818 : vector<8x8x32xf32>
    %820 = arith.addf %814, %819 : vector<8x8x32xf32>
    %c6_478 = arith.constant 6 : index
    %c5_479 = arith.constant 5 : index
    %c0_480 = arith.constant 0 : index
    %821 = vector.load %arg22[%c6_478, %c5_479, %c0_480] : memref<14x14x32xf32, #tpu.memory_space<vmem>>, vector<8x8x32xf32>
    %822 = vector.extract_strided_slice %537 {offsets = [47, 0], sizes = [1, 32], strides = [1, 1]} : vector<49x32xf32> to vector<1x32xf32>
    %823 = vector.shape_cast %822 : vector<1x32xf32> to vector<1x1x32xf32>
    %824 = vector.broadcast %823 : vector<1x1x32xf32> to vector<8x8x32xf32>
    %825 = arith.mulf %821, %824 : vector<8x8x32xf32>
    %826 = arith.addf %820, %825 : vector<8x8x32xf32>
    %c6_481 = arith.constant 6 : index
    %c6_482 = arith.constant 6 : index
    %c0_483 = arith.constant 0 : index
    %827 = vector.load %arg22[%c6_481, %c6_482, %c0_483] : memref<14x14x32xf32, #tpu.memory_space<vmem>>, vector<8x8x32xf32>
    %828 = vector.extract_strided_slice %537 {offsets = [48, 0], sizes = [1, 32], strides = [1, 1]} : vector<49x32xf32> to vector<1x32xf32>
    %829 = vector.shape_cast %828 : vector<1x32xf32> to vector<1x1x32xf32>
    %830 = vector.broadcast %829 : vector<1x1x32xf32> to vector<8x8x32xf32>
    %831 = arith.mulf %827, %830 : vector<8x8x32xf32>
    %832 = arith.addf %826, %831 : vector<8x8x32xf32>
    %c0_484 = arith.constant 0 : index
    %c0_485 = arith.constant 0 : index
    %833 = vector.load %arg14[%c0_484, %c0_485] : memref<1x32xf32, #tpu.memory_space<vmem>>, vector<1x32xf32>
    %834 = vector.shape_cast %833 : vector<1x32xf32> to vector<1x1x32xf32>
    %835 = vector.broadcast %834 : vector<1x1x32xf32> to vector<8x8x32xf32>
    %836 = arith.mulf %832, %835 : vector<8x8x32xf32>
    %c0_486 = arith.constant 0 : index
    %c0_487 = arith.constant 0 : index
    %837 = vector.load %arg15[%c0_486, %c0_487] : memref<1x32xf32, #tpu.memory_space<vmem>>, vector<1x32xf32>
    %838 = vector.shape_cast %837 : vector<1x32xf32> to vector<1x1x32xf32>
    %839 = vector.broadcast %838 : vector<1x1x32xf32> to vector<8x8x32xf32>
    %840 = arith.addf %836, %839 : vector<8x8x32xf32>
    %841 = vector.shape_cast %840 : vector<8x8x32xf32> to vector<64x32xf32>
    %842 = arith.truncf %841 : vector<64x32xf32> to vector<64x32xbf16>
    %c0_488 = arith.constant 0 : index
    %c0_489 = arith.constant 0 : index
    %843 = vector.load %arg16[%c0_488, %c0_489] : memref<32x64xbf16, #tpu.memory_space<vmem>>, vector<32x64xbf16>
    %cst_490 = arith.constant dense<0.000000e+00> : vector<64x64xf32>
    %844 = tpu.matmul %842, %843, %cst_490 {dimension_numbers = #tpu.dot_dimension_numbers<[1], [0], [0], [1], [0, 0, 1, 1], [], []>} : vector<64x32xbf16>, vector<32x64xbf16>, vector<64x64xf32> -> vector<64x64xf32>
    %c0_491 = arith.constant 0 : index
    %c0_492 = arith.constant 0 : index
    %845 = vector.load %arg17[%c0_491, %c0_492] : memref<1x64xf32, #tpu.memory_space<vmem>>, vector<1x64xf32>
    %846 = vector.broadcast %845 : vector<1x64xf32> to vector<64x64xf32>
    %847 = arith.addf %844, %846 : vector<64x64xf32>
    %cst_493 = arith.constant 0.000000e+00 : f32
    %848 = vector.broadcast %cst_493 : f32 to vector<64x64xf32>
    %849 = arith.maximumf %847, %848 : vector<64x64xf32>
    %850 = arith.truncf %849 : vector<64x64xf32> to vector<64x64xbf16>
    %c0_494 = arith.constant 0 : index
    %c0_495 = arith.constant 0 : index
    %851 = vector.load %arg18[%c0_494, %c0_495] : memref<64x32xbf16, #tpu.memory_space<vmem>>, vector<64x32xbf16>
    %cst_496 = arith.constant dense<0.000000e+00> : vector<64x32xf32>
    %852 = tpu.matmul %850, %851, %cst_496 {dimension_numbers = #tpu.dot_dimension_numbers<[1], [0], [0], [1], [0, 0, 1, 1], [], []>} : vector<64x64xbf16>, vector<64x32xbf16>, vector<64x32xf32> -> vector<64x32xf32>
    %c0_497 = arith.constant 0 : index
    %c0_498 = arith.constant 0 : index
    %853 = vector.load %arg19[%c0_497, %c0_498] : memref<1x32xf32, #tpu.memory_space<vmem>>, vector<1x32xf32>
    %854 = vector.broadcast %853 : vector<1x32xf32> to vector<64x32xf32>
    %855 = arith.addf %852, %854 : vector<64x32xf32>
    %856 = arith.addf %855, %529 : vector<64x32xf32>
    %c0_499 = arith.constant 0 : index
    %c0_500 = arith.constant 0 : index
    %c0_501 = arith.constant 0 : index
    %857 = vector.load %arg20[%c0_499, %c0_500, %c0_501] : memref<1x64x32xf32, #tpu.memory_space<vmem>>, vector<1x64x32xf32>
    %858 = vector.shape_cast %857 : vector<1x64x32xf32> to vector<64x32xf32>
    %859 = vector.shape_cast %856 : vector<64x32xf32> to vector<1x64x32xf32>
    tpu.vector_store %arg20[%c0_499, %c0_500, %c0_501], %859 {strides = array<i32>} : memref<1x64x32xf32, #tpu.memory_space<vmem>>, vector<1x64x32xf32>,
    return
  }
  func.func @transform_0(%arg0: i32) -> (i32, i32, i32, i32, i32) {
    %c0_i32 = arith.constant 0 : i32
    %c0_i32_0 = arith.constant 0 : i32
    %c0_i32_1 = arith.constant 0 : i32
    %c0_i32_2 = arith.constant 0 : i32
    %c0_i32_3 = arith.constant 0 : i32
    return %arg0, %c0_i32, %c0_i32_0, %c0_i32_1, %c0_i32_2 : i32, i32, i32, i32, i32
  }
  func.func @transform_1(%arg0: i32) -> (i32, i32) {
    %c0_i32 = arith.constant 0 : i32
    %c0_i32_0 = arith.constant 0 : i32
    %c0_i32_1 = arith.constant 0 : i32
    return %c0_i32, %c0_i32_0 : i32, i32
  }
  func.func @transform_2(%arg0: i32) -> (i32, i32) {
    %c0_i32 = arith.constant 0 : i32
    %c0_i32_0 = arith.constant 0 : i32
    %c0_i32_1 = arith.constant 0 : i32
    return %c0_i32, %c0_i32_0 : i32, i32
  }
  func.func @transform_3(%arg0: i32) -> (i32, i32) {
    %c0_i32 = arith.constant 0 : i32
    %c0_i32_0 = arith.constant 0 : i32
    %c0_i32_1 = arith.constant 0 : i32
    return %c0_i32, %c0_i32_0 : i32, i32
  }
  func.func @transform_4(%arg0: i32) -> (i32, i32) {
    %c0_i32 = arith.constant 0 : i32
    %c0_i32_0 = arith.constant 0 : i32
    %c0_i32_1 = arith.constant 0 : i32
    return %c0_i32, %c0_i32_0 : i32, i32
  }
  func.func @transform_5(%arg0: i32) -> (i32, i32) {
    %c0_i32 = arith.constant 0 : i32
    %c0_i32_0 = arith.constant 0 : i32
    %c0_i32_1 = arith.constant 0 : i32
    return %c0_i32, %c0_i32_0 : i32, i32
  }
  func.func @transform_6(%arg0: i32) -> (i32, i32) {
    %c0_i32 = arith.constant 0 : i32
    %c0_i32_0 = arith.constant 0 : i32
    %c0_i32_1 = arith.constant 0 : i32
    return %c0_i32, %c0_i32_0 : i32, i32
  }
  func.func @transform_7(%arg0: i32) -> (i32, i32) {
    %c0_i32 = arith.constant 0 : i32
    %c0_i32_0 = arith.constant 0 : i32
    %c0_i32_1 = arith.constant 0 : i32
    return %c0_i32, %c0_i32_0 : i32, i32
  }
  func.func @transform_8(%arg0: i32) -> (i32, i32) {
    %c0_i32 = arith.constant 0 : i32
    %c0_i32_0 = arith.constant 0 : i32
    %c0_i32_1 = arith.constant 0 : i32
    return %c0_i32, %c0_i32_0 : i32, i32
  }
  func.func @transform_9(%arg0: i32) -> (i32, i32) {
    %c0_i32 = arith.constant 0 : i32
    %c0_i32_0 = arith.constant 0 : i32
    %c0_i32_1 = arith.constant 0 : i32
    return %c0_i32, %c0_i32_0 : i32, i32
  }
  func.func @transform_10(%arg0: i32) -> (i32, i32) {
    %c0_i32 = arith.constant 0 : i32
    %c0_i32_0 = arith.constant 0 : i32
    %c0_i32_1 = arith.constant 0 : i32
    return %c0_i32, %c0_i32_0 : i32, i32
  }
  func.func @transform_11(%arg0: i32) -> (i32, i32) {
    %c0_i32 = arith.constant 0 : i32
    %c0_i32_0 = arith.constant 0 : i32
    %c0_i32_1 = arith.constant 0 : i32
    return %c0_i32, %c0_i32_0 : i32, i32
  }
  func.func @transform_12(%arg0: i32) -> (i32, i32) {
    %c0_i32 = arith.constant 0 : i32
    %c0_i32_0 = arith.constant 0 : i32
    %c0_i32_1 = arith.constant 0 : i32
    return %c0_i32, %c0_i32_0 : i32, i32
  }
  func.func @transform_13(%arg0: i32) -> (i32, i32) {
    %c0_i32 = arith.constant 0 : i32
    %c0_i32_0 = arith.constant 0 : i32
    %c0_i32_1 = arith.constant 0 : i32
    return %c0_i32, %c0_i32_0 : i32, i32
  }
  func.func @transform_14(%arg0: i32) -> (i32, i32) {
    %c0_i32 = arith.constant 0 : i32
    %c0_i32_0 = arith.constant 0 : i32
    %c0_i32_1 = arith.constant 0 : i32
    return %c0_i32, %c0_i32_0 : i32, i32
  }
  func.func @transform_15(%arg0: i32) -> (i32, i32) {
    %c0_i32 = arith.constant 0 : i32
    %c0_i32_0 = arith.constant 0 : i32
    %c0_i32_1 = arith.constant 0 : i32
    return %c0_i32, %c0_i32_0 : i32, i32
  }
  func.func @transform_16(%arg0: i32) -> (i32, i32) {
    %c0_i32 = arith.constant 0 : i32
    %c0_i32_0 = arith.constant 0 : i32
    %c0_i32_1 = arith.constant 0 : i32
    return %c0_i32, %c0_i32_0 : i32, i32
  }
  func.func @transform_17(%arg0: i32) -> (i32, i32) {
    %c0_i32 = arith.constant 0 : i32
    %c0_i32_0 = arith.constant 0 : i32
    %c0_i32_1 = arith.constant 0 : i32
    return %c0_i32, %c0_i32_0 : i32, i32
  }
  func.func @transform_18(%arg0: i32) -> (i32, i32) {
    %c0_i32 = arith.constant 0 : i32
    %c0_i32_0 = arith.constant 0 : i32
    %c0_i32_1 = arith.constant 0 : i32
    return %c0_i32, %c0_i32_0 : i32, i32
  }
  func.func @transform_19(%arg0: i32) -> (i32, i32, i32) {
    %c0_i32 = arith.constant 0 : i32
    %c0_i32_0 = arith.constant 0 : i32
    %c0_i32_1 = arith.constant 0 : i32
    return %arg0, %c0_i32, %c0_i32_0 : i32, i32, i32
  }
}

</mosaic_0001>

<llo_original>
// kernel: dwon_stage_forward.1
$region0: #{dwon_stage_forward.1}
  #allocation0 [shape = 'u32[]', space=smem, size = 0x4, offset = 0x4, fixed_abs, tag = 'smem constant byte address 0x4 - core index']
  #allocation1 [shape = 'u32[144,128]{1,0:T(1,128)}', space=vmem, size = 0x12000, scoped, tag = 'internal scratch']
  #allocation2 [shape = 'f32[10,10,32]{2,1,0:T(8,128)}', space=vmem, size = 0x14000, scoped, tag = 'scratch operand']
  #allocation3 [shape = 'f32[14,14,32]{2,1,0:T(8,128)}', space=vmem, size = 0x1c000, scoped, tag = 'scratch operand']
  %s0 = inlined_call_operand.vmem [shape: f32[2,4,11,11,16], index: 0, kind: input, shape index: {}]
  %s1 = inlined_call_operand.vmem [shape: f32[49,16], index: 1, kind: input, shape index: {}]
  %s2 = inlined_call_operand.vmem [shape: f32[1,16], index: 2, kind: input, shape index: {}]
  %s3 = inlined_call_operand.vmem [shape: bf16[16,32], index: 3, kind: input, shape index: {}]
  %s4 = inlined_call_operand.vmem [shape: f32[1,32], index: 4, kind: input, shape index: {}]
  %s5 = inlined_call_operand.vmem [shape: f32[9,32], index: 5, kind: input, shape index: {}]
  %s6 = inlined_call_operand.vmem [shape: f32[1,32], index: 6, kind: input, shape index: {}]
  %s7 = inlined_call_operand.vmem [shape: f32[1,32], index: 7, kind: input, shape index: {}]
  %s8 = inlined_call_operand.vmem [shape: f32[1,32], index: 8, kind: input, shape index: {}]
  %s9 = inlined_call_operand.vmem [shape: bf16[32,96], index: 9, kind: input, shape index: {}]
  %s10 = inlined_call_operand.vmem [shape: bf16[32,32], index: 10, kind: input, shape index: {}]
  %s11 = inlined_call_operand.vmem [shape: f32[1,32], index: 11, kind: input, shape index: {}]
  %s12 = inlined_call_operand.vmem [shape: f32[49,32], index: 12, kind: input, shape index: {}]
  %s13 = inlined_call_operand.vmem [shape: f32[1,32], index: 13, kind: input, shape index: {}]
  %s14 = inlined_call_operand.vmem [shape: f32[1,32], index: 14, kind: input, shape index: {}]
  %s15 = inlined_call_operand.vmem [shape: bf16[32,64], index: 15, kind: input, shape index: {}]
  %s16 = inlined_call_operand.vmem [shape: f32[1,64], index: 16, kind: input, shape index: {}]
  %s17 = inlined_call_operand.vmem [shape: bf16[64,32], index: 17, kind: input, shape index: {}]
  %s18 = inlined_call_operand.vmem [shape: f32[1,32], index: 18, kind: input, shape index: {}]
  %s19 = inlined_call_operand.hbm [shape: f32[2,64,32], index: 19, kind: output, shape index: {}]
  %s20 = sld [smem:[#allocation0]]
  $region109: #{dwon_stage_forward.1} parent=0
    _
  %s22 = ssub.s32 1, %s20
  %s23 = scalar_select 0, %s22, %s20
  $region1: #{dwon_stage_forward.1} parent=0
    #allocation4 [shape = 'u8[65536]{0}', space=vmem, size = 0x10000, scoped, tag = 'output window, operand 0']
    #allocation5 [shape = 's32[2]{0}', space=sflag, size = 0x8, scoped, tag = 'scoped memory for dwon_stage_forward.1']
    %24 = vsyncpa [#allocation5], 0
    %s25 = scalar_lea.sflag [#allocation5], 1
    %26 = vsyncpa %s25, 0
    loop: start=0, step=1, limit=4
    $region2: #{dwon_stage_forward.1} parent=1 // loop_pre_header
      _
    $region3: #{dwon_stage_forward.1} parent=1 // loop_header
      %s28 = sphi 0, %s32
      %p29 = scmp.ge.s32.totalorder %s28, 4
      %s38 = sphi 0, %s40
      %s41 = sphi 0, %s38
      %s42 = sphi 0, %s41
      %s58 = sphi 0, %s42
      %s62 = sphi 0, %s62
      %s64 = sphi 0, %s62
      %s65 = sphi 0, %s64
      %s79 = sphi 0, %s65
      %s83 = sphi 0, %s83
      %s85 = sphi 0, %s83
      %s86 = sphi 0, %s85
      %s100 = sphi 0, %s86
      %s104 = sphi 0, %s104
      %s106 = sphi 0, %s104
      %s107 = sphi 0, %s106
      %s121 = sphi 0, %s107
      %s125 = sphi 0, %s125
      %s127 = sphi 0, %s125
      %s128 = sphi 0, %s127
      %s142 = sphi 0, %s128
      %s146 = sphi 0, %s146
      %s148 = sphi 0, %s146
      %s149 = sphi 0, %s148
      %s163 = sphi 0, %s149
      %s167 = sphi 0, %s167
      %s169 = sphi 0, %s167
      %s170 = sphi 0, %s169
      %s184 = sphi 0, %s170
      %s188 = sphi 0, %s188
      %s190 = sphi 0, %s188
      %s191 = sphi 0, %s190
      %s205 = sphi 0, %s191
      %s209 = sphi 0, %s209
      %s211 = sphi 0, %s209
      %s212 = sphi 0, %s211
      %s226 = sphi 0, %s212
      %s230 = sphi 0, %s230
      %s232 = sphi 0, %s230
      %s233 = sphi 0, %s232
      %s247 = sphi 0, %s233
      %s251 = sphi 0, %s251
      %s253 = sphi 0, %s251
      %s254 = sphi 0, %s253
      %s268 = sphi 0, %s254
      %s272 = sphi 0, %s272
      %s274 = sphi 0, %s272
      %s275 = sphi 0, %s274
      %s289 = sphi 0, %s275
      %s293 = sphi 0, %s293
      %s295 = sphi 0, %s293
      %s296 = sphi 0, %s295
      %s310 = sphi 0, %s296
      %s314 = sphi 0, %s314
      %s316 = sphi 0, %s314
      %s317 = sphi 0, %s316
      %s331 = sphi 0, %s317
      %s335 = sphi 0, %s335
      %s337 = sphi 0, %s335
      %s338 = sphi 0, %s337
      %s352 = sphi 0, %s338
      %s356 = sphi 0, %s356
      %s358 = sphi 0, %s356
      %s359 = sphi 0, %s358
      %s373 = sphi 0, %s359
      %s377 = sphi 0, %s377
      %s379 = sphi 0, %s377
      %s380 = sphi 0, %s379
      %s394 = sphi 0, %s380
      %s398 = sphi 0, %s398
      %s400 = sphi 0, %s398
      %s401 = sphi 0, %s400
      %s415 = sphi 0, %s401
      %s419 = sphi 0, %s419
      %s421 = sphi 0, %s419
      %s422 = sphi 0, %s421
      %s436 = sphi 0, %s422
      %s442 = sphi 0, %s444
      %s445 = sphi 0, %s442
      %s446 = sphi 0, %s445
      %s462 = sphi 0, %s446
    $region4: #{dwon_stage_forward.1} parent=1 // loop_header_branch
      %31 = sbr.rel (%p29) target = $region8
    $region5: #{dwon_stage_forward.1} parent=1 // loop_body
      %s33 = ssub.s32 %s28, 1
      %s34 = ssub.s32 %s28, 2
      %s35 = sadd.s32 %s28, 1
      %s36 = ssub.s32 %s28, %s35
      %p37 = scmp.eq.s32.totalorder %s36, 0
      %s39 = sadd.s32 %s38, 1
      %s40 = scalar_select %p37, %s38, %s39
      %p43 = pneg %p37
      %p44 = scmp.eq.s32.totalorder %s28, 1
      %p45 = por %p43, %p44
      %p46 = scmp.ne.s32.totalorder %s38, %s41
      %p47 = scmp.eq.s32.totalorder %s28, 0
      %p48 = por %p46, %p47
      %p49 = scmp.ne.s32.totalorder %s38, %s41
      %p50 = scmp.eq.s32.totalorder %s33, 1
      %p51 = por %p49, %p50
      %p52 = scmp.ne.s32.totalorder %s41, %s42
      %p53 = scmp.eq.s32.totalorder %s33, 0
      %p54 = por %p52, %p53
      %p55 = scmp.ne.s32.totalorder %s41, %s42
      %p56 = scmp.eq.s32.totalorder %s34, 1
      %p57 = por %p55, %p56
      %p59 = scmp.ne.s32.totalorder %s42, %s58
      %p60 = scmp.eq.s32.totalorder %s34, 0
      %p61 = por %p59, %p60
      %s63 = sadd.s32 %s62, 1
      %p66 = scmp.eq.s32.totalorder %s28, 1
      %p67 = scmp.ne.s32.totalorder %s62, %s64
      %p68 = scmp.eq.s32.totalorder %s28, 0
      %p69 = por %p67, %p68
      %p70 = scmp.ne.s32.totalorder %s62, %s64
      %p71 = scmp.eq.s32.totalorder %s33, 1
      %p72 = por %p70, %p71
      %p73 = scmp.ne.s32.totalorder %s64, %s65
      %p74 = scmp.eq.s32.totalorder %s33, 0
      %p75 = por %p73, %p74
      %p76 = scmp.ne.s32.totalorder %s64, %s65
      %p77 = scmp.eq.s32.totalorder %s34, 1
      %p78 = por %p76, %p77
      %p80 = scmp.ne.s32.totalorder %s65, %s79
      %p81 = scmp.eq.s32.totalorder %s34, 0
      %p82 = por %p80, %p81
      %s84 = sadd.s32 %s83, 1
      %p87 = scmp.eq.s32.totalorder %s28, 1
      %p88 = scmp.ne.s32.totalorder %s83, %s85
      %p89 = scmp.eq.s32.totalorder %s28, 0
      %p90 = por %p88, %p89
      %p91 = scmp.ne.s32.totalorder %s83, %s85
      %p92 = scmp.eq.s32.totalorder %s33, 1
      %p93 = por %p91, %p92
      %p94 = scmp.ne.s32.totalorder %s85, %s86
      %p95 = scmp.eq.s32.totalorder %s33, 0
      %p96 = por %p94, %p95
      %p97 = scmp.ne.s32.totalorder %s85, %s86
      %p98 = scmp.eq.s32.totalorder %s34, 1
      %p99 = por %p97, %p98
      %p101 = scmp.ne.s32.totalorder %s86, %s100
      %p102 = scmp.eq.s32.totalorder %s34, 0
      %p103 = por %p101, %p102
      %s105 = sadd.s32 %s104, 1
      %p108 = scmp.eq.s32.totalorder %s28, 1
      %p109 = scmp.ne.s32.totalorder %s104, %s106
      %p110 = scmp.eq.s32.totalorder %s28, 0
      %p111 = por %p109, %p110
      %p112 = scmp.ne.s32.totalorder %s104, %s106
      %p113 = scmp.eq.s32.totalorder %s33, 1
      %p114 = por %p112, %p113
      %p115 = scmp.ne.s32.totalorder %s106, %s107
      %p116 = scmp.eq.s32.totalorder %s33, 0
      %p117 = por %p115, %p116
      %p118 = scmp.ne.s32.totalorder %s106, %s107
      %p119 = scmp.eq.s32.totalorder %s34, 1
      %p120 = por %p118, %p119
      %p122 = scmp.ne.s32.totalorder %s107, %s121
      %p123 = scmp.eq.s32.totalorder %s34, 0
      %p124 = por %p122, %p123
      %s126 = sadd.s32 %s125, 1
      %p129 = scmp.eq.s32.totalorder %s28, 1
      %p130 = scmp.ne.s32.totalorder %s125, %s127
      %p131 = scmp.eq.s32.totalorder %s28, 0
      %p132 = por %p130, %p131
      %p133 = scmp.ne.s32.totalorder %s125, %s127
      %p134 = scmp.eq.s32.totalorder %s33, 1
      %p135 = por %p133, %p134
      %p136 = scmp.ne.s32.totalorder %s127, %s128
      %p137 = scmp.eq.s32.totalorder %s33, 0
      %p138 = por %p136, %p137
      %p139 = scmp.ne.s32.totalorder %s127, %s128
      %p140 = scmp.eq.s32.totalorder %s34, 1
      %p141 = por %p139, %p140
      %p143 = scmp.ne.s32.totalorder %s128, %s142
      %p144 = scmp.eq.s32.totalorder %s34, 0
      %p145 = por %p143, %p144
      %s147 = sadd.s32 %s146, 1
      %p150 = scmp.eq.s32.totalorder %s28, 1
      %p151 = scmp.ne.s32.totalorder %s146, %s148
      %p152 = scmp.eq.s32.totalorder %s28, 0
      %p153 = por %p151, %p152
      %p154 = scmp.ne.s32.totalorder %s146, %s148
      %p155 = scmp.eq.s32.totalorder %s33, 1
      %p156 = por %p154, %p155
      %p157 = scmp.ne.s32.totalorder %s148, %s149
      %p158 = scmp.eq.s32.totalorder %s33, 0
      %p159 = por %p157, %p158
      %p160 = scmp.ne.s32.totalorder %s148, %s149
      %p161 = scmp.eq.s32.totalorder %s34, 1
      %p162 = por %p160, %p161
      %p164 = scmp.ne.s32.totalorder %s149, %s163
      %p165 = scmp.eq.s32.totalorder %s34, 0
      %p166 = por %p164, %p165
      %s168 = sadd.s32 %s167, 1
      %p171 = scmp.eq.s32.totalorder %s28, 1
      %p172 = scmp.ne.s32.totalorder %s167, %s169
      %p173 = scmp.eq.s32.totalorder %s28, 0
      %p174 = por %p172, %p173
      %p175 = scmp.ne.s32.totalorder %s167, %s169
      %p176 = scmp.eq.s32.totalorder %s33, 1
      %p177 = por %p175, %p176
      %p178 = scmp.ne.s32.totalorder %s169, %s170
      %p179 = scmp.eq.s32.totalorder %s33, 0
      %p180 = por %p178, %p179
      %p181 = scmp.ne.s32.totalorder %s169, %s170
      %p182 = scmp.eq.s32.totalorder %s34, 1
      %p183 = por %p181, %p182
      %p185 = scmp.ne.s32.totalorder %s170, %s184
      %p186 = scmp.eq.s32.totalorder %s34, 0
      %p187 = por %p185, %p186
      %s189 = sadd.s32 %s188, 1
      %p192 = scmp.eq.s32.totalorder %s28, 1
      %p193 = scmp.ne.s32.totalorder %s188, %s190
      %p194 = scmp.eq.s32.totalorder %s28, 0
      %p195 = por %p193, %p194
      %p196 = scmp.ne.s32.totalorder %s188, %s190
      %p197 = scmp.eq.s32.totalorder %s33, 1
      %p198 = por %p196, %p197
      %p199 = scmp.ne.s32.totalorder %s190, %s191
      %p200 = scmp.eq.s32.totalorder %s33, 0
      %p201 = por %p199, %p200
      %p202 = scmp.ne.s32.totalorder %s190, %s191
      %p203 = scmp.eq.s32.totalorder %s34, 1
      %p204 = por %p202, %p203
      %p206 = scmp.ne.s32.totalorder %s191, %s205
      %p207 = scmp.eq.s32.totalorder %s34, 0
      %p208 = por %p206, %p207
      %s210 = sadd.s32 %s209, 1
      %p213 = scmp.eq.s32.totalorder %s28, 1
      %p214 = scmp.ne.s32.totalorder %s209, %s211
      %p215 = scmp.eq.s32.totalorder %s28, 0
      %p216 = por %p214, %p215
      %p217 = scmp.ne.s32.totalorder %s209, %s211
      %p218 = scmp.eq.s32.totalorder %s33, 1
      %p219 = por %p217, %p218
      %p220 = scmp.ne.s32.totalorder %s211, %s212
      %p221 = scmp.eq.s32.totalorder %s33, 0
      %p222 = por %p220, %p221
      %p223 = scmp.ne.s32.totalorder %s211, %s212
      %p224 = scmp.eq.s32.totalorder %s34, 1
      %p225 = por %p223, %p224
      %p227 = scmp.ne.s32.totalorder %s212, %s226
      %p228 = scmp.eq.s32.totalorder %s34, 0
      %p229 = por %p227, %p228
      %s231 = sadd.s32 %s230, 1
      %p234 = scmp.eq.s32.totalorder %s28, 1
      %p235 = scmp.ne.s32.totalorder %s230, %s232
      %p236 = scmp.eq.s32.totalorder %s28, 0
      %p237 = por %p235, %p236
      %p238 = scmp.ne.s32.totalorder %s230, %s232
      %p239 = scmp.eq.s32.totalorder %s33, 1
      %p240 = por %p238, %p239
      %p241 = scmp.ne.s32.totalorder %s232, %s233
      %p242 = scmp.eq.s32.totalorder %s33, 0
      %p243 = por %p241, %p242
      %p244 = scmp.ne.s32.totalorder %s232, %s233
      %p245 = scmp.eq.s32.totalorder %s34, 1
      %p246 = por %p244, %p245
      %p248 = scmp.ne.s32.totalorder %s233, %s247
      %p249 = scmp.eq.s32.totalorder %s34, 0
      %p250 = por %p248, %p249
      %s252 = sadd.s32 %s251, 1
      %p255 = scmp.eq.s32.totalorder %s28, 1
      %p256 = scmp.ne.s32.totalorder %s251, %s253
      %p257 = scmp.eq.s32.totalorder %s28, 0
      %p258 = por %p256, %p257
      %p259 = scmp.ne.s32.totalorder %s251, %s253
      %p260 = scmp.eq.s32.totalorder %s33, 1
      %p261 = por %p259, %p260
      %p262 = scmp.ne.s32.totalorder %s253, %s254
      %p263 = scmp.eq.s32.totalorder %s33, 0
      %p264 = por %p262, %p263
      %p265 = scmp.ne.s32.totalorder %s253, %s254
      %p266 = scmp.eq.s32.totalorder %s34, 1
      %p267 = por %p265, %p266
      %p269 = scmp.ne.s32.totalorder %s254, %s268
      %p270 = scmp.eq.s32.totalorder %s34, 0
      %p271 = por %p269, %p270
      %s273 = sadd.s32 %s272, 1
      %p276 = scmp.eq.s32.totalorder %s28, 1
      %p277 = scmp.ne.s32.totalorder %s272, %s274
      %p278 = scmp.eq.s32.totalorder %s28, 0
      %p279 = por %p277, %p278
      %p280 = scmp.ne.s32.totalorder %s272, %s274
      %p281 = scmp.eq.s32.totalorder %s33, 1
      %p282 = por %p280, %p281
      %p283 = scmp.ne.s32.totalorder %s274, %s275
      %p284 = scmp.eq.s32.totalorder %s33, 0
      %p285 = por %p283, %p284
      %p286 = scmp.ne.s32.totalorder %s274, %s275
      %p287 = scmp.eq.s32.totalorder %s34, 1
      %p288 = por %p286, %p287
      %p290 = scmp.ne.s32.totalorder %s275, %s289
      %p291 = scmp.eq.s32.totalorder %s34, 0
      %p292 = por %p290, %p291
      %s294 = sadd.s32 %s293, 1
      %p297 = scmp.eq.s32.totalorder %s28, 1
      %p298 = scmp.ne.s32.totalorder %s293, %s295
      %p299 = scmp.eq.s32.totalorder %s28, 0
      %p300 = por %p298, %p299
      %p301 = scmp.ne.s32.totalorder %s293, %s295
      %p302 = scmp.eq.s32.totalorder %s33, 1
      %p303 = por %p301, %p302
      %p304 = scmp.ne.s32.totalorder %s295, %s296
      %p305 = scmp.eq.s32.totalorder %s33, 0
      %p306 = por %p304, %p305
      %p307 = scmp.ne.s32.totalorder %s295, %s296
      %p308 = scmp.eq.s32.totalorder %s34, 1
      %p309 = por %p307, %p308
      %p311 = scmp.ne.s32.totalorder %s296, %s310
      %p312 = scmp.eq.s32.totalorder %s34, 0
      %p313 = por %p311, %p312
      %s315 = sadd.s32 %s314, 1
      %p318 = scmp.eq.s32.totalorder %s28, 1
      %p319 = scmp.ne.s32.totalorder %s314, %s316
      %p320 = scmp.eq.s32.totalorder %s28, 0
      %p321 = por %p319, %p320
      %p322 = scmp.ne.s32.totalorder %s314, %s316
      %p323 = scmp.eq.s32.totalorder %s33, 1
      %p324 = por %p322, %p323
      %p325 = scmp.ne.s32.totalorder %s316, %s317
      %p326 = scmp.eq.s32.totalorder %s33, 0
      %p327 = por %p325, %p326
      %p328 = scmp.ne.s32.totalorder %s316, %s317
      %p329 = scmp.eq.s32.totalorder %s34, 1
      %p330 = por %p328, %p329
      %p332 = scmp.ne.s32.totalorder %s317, %s331
      %p333 = scmp.eq.s32.totalorder %s34, 0
      %p334 = por %p332, %p333
      %s336 = sadd.s32 %s335, 1
      %p339 = scmp.eq.s32.totalorder %s28, 1
      %p340 = scmp.ne.s32.totalorder %s335, %s337
      %p341 = scmp.eq.s32.totalorder %s28, 0
      %p342 = por %p340, %p341
      %p343 = scmp.ne.s32.totalorder %s335, %s337
      %p344 = scmp.eq.s32.totalorder %s33, 1
      %p345 = por %p343, %p344
      %p346 = scmp.ne.s32.totalorder %s337, %s338
      %p347 = scmp.eq.s32.totalorder %s33, 0
      %p348 = por %p346, %p347
      %p349 = scmp.ne.s32.totalorder %s337, %s338
      %p350 = scmp.eq.s32.totalorder %s34, 1
      %p351 = por %p349, %p350
      %p353 = scmp.ne.s32.totalorder %s338, %s352
      %p354 = scmp.eq.s32.totalorder %s34, 0
      %p355 = por %p353, %p354
      %s357 = sadd.s32 %s356, 1
      %p360 = scmp.eq.s32.totalorder %s28, 1
      %p361 = scmp.ne.s32.totalorder %s356, %s358
      %p362 = scmp.eq.s32.totalorder %s28, 0
      %p363 = por %p361, %p362
      %p364 = scmp.ne.s32.totalorder %s356, %s358
      %p365 = scmp.eq.s32.totalorder %s33, 1
      %p366 = por %p364, %p365
      %p367 = scmp.ne.s32.totalorder %s358, %s359
      %p368 = scmp.eq.s32.totalorder %s33, 0
      %p369 = por %p367, %p368
      %p370 = scmp.ne.s32.totalorder %s358, %s359
      %p371 = scmp.eq.s32.totalorder %s34, 1
      %p372 = por %p370, %p371
      %p374 = scmp.ne.s32.totalorder %s359, %s373
      %p375 = scmp.eq.s32.totalorder %s34, 0
      %p376 = por %p374, %p375
      %s378 = sadd.s32 %s377, 1
      %p381 = scmp.eq.s32.totalorder %s28, 1
      %p382 = scmp.ne.s32.totalorder %s377, %s379
      %p383 = scmp.eq.s32.totalorder %s28, 0
      %p384 = por %p382, %p383
      %p385 = scmp.ne.s32.totalorder %s377, %s379
      %p386 = scmp.eq.s32.totalorder %s33, 1
      %p387 = por %p385, %p386
      %p388 = scmp.ne.s32.totalorder %s379, %s380
      %p389 = scmp.eq.s32.totalorder %s33, 0
      %p390 = por %p388, %p389
      %p391 = scmp.ne.s32.totalorder %s379, %s380
      %p392 = scmp.eq.s32.totalorder %s34, 1
      %p393 = por %p391, %p392
      %p395 = scmp.ne.s32.totalorder %s380, %s394
      %p396 = scmp.eq.s32.totalorder %s34, 0
      %p397 = por %p395, %p396
      %s399 = sadd.s32 %s398, 1
      %p402 = scmp.eq.s32.totalorder %s28, 1
      %p403 = scmp.ne.s32.totalorder %s398, %s400
      %p404 = scmp.eq.s32.totalorder %s28, 0
      %p405 = por %p403, %p404
      %p406 = scmp.ne.s32.totalorder %s398, %s400
      %p407 = scmp.eq.s32.totalorder %s33, 1
      %p408 = por %p406, %p407
      %p409 = scmp.ne.s32.totalorder %s400, %s401
      %p410 = scmp.eq.s32.totalorder %s33, 0
      %p411 = por %p409, %p410
      %p412 = scmp.ne.s32.totalorder %s400, %s401
      %p413 = scmp.eq.s32.totalorder %s34, 1
      %p414 = por %p412, %p413
      %p416 = scmp.ne.s32.totalorder %s401, %s415
      %p417 = scmp.eq.s32.totalorder %s34, 0
      %p418 = por %p416, %p417
      %s420 = sadd.s32 %s419, 1
      %p423 = scmp.eq.s32.totalorder %s28, 1
      %p424 = scmp.ne.s32.totalorder %s419, %s421
      %p425 = scmp.eq.s32.totalorder %s28, 0
      %p426 = por %p424, %p425
      %p427 = scmp.ne.s32.totalorder %s419, %s421
      %p428 = scmp.eq.s32.totalorder %s33, 1
      %p429 = por %p427, %p428
      %p430 = scmp.ne.s32.totalorder %s421, %s422
      %p431 = scmp.eq.s32.totalorder %s33, 0
      %p432 = por %p430, %p431
      %p433 = scmp.ne.s32.totalorder %s421, %s422
      %p434 = scmp.eq.s32.totalorder %s34, 1
      %p435 = por %p433, %p434
      %p437 = scmp.ne.s32.totalorder %s422, %s436
      %p438 = scmp.eq.s32.totalorder %s34, 0
      %p439 = por %p437, %p438
      %s440 = ssub.s32 %s28, %s35
      %p441 = scmp.eq.s32.totalorder %s440, 0
      %s443 = sadd.s32 %s442, 1
      %s444 = scalar_select %p441, %s442, %s443
      %p447 = pneg %p441
      %p448 = scmp.eq.s32.totalorder %s28, 1
      %p449 = por %p447, %p448
      %p450 = scmp.ne.s32.totalorder %s442, %s445
      %p451 = scmp.eq.s32.totalorder %s28, 0
      %p452 = por %p450, %p451
      %p453 = scmp.ne.s32.totalorder %s442, %s445
      %p454 = scmp.eq.s32.totalorder %s33, 1
      %p455 = por %p453, %p454
      %p456 = scmp.ne.s32.totalorder %s445, %s446
      %p457 = scmp.eq.s32.totalorder %s33, 0
      %p458 = por %p456, %p457
      %p459 = scmp.ne.s32.totalorder %s445, %s446
      %p460 = scmp.eq.s32.totalorder %s34, 1
      %p461 = por %p459, %p460
      %p463 = scmp.ne.s32.totalorder %s446, %s462
      %p464 = scmp.eq.s32.totalorder %s34, 0
      %p465 = por %p463, %p464
      %p466 = scmp.le.s32.totalorder 1, %s28
      %p467 = scmp.lt.s32.totalorder %s28, 3
      %p468 = pnand %p466, %p467
      %p469 = pneg %p468
      // Predicated region
      $region9: #{dwon_stage_forward.1} parent=5 // pred_check
        _
      $region10: #{dwon_stage_forward.1} parent=5 // pred_check_branch
        %471 = sbr.rel (%p468) target = $region12
      $region11: #{dwon_stage_forward.1} parent=5 // pred_region
        %s472 = ssub.s32 %s28, 1
        // Predicated region
        $region13: #{dwon_stage_forward.1} parent=11 // pred_check
          %p473 = pneg %p75
        $region14: #{dwon_stage_forward.1} parent=11 // pred_check_branch
          %475 = sbr.rel (%p473) target = $region16
        $region15: #{dwon_stage_forward.1} parent=11 // pred_region
          _
        $region16: #{dwon_stage_forward.1} parent=11 // pred_fallthru
          _
        // Predicated region
        $region17: #{dwon_stage_forward.1} parent=11 // pred_check
          %p476 = pneg %p96
        $region18: #{dwon_stage_forward.1} parent=11 // pred_check_branch
          %478 = sbr.rel (%p476) target = $region20
        $region19: #{dwon_stage_forward.1} parent=11 // pred_region
          _
        $region20: #{dwon_stage_forward.1} parent=11 // pred_fallthru
          _
        // Predicated region
        $region21: #{dwon_stage_forward.1} parent=11 // pred_check
          %p479 = pneg %p117
        $region22: #{dwon_stage_forward.1} parent=11 // pred_check_branch
          %481 = sbr.rel (%p479) target = $region24
        $region23: #{dwon_stage_forward.1} parent=11 // pred_region
          _
        $region24: #{dwon_stage_forward.1} parent=11 // pred_fallthru
          _
        // Predicated region
        $region25: #{dwon_stage_forward.1} parent=11 // pred_check
          %p482 = pneg %p138
        $region26: #{dwon_stage_forward.1} parent=11 // pred_check_branch
          %484 = sbr.rel (%p482) target = $region28
        $region27: #{dwon_stage_forward.1} parent=11 // pred_region
          _
        $region28: #{dwon_stage_forward.1} parent=11 // pred_fallthru
          _
        // Predicated region
        $region29: #{dwon_stage_forward.1} parent=11 // pred_check
          %p485 = pneg %p159
        $region30: #{dwon_stage_forward.1} parent=11 // pred_check_branch
          %487 = sbr.rel (%p485) target = $region32
        $region31: #{dwon_stage_forward.1} parent=11 // pred_region
          _
        $region32: #{dwon_stage_forward.1} parent=11 // pred_fallthru
          _
        // Predicated region
        $region33: #{dwon_stage_forward.1} parent=11 // pred_check
          %p488 = pneg %p180
        $region34: #{dwon_stage_forward.1} parent=11 // pred_check_branch
          %490 = sbr.rel (%p488) target = $region36
        $region35: #{dwon_stage_forward.1} parent=11 // pred_region
          _
        $region36: #{dwon_stage_forward.1} parent=11 // pred_fallthru
          _
        // Predicated region
        $region37: #{dwon_stage_forward.1} parent=11 // pred_check
          %p491 = pneg %p201
        $region38: #{dwon_stage_forward.1} parent=11 // pred_check_branch
          %493 = sbr.rel (%p491) target = $region40
        $region39: #{dwon_stage_forward.1} parent=11 // pred_region
          _
        $region40: #{dwon_stage_forward.1} parent=11 // pred_fallthru
          _
        // Predicated region
        $region41: #{dwon_stage_forward.1} parent=11 // pred_check
          %p494 = pneg %p222
        $region42: #{dwon_stage_forward.1} parent=11 // pred_check_branch
          %496 = sbr.rel (%p494) target = $region44
        $region43: #{dwon_stage_forward.1} parent=11 // pred_region
          _
        $region44: #{dwon_stage_forward.1} parent=11 // pred_fallthru
          _
        // Predicated region
        $region45: #{dwon_stage_forward.1} parent=11 // pred_check
          %p497 = pneg %p243
        $region46: #{dwon_stage_forward.1} parent=11 // pred_check_branch
          %499 = sbr.rel (%p497) target = $region48
        $region47: #{dwon_stage_forward.1} parent=11 // pred_region
          _
        $region48: #{dwon_stage_forward.1} parent=11 // pred_fallthru
          _
        // Predicated region
        $region49: #{dwon_stage_forward.1} parent=11 // pred_check
          %p500 = pneg %p264
        $region50: #{dwon_stage_forward.1} parent=11 // pred_check_branch
          %502 = sbr.rel (%p500) target = $region52
        $region51: #{dwon_stage_forward.1} parent=11 // pred_region
          _
        $region52: #{dwon_stage_forward.1} parent=11 // pred_fallthru
          _
        // Predicated region
        $region53: #{dwon_stage_forward.1} parent=11 // pred_check
          %p503 = pneg %p285
        $region54: #{dwon_stage_forward.1} parent=11 // pred_check_branch
          %505 = sbr.rel (%p503) target = $region56
        $region55: #{dwon_stage_forward.1} parent=11 // pred_region
          _
        $region56: #{dwon_stage_forward.1} parent=11 // pred_fallthru
          _
        // Predicated region
        $region57: #{dwon_stage_forward.1} parent=11 // pred_check
          %p506 = pneg %p306
        $region58: #{dwon_stage_forward.1} parent=11 // pred_check_branch
          %508 = sbr.rel (%p506) target = $region60
        $region59: #{dwon_stage_forward.1} parent=11 // pred_region
          _
        $region60: #{dwon_stage_forward.1} parent=11 // pred_fallthru
          _
        // Predicated region
        $region61: #{dwon_stage_forward.1} parent=11 // pred_check
          %p509 = pneg %p327
        $region62: #{dwon_stage_forward.1} parent=11 // pred_check_branch
          %511 = sbr.rel (%p509) target = $region64
        $region63: #{dwon_stage_forward.1} parent=11 // pred_region
          _
        $region64: #{dwon_stage_forward.1} parent=11 // pred_fallthru
          _
        // Predicated region
        $region65: #{dwon_stage_forward.1} parent=11 // pred_check
          %p512 = pneg %p348
        $region66: #{dwon_stage_forward.1} parent=11 // pred_check_branch
          %514 = sbr.rel (%p512) target = $region68
        $region67: #{dwon_stage_forward.1} parent=11 // pred_region
          _
        $region68: #{dwon_stage_forward.1} parent=11 // pred_fallthru
          _
        // Predicated region
        $region69: #{dwon_stage_forward.1} parent=11 // pred_check
          %p515 = pneg %p369
        $region70: #{dwon_stage_forward.1} parent=11 // pred_check_branch
          %517 = sbr.rel (%p515) target = $region72
        $region71: #{dwon_stage_forward.1} parent=11 // pred_region
          _
        $region72: #{dwon_stage_forward.1} parent=11 // pred_fallthru
          _
        // Predicated region
        $region73: #{dwon_stage_forward.1} parent=11 // pred_check
          %p518 = pneg %p390
        $region74: #{dwon_stage_forward.1} parent=11 // pred_check_branch
          %520 = sbr.rel (%p518) target = $region76
        $region75: #{dwon_stage_forward.1} parent=11 // pred_region
          _
        $region76: #{dwon_stage_forward.1} parent=11 // pred_fallthru
          _
        // Predicated region
        $region77: #{dwon_stage_forward.1} parent=11 // pred_check
          %p521 = pneg %p411
        $region78: #{dwon_stage_forward.1} parent=11 // pred_check_branch
          %523 = sbr.rel (%p521) target = $region80
        $region79: #{dwon_stage_forward.1} parent=11 // pred_region
          _
        $region80: #{dwon_stage_forward.1} parent=11 // pred_fallthru
          _
        // Predicated region
        $region81: #{dwon_stage_forward.1} parent=11 // pred_check
          %p524 = pneg %p432
        $region82: #{dwon_stage_forward.1} parent=11 // pred_check_branch
          %526 = sbr.rel (%p524) target = $region84
        $region83: #{dwon_stage_forward.1} parent=11 // pred_region
          _
        $region84: #{dwon_stage_forward.1} parent=11 // pred_fallthru
          _
      $region12: #{dwon_stage_forward.1} parent=5 // pred_fallthru
        _
      %p527 = scmp.lt.s32.totalorder %s28, 2
      // Predicated region
      $region85: #{dwon_stage_forward.1} parent=5 // pred_check
        %p528 = pneg %p527
      $region86: #{dwon_stage_forward.1} parent=5 // pred_check_branch
        %530 = sbr.rel (%p528) target = $region88
      $region87: #{dwon_stage_forward.1} parent=5 // pred_region
        // Predicated region
        $region89: #{dwon_stage_forward.1} parent=87 // pred_check
          %p531 = pneg %p48
        $region90: #{dwon_stage_forward.1} parent=87 // pred_check_branch
          %533 = sbr.rel (%p531) target = $region92
        $region91: #{dwon_stage_forward.1} parent=87 // pred_region
          %p534 = scmp.lt.s32.totalorder %s28, 1
          %s535 = scalar_select %p534, %s28, 1
          %s536 = smul.addr %s535, 88
          %s537 = smul.addr %s536, 8
          %s538 = scalar_lea.vmem %s0, %s537
        $region92: #{dwon_stage_forward.1} parent=87 // pred_fallthru
          _
      $region88: #{dwon_stage_forward.1} parent=5 // pred_fallthru
        _
      %p539 = scmp.le.s32.totalorder 1, %s28
      %p540 = scmp.lt.s32.totalorder %s28, 3
      %p541 = pnand %p539, %p540
      %p542 = pneg %p541
      // Predicated region
      $region93: #{dwon_stage_forward.1} parent=5 // pred_check
        _
      $region94: #{dwon_stage_forward.1} parent=5 // pred_check_branch
        %544 = sbr.rel (%p541) target = $region96
      $region95: #{dwon_stage_forward.1} parent=5 // pred_region
        %s545 = ssub.s32 %s28, 1
        %p546 = scmp.lt.s32.totalorder %s33, 1
        %s547 = scalar_select %p546, %s33, 1
        %s548 = smul.addr %s547, 88
        %s549 = smul.addr %s548, 8
        %s550 = scalar_lea.vmem %s0, %s549
        %p551 = pneg %p54
        %p552 = pneg %p51
        %p553 = pneg %p75
        %p554 = pneg %p72
        %p555 = pneg %p96
        %p556 = pneg %p93
        %p557 = pneg %p117
        %p558 = pneg %p114
        %p559 = pneg %p138
        %p560 = pneg %p135
        %p561 = pneg %p159
        %p562 = pneg %p156
        %p563 = pneg %p180
        %p564 = pneg %p177
        %p565 = pneg %p201
        %p566 = pneg %p198
        %p567 = pneg %p222
        %p568 = pneg %p219
        %p569 = pneg %p243
        %p570 = pneg %p240
        %p571 = pneg %p264
        %p572 = pneg %p261
        %p573 = pneg %p285
        %p574 = pneg %p282
        %p575 = pneg %p306
        %p576 = pneg %p303
        %p577 = pneg %p327
        %p578 = pneg %p324
        %p579 = pneg %p348
        %p580 = pneg %p345
        %p581 = pneg %p369
        %p582 = pneg %p366
        %p583 = pneg %p390
        %p584 = pneg %p387
        %p585 = pneg %p411
        %p586 = pneg %p408
        %p587 = pneg %p432
        %p588 = pneg %p429
        %p589 = pneg %p458
        %p590 = pneg %p455
        %s591 = sand.u32 %s445, 1
        %s592 = scalar_lea.sflag [#allocation5], %s591
        %s593 = sand.u32 %s445, 1
        %s594 = smul.addr %s593, 64
        %s595 = scalar_lea.vmem [#allocation4], %s594
        %p596 = scmp.lt.s32.totalorder %s33, 1
        %s597 = scalar_select %p596, %s33, 1
        %s598 = smul.addr %s597, 88
        %s599 = smul.addr %s598, 8
        %s600 = scalar_lea.vmem %s0, %s599
        %v602 = vld [vmem:[%s1] sm:$0xff]
        %v603 = vld [vmem:[%s1 + $0x8] sm:$0xff]
        %v604 = vld [vmem:[%s1 + $0x10] sm:$0xff]
        %v605 = vld [vmem:[%s1 + $0x18] sm:$0xff]
        %v606 = vld [vmem:[%s1 + $0x20] sm:$0xff]
        %v607 = vld [vmem:[%s1 + $0x28] sm:$0xff]
        %v608 = vld [vmem:[%s1 + $0x30] sm:$0x1]
        %v609 = vld [vmem:[%s600] sm:$0xff]
        %v610 = vld [vmem:[%s600 + $0x10] sm:$0xff]
        %v611 = vld [vmem:[%s600 + $0x20] sm:$0xff]
        %v612 = vld [vmem:[%s600 + $0x30] sm:$0xff]
        %v613 = vld [vmem:[%s600 + $0x40] sm:$0xff]
        %v614 = vld [vmem:[%s600 + $0x50] sm:$0xff]
        %v615 = vld [vmem:[%s600 + $0x60] sm:$0xff]
        %v616 = vld [vmem:[%s600 + $0x70] sm:$0xff]
        %v617 = vlaneseq
        %v618 = vshrl.u32 %v617, 7
        %v619 = vsub.s32 0, %v618
        %v620 = vrot.slane %v602, %v619
        %v621 = vmul.f32 %v609, %v620
        %v622 = vmul.f32 %v610, %v620
        %v623 = vmul.f32 %v611, %v620
        %v624 = vmul.f32 %v612, %v620
        %v625 = vmul.f32 %v613, %v620
        %v626 = vmul.f32 %v614, %v620
        %v627 = vmul.f32 %v615, %v620
        %v628 = vmul.f32 %v616, %v620
        %v629 = vadd.f32 %v621, 0.0
        %v630 = vadd.f32 %v622, 0.0
        %v631 = vadd.f32 %v623, 0.0
        %v632 = vadd.f32 %v624, 0.0
        %v633 = vadd.f32 %v625, 0.0
        %v634 = vadd.f32 %v626, 0.0
        %v635 = vadd.f32 %v627, 0.0
        %v636 = vadd.f32 %v628, 0.0
        %s637 = scalar_lea.vmem %s600, 176
        %v638 = vld [vmem:[%s637] sm:$0xff]
        %v639 = vld [vmem:[%s637 + $0x10] sm:$0xff]
        %v640 = vld [vmem:[%s637 + $0x20] sm:$0xff]
        %v641 = vld [vmem:[%s637 + $0x30] sm:$0xff]
        %v642 = vld [vmem:[%s637 + $0x40] sm:$0xff]
        %v643 = vld [vmem:[%s637 + $0x50] sm:$0xff]
        %v644 = vld [vmem:[%s637 + $0x60] sm:$0xff]
        %v645 = vld [vmem:[%s637 + $0x70] sm:$0xff]
        %v646 = vlaneseq
        %v647 = vshrl.u32 %v646, 7
        %v648 = vsub.s32 1, %v647
        %v649 = vrot.slane %v602, %v648
        %v650 = vmul.f32 %v638, %v649
        %v651 = vmul.f32 %v639, %v649
        %v652 = vmul.f32 %v640, %v649
        %v653 = vmul.f32 %v641, %v649
        %v654 = vmul.f32 %v642, %v649
        %v655 = vmul.f32 %v643, %v649
        %v656 = vmul.f32 %v644, %v649
        %v657 = vmul.f32 %v645, %v649
        %v658 = vadd.f32 %v629, %v650
        %v659 = vadd.f32 %v630, %v651
        %v660 = vadd.f32 %v631, %v652
        %v661 = vadd.f32 %v632, %v653
        %v662 = vadd.f32 %v633, %v654
        %v663 = vadd.f32 %v634, %v655
        %v664 = vadd.f32 %v635, %v656
        %v665 = vadd.f32 %v636, %v657
        %v666 = vld [vmem:[%s600 + $0x1] sm:$0xff]
        %v667 = vld [vmem:[%s600 + $0x11] sm:$0xff]
        %v668 = vld [vmem:[%s600 + $0x21] sm:$0xff]
        %v669 = vld [vmem:[%s600 + $0x31] sm:$0xff]
        %v670 = vld [vmem:[%s600 + $0x41] sm:$0xff]
        %v671 = vld [vmem:[%s600 + $0x51] sm:$0xff]
        %v672 = vld [vmem:[%s600 + $0x61] sm:$0xff]
        %v673 = vld [vmem:[%s600 + $0x71] sm:$0xff]
        %v674 = vlaneseq
        %v675 = vshrl.u32 %v674, 7
        %v676 = vsub.s32 2, %v675
        %v677 = vrot.slane %v602, %v676
        %v678 = vmul.f32 %v666, %v677
        %v679 = vmul.f32 %v667, %v677
        %v680 = vmul.f32 %v668, %v677
        %v681 = vmul.f32 %v669, %v677
        %v682 = vmul.f32 %v670, %v677
        %v683 = vmul.f32 %v671, %v677
        %v684 = vmul.f32 %v672, %v677
        %v685 = vmul.f32 %v673, %v677
        %v686 = vadd.f32 %v658, %v678
        %v687 = vadd.f32 %v659, %v679
        %v688 = vadd.f32 %v660, %v680
        %v689 = vadd.f32 %v661, %v681
        %v690 = vadd.f32 %v662, %v682
        %v691 = vadd.f32 %v663, %v683
        %v692 = vadd.f32 %v664, %v684
        %v693 = vadd.f32 %v665, %v685
        %v694 = vld [vmem:[%s637 + $0x1] sm:$0xff]
        %v695 = vld [vmem:[%s637 + $0x11] sm:$0xff]
        %v696 = vld [vmem:[%s637 + $0x21] sm:$0xff]
        %v697 = vld [vmem:[%s637 + $0x31] sm:$0xff]
        %v698 = vld [vmem:[%s637 + $0x41] sm:$0xff]
        %v699 = vld [vmem:[%s637 + $0x51] sm:$0xff]
        %v700 = vld [vmem:[%s637 + $0x61] sm:$0xff]
        %v701 = vld [vmem:[%s637 + $0x71] sm:$0xff]
        %v702 = vlaneseq
        %v703 = vshrl.u32 %v702, 7
        %v704 = vsub.s32 3, %v703
        %v705 = vrot.slane %v602, %v704
        %v706 = vmul.f32 %v694, %v705
        %v707 = vmul.f32 %v695, %v705
        %v708 = vmul.f32 %v696, %v705
        %v709 = vmul.f32 %v697, %v705
        %v710 = vmul.f32 %v698, %v705
        %v711 = vmul.f32 %v699, %v705
        %v712 = vmul.f32 %v700, %v705
        %v713 = vmul.f32 %v701, %v705
        %v714 = vadd.f32 %v686, %v706
        %v715 = vadd.f32 %v687, %v707
        %v716 = vadd.f32 %v688, %v708
        %v717 = vadd.f32 %v689, %v709
        %v718 = vadd.f32 %v690, %v710
        %v719 = vadd.f32 %v691, %v711
        %v720 = vadd.f32 %v692, %v712
        %v721 = vadd.f32 %v693, %v713
        %v722 = vld [vmem:[%s600 + $0x2] sm:$0xff]
        %v723 = vld [vmem:[%s600 + $0x12] sm:$0xff]
        %v724 = vld [vmem:[%s600 + $0x22] sm:$0xff]
        %v725 = vld [vmem:[%s600 + $0x32] sm:$0xff]
        %v726 = vld [vmem:[%s600 + $0x42] sm:$0xff]
        %v727 = vld [vmem:[%s600 + $0x52] sm:$0xff]
        %v728 = vld [vmem:[%s600 + $0x62] sm:$0xff]
        %v729 = vld [vmem:[%s600 + $0x72] sm:$0xff]
        %v730 = vlaneseq
        %v731 = vshrl.u32 %v730, 7
        %v732 = vsub.s32 4, %v731
        %v733 = vrot.slane %v602, %v732
        %v734 = vmul.f32 %v722, %v733
        %v735 = vmul.f32 %v723, %v733
        %v736 = vmul.f32 %v724, %v733
        %v737 = vmul.f32 %v725, %v733
        %v738 = vmul.f32 %v726, %v733
        %v739 = vmul.f32 %v727, %v733
        %v740 = vmul.f32 %v728, %v733
        %v741 = vmul.f32 %v729, %v733
        %v742 = vadd.f32 %v714, %v734
        %v743 = vadd.f32 %v715, %v735
        %v744 = vadd.f32 %v716, %v736
        %v745 = vadd.f32 %v717, %v737
        %v746 = vadd.f32 %v718, %v738
        %v747 = vadd.f32 %v719, %v739
        %v748 = vadd.f32 %v720, %v740
        %v749 = vadd.f32 %v721, %v741
        %v750 = vld [vmem:[%s637 + $0x2] sm:$0xff]
        %v751 = vld [vmem:[%s637 + $0x12] sm:$0xff]
        %v752 = vld [vmem:[%s637 + $0x22] sm:$0xff]
        %v753 = vld [vmem:[%s637 + $0x32] sm:$0xff]
        %v754 = vld [vmem:[%s637 + $0x42] sm:$0xff]
        %v755 = vld [vmem:[%s637 + $0x52] sm:$0xff]
        %v756 = vld [vmem:[%s637 + $0x62] sm:$0xff]
        %v757 = vld [vmem:[%s637 + $0x72] sm:$0xff]
        %v758 = vlaneseq
        %v759 = vshrl.u32 %v758, 7
        %v760 = vsub.s32 5, %v759
        %v761 = vrot.slane %v602, %v760
        %v762 = vmul.f32 %v750, %v761
        %v763 = vmul.f32 %v751, %v761
        %v764 = vmul.f32 %v752, %v761
        %v765 = vmul.f32 %v753, %v761
        %v766 = vmul.f32 %v754, %v761
        %v767 = vmul.f32 %v755, %v761
        %v768 = vmul.f32 %v756, %v761
        %v769 = vmul.f32 %v757, %v761
        %v770 = vadd.f32 %v742, %v762
        %v771 = vadd.f32 %v743, %v763
        %v772 = vadd.f32 %v744, %v764
        %v773 = vadd.f32 %v745, %v765
        %v774 = vadd.f32 %v746, %v766
        %v775 = vadd.f32 %v747, %v767
        %v776 = vadd.f32 %v748, %v768
        %v777 = vadd.f32 %v749, %v769
        %v778 = vld [vmem:[%s600 + $0x3] sm:$0xff]
        %v779 = vld [vmem:[%s600 + $0x13] sm:$0xff]
        %v780 = vld [vmem:[%s600 + $0x23] sm:$0xff]
        %v781 = vld [vmem:[%s600 + $0x33] sm:$0xff]
        %v782 = vld [vmem:[%s600 + $0x43] sm:$0xff]
        %v783 = vld [vmem:[%s600 + $0x53] sm:$0xff]
        %v784 = vld [vmem:[%s600 + $0x63] sm:$0xff]
        %v785 = vld [vmem:[%s600 + $0x73] sm:$0xff]
        %v786 = vlaneseq
        %v787 = vshrl.u32 %v786, 7
        %v788 = vsub.s32 6, %v787
        %v789 = vrot.slane %v602, %v788
        %v790 = vmul.f32 %v778, %v789
        %v791 = vmul.f32 %v779, %v789
        %v792 = vmul.f32 %v780, %v789
        %v793 = vmul.f32 %v781, %v789
        %v794 = vmul.f32 %v782, %v789
        %v795 = vmul.f32 %v783, %v789
        %v796 = vmul.f32 %v784, %v789
        %v797 = vmul.f32 %v785, %v789
        %v798 = vadd.f32 %v770, %v790
        %v799 = vadd.f32 %v771, %v791
        %v800 = vadd.f32 %v772, %v792
        %v801 = vadd.f32 %v773, %v793
        %v802 = vadd.f32 %v774, %v794
        %v803 = vadd.f32 %v775, %v795
        %v804 = vadd.f32 %v776, %v796
        %v805 = vadd.f32 %v777, %v797
        %s806 = scalar_lea.vmem %s600, 352
        %v807 = vld [vmem:[%s806] sm:$0xff]
        %v808 = vld [vmem:[%s806 + $0x10] sm:$0xff]
        %v809 = vld [vmem:[%s806 + $0x20] sm:$0xff]
        %v810 = vld [vmem:[%s806 + $0x30] sm:$0xff]
        %v811 = vld [vmem:[%s806 + $0x40] sm:$0xff]
        %v812 = vld [vmem:[%s806 + $0x50] sm:$0xff]
        %v813 = vld [vmem:[%s806 + $0x60] sm:$0xff]
        %v814 = vld [vmem:[%s806 + $0x70] sm:$0xff]
        %v815 = vlaneseq
        %v816 = vshrl.u32 %v815, 7
        %v817 = vsub.s32 7, %v816
        %v818 = vrot.slane %v602, %v817
        %v819 = vmul.f32 %v807, %v818
        %v820 = vmul.f32 %v808, %v818
        %v821 = vmul.f32 %v809, %v818
        %v822 = vmul.f32 %v810, %v818
        %v823 = vmul.f32 %v811, %v818
        %v824 = vmul.f32 %v812, %v818
        %v825 = vmul.f32 %v813, %v818
        %v826 = vmul.f32 %v814, %v818
        %v827 = vadd.f32 %v798, %v819
        %v828 = vadd.f32 %v799, %v820
        %v829 = vadd.f32 %v800, %v821
        %v830 = vadd.f32 %v801, %v822
        %v831 = vadd.f32 %v802, %v823
        %v832 = vadd.f32 %v803, %v824
        %v833 = vadd.f32 %v804, %v825
        %v834 = vadd.f32 %v805, %v826
        %s835 = scalar_lea.vmem %s600, 528
        %v836 = vld [vmem:[%s835] sm:$0xff]
        %v837 = vld [vmem:[%s835 + $0x10] sm:$0xff]
        %v838 = vld [vmem:[%s835 + $0x20] sm:$0xff]
        %v839 = vld [vmem:[%s835 + $0x30] sm:$0xff]
        %v840 = vld [vmem:[%s835 + $0x40] sm:$0xff]
        %v841 = vld [vmem:[%s835 + $0x50] sm:$0xff]
        %v842 = vld [vmem:[%s835 + $0x60] sm:$0xff]
        %v843 = vld [vmem:[%s835 + $0x70] sm:$0xff]
        %v844 = vlaneseq
        %v845 = vshrl.u32 %v844, 7
        %v846 = vsub.s32 0, %v845
        %v847 = vrot.slane %v603, %v846
        %v848 = vmul.f32 %v836, %v847
        %v849 = vmul.f32 %v837, %v847
        %v850 = vmul.f32 %v838, %v847
        %v851 = vmul.f32 %v839, %v847
        %v852 = vmul.f32 %v840, %v847
        %v853 = vmul.f32 %v841, %v847
        %v854 = vmul.f32 %v842, %v847
        %v855 = vmul.f32 %v843, %v847
        %v856 = vadd.f32 %v827, %v848
        %v857 = vadd.f32 %v828, %v849
        %v858 = vadd.f32 %v829, %v850
        %v859 = vadd.f32 %v830, %v851
        %v860 = vadd.f32 %v831, %v852
        %v861 = vadd.f32 %v832, %v853
        %v862 = vadd.f32 %v833, %v854
        %v863 = vadd.f32 %v834, %v855
        %v864 = vld [vmem:[%s806 + $0x1] sm:$0xff]
        %v865 = vld [vmem:[%s806 + $0x11] sm:$0xff]
        %v866 = vld [vmem:[%s806 + $0x21] sm:$0xff]
        %v867 = vld [vmem:[%s806 + $0x31] sm:$0xff]
        %v868 = vld [vmem:[%s806 + $0x41] sm:$0xff]
        %v869 = vld [vmem:[%s806 + $0x51] sm:$0xff]
        %v870 = vld [vmem:[%s806 + $0x61] sm:$0xff]
        %v871 = vld [vmem:[%s806 + $0x71] sm:$0xff]
        %v872 = vlaneseq
        %v873 = vshrl.u32 %v872, 7
        %v874 = vsub.s32 1, %v873
        %v875 = vrot.slane %v603, %v874
        %v876 = vmul.f32 %v864, %v875
        %v877 = vmul.f32 %v865, %v875
        %v878 = vmul.f32 %v866, %v875
        %v879 = vmul.f32 %v867, %v875
        %v880 = vmul.f32 %v868, %v875
        %v881 = vmul.f32 %v869, %v875
        %v882 = vmul.f32 %v870, %v875
        %v883 = vmul.f32 %v871, %v875
        %v884 = vadd.f32 %v856, %v876
        %v885 = vadd.f32 %v857, %v877
        %v886 = vadd.f32 %v858, %v878
        %v887 = vadd.f32 %v859, %v879
        %v888 = vadd.f32 %v860, %v880
        %v889 = vadd.f32 %v861, %v881
        %v890 = vadd.f32 %v862, %v882
        %v891 = vadd.f32 %v863, %v883
        %v892 = vld [vmem:[%s835 + $0x1] sm:$0xff]
        %v893 = vld [vmem:[%s835 + $0x11] sm:$0xff]
        %v894 = vld [vmem:[%s835 + $0x21] sm:$0xff]
        %v895 = vld [vmem:[%s835 + $0x31] sm:$0xff]
        %v896 = vld [vmem:[%s835 + $0x41] sm:$0xff]
        %v897 = vld [vmem:[%s835 + $0x51] sm:$0xff]
        %v898 = vld [vmem:[%s835 + $0x61] sm:$0xff]
        %v899 = vld [vmem:[%s835 + $0x71] sm:$0xff]
        %v900 = vlaneseq
        %v901 = vshrl.u32 %v900, 7
        %v902 = vsub.s32 2, %v901
        %v903 = vrot.slane %v603, %v902
        %v904 = vmul.f32 %v892, %v903
        %v905 = vmul.f32 %v893, %v903
        %v906 = vmul.f32 %v894, %v903
        %v907 = vmul.f32 %v895, %v903
        %v908 = vmul.f32 %v896, %v903
        %v909 = vmul.f32 %v897, %v903
        %v910 = vmul.f32 %v898, %v903
        %v911 = vmul.f32 %v899, %v903
        %v912 = vadd.f32 %v884, %v904
        %v913 = vadd.f32 %v885, %v905
        %v914 = vadd.f32 %v886, %v906
        %v915 = vadd.f32 %v887, %v907
        %v916 = vadd.f32 %v888, %v908
        %v917 = vadd.f32 %v889, %v909
        %v918 = vadd.f32 %v890, %v910
        %v919 = vadd.f32 %v891, %v911
        %v920 = vld [vmem:[%s806 + $0x2] sm:$0xff]
        %v921 = vld [vmem:[%s806 + $0x12] sm:$0xff]
        %v922 = vld [vmem:[%s806 + $0x22] sm:$0xff]
        %v923 = vld [vmem:[%s806 + $0x32] sm:$0xff]
        %v924 = vld [vmem:[%s806 + $0x42] sm:$0xff]
        %v925 = vld [vmem:[%s806 + $0x52] sm:$0xff]
        %v926 = vld [vmem:[%s806 + $0x62] sm:$0xff]
        %v927 = vld [vmem:[%s806 + $0x72] sm:$0xff]
        %v928 = vlaneseq
        %v929 = vshrl.u32 %v928, 7
        %v930 = vsub.s32 3, %v929
        %v931 = vrot.slane %v603, %v930
        %v932 = vmul.f32 %v920, %v931
        %v933 = vmul.f32 %v921, %v931
        %v934 = vmul.f32 %v922, %v931
        %v935 = vmul.f32 %v923, %v931
        %v936 = vmul.f32 %v924, %v931
        %v937 = vmul.f32 %v925, %v931
        %v938 = vmul.f32 %v926, %v931
        %v939 = vmul.f32 %v927, %v931
        %v940 = vadd.f32 %v912, %v932
        %v941 = vadd.f32 %v913, %v933
        %v942 = vadd.f32 %v914, %v934
        %v943 = vadd.f32 %v915, %v935
        %v944 = vadd.f32 %v916, %v936
        %v945 = vadd.f32 %v917, %v937
        %v946 = vadd.f32 %v918, %v938
        %v947 = vadd.f32 %v919, %v939
        %v948 = vld [vmem:[%s835 + $0x2] sm:$0xff]
        %v949 = vld [vmem:[%s835 + $0x12] sm:$0xff]
        %v950 = vld [vmem:[%s835 + $0x22] sm:$0xff]
        %v951 = vld [vmem:[%s835 + $0x32] sm:$0xff]
        %v952 = vld [vmem:[%s835 + $0x42] sm:$0xff]
        %v953 = vld [vmem:[%s835 + $0x52] sm:$0xff]
        %v954 = vld [vmem:[%s835 + $0x62] sm:$0xff]
        %v955 = vld [vmem:[%s835 + $0x72] sm:$0xff]
        %v956 = vlaneseq
        %v957 = vshrl.u32 %v956, 7
        %v958 = vsub.s32 4, %v957
        %v959 = vrot.slane %v603, %v958
        %v960 = vmul.f32 %v948, %v959
        %v961 = vmul.f32 %v949, %v959
        %v962 = vmul.f32 %v950, %v959
        %v963 = vmul.f32 %v951, %v959
        %v964 = vmul.f32 %v952, %v959
        %v965 = vmul.f32 %v953, %v959
        %v966 = vmul.f32 %v954, %v959
        %v967 = vmul.f32 %v955, %v959
        %v968 = vadd.f32 %v940, %v960
        %v969 = vadd.f32 %v941, %v961
        %v970 = vadd.f32 %v942, %v962
        %v971 = vadd.f32 %v943, %v963
        %v972 = vadd.f32 %v944, %v964
        %v973 = vadd.f32 %v945, %v965
        %v974 = vadd.f32 %v946, %v966
        %v975 = vadd.f32 %v947, %v967
        %v976 = vld [vmem:[%s806 + $0x3] sm:$0xff]
        %v977 = vld [vmem:[%s806 + $0x13] sm:$0xff]
        %v978 = vld [vmem:[%s806 + $0x23] sm:$0xff]
        %v979 = vld [vmem:[%s806 + $0x33] sm:$0xff]
        %v980 = vld [vmem:[%s806 + $0x43] sm:$0xff]
        %v981 = vld [vmem:[%s806 + $0x53] sm:$0xff]
        %v982 = vld [vmem:[%s806 + $0x63] sm:$0xff]
        %v983 = vld [vmem:[%s806 + $0x73] sm:$0xff]
        %v984 = vlaneseq
        %v985 = vshrl.u32 %v984, 7
        %v986 = vsub.s32 5, %v985
        %v987 = vrot.slane %v603, %v986
        %v988 = vmul.f32 %v976, %v987
        %v989 = vmul.f32 %v977, %v987
        %v990 = vmul.f32 %v978, %v987
        %v991 = vmul.f32 %v979, %v987
        %v992 = vmul.f32 %v980, %v987
        %v993 = vmul.f32 %v981, %v987
        %v994 = vmul.f32 %v982, %v987
        %v995 = vmul.f32 %v983, %v987
        %v996 = vadd.f32 %v968, %v988
        %v997 = vadd.f32 %v969, %v989
        %v998 = vadd.f32 %v970, %v990
        %v999 = vadd.f32 %v971, %v991
        %v1000 = vadd.f32 %v972, %v992
        %v1001 = vadd.f32 %v973, %v993
        %v1002 = vadd.f32 %v974, %v994
        %v1003 = vadd.f32 %v975, %v995
        %s1004 = scalar_lea.vmem %s600, 16
        %v1005 = vld [vmem:[%s1004] sm:$0xff]
        %v1006 = vld [vmem:[%s1004 + $0x10] sm:$0xff]
        %v1007 = vld [vmem:[%s1004 + $0x20] sm:$0xff]
        %v1008 = vld [vmem:[%s1004 + $0x30] sm:$0xff]
        %v1009 = vld [vmem:[%s1004 + $0x40] sm:$0xff]
        %v1010 = vld [vmem:[%s1004 + $0x50] sm:$0xff]
        %v1011 = vld [vmem:[%s1004 + $0x60] sm:$0xff]
        %v1012 = vld [vmem:[%s1004 + $0x70] sm:$0xff]
        %v1013 = vlaneseq
        %v1014 = vshrl.u32 %v1013, 7
        %v1015 = vsub.s32 6, %v1014
        %v1016 = vrot.slane %v603, %v1015
        %v1017 = vmul.f32 %v1005, %v1016
        %v1018 = vmul.f32 %v1006, %v1016
        %v1019 = vmul.f32 %v1007, %v1016
        %v1020 = vmul.f32 %v1008, %v1016
        %v1021 = vmul.f32 %v1009, %v1016
        %v1022 = vmul.f32 %v1010, %v1016
        %v1023 = vmul.f32 %v1011, %v1016
        %v1024 = vmul.f32 %v1012, %v1016
        %v1025 = vadd.f32 %v996, %v1017
        %v1026 = vadd.f32 %v997, %v1018
        %v1027 = vadd.f32 %v998, %v1019
        %v1028 = vadd.f32 %v999, %v1020
        %v1029 = vadd.f32 %v1000, %v1021
        %v1030 = vadd.f32 %v1001, %v1022
        %v1031 = vadd.f32 %v1002, %v1023
        %v1032 = vadd.f32 %v1003, %v1024
        %s1033 = scalar_lea.vmem %s600, 192
        %v1034 = vld [vmem:[%s1033] sm:$0xff]
        %v1035 = vld [vmem:[%s1033 + $0x10] sm:$0xff]
        %v1036 = vld [vmem:[%s1033 + $0x20] sm:$0xff]
        %v1037 = vld [vmem:[%s1033 + $0x30] sm:$0xff]
        %v1038 = vld [vmem:[%s1033 + $0x40] sm:$0xff]
        %v1039 = vld [vmem:[%s1033 + $0x50] sm:$0xff]
        %v1040 = vld [vmem:[%s1033 + $0x60] sm:$0xff]
        %v1041 = vld [vmem:[%s1033 + $0x70] sm:$0xff]
        %v1042 = vlaneseq
        %v1043 = vshrl.u32 %v1042, 7
        %v1044 = vsub.s32 7, %v1043
        %v1045 = vrot.slane %v603, %v1044
        %v1046 = vmul.f32 %v1034, %v1045
        %v1047 = vmul.f32 %v1035, %v1045
        %v1048 = vmul.f32 %v1036, %v1045
        %v1049 = vmul.f32 %v1037, %v1045
        %v1050 = vmul.f32 %v1038, %v1045
        %v1051 = vmul.f32 %v1039, %v1045
        %v1052 = vmul.f32 %v1040, %v1045
        %v1053 = vmul.f32 %v1041, %v1045
        %v1054 = vadd.f32 %v1025, %v1046
        %v1055 = vadd.f32 %v1026, %v1047
        %v1056 = vadd.f32 %v1027, %v1048
        %v1057 = vadd.f32 %v1028, %v1049
        %v1058 = vadd.f32 %v1029, %v1050
        %v1059 = vadd.f32 %v1030, %v1051
        %v1060 = vadd.f32 %v1031, %v1052
        %v1061 = vadd.f32 %v1032, %v1053
        %v1062 = vld [vmem:[%s1004 + $0x1] sm:$0xff]
        %v1063 = vld [vmem:[%s1004 + $0x11] sm:$0xff]
        %v1064 = vld [vmem:[%s1004 + $0x21] sm:$0xff]
        %v1065 = vld [vmem:[%s1004 + $0x31] sm:$0xff]
        %v1066 = vld [vmem:[%s1004 + $0x41] sm:$0xff]
        %v1067 = vld [vmem:[%s1004 + $0x51] sm:$0xff]
        %v1068 = vld [vmem:[%s1004 + $0x61] sm:$0xff]
        %v1069 = vld [vmem:[%s1004 + $0x71] sm:$0xff]
        %v1070 = vlaneseq
        %v1071 = vshrl.u32 %v1070, 7
        %v1072 = vsub.s32 0, %v1071
        %v1073 = vrot.slane %v604, %v1072
        %v1074 = vmul.f32 %v1062, %v1073
        %v1075 = vmul.f32 %v1063, %v1073
        %v1076 = vmul.f32 %v1064, %v1073
        %v1077 = vmul.f32 %v1065, %v1073
        %v1078 = vmul.f32 %v1066, %v1073
        %v1079 = vmul.f32 %v1067, %v1073
        %v1080 = vmul.f32 %v1068, %v1073
        %v1081 = vmul.f32 %v1069, %v1073
        %v1082 = vadd.f32 %v1054, %v1074
        %v1083 = vadd.f32 %v1055, %v1075
        %v1084 = vadd.f32 %v1056, %v1076
        %v1085 = vadd.f32 %v1057, %v1077
        %v1086 = vadd.f32 %v1058, %v1078
        %v1087 = vadd.f32 %v1059, %v1079
        %v1088 = vadd.f32 %v1060, %v1080
        %v1089 = vadd.f32 %v1061, %v1081
        %v1090 = vld [vmem:[%s1033 + $0x1] sm:$0xff]
        %v1091 = vld [vmem:[%s1033 + $0x11] sm:$0xff]
        %v1092 = vld [vmem:[%s1033 + $0x21] sm:$0xff]
        %v1093 = vld [vmem:[%s1033 + $0x31] sm:$0xff]
        %v1094 = vld [vmem:[%s1033 + $0x41] sm:$0xff]
        %v1095 = vld [vmem:[%s1033 + $0x51] sm:$0xff]
        %v1096 = vld [vmem:[%s1033 + $0x61] sm:$0xff]
        %v1097 = vld [vmem:[%s1033 + $0x71] sm:$0xff]
        %v1098 = vlaneseq
        %v1099 = vshrl.u32 %v1098, 7
        %v1100 = vsub.s32 1, %v1099
        %v1101 = vrot.slane %v604, %v1100
        %v1102 = vmul.f32 %v1090, %v1101
        %v1103 = vmul.f32 %v1091, %v1101
        %v1104 = vmul.f32 %v1092, %v1101
        %v1105 = vmul.f32 %v1093, %v1101
        %v1106 = vmul.f32 %v1094, %v1101
        %v1107 = vmul.f32 %v1095, %v1101
        %v1108 = vmul.f32 %v1096, %v1101
        %v1109 = vmul.f32 %v1097, %v1101
        %v1110 = vadd.f32 %v1082, %v1102
        %v1111 = vadd.f32 %v1083, %v1103
        %v1112 = vadd.f32 %v1084, %v1104
        %v1113 = vadd.f32 %v1085, %v1105
        %v1114 = vadd.f32 %v1086, %v1106
        %v1115 = vadd.f32 %v1087, %v1107
        %v1116 = vadd.f32 %v1088, %v1108
        %v1117 = vadd.f32 %v1089, %v1109
        %v1118 = vld [vmem:[%s1004 + $0x2] sm:$0xff]
        %v1119 = vld [vmem:[%s1004 + $0x12] sm:$0xff]
        %v1120 = vld [vmem:[%s1004 + $0x22] sm:$0xff]
        %v1121 = vld [vmem:[%s1004 + $0x32] sm:$0xff]
        %v1122 = vld [vmem:[%s1004 + $0x42] sm:$0xff]
        %v1123 = vld [vmem:[%s1004 + $0x52] sm:$0xff]
        %v1124 = vld [vmem:[%s1004 + $0x62] sm:$0xff]
        %v1125 = vld [vmem:[%s1004 + $0x72] sm:$0xff]
        %v1126 = vlaneseq
        %v1127 = vshrl.u32 %v1126, 7
        %v1128 = vsub.s32 2, %v1127
        %v1129 = vrot.slane %v604, %v1128
        %v1130 = vmul.f32 %v1118, %v1129
        %v1131 = vmul.f32 %v1119, %v1129
        %v1132 = vmul.f32 %v1120, %v1129
        %v1133 = vmul.f32 %v1121, %v1129
        %v1134 = vmul.f32 %v1122, %v1129
        %v1135 = vmul.f32 %v1123, %v1129
        %v1136 = vmul.f32 %v1124, %v1129
        %v1137 = vmul.f32 %v1125, %v1129
        %v1138 = vadd.f32 %v1110, %v1130
        %v1139 = vadd.f32 %v1111, %v1131
        %v1140 = vadd.f32 %v1112, %v1132
        %v1141 = vadd.f32 %v1113, %v1133
        %v1142 = vadd.f32 %v1114, %v1134
        %v1143 = vadd.f32 %v1115, %v1135
        %v1144 = vadd.f32 %v1116, %v1136
        %v1145 = vadd.f32 %v1117, %v1137
        %v1146 = vld [vmem:[%s1033 + $0x2] sm:$0xff]
        %v1147 = vld [vmem:[%s1033 + $0x12] sm:$0xff]
        %v1148 = vld [vmem:[%s1033 + $0x22] sm:$0xff]
        %v1149 = vld [vmem:[%s1033 + $0x32] sm:$0xff]
        %v1150 = vld [vmem:[%s1033 + $0x42] sm:$0xff]
        %v1151 = vld [vmem:[%s1033 + $0x52] sm:$0xff]
        %v1152 = vld [vmem:[%s1033 + $0x62] sm:$0xff]
        %v1153 = vld [vmem:[%s1033 + $0x72] sm:$0xff]
        %v1154 = vlaneseq
        %v1155 = vshrl.u32 %v1154, 7
        %v1156 = vsub.s32 3, %v1155
        %v1157 = vrot.slane %v604, %v1156
        %v1158 = vmul.f32 %v1146, %v1157
        %v1159 = vmul.f32 %v1147, %v1157
        %v1160 = vmul.f32 %v1148, %v1157
        %v1161 = vmul.f32 %v1149, %v1157
        %v1162 = vmul.f32 %v1150, %v1157
        %v1163 = vmul.f32 %v1151, %v1157
        %v1164 = vmul.f32 %v1152, %v1157
        %v1165 = vmul.f32 %v1153, %v1157
        %v1166 = vadd.f32 %v1138, %v1158
        %v1167 = vadd.f32 %v1139, %v1159
        %v1168 = vadd.f32 %v1140, %v1160
        %v1169 = vadd.f32 %v1141, %v1161
        %v1170 = vadd.f32 %v1142, %v1162
        %v1171 = vadd.f32 %v1143, %v1163
        %v1172 = vadd.f32 %v1144, %v1164
        %v1173 = vadd.f32 %v1145, %v1165
        %v1174 = vld [vmem:[%s1004 + $0x3] sm:$0xff]
        %v1175 = vld [vmem:[%s1004 + $0x13] sm:$0xff]
        %v1176 = vld [vmem:[%s1004 + $0x23] sm:$0xff]
        %v1177 = vld [vmem:[%s1004 + $0x33] sm:$0xff]
        %v1178 = vld [vmem:[%s1004 + $0x43] sm:$0xff]
        %v1179 = vld [vmem:[%s1004 + $0x53] sm:$0xff]
        %v1180 = vld [vmem:[%s1004 + $0x63] sm:$0xff]
        %v1181 = vld [vmem:[%s1004 + $0x73] sm:$0xff]
        %v1182 = vlaneseq
        %v1183 = vshrl.u32 %v1182, 7
        %v1184 = vsub.s32 4, %v1183
        %v1185 = vrot.slane %v604, %v1184
        %v1186 = vmul.f32 %v1174, %v1185
        %v1187 = vmul.f32 %v1175, %v1185
        %v1188 = vmul.f32 %v1176, %v1185
        %v1189 = vmul.f32 %v1177, %v1185
        %v1190 = vmul.f32 %v1178, %v1185
        %v1191 = vmul.f32 %v1179, %v1185
        %v1192 = vmul.f32 %v1180, %v1185
        %v1193 = vmul.f32 %v1181, %v1185
        %v1194 = vadd.f32 %v1166, %v1186
        %v1195 = vadd.f32 %v1167, %v1187
        %v1196 = vadd.f32 %v1168, %v1188
        %v1197 = vadd.f32 %v1169, %v1189
        %v1198 = vadd.f32 %v1170, %v1190
        %v1199 = vadd.f32 %v1171, %v1191
        %v1200 = vadd.f32 %v1172, %v1192
        %v1201 = vadd.f32 %v1173, %v1193
        %s1202 = scalar_lea.vmem %s600, 368
        %v1203 = vld [vmem:[%s1202] sm:$0xff]
        %v1204 = vld [vmem:[%s1202 + $0x10] sm:$0xff]
        %v1205 = vld [vmem:[%s1202 + $0x20] sm:$0xff]
        %v1206 = vld [vmem:[%s1202 + $0x30] sm:$0xff]
        %v1207 = vld [vmem:[%s1202 + $0x40] sm:$0xff]
        %v1208 = vld [vmem:[%s1202 + $0x50] sm:$0xff]
        %v1209 = vld [vmem:[%s1202 + $0x60] sm:$0xff]
        %v1210 = vld [vmem:[%s1202 + $0x70] sm:$0xff]
        %v1211 = vlaneseq
        %v1212 = vshrl.u32 %v1211, 7
        %v1213 = vsub.s32 5, %v1212
        %v1214 = vrot.slane %v604, %v1213
        %v1215 = vmul.f32 %v1203, %v1214
        %v1216 = vmul.f32 %v1204, %v1214
        %v1217 = vmul.f32 %v1205, %v1214
        %v1218 = vmul.f32 %v1206, %v1214
        %v1219 = vmul.f32 %v1207, %v1214
        %v1220 = vmul.f32 %v1208, %v1214
        %v1221 = vmul.f32 %v1209, %v1214
        %v1222 = vmul.f32 %v1210, %v1214
        %v1223 = vadd.f32 %v1194, %v1215
        %v1224 = vadd.f32 %v1195, %v1216
        %v1225 = vadd.f32 %v1196, %v1217
        %v1226 = vadd.f32 %v1197, %v1218
        %v1227 = vadd.f32 %v1198, %v1219
        %v1228 = vadd.f32 %v1199, %v1220
        %v1229 = vadd.f32 %v1200, %v1221
        %v1230 = vadd.f32 %v1201, %v1222
        %s1231 = scalar_lea.vmem %s600, 544
        %v1232 = vld [vmem:[%s1231] sm:$0xff]
        %v1233 = vld [vmem:[%s1231 + $0x10] sm:$0xff]
        %v1234 = vld [vmem:[%s1231 + $0x20] sm:$0xff]
        %v1235 = vld [vmem:[%s1231 + $0x30] sm:$0xff]
        %v1236 = vld [vmem:[%s1231 + $0x40] sm:$0xff]
        %v1237 = vld [vmem:[%s1231 + $0x50] sm:$0xff]
        %v1238 = vld [vmem:[%s1231 + $0x60] sm:$0xff]
        %v1239 = vld [vmem:[%s1231 + $0x70] sm:$0xff]
        %v1240 = vlaneseq
        %v1241 = vshrl.u32 %v1240, 7
        %v1242 = vsub.s32 6, %v1241
        %v1243 = vrot.slane %v604, %v1242
        %v1244 = vmul.f32 %v1232, %v1243
        %v1245 = vmul.f32 %v1233, %v1243
        %v1246 = vmul.f32 %v1234, %v1243
        %v1247 = vmul.f32 %v1235, %v1243
        %v1248 = vmul.f32 %v1236, %v1243
        %v1249 = vmul.f32 %v1237, %v1243
        %v1250 = vmul.f32 %v1238, %v1243
        %v1251 = vmul.f32 %v1239, %v1243
        %v1252 = vadd.f32 %v1223, %v1244
        %v1253 = vadd.f32 %v1224, %v1245
        %v1254 = vadd.f32 %v1225, %v1246
        %v1255 = vadd.f32 %v1226, %v1247
        %v1256 = vadd.f32 %v1227, %v1248
        %v1257 = vadd.f32 %v1228, %v1249
        %v1258 = vadd.f32 %v1229, %v1250
        %v1259 = vadd.f32 %v1230, %v1251
        %v1260 = vld [vmem:[%s1202 + $0x1] sm:$0xff]
        %v1261 = vld [vmem:[%s1202 + $0x11] sm:$0xff]
        %v1262 = vld [vmem:[%s1202 + $0x21] sm:$0xff]
        %v1263 = vld [vmem:[%s1202 + $0x31] sm:$0xff]
        %v1264 = vld [vmem:[%s1202 + $0x41] sm:$0xff]
        %v1265 = vld [vmem:[%s1202 + $0x51] sm:$0xff]
        %v1266 = vld [vmem:[%s1202 + $0x61] sm:$0xff]
        %v1267 = vld [vmem:[%s1202 + $0x71] sm:$0xff]
        %v1268 = vlaneseq
        %v1269 = vshrl.u32 %v1268, 7
        %v1270 = vsub.s32 7, %v1269
        %v1271 = vrot.slane %v604, %v1270
        %v1272 = vmul.f32 %v1260, %v1271
        %v1273 = vmul.f32 %v1261, %v1271
        %v1274 = vmul.f32 %v1262, %v1271
        %v1275 = vmul.f32 %v1263, %v1271
        %v1276 = vmul.f32 %v1264, %v1271
        %v1277 = vmul.f32 %v1265, %v1271
        %v1278 = vmul.f32 %v1266, %v1271
        %v1279 = vmul.f32 %v1267, %v1271
        %v1280 = vadd.f32 %v1252, %v1272
        %v1281 = vadd.f32 %v1253, %v1273
        %v1282 = vadd.f32 %v1254, %v1274
        %v1283 = vadd.f32 %v1255, %v1275
        %v1284 = vadd.f32 %v1256, %v1276
        %v1285 = vadd.f32 %v1257, %v1277
        %v1286 = vadd.f32 %v1258, %v1278
        %v1287 = vadd.f32 %v1259, %v1279
        %v1288 = vld [vmem:[%s1231 + $0x1] sm:$0xff]
        %v1289 = vld [vmem:[%s1231 + $0x11] sm:$0xff]
        %v1290 = vld [vmem:[%s1231 + $0x21] sm:$0xff]
        %v1291 = vld [vmem:[%s1231 + $0x31] sm:$0xff]
        %v1292 = vld [vmem:[%s1231 + $0x41] sm:$0xff]
        %v1293 = vld [vmem:[%s1231 + $0x51] sm:$0xff]
        %v1294 = vld [vmem:[%s1231 + $0x61] sm:$0xff]
        %v1295 = vld [vmem:[%s1231 + $0x71] sm:$0xff]
        %v1296 = vlaneseq
        %v1297 = vshrl.u32 %v1296, 7
        %v1298 = vsub.s32 0, %v1297
        %v1299 = vrot.slane %v605, %v1298
        %v1300 = vmul.f32 %v1288, %v1299
        %v1301 = vmul.f32 %v1289, %v1299
        %v1302 = vmul.f32 %v1290, %v1299
        %v1303 = vmul.f32 %v1291, %v1299
        %v1304 = vmul.f32 %v1292, %v1299
        %v1305 = vmul.f32 %v1293, %v1299
        %v1306 = vmul.f32 %v1294, %v1299
        %v1307 = vmul.f32 %v1295, %v1299
        %v1308 = vadd.f32 %v1280, %v1300
        %v1309 = vadd.f32 %v1281, %v1301
        %v1310 = vadd.f32 %v1282, %v1302
        %v1311 = vadd.f32 %v1283, %v1303
        %v1312 = vadd.f32 %v1284, %v1304
        %v1313 = vadd.f32 %v1285, %v1305
        %v1314 = vadd.f32 %v1286, %v1306
        %v1315 = vadd.f32 %v1287, %v1307
        %v1316 = vld [vmem:[%s1202 + $0x2] sm:$0xff]
        %v1317 = vld [vmem:[%s1202 + $0x12] sm:$0xff]
        %v1318 = vld [vmem:[%s1202 + $0x22] sm:$0xff]
        %v1319 = vld [vmem:[%s1202 + $0x32] sm:$0xff]
        %v1320 = vld [vmem:[%s1202 + $0x42] sm:$0xff]
        %v1321 = vld [vmem:[%s1202 + $0x52] sm:$0xff]
        %v1322 = vld [vmem:[%s1202 + $0x62] sm:$0xff]
        %v1323 = vld [vmem:[%s1202 + $0x72] sm:$0xff]
        %v1324 = vlaneseq
        %v1325 = vshrl.u32 %v1324, 7
        %v1326 = vsub.s32 1, %v1325
        %v1327 = vrot.slane %v605, %v1326
        %v1328 = vmul.f32 %v1316, %v1327
        %v1329 = vmul.f32 %v1317, %v1327
        %v1330 = vmul.f32 %v1318, %v1327
        %v1331 = vmul.f32 %v1319, %v1327
        %v1332 = vmul.f32 %v1320, %v1327
        %v1333 = vmul.f32 %v1321, %v1327
        %v1334 = vmul.f32 %v1322, %v1327
        %v1335 = vmul.f32 %v1323, %v1327
        %v1336 = vadd.f32 %v1308, %v1328
        %v1337 = vadd.f32 %v1309, %v1329
        %v1338 = vadd.f32 %v1310, %v1330
        %v1339 = vadd.f32 %v1311, %v1331
        %v1340 = vadd.f32 %v1312, %v1332
        %v1341 = vadd.f32 %v1313, %v1333
        %v1342 = vadd.f32 %v1314, %v1334
        %v1343 = vadd.f32 %v1315, %v1335
        %v1344 = vld [vmem:[%s1231 + $0x2] sm:$0xff]
        %v1345 = vld [vmem:[%s1231 + $0x12] sm:$0xff]
        %v1346 = vld [vmem:[%s1231 + $0x22] sm:$0xff]
        %v1347 = vld [vmem:[%s1231 + $0x32] sm:$0xff]
        %v1348 = vld [vmem:[%s1231 + $0x42] sm:$0xff]
        %v1349 = vld [vmem:[%s1231 + $0x52] sm:$0xff]
        %v1350 = vld [vmem:[%s1231 + $0x62] sm:$0xff]
        %v1351 = vld [vmem:[%s1231 + $0x72] sm:$0xff]
        %v1352 = vlaneseq
        %v1353 = vshrl.u32 %v1352, 7
        %v1354 = vsub.s32 2, %v1353
        %v1355 = vrot.slane %v605, %v1354
        %v1356 = vmul.f32 %v1344, %v1355
        %v1357 = vmul.f32 %v1345, %v1355
        %v1358 = vmul.f32 %v1346, %v1355
        %v1359 = vmul.f32 %v1347, %v1355
        %v1360 = vmul.f32 %v1348, %v1355
        %v1361 = vmul.f32 %v1349, %v1355
        %v1362 = vmul.f32 %v1350, %v1355
        %v1363 = vmul.f32 %v1351, %v1355
        %v1364 = vadd.f32 %v1336, %v1356
        %v1365 = vadd.f32 %v1337, %v1357
        %v1366 = vadd.f32 %v1338, %v1358
        %v1367 = vadd.f32 %v1339, %v1359
        %v1368 = vadd.f32 %v1340, %v1360
        %v1369 = vadd.f32 %v1341, %v1361
        %v1370 = vadd.f32 %v1342, %v1362
        %v1371 = vadd.f32 %v1343, %v1363
        %v1372 = vld [vmem:[%s1202 + $0x3] sm:$0xff]
        %v1373 = vld [vmem:[%s1202 + $0x13] sm:$0xff]
        %v1374 = vld [vmem:[%s1202 + $0x23] sm:$0xff]
        %v1375 = vld [vmem:[%s1202 + $0x33] sm:$0xff]
        %v1376 = vld [vmem:[%s1202 + $0x43] sm:$0xff]
        %v1377 = vld [vmem:[%s1202 + $0x53] sm:$0xff]
        %v1378 = vld [vmem:[%s1202 + $0x63] sm:$0xff]
        %v1379 = vld [vmem:[%s1202 + $0x73] sm:$0xff]
        %v1380 = vlaneseq
        %v1381 = vshrl.u32 %v1380, 7
        %v1382 = vsub.s32 3, %v1381
        %v1383 = vrot.slane %v605, %v1382
        %v1384 = vmul.f32 %v1372, %v1383
        %v1385 = vmul.f32 %v1373, %v1383
        %v1386 = vmul.f32 %v1374, %v1383
        %v1387 = vmul.f32 %v1375, %v1383
        %v1388 = vmul.f32 %v1376, %v1383
        %v1389 = vmul.f32 %v1377, %v1383
        %v1390 = vmul.f32 %v1378, %v1383
        %v1391 = vmul.f32 %v1379, %v1383
        %v1392 = vadd.f32 %v1364, %v1384
        %v1393 = vadd.f32 %v1365, %v1385
        %v1394 = vadd.f32 %v1366, %v1386
        %v1395 = vadd.f32 %v1367, %v1387
        %v1396 = vadd.f32 %v1368, %v1388
        %v1397 = vadd.f32 %v1369, %v1389
        %v1398 = vadd.f32 %v1370, %v1390
        %v1399 = vadd.f32 %v1371, %v1391
        %s1400 = scalar_lea.vmem %s600, 32
        %v1401 = vld [vmem:[%s1400] sm:$0xff]
        %v1402 = vld [vmem:[%s1400 + $0x10] sm:$0xff]
        %v1403 = vld [vmem:[%s1400 + $0x20] sm:$0xff]
        %v1404 = vld [vmem:[%s1400 + $0x30] sm:$0xff]
        %v1405 = vld [vmem:[%s1400 + $0x40] sm:$0xff]
        %v1406 = vld [vmem:[%s1400 + $0x50] sm:$0xff]
        %v1407 = vld [vmem:[%s1400 + $0x60] sm:$0xff]
        %v1408 = vld [vmem:[%s1400 + $0x70] sm:$0xff]
        %v1409 = vlaneseq
        %v1410 = vshrl.u32 %v1409, 7
        %v1411 = vsub.s32 4, %v1410
        %v1412 = vrot.slane %v605, %v1411
        %v1413 = vmul.f32 %v1401, %v1412
        %v1414 = vmul.f32 %v1402, %v1412
        %v1415 = vmul.f32 %v1403, %v1412
        %v1416 = vmul.f32 %v1404, %v1412
        %v1417 = vmul.f32 %v1405, %v1412
        %v1418 = vmul.f32 %v1406, %v1412
        %v1419 = vmul.f32 %v1407, %v1412
        %v1420 = vmul.f32 %v1408, %v1412
        %v1421 = vadd.f32 %v1392, %v1413
        %v1422 = vadd.f32 %v1393, %v1414
        %v1423 = vadd.f32 %v1394, %v1415
        %v1424 = vadd.f32 %v1395, %v1416
        %v1425 = vadd.f32 %v1396, %v1417
        %v1426 = vadd.f32 %v1397, %v1418
        %v1427 = vadd.f32 %v1398, %v1419
        %v1428 = vadd.f32 %v1399, %v1420
        %s1429 = scalar_lea.vmem %s600, 208
        %v1430 = vld [vmem:[%s1429] sm:$0xff]
        %v1431 = vld [vmem:[%s1429 + $0x10] sm:$0xff]
        %v1432 = vld [vmem:[%s1429 + $0x20] sm:$0xff]
        %v1433 = vld [vmem:[%s1429 + $0x30] sm:$0xff]
        %v1434 = vld [vmem:[%s1429 + $0x40] sm:$0xff]
        %v1435 = vld [vmem:[%s1429 + $0x50] sm:$0xff]
        %v1436 = vld [vmem:[%s1429 + $0x60] sm:$0xff]
        %v1437 = vld [vmem:[%s1429 + $0x70] sm:$0xff]
        %v1438 = vlaneseq
        %v1439 = vshrl.u32 %v1438, 7
        %v1440 = vsub.s32 5, %v1439
        %v1441 = vrot.slane %v605, %v1440
        %v1442 = vmul.f32 %v1430, %v1441
        %v1443 = vmul.f32 %v1431, %v1441
        %v1444 = vmul.f32 %v1432, %v1441
        %v1445 = vmul.f32 %v1433, %v1441
        %v1446 = vmul.f32 %v1434, %v1441
        %v1447 = vmul.f32 %v1435, %v1441
        %v1448 = vmul.f32 %v1436, %v1441
        %v1449 = vmul.f32 %v1437, %v1441
        %v1450 = vadd.f32 %v1421, %v1442
        %v1451 = vadd.f32 %v1422, %v1443
        %v1452 = vadd.f32 %v1423, %v1444
        %v1453 = vadd.f32 %v1424, %v1445
        %v1454 = vadd.f32 %v1425, %v1446
        %v1455 = vadd.f32 %v1426, %v1447
        %v1456 = vadd.f32 %v1427, %v1448
        %v1457 = vadd.f32 %v1428, %v1449
        %v1458 = vld [vmem:[%s1400 + $0x1] sm:$0xff]
        %v1459 = vld [vmem:[%s1400 + $0x11] sm:$0xff]
        %v1460 = vld [vmem:[%s1400 + $0x21] sm:$0xff]
        %v1461 = vld [vmem:[%s1400 + $0x31] sm:$0xff]
        %v1462 = vld [vmem:[%s1400 + $0x41] sm:$0xff]
        %v1463 = vld [vmem:[%s1400 + $0x51] sm:$0xff]
        %v1464 = vld [vmem:[%s1400 + $0x61] sm:$0xff]
        %v1465 = vld [vmem:[%s1400 + $0x71] sm:$0xff]
        %v1466 = vlaneseq
        %v1467 = vshrl.u32 %v1466, 7
        %v1468 = vsub.s32 6, %v1467
        %v1469 = vrot.slane %v605, %v1468
        %v1470 = vmul.f32 %v1458, %v1469
        %v1471 = vmul.f32 %v1459, %v1469
        %v1472 = vmul.f32 %v1460, %v1469
        %v1473 = vmul.f32 %v1461, %v1469
        %v1474 = vmul.f32 %v1462, %v1469
        %v1475 = vmul.f32 %v1463, %v1469
        %v1476 = vmul.f32 %v1464, %v1469
        %v1477 = vmul.f32 %v1465, %v1469
        %v1478 = vadd.f32 %v1450, %v1470
        %v1479 = vadd.f32 %v1451, %v1471
        %v1480 = vadd.f32 %v1452, %v1472
        %v1481 = vadd.f32 %v1453, %v1473
        %v1482 = vadd.f32 %v1454, %v1474
        %v1483 = vadd.f32 %v1455, %v1475
        %v1484 = vadd.f32 %v1456, %v1476
        %v1485 = vadd.f32 %v1457, %v1477
        %v1486 = vld [vmem:[%s1429 + $0x1] sm:$0xff]
        %v1487 = vld [vmem:[%s1429 + $0x11] sm:$0xff]
        %v1488 = vld [vmem:[%s1429 + $0x21] sm:$0xff]
        %v1489 = vld [vmem:[%s1429 + $0x31] sm:$0xff]
        %v1490 = vld [vmem:[%s1429 + $0x41] sm:$0xff]
        %v1491 = vld [vmem:[%s1429 + $0x51] sm:$0xff]
        %v1492 = vld [vmem:[%s1429 + $0x61] sm:$0xff]
        %v1493 = vld [vmem:[%s1429 + $0x71] sm:$0xff]
        %v1494 = vlaneseq
        %v1495 = vshrl.u32 %v1494, 7
        %v1496 = vsub.s32 7, %v1495
        %v1497 = vrot.slane %v605, %v1496
        %v1498 = vmul.f32 %v1486, %v1497
        %v1499 = vmul.f32 %v1487, %v1497
        %v1500 = vmul.f32 %v1488, %v1497
        %v1501 = vmul.f32 %v1489, %v1497
        %v1502 = vmul.f32 %v1490, %v1497
        %v1503 = vmul.f32 %v1491, %v1497
        %v1504 = vmul.f32 %v1492, %v1497
        %v1505 = vmul.f32 %v1493, %v1497
        %v1506 = vadd.f32 %v1478, %v1498
        %v1507 = vadd.f32 %v1479, %v1499
        %v1508 = vadd.f32 %v1480, %v1500
        %v1509 = vadd.f32 %v1481, %v1501
        %v1510 = vadd.f32 %v1482, %v1502
        %v1511 = vadd.f32 %v1483, %v1503
        %v1512 = vadd.f32 %v1484, %v1504
        %v1513 = vadd.f32 %v1485, %v1505
        %v1514 = vld [vmem:[%s1400 + $0x2] sm:$0xff]
        %v1515 = vld [vmem:[%s1400 + $0x12] sm:$0xff]
        %v1516 = vld [vmem:[%s1400 + $0x22] sm:$0xff]
        %v1517 = vld [vmem:[%s1400 + $0x32] sm:$0xff]
        %v1518 = vld [vmem:[%s1400 + $0x42] sm:$0xff]
        %v1519 = vld [vmem:[%s1400 + $0x52] sm:$0xff]
        %v1520 = vld [vmem:[%s1400 + $0x62] sm:$0xff]
        %v1521 = vld [vmem:[%s1400 + $0x72] sm:$0xff]
        %v1522 = vlaneseq
        %v1523 = vshrl.u32 %v1522, 7
        %v1524 = vsub.s32 0, %v1523
        %v1525 = vrot.slane %v606, %v1524
        %v1526 = vmul.f32 %v1514, %v1525
        %v1527 = vmul.f32 %v1515, %v1525
        %v1528 = vmul.f32 %v1516, %v1525
        %v1529 = vmul.f32 %v1517, %v1525
        %v1530 = vmul.f32 %v1518, %v1525
        %v1531 = vmul.f32 %v1519, %v1525
        %v1532 = vmul.f32 %v1520, %v1525
        %v1533 = vmul.f32 %v1521, %v1525
        %v1534 = vadd.f32 %v1506, %v1526
        %v1535 = vadd.f32 %v1507, %v1527
        %v1536 = vadd.f32 %v1508, %v1528
        %v1537 = vadd.f32 %v1509, %v1529
        %v1538 = vadd.f32 %v1510, %v1530
        %v1539 = vadd.f32 %v1511, %v1531
        %v1540 = vadd.f32 %v1512, %v1532
        %v1541 = vadd.f32 %v1513, %v1533
        %v1542 = vld [vmem:[%s1429 + $0x2] sm:$0xff]
        %v1543 = vld [vmem:[%s1429 + $0x12] sm:$0xff]
        %v1544 = vld [vmem:[%s1429 + $0x22] sm:$0xff]
        %v1545 = vld [vmem:[%s1429 + $0x32] sm:$0xff]
        %v1546 = vld [vmem:[%s1429 + $0x42] sm:$0xff]
        %v1547 = vld [vmem:[%s1429 + $0x52] sm:$0xff]
        %v1548 = vld [vmem:[%s1429 + $0x62] sm:$0xff]
        %v1549 = vld [vmem:[%s1429 + $0x72] sm:$0xff]
        %v1550 = vlaneseq
        %v1551 = vshrl.u32 %v1550, 7
        %v1552 = vsub.s32 1, %v1551
        %v1553 = vrot.slane %v606, %v1552
        %v1554 = vmul.f32 %v1542, %v1553
        %v1555 = vmul.f32 %v1543, %v1553
        %v1556 = vmul.f32 %v1544, %v1553
        %v1557 = vmul.f32 %v1545, %v1553
        %v1558 = vmul.f32 %v1546, %v1553
        %v1559 = vmul.f32 %v1547, %v1553
        %v1560 = vmul.f32 %v1548, %v1553
        %v1561 = vmul.f32 %v1549, %v1553
        %v1562 = vadd.f32 %v1534, %v1554
        %v1563 = vadd.f32 %v1535, %v1555
        %v1564 = vadd.f32 %v1536, %v1556
        %v1565 = vadd.f32 %v1537, %v1557
        %v1566 = vadd.f32 %v1538, %v1558
        %v1567 = vadd.f32 %v1539, %v1559
        %v1568 = vadd.f32 %v1540, %v1560
        %v1569 = vadd.f32 %v1541, %v1561
        %v1570 = vld [vmem:[%s1400 + $0x3] sm:$0xff]
        %v1571 = vld [vmem:[%s1400 + $0x13] sm:$0xff]
        %v1572 = vld [vmem:[%s1400 + $0x23] sm:$0xff]
        %v1573 = vld [vmem:[%s1400 + $0x33] sm:$0xff]
        %v1574 = vld [vmem:[%s1400 + $0x43] sm:$0xff]
        %v1575 = vld [vmem:[%s1400 + $0x53] sm:$0xff]
        %v1576 = vld [vmem:[%s1400 + $0x63] sm:$0xff]
        %v1577 = vld [vmem:[%s1400 + $0x73] sm:$0xff]
        %v1578 = vlaneseq
        %v1579 = vshrl.u32 %v1578, 7
        %v1580 = vsub.s32 2, %v1579
        %v1581 = vrot.slane %v606, %v1580
        %v1582 = vmul.f32 %v1570, %v1581
        %v1583 = vmul.f32 %v1571, %v1581
        %v1584 = vmul.f32 %v1572, %v1581
        %v1585 = vmul.f32 %v1573, %v1581
        %v1586 = vmul.f32 %v1574, %v1581
        %v1587 = vmul.f32 %v1575, %v1581
        %v1588 = vmul.f32 %v1576, %v1581
        %v1589 = vmul.f32 %v1577, %v1581
        %v1590 = vadd.f32 %v1562, %v1582
        %v1591 = vadd.f32 %v1563, %v1583
        %v1592 = vadd.f32 %v1564, %v1584
        %v1593 = vadd.f32 %v1565, %v1585
        %v1594 = vadd.f32 %v1566, %v1586
        %v1595 = vadd.f32 %v1567, %v1587
        %v1596 = vadd.f32 %v1568, %v1588
        %v1597 = vadd.f32 %v1569, %v1589
        %s1598 = scalar_lea.vmem %s600, 384
        %v1599 = vld [vmem:[%s1598] sm:$0xff]
        %v1600 = vld [vmem:[%s1598 + $0x10] sm:$0xff]
        %v1601 = vld [vmem:[%s1598 + $0x20] sm:$0xff]
        %v1602 = vld [vmem:[%s1598 + $0x30] sm:$0xff]
        %v1603 = vld [vmem:[%s1598 + $0x40] sm:$0xff]
        %v1604 = vld [vmem:[%s1598 + $0x50] sm:$0xff]
        %v1605 = vld [vmem:[%s1598 + $0x60] sm:$0xff]
        %v1606 = vld [vmem:[%s1598 + $0x70] sm:$0xff]
        %v1607 = vlaneseq
        %v1608 = vshrl.u32 %v1607, 7
        %v1609 = vsub.s32 3, %v1608
        %v1610 = vrot.slane %v606, %v1609
        %v1611 = vmul.f32 %v1599, %v1610
        %v1612 = vmul.f32 %v1600, %v1610
        %v1613 = vmul.f32 %v1601, %v1610
        %v1614 = vmul.f32 %v1602, %v1610
        %v1615 = vmul.f32 %v1603, %v1610
        %v1616 = vmul.f32 %v1604, %v1610
        %v1617 = vmul.f32 %v1605, %v1610
        %v1618 = vmul.f32 %v1606, %v1610
        %v1619 = vadd.f32 %v1590, %v1611
        %v1620 = vadd.f32 %v1591, %v1612
        %v1621 = vadd.f32 %v1592, %v1613
        %v1622 = vadd.f32 %v1593, %v1614
        %v1623 = vadd.f32 %v1594, %v1615
        %v1624 = vadd.f32 %v1595, %v1616
        %v1625 = vadd.f32 %v1596, %v1617
        %v1626 = vadd.f32 %v1597, %v1618
        %s1627 = scalar_lea.vmem %s600, 560
        %v1628 = vld [vmem:[%s1627] sm:$0xff]
        %v1629 = vld [vmem:[%s1627 + $0x10] sm:$0xff]
        %v1630 = vld [vmem:[%s1627 + $0x20] sm:$0xff]
        %v1631 = vld [vmem:[%s1627 + $0x30] sm:$0xff]
        %v1632 = vld [vmem:[%s1627 + $0x40] sm:$0xff]
        %v1633 = vld [vmem:[%s1627 + $0x50] sm:$0xff]
        %v1634 = vld [vmem:[%s1627 + $0x60] sm:$0xff]
        %v1635 = vld [vmem:[%s1627 + $0x70] sm:$0xff]
        %v1636 = vlaneseq
        %v1637 = vshrl.u32 %v1636, 7
        %v1638 = vsub.s32 4, %v1637
        %v1639 = vrot.slane %v606, %v1638
        %v1640 = vmul.f32 %v1628, %v1639
        %v1641 = vmul.f32 %v1629, %v1639
        %v1642 = vmul.f32 %v1630, %v1639
        %v1643 = vmul.f32 %v1631, %v1639
        %v1644 = vmul.f32 %v1632, %v1639
        %v1645 = vmul.f32 %v1633, %v1639
        %v1646 = vmul.f32 %v1634, %v1639
        %v1647 = vmul.f32 %v1635, %v1639
        %v1648 = vadd.f32 %v1619, %v1640
        %v1649 = vadd.f32 %v1620, %v1641
        %v1650 = vadd.f32 %v1621, %v1642
        %v1651 = vadd.f32 %v1622, %v1643
        %v1652 = vadd.f32 %v1623, %v1644
        %v1653 = vadd.f32 %v1624, %v1645
        %v1654 = vadd.f32 %v1625, %v1646
        %v1655 = vadd.f32 %v1626, %v1647
        %v1656 = vld [vmem:[%s1598 + $0x1] sm:$0xff]
        %v1657 = vld [vmem:[%s1598 + $0x11] sm:$0xff]
        %v1658 = vld [vmem:[%s1598 + $0x21] sm:$0xff]
        %v1659 = vld [vmem:[%s1598 + $0x31] sm:$0xff]
        %v1660 = vld [vmem:[%s1598 + $0x41] sm:$0xff]
        %v1661 = vld [vmem:[%s1598 + $0x51] sm:$0xff]
        %v1662 = vld [vmem:[%s1598 + $0x61] sm:$0xff]
        %v1663 = vld [vmem:[%s1598 + $0x71] sm:$0xff]
        %v1664 = vlaneseq
        %v1665 = vshrl.u32 %v1664, 7
        %v1666 = vsub.s32 5, %v1665
        %v1667 = vrot.slane %v606, %v1666
        %v1668 = vmul.f32 %v1656, %v1667
        %v1669 = vmul.f32 %v1657, %v1667
        %v1670 = vmul.f32 %v1658, %v1667
        %v1671 = vmul.f32 %v1659, %v1667
        %v1672 = vmul.f32 %v1660, %v1667
        %v1673 = vmul.f32 %v1661, %v1667
        %v1674 = vmul.f32 %v1662, %v1667
        %v1675 = vmul.f32 %v1663, %v1667
        %v1676 = vadd.f32 %v1648, %v1668
        %v1677 = vadd.f32 %v1649, %v1669
        %v1678 = vadd.f32 %v1650, %v1670
        %v1679 = vadd.f32 %v1651, %v1671
        %v1680 = vadd.f32 %v1652, %v1672
        %v1681 = vadd.f32 %v1653, %v1673
        %v1682 = vadd.f32 %v1654, %v1674
        %v1683 = vadd.f32 %v1655, %v1675
        %v1684 = vld [vmem:[%s1627 + $0x1] sm:$0xff]
        %v1685 = vld [vmem:[%s1627 + $0x11] sm:$0xff]
        %v1686 = vld [vmem:[%s1627 + $0x21] sm:$0xff]
        %v1687 = vld [vmem:[%s1627 + $0x31] sm:$0xff]
        %v1688 = vld [vmem:[%s1627 + $0x41] sm:$0xff]
        %v1689 = vld [vmem:[%s1627 + $0x51] sm:$0xff]
        %v1690 = vld [vmem:[%s1627 + $0x61] sm:$0xff]
        %v1691 = vld [vmem:[%s1627 + $0x71] sm:$0xff]
        %v1692 = vlaneseq
        %v1693 = vshrl.u32 %v1692, 7
        %v1694 = vsub.s32 6, %v1693
        %v1695 = vrot.slane %v606, %v1694
        %v1696 = vmul.f32 %v1684, %v1695
        %v1697 = vmul.f32 %v1685, %v1695
        %v1698 = vmul.f32 %v1686, %v1695
        %v1699 = vmul.f32 %v1687, %v1695
        %v1700 = vmul.f32 %v1688, %v1695
        %v1701 = vmul.f32 %v1689, %v1695
        %v1702 = vmul.f32 %v1690, %v1695
        %v1703 = vmul.f32 %v1691, %v1695
        %v1704 = vadd.f32 %v1676, %v1696
        %v1705 = vadd.f32 %v1677, %v1697
        %v1706 = vadd.f32 %v1678, %v1698
        %v1707 = vadd.f32 %v1679, %v1699
        %v1708 = vadd.f32 %v1680, %v1700
        %v1709 = vadd.f32 %v1681, %v1701
        %v1710 = vadd.f32 %v1682, %v1702
        %v1711 = vadd.f32 %v1683, %v1703
        %v1712 = vld [vmem:[%s1598 + $0x2] sm:$0xff]
        %v1713 = vld [vmem:[%s1598 + $0x12] sm:$0xff]
        %v1714 = vld [vmem:[%s1598 + $0x22] sm:$0xff]
        %v1715 = vld [vmem:[%s1598 + $0x32] sm:$0xff]
        %v1716 = vld [vmem:[%s1598 + $0x42] sm:$0xff]
        %v1717 = vld [vmem:[%s1598 + $0x52] sm:$0xff]
        %v1718 = vld [vmem:[%s1598 + $0x62] sm:$0xff]
        %v1719 = vld [vmem:[%s1598 + $0x72] sm:$0xff]
        %v1720 = vlaneseq
        %v1721 = vshrl.u32 %v1720, 7
        %v1722 = vsub.s32 7, %v1721
        %v1723 = vrot.slane %v606, %v1722
        %v1724 = vmul.f32 %v1712, %v1723
        %v1725 = vmul.f32 %v1713, %v1723
        %v1726 = vmul.f32 %v1714, %v1723
        %v1727 = vmul.f32 %v1715, %v1723
        %v1728 = vmul.f32 %v1716, %v1723
        %v1729 = vmul.f32 %v1717, %v1723
        %v1730 = vmul.f32 %v1718, %v1723
        %v1731 = vmul.f32 %v1719, %v1723
        %v1732 = vadd.f32 %v1704, %v1724
        %v1733 = vadd.f32 %v1705, %v1725
        %v1734 = vadd.f32 %v1706, %v1726
        %v1735 = vadd.f32 %v1707, %v1727
        %v1736 = vadd.f32 %v1708, %v1728
        %v1737 = vadd.f32 %v1709, %v1729
        %v1738 = vadd.f32 %v1710, %v1730
        %v1739 = vadd.f32 %v1711, %v1731
        %v1740 = vld [vmem:[%s1627 + $0x2] sm:$0xff]
        %v1741 = vld [vmem:[%s1627 + $0x12] sm:$0xff]
        %v1742 = vld [vmem:[%s1627 + $0x22] sm:$0xff]
        %v1743 = vld [vmem:[%s1627 + $0x32] sm:$0xff]
        %v1744 = vld [vmem:[%s1627 + $0x42] sm:$0xff]
        %v1745 = vld [vmem:[%s1627 + $0x52] sm:$0xff]
        %v1746 = vld [vmem:[%s1627 + $0x62] sm:$0xff]
        %v1747 = vld [vmem:[%s1627 + $0x72] sm:$0xff]
        %v1748 = vlaneseq
        %v1749 = vshrl.u32 %v1748, 7
        %v1750 = vsub.s32 0, %v1749
        %v1751 = vrot.slane %v607, %v1750
        %v1752 = vmul.f32 %v1740, %v1751
        %v1753 = vmul.f32 %v1741, %v1751
        %v1754 = vmul.f32 %v1742, %v1751
        %v1755 = vmul.f32 %v1743, %v1751
        %v1756 = vmul.f32 %v1744, %v1751
        %v1757 = vmul.f32 %v1745, %v1751
        %v1758 = vmul.f32 %v1746, %v1751
        %v1759 = vmul.f32 %v1747, %v1751
        %v1760 = vadd.f32 %v1732, %v1752
        %v1761 = vadd.f32 %v1733, %v1753
        %v1762 = vadd.f32 %v1734, %v1754
        %v1763 = vadd.f32 %v1735, %v1755
        %v1764 = vadd.f32 %v1736, %v1756
        %v1765 = vadd.f32 %v1737, %v1757
        %v1766 = vadd.f32 %v1738, %v1758
        %v1767 = vadd.f32 %v1739, %v1759
        %v1768 = vld [vmem:[%s1598 + $0x3] sm:$0xff]
        %v1769 = vld [vmem:[%s1598 + $0x13] sm:$0xff]
        %v1770 = vld [vmem:[%s1598 + $0x23] sm:$0xff]
        %v1771 = vld [vmem:[%s1598 + $0x33] sm:$0xff]
        %v1772 = vld [vmem:[%s1598 + $0x43] sm:$0xff]
        %v1773 = vld [vmem:[%s1598 + $0x53] sm:$0xff]
        %v1774 = vld [vmem:[%s1598 + $0x63] sm:$0xff]
        %v1775 = vld [vmem:[%s1598 + $0x73] sm:$0xff]
        %v1776 = vlaneseq
        %v1777 = vshrl.u32 %v1776, 7
        %v1778 = vsub.s32 1, %v1777
        %v1779 = vrot.slane %v607, %v1778
        %v1780 = vmul.f32 %v1768, %v1779
        %v1781 = vmul.f32 %v1769, %v1779
        %v1782 = vmul.f32 %v1770, %v1779
        %v1783 = vmul.f32 %v1771, %v1779
        %v1784 = vmul.f32 %v1772, %v1779
        %v1785 = vmul.f32 %v1773, %v1779
        %v1786 = vmul.f32 %v1774, %v1779
        %v1787 = vmul.f32 %v1775, %v1779
        %v1788 = vadd.f32 %v1760, %v1780
        %v1789 = vadd.f32 %v1761, %v1781
        %v1790 = vadd.f32 %v1762, %v1782
        %v1791 = vadd.f32 %v1763, %v1783
        %v1792 = vadd.f32 %v1764, %v1784
        %v1793 = vadd.f32 %v1765, %v1785
        %v1794 = vadd.f32 %v1766, %v1786
        %v1795 = vadd.f32 %v1767, %v1787
        %s1796 = scalar_lea.vmem %s600, 48
        %v1797 = vld [vmem:[%s1796] sm:$0xff]
        %v1798 = vld [vmem:[%s1796 + $0x10] sm:$0xff]
        %v1799 = vld [vmem:[%s1796 + $0x20] sm:$0xff]
        %v1800 = vld [vmem:[%s1796 + $0x30] sm:$0xff]
        %v1801 = vld [vmem:[%s1796 + $0x40] sm:$0xff]
        %v1802 = vld [vmem:[%s1796 + $0x50] sm:$0xff]
        %v1803 = vld [vmem:[%s1796 + $0x60] sm:$0xff]
        %v1804 = vld [vmem:[%s1796 + $0x70] sm:$0xff]
        %v1805 = vlaneseq
        %v1806 = vshrl.u32 %v1805, 7
        %v1807 = vsub.s32 2, %v1806
        %v1808 = vrot.slane %v607, %v1807
        %v1809 = vmul.f32 %v1797, %v1808
        %v1810 = vmul.f32 %v1798, %v1808
        %v1811 = vmul.f32 %v1799, %v1808
        %v1812 = vmul.f32 %v1800, %v1808
        %v1813 = vmul.f32 %v1801, %v1808
        %v1814 = vmul.f32 %v1802, %v1808
        %v1815 = vmul.f32 %v1803, %v1808
        %v1816 = vmul.f32 %v1804, %v1808
        %v1817 = vadd.f32 %v1788, %v1809
        %v1818 = vadd.f32 %v1789, %v1810
        %v1819 = vadd.f32 %v1790, %v1811
        %v1820 = vadd.f32 %v1791, %v1812
        %v1821 = vadd.f32 %v1792, %v1813
        %v1822 = vadd.f32 %v1793, %v1814
        %v1823 = vadd.f32 %v1794, %v1815
        %v1824 = vadd.f32 %v1795, %v1816
        %s1825 = scalar_lea.vmem %s600, 224
        %v1826 = vld [vmem:[%s1825] sm:$0xff]
        %v1827 = vld [vmem:[%s1825 + $0x10] sm:$0xff]
        %v1828 = vld [vmem:[%s1825 + $0x20] sm:$0xff]
        %v1829 = vld [vmem:[%s1825 + $0x30] sm:$0xff]
        %v1830 = vld [vmem:[%s1825 + $0x40] sm:$0xff]
        %v1831 = vld [vmem:[%s1825 + $0x50] sm:$0xff]
        %v1832 = vld [vmem:[%s1825 + $0x60] sm:$0xff]
        %v1833 = vld [vmem:[%s1825 + $0x70] sm:$0xff]
        %v1834 = vlaneseq
        %v1835 = vshrl.u32 %v1834, 7
        %v1836 = vsub.s32 3, %v1835
        %v1837 = vrot.slane %v607, %v1836
        %v1838 = vmul.f32 %v1826, %v1837
        %v1839 = vmul.f32 %v1827, %v1837
        %v1840 = vmul.f32 %v1828, %v1837
        %v1841 = vmul.f32 %v1829, %v1837
        %v1842 = vmul.f32 %v1830, %v1837
        %v1843 = vmul.f32 %v1831, %v1837
        %v1844 = vmul.f32 %v1832, %v1837
        %v1845 = vmul.f32 %v1833, %v1837
        %v1846 = vadd.f32 %v1817, %v1838
        %v1847 = vadd.f32 %v1818, %v1839
        %v1848 = vadd.f32 %v1819, %v1840
        %v1849 = vadd.f32 %v1820, %v1841
        %v1850 = vadd.f32 %v1821, %v1842
        %v1851 = vadd.f32 %v1822, %v1843
        %v1852 = vadd.f32 %v1823, %v1844
        %v1853 = vadd.f32 %v1824, %v1845
        %v1854 = vld [vmem:[%s1796 + $0x1] sm:$0xff]
        %v1855 = vld [vmem:[%s1796 + $0x11] sm:$0xff]
        %v1856 = vld [vmem:[%s1796 + $0x21] sm:$0xff]
        %v1857 = vld [vmem:[%s1796 + $0x31] sm:$0xff]
        %v1858 = vld [vmem:[%s1796 + $0x41] sm:$0xff]
        %v1859 = vld [vmem:[%s1796 + $0x51] sm:$0xff]
        %v1860 = vld [vmem:[%s1796 + $0x61] sm:$0xff]
        %v1861 = vld [vmem:[%s1796 + $0x71] sm:$0xff]
        %v1862 = vlaneseq
        %v1863 = vshrl.u32 %v1862, 7
        %v1864 = vsub.s32 4, %v1863
        %v1865 = vrot.slane %v607, %v1864
        %v1866 = vmul.f32 %v1854, %v1865
        %v1867 = vmul.f32 %v1855, %v1865
        %v1868 = vmul.f32 %v1856, %v1865
        %v1869 = vmul.f32 %v1857, %v1865
        %v1870 = vmul.f32 %v1858, %v1865
        %v1871 = vmul.f32 %v1859, %v1865
        %v1872 = vmul.f32 %v1860, %v1865
        %v1873 = vmul.f32 %v1861, %v1865
        %v1874 = vadd.f32 %v1846, %v1866
        %v1875 = vadd.f32 %v1847, %v1867
        %v1876 = vadd.f32 %v1848, %v1868
        %v1877 = vadd.f32 %v1849, %v1869
        %v1878 = vadd.f32 %v1850, %v1870
        %v1879 = vadd.f32 %v1851, %v1871
        %v1880 = vadd.f32 %v1852, %v1872
        %v1881 = vadd.f32 %v1853, %v1873
        %v1882 = vld [vmem:[%s1825 + $0x1] sm:$0xff]
        %v1883 = vld [vmem:[%s1825 + $0x11] sm:$0xff]
        %v1884 = vld [vmem:[%s1825 + $0x21] sm:$0xff]
        %v1885 = vld [vmem:[%s1825 + $0x31] sm:$0xff]
        %v1886 = vld [vmem:[%s1825 + $0x41] sm:$0xff]
        %v1887 = vld [vmem:[%s1825 + $0x51] sm:$0xff]
        %v1888 = vld [vmem:[%s1825 + $0x61] sm:$0xff]
        %v1889 = vld [vmem:[%s1825 + $0x71] sm:$0xff]
        %v1890 = vlaneseq
        %v1891 = vshrl.u32 %v1890, 7
        %v1892 = vsub.s32 5, %v1891
        %v1893 = vrot.slane %v607, %v1892
        %v1894 = vmul.f32 %v1882, %v1893
        %v1895 = vmul.f32 %v1883, %v1893
        %v1896 = vmul.f32 %v1884, %v1893
        %v1897 = vmul.f32 %v1885, %v1893
        %v1898 = vmul.f32 %v1886, %v1893
        %v1899 = vmul.f32 %v1887, %v1893
        %v1900 = vmul.f32 %v1888, %v1893
        %v1901 = vmul.f32 %v1889, %v1893
        %v1902 = vadd.f32 %v1874, %v1894
        %v1903 = vadd.f32 %v1875, %v1895
        %v1904 = vadd.f32 %v1876, %v1896
        %v1905 = vadd.f32 %v1877, %v1897
        %v1906 = vadd.f32 %v1878, %v1898
        %v1907 = vadd.f32 %v1879, %v1899
        %v1908 = vadd.f32 %v1880, %v1900
        %v1909 = vadd.f32 %v1881, %v1901
        %v1910 = vld [vmem:[%s1796 + $0x2] sm:$0xff]
        %v1911 = vld [vmem:[%s1796 + $0x12] sm:$0xff]
        %v1912 = vld [vmem:[%s1796 + $0x22] sm:$0xff]
        %v1913 = vld [vmem:[%s1796 + $0x32] sm:$0xff]
        %v1914 = vld [vmem:[%s1796 + $0x42] sm:$0xff]
        %v1915 = vld [vmem:[%s1796 + $0x52] sm:$0xff]
        %v1916 = vld [vmem:[%s1796 + $0x62] sm:$0xff]
        %v1917 = vld [vmem:[%s1796 + $0x72] sm:$0xff]
        %v1918 = vlaneseq
        %v1919 = vshrl.u32 %v1918, 7
        %v1920 = vsub.s32 6, %v1919
        %v1921 = vrot.slane %v607, %v1920
        %v1922 = vmul.f32 %v1910, %v1921
        %v1923 = vmul.f32 %v1911, %v1921
        %v1924 = vmul.f32 %v1912, %v1921
        %v1925 = vmul.f32 %v1913, %v1921
        %v1926 = vmul.f32 %v1914, %v1921
        %v1927 = vmul.f32 %v1915, %v1921
        %v1928 = vmul.f32 %v1916, %v1921
        %v1929 = vmul.f32 %v1917, %v1921
        %v1930 = vadd.f32 %v1902, %v1922
        %v1931 = vadd.f32 %v1903, %v1923
        %v1932 = vadd.f32 %v1904, %v1924
        %v1933 = vadd.f32 %v1905, %v1925
        %v1934 = vadd.f32 %v1906, %v1926
        %v1935 = vadd.f32 %v1907, %v1927
        %v1936 = vadd.f32 %v1908, %v1928
        %v1937 = vadd.f32 %v1909, %v1929
        %v1938 = vld [vmem:[%s1825 + $0x2] sm:$0xff]
        %v1939 = vld [vmem:[%s1825 + $0x12] sm:$0xff]
        %v1940 = vld [vmem:[%s1825 + $0x22] sm:$0xff]
        %v1941 = vld [vmem:[%s1825 + $0x32] sm:$0xff]
        %v1942 = vld [vmem:[%s1825 + $0x42] sm:$0xff]
        %v1943 = vld [vmem:[%s1825 + $0x52] sm:$0xff]
        %v1944 = vld [vmem:[%s1825 + $0x62] sm:$0xff]
        %v1945 = vld [vmem:[%s1825 + $0x72] sm:$0xff]
        %v1946 = vlaneseq
        %v1947 = vshrl.u32 %v1946, 7
        %v1948 = vsub.s32 7, %v1947
        %v1949 = vrot.slane %v607, %v1948
        %v1950 = vmul.f32 %v1938, %v1949
        %v1951 = vmul.f32 %v1939, %v1949
        %v1952 = vmul.f32 %v1940, %v1949
        %v1953 = vmul.f32 %v1941, %v1949
        %v1954 = vmul.f32 %v1942, %v1949
        %v1955 = vmul.f32 %v1943, %v1949
        %v1956 = vmul.f32 %v1944, %v1949
        %v1957 = vmul.f32 %v1945, %v1949
        %v1958 = vadd.f32 %v1930, %v1950
        %v1959 = vadd.f32 %v1931, %v1951
        %v1960 = vadd.f32 %v1932, %v1952
        %v1961 = vadd.f32 %v1933, %v1953
        %v1962 = vadd.f32 %v1934, %v1954
        %v1963 = vadd.f32 %v1935, %v1955
        %v1964 = vadd.f32 %v1936, %v1956
        %v1965 = vadd.f32 %v1937, %v1957
        %v1966 = vld [vmem:[%s1796 + $0x3] sm:$0xff]
        %v1967 = vld [vmem:[%s1796 + $0x13] sm:$0xff]
        %v1968 = vld [vmem:[%s1796 + $0x23] sm:$0xff]
        %v1969 = vld [vmem:[%s1796 + $0x33] sm:$0xff]
        %v1970 = vld [vmem:[%s1796 + $0x43] sm:$0xff]
        %v1971 = vld [vmem:[%s1796 + $0x53] sm:$0xff]
        %v1972 = vld [vmem:[%s1796 + $0x63] sm:$0xff]
        %v1973 = vld [vmem:[%s1796 + $0x73] sm:$0xff]
        %v1974 = vlaneseq
        %v1975 = vshrl.u32 %v1974, 7
        %v1976 = vsub.s32 0, %v1975
        %v1977 = vrot.slane %v608, %v1976
        %v1978 = vmul.f32 %v1966, %v1977
        %v1979 = vmul.f32 %v1967, %v1977
        %v1980 = vmul.f32 %v1968, %v1977
        %v1981 = vmul.f32 %v1969, %v1977
        %v1982 = vmul.f32 %v1970, %v1977
        %v1983 = vmul.f32 %v1971, %v1977
        %v1984 = vmul.f32 %v1972, %v1977
        %v1985 = vmul.f32 %v1973, %v1977
        %v1986 = vadd.f32 %v1958, %v1978
        %v1987 = vadd.f32 %v1959, %v1979
        %v1988 = vadd.f32 %v1960, %v1980
        %v1989 = vadd.f32 %v1961, %v1981
        %v1990 = vadd.f32 %v1962, %v1982
        %v1991 = vadd.f32 %v1963, %v1983
        %v1992 = vadd.f32 %v1964, %v1984
        %v1993 = vadd.f32 %v1965, %v1985
        %v1994 = vld [vmem:[%s2] sm:$0x1]
        %v1996 = vlaneseq
        %v1997 = vshrl.u32 %v1996, 7
        %v1998 = vsub.s32 0, %v1997
        %v1999 = vrot.slane %v1994, %v1998
        %v2001 = vadd.f32 %v1986, %v1999
        %v2002 = vadd.f32 %v1987, %v1999
        %v2003 = vadd.f32 %v1988, %v1999
        %v2004 = vadd.f32 %v1989, %v1999
        %v2005 = vadd.f32 %v1990, %v1999
        %v2006 = vadd.f32 %v1991, %v1999
        %v2007 = vadd.f32 %v1992, %v1999
        %v2008 = vadd.f32 %v1993, %v1999
        %v2009 = vmax.f32 %v2001, 0.0
        %v2010 = vmax.f32 %v2002, 0.0
        %v2011 = vmax.f32 %v2003, 0.0
        %v2012 = vmax.f32 %v2004, 0.0
        %v2013 = vmax.f32 %v2005, 0.0
        %v2014 = vmax.f32 %v2006, 0.0
        %v2015 = vmax.f32 %v2007, 0.0
        %v2016 = vmax.f32 %v2008, 0.0
        %v2017 = vpack.c.bf16 %v2010, %v2009
        %v2018 = vpack.c.bf16 %v2012, %v2011
        %v2019 = vpack.c.bf16 %v2014, %v2013
        %v2020 = vpack.c.bf16 %v2016, %v2015
        %v2021 = vld [vmem:[%s3] sm:$0xf]
        %v2022 = vld [vmem:[%s3 + $0x4] sm:$0xf]
        %v2023 = vld [vmem:[%s4] sm:$0x1]
        %v2025 = vlaneseq
        %v2026 = vshrl.u32 %v2025, 7
        %v2027 = vsub.s32 0, %v2026
        %v2028 = vrot.slane %v2023, %v2027
        %v2032 = vunpack.c.l.b16 %v2021
        %v2033 = vunpack.c.l.b16 %v2022
        %v2034 = vpack.c.b16 %v2033, %v2032
        %vm2036 = vcmask 130048
        %v2038 = vsel %vm2036, %v2017, 0
        %v2041 = vsel %vm2036, %v2018, 0
        %v2044 = vsel %vm2036, %v2019, 0
        %v2047 = vsel %vm2036, %v2020, 0
        %2049 = vmatprep.subr.bf16.mxu0 0
        %2050 = vmatpush1.bf16.msra.mxu0 0
        %2051 = vmatprep.subr.bf16.mxu0 0
        %2052 = vmatpush1.bf16.msra.mxu0 0
        %2053 = vmatprep.subr.bf16.mxu0 0
        %2054 = vmatpush1.bf16.msra.mxu0 0
        %2055 = vmatprep.subr.bf16.mxu0 0
        %2056 = vmatpush1.bf16.msra.mxu0 0
        %2057 = vmatprep.subr.bf16.mxu0 0
        %2058 = vmatpush1.bf16.msra.mxu0 0
        %2059 = vmatprep.subr.bf16.mxu0 0
        %2060 = vmatpush1.bf16.msra.mxu0 0
        %2061 = vmatprep.subr.bf16.mxu0 0
        %2062 = vmatpush1.bf16.msra.mxu0 0
        %2063 = vmatprep.subr.bf16.mxu0 0
        %2064 = vmatpush1.bf16.msra.mxu0 %v2034
        %2065 = vmatprep.subr.bf16.mxu0 0
        %2066 = vmatpush2.bf16.msra.mxu0 0
        %2067 = vmatprep.subr.bf16.mxu0 0
        %2068 = vmatpush2.bf16.msra.mxu0 0
        %2069 = vmatprep.subr.bf16.mxu0 0
        %2070 = vmatpush2.bf16.msra.mxu0 0
        %2071 = vmatprep.subr.bf16.mxu0 0
        %2072 = vmatpush2.bf16.msra.mxu0 0
        %2073 = vmatprep.subr.bf16.mxu0 0
        %2074 = vmatpush2.bf16.msra.mxu0 0
        %2075 = vmatprep.subr.bf16.mxu0 0
        %2076 = vmatpush2.bf16.msra.mxu0 0
        %2077 = vmatprep.subr.bf16.mxu0 0
        %2078 = vmatpush2.bf16.msra.mxu0 0
        %2079 = vmatprep.subr.bf16.mxu0 0
        %2080 = vmatpush2.bf16.msra.mxu0 0
        %2081 = vmatprep.mubr.bf16.mxu0 0
        %2082 = vmatmul.mubr.bf16.gmra.mxu0 %v2038
        %v2083 = vpop.f32.mrf.mxu0
        %v2084 = vadd.f32 %v2028, %v2083
        %v2085 = vpop.f32.mrf.mxu0
        %v2086 = vpop.f32.mrf.mxu0
        %v2087 = vadd.f32 %v2028, %v2086
        %v2088 = vpop.f32.mrf.mxu0
        %2089 = vmatprep.mubr.bf16.mxu0 0
        %2090 = vmatmul.mubr.bf16.gmra.mxu0 %v2041
        %v2091 = vpop.f32.mrf.mxu0
        %v2092 = vadd.f32 %v2028, %v2091
        %v2093 = vpop.f32.mrf.mxu0
        %v2094 = vpop.f32.mrf.mxu0
        %v2095 = vadd.f32 %v2028, %v2094
        %v2096 = vpop.f32.mrf.mxu0
        %2097 = vmatprep.mubr.bf16.mxu0 0
        %2098 = vmatmul.mubr.bf16.gmra.mxu0 %v2044
        %v2099 = vpop.f32.mrf.mxu0
        %v2100 = vadd.f32 %v2028, %v2099
        %v2101 = vpop.f32.mrf.mxu0
        %v2102 = vpop.f32.mrf.mxu0
        %v2103 = vadd.f32 %v2028, %v2102
        %v2104 = vpop.f32.mrf.mxu0
        %2105 = vmatprep.mubr.bf16.mxu0 0
        %2106 = vmatmul.mubr.bf16.gmra.mxu0 %v2047
        %v2107 = vpop.f32.mrf.mxu0
        %v2108 = vadd.f32 %v2028, %v2107
        %v2109 = vpop.f32.mrf.mxu0
        %v2110 = vpop.f32.mrf.mxu0
        %v2111 = vadd.f32 %v2028, %v2110
        %v2112 = vpop.f32.mrf.mxu0
        %2113 = vdwg.mxu0
        %v2114 = vmax.f32 %v2084, 0.0
        %v2115 = vmax.f32 %v2087, 0.0
        %v2116 = vmax.f32 %v2092, 0.0
        %v2117 = vmax.f32 %v2095, 0.0
        %v2118 = vmax.f32 %v2100, 0.0
        %v2119 = vmax.f32 %v2103, 0.0
        %v2120 = vmax.f32 %v2108, 0.0
        %v2121 = vmax.f32 %v2111, 0.0
        %vm2122 = vcmask 261120
        %2123 = vst.msk [vmem:[#allocation2] sm:$0xff] %vm2122, 0.0
        %vm2124 = vcmask 254976
        %2125 = vst.msk [vmem:[#allocation2 + $0x8] sm:$0x3] %vm2124, 0.0
        %s2126 = scalar_lea.vmem [#allocation2], 144
        %2127 = vst.msk [vmem:[%s2126] sm:$0xff] %vm2122, 0.0
        %2128 = vst.msk [vmem:[%s2126 + $0x8] sm:$0x3] %vm2124, 0.0
        %v2137 = vrot.slane %v2114, 7
        %v2138 = vrot.slane %v2115, 7
        %v2139 = vrot.slane %v2116, 7
        %v2140 = vrot.slane %v2117, 7
        %v2141 = vrot.slane %v2118, 7
        %v2142 = vrot.slane %v2119, 7
        %v2143 = vrot.slane %v2120, 7
        %v2144 = vrot.slane %v2121, 7
        %vm2153 = vcmask 1040384
        %v2154 = vsel %vm2153, 0.0, %v2137
        %v2155 = vsel %vm2153, 0.0, %v2138
        %v2156 = vsel %vm2153, 0.0, %v2139
        %v2157 = vsel %vm2153, 0.0, %v2140
        %v2158 = vsel %vm2153, 0.0, %v2141
        %v2159 = vsel %vm2153, 0.0, %v2142
        %v2160 = vsel %vm2153, 0.0, %v2143
        %v2161 = vsel %vm2153, 0.0, %v2144
        %v2162 = vsel %vm2153, %v2137, 0.0
        %v2163 = vsel %vm2153, %v2138, 0.0
        %v2164 = vsel %vm2153, %v2139, 0.0
        %v2165 = vsel %vm2153, %v2140, 0.0
        %v2166 = vsel %vm2153, %v2141, 0.0
        %v2167 = vsel %vm2153, %v2142, 0.0
        %v2168 = vsel %vm2153, %v2143, 0.0
        %v2169 = vsel %vm2153, %v2144, 0.0
        %s2170 = scalar_lea.vmem [#allocation2], 16
        %2171 = vst.msk [vmem:[%s2170] sm:$0xff] %vm2122, %v2154
        %2172 = vst.msk [vmem:[%s2170 + $0x8] sm:$0x3] %vm2124, %v2162
        %2173 = vst.msk [vmem:[%s2170 + $0x10] sm:$0xff] %vm2122, %v2155
        %2174 = vst.msk [vmem:[%s2170 + $0x18] sm:$0x3] %vm2124, %v2163
        %2175 = vst.msk [vmem:[%s2170 + $0x20] sm:$0xff] %vm2122, %v2156
        %2176 = vst.msk [vmem:[%s2170 + $0x28] sm:$0x3] %vm2124, %v2164
        %2177 = vst.msk [vmem:[%s2170 + $0x30] sm:$0xff] %vm2122, %v2157
        %2178 = vst.msk [vmem:[%s2170 + $0x38] sm:$0x3] %vm2124, %v2165
        %2179 = vst.msk [vmem:[%s2170 + $0x40] sm:$0xff] %vm2122, %v2158
        %2180 = vst.msk [vmem:[%s2170 + $0x48] sm:$0x3] %vm2124, %v2166
        %2181 = vst.msk [vmem:[%s2170 + $0x50] sm:$0xff] %vm2122, %v2159
        %2182 = vst.msk [vmem:[%s2170 + $0x58] sm:$0x3] %vm2124, %v2167
        %2183 = vst.msk [vmem:[%s2170 + $0x60] sm:$0xff] %vm2122, %v2160
        %2184 = vst.msk [vmem:[%s2170 + $0x68] sm:$0x3] %vm2124, %v2168
        %2185 = vst.msk [vmem:[%s2170 + $0x70] sm:$0xff] %vm2122, %v2161
        %2186 = vst.msk [vmem:[%s2170 + $0x78] sm:$0x3] %vm2124, %v2169
        %v2187 = vld [vmem:[%s5] sm:$0xff]
        %v2188 = vld [vmem:[%s5 + $0x8] sm:$0x1]
        %v2189 = vld [vmem:[#allocation2] sm:$0xff]
        %v2190 = vld [vmem:[#allocation2 + $0x10] sm:$0xff]
        %v2191 = vld [vmem:[#allocation2 + $0x20] sm:$0xff]
        %v2192 = vld [vmem:[#allocation2 + $0x30] sm:$0xff]
        %v2193 = vld [vmem:[#allocation2 + $0x40] sm:$0xff]
        %v2194 = vld [vmem:[#allocation2 + $0x50] sm:$0xff]
        %v2195 = vld [vmem:[#allocation2 + $0x60] sm:$0xff]
        %v2196 = vld [vmem:[#allocation2 + $0x70] sm:$0xff]
        %v2197 = vlaneseq
        %v2198 = vshrl.u32 %v2197, 7
        %v2199 = vsub.s32 0, %v2198
        %v2200 = vrot.slane %v2187, %v2199
        %v2201 = vmul.f32 %v2189, %v2200
        %v2202 = vmul.f32 %v2190, %v2200
        %v2203 = vmul.f32 %v2191, %v2200
        %v2204 = vmul.f32 %v2192, %v2200
        %v2205 = vmul.f32 %v2193, %v2200
        %v2206 = vmul.f32 %v2194, %v2200
        %v2207 = vmul.f32 %v2195, %v2200
        %v2208 = vmul.f32 %v2196, %v2200
        %v2209 = vadd.f32 %v2201, 0.0
        %v2210 = vadd.f32 %v2202, 0.0
        %v2211 = vadd.f32 %v2203, 0.0
        %v2212 = vadd.f32 %v2204, 0.0
        %v2213 = vadd.f32 %v2205, 0.0
        %v2214 = vadd.f32 %v2206, 0.0
        %v2215 = vadd.f32 %v2207, 0.0
        %v2216 = vadd.f32 %v2208, 0.0
        %v2217 = vld [vmem:[#allocation2 + $0x1] sm:$0xff]
        %v2218 = vld [vmem:[#allocation2 + $0x11] sm:$0xff]
        %v2219 = vld [vmem:[#allocation2 + $0x21] sm:$0xff]
        %v2220 = vld [vmem:[#allocation2 + $0x31] sm:$0xff]
        %v2221 = vld [vmem:[#allocation2 + $0x41] sm:$0xff]
        %v2222 = vld [vmem:[#allocation2 + $0x51] sm:$0xff]
        %v2223 = vld [vmem:[#allocation2 + $0x61] sm:$0xff]
        %v2224 = vld [vmem:[#allocation2 + $0x71] sm:$0xff]
        %v2225 = vlaneseq
        %v2226 = vshrl.u32 %v2225, 7
        %v2227 = vsub.s32 1, %v2226
        %v2228 = vrot.slane %v2187, %v2227
        %v2229 = vmul.f32 %v2217, %v2228
        %v2230 = vmul.f32 %v2218, %v2228
        %v2231 = vmul.f32 %v2219, %v2228
        %v2232 = vmul.f32 %v2220, %v2228
        %v2233 = vmul.f32 %v2221, %v2228
        %v2234 = vmul.f32 %v2222, %v2228
        %v2235 = vmul.f32 %v2223, %v2228
        %v2236 = vmul.f32 %v2224, %v2228
        %v2237 = vadd.f32 %v2209, %v2229
        %v2238 = vadd.f32 %v2210, %v2230
        %v2239 = vadd.f32 %v2211, %v2231
        %v2240 = vadd.f32 %v2212, %v2232
        %v2241 = vadd.f32 %v2213, %v2233
        %v2242 = vadd.f32 %v2214, %v2234
        %v2243 = vadd.f32 %v2215, %v2235
        %v2244 = vadd.f32 %v2216, %v2236
        %v2245 = vld [vmem:[#allocation2 + $0x2] sm:$0xff]
        %v2246 = vld [vmem:[#allocation2 + $0x12] sm:$0xff]
        %v2247 = vld [vmem:[#allocation2 + $0x22] sm:$0xff]
        %v2248 = vld [vmem:[#allocation2 + $0x32] sm:$0xff]
        %v2249 = vld [vmem:[#allocation2 + $0x42] sm:$0xff]
        %v2250 = vld [vmem:[#allocation2 + $0x52] sm:$0xff]
        %v2251 = vld [vmem:[#allocation2 + $0x62] sm:$0xff]
        %v2252 = vld [vmem:[#allocation2 + $0x72] sm:$0xff]
        %v2253 = vlaneseq
        %v2254 = vshrl.u32 %v2253, 7
        %v2255 = vsub.s32 2, %v2254
        %v2256 = vrot.slane %v2187, %v2255
        %v2257 = vmul.f32 %v2245, %v2256
        %v2258 = vmul.f32 %v2246, %v2256
        %v2259 = vmul.f32 %v2247, %v2256
        %v2260 = vmul.f32 %v2248, %v2256
        %v2261 = vmul.f32 %v2249, %v2256
        %v2262 = vmul.f32 %v2250, %v2256
        %v2263 = vmul.f32 %v2251, %v2256
        %v2264 = vmul.f32 %v2252, %v2256
        %v2265 = vadd.f32 %v2237, %v2257
        %v2266 = vadd.f32 %v2238, %v2258
        %v2267 = vadd.f32 %v2239, %v2259
        %v2268 = vadd.f32 %v2240, %v2260
        %v2269 = vadd.f32 %v2241, %v2261
        %v2270 = vadd.f32 %v2242, %v2262
        %v2271 = vadd.f32 %v2243, %v2263
        %v2272 = vadd.f32 %v2244, %v2264
        %v2273 = vld [vmem:[%s2170] sm:$0xff]
        %v2274 = vld [vmem:[%s2170 + $0x10] sm:$0xff]
        %v2275 = vld [vmem:[%s2170 + $0x20] sm:$0xff]
        %v2276 = vld [vmem:[%s2170 + $0x30] sm:$0xff]
        %v2277 = vld [vmem:[%s2170 + $0x40] sm:$0xff]
        %v2278 = vld [vmem:[%s2170 + $0x50] sm:$0xff]
        %v2279 = vld [vmem:[%s2170 + $0x60] sm:$0xff]
        %v2280 = vld [vmem:[%s2170 + $0x70] sm:$0xff]
        %v2281 = vlaneseq
        %v2282 = vshrl.u32 %v2281, 7
        %v2283 = vsub.s32 3, %v2282
        %v2284 = vrot.slane %v2187, %v2283
        %v2285 = vmul.f32 %v2273, %v2284
        %v2286 = vmul.f32 %v2274, %v2284
        %v2287 = vmul.f32 %v2275, %v2284
        %v2288 = vmul.f32 %v2276, %v2284
        %v2289 = vmul.f32 %v2277, %v2284
        %v2290 = vmul.f32 %v2278, %v2284
        %v2291 = vmul.f32 %v2279, %v2284
        %v2292 = vmul.f32 %v2280, %v2284
        %v2293 = vadd.f32 %v2265, %v2285
        %v2294 = vadd.f32 %v2266, %v2286
        %v2295 = vadd.f32 %v2267, %v2287
        %v2296 = vadd.f32 %v2268, %v2288
        %v2297 = vadd.f32 %v2269, %v2289
        %v2298 = vadd.f32 %v2270, %v2290
        %v2299 = vadd.f32 %v2271, %v2291
        %v2300 = vadd.f32 %v2272, %v2292
        %v2301 = vld [vmem:[%s2170 + $0x1] sm:$0xff]
        %v2302 = vld [vmem:[%s2170 + $0x11] sm:$0xff]
        %v2303 = vld [vmem:[%s2170 + $0x21] sm:$0xff]
        %v2304 = vld [vmem:[%s2170 + $0x31] sm:$0xff]
        %v2305 = vld [vmem:[%s2170 + $0x41] sm:$0xff]
        %v2306 = vld [vmem:[%s2170 + $0x51] sm:$0xff]
        %v2307 = vld [vmem:[%s2170 + $0x61] sm:$0xff]
        %v2308 = vld [vmem:[%s2170 + $0x71] sm:$0xff]
        %v2309 = vlaneseq
        %v2310 = vshrl.u32 %v2309, 7
        %v2311 = vsub.s32 4, %v2310
        %v2312 = vrot.slane %v2187, %v2311
        %v2313 = vmul.f32 %v2301, %v2312
        %v2314 = vmul.f32 %v2302, %v2312
        %v2315 = vmul.f32 %v2303, %v2312
        %v2316 = vmul.f32 %v2304, %v2312
        %v2317 = vmul.f32 %v2305, %v2312
        %v2318 = vmul.f32 %v2306, %v2312
        %v2319 = vmul.f32 %v2307, %v2312
        %v2320 = vmul.f32 %v2308, %v2312
        %v2321 = vadd.f32 %v2293, %v2313
        %v2322 = vadd.f32 %v2294, %v2314
        %v2323 = vadd.f32 %v2295, %v2315
        %v2324 = vadd.f32 %v2296, %v2316
        %v2325 = vadd.f32 %v2297, %v2317
        %v2326 = vadd.f32 %v2298, %v2318
        %v2327 = vadd.f32 %v2299, %v2319
        %v2328 = vadd.f32 %v2300, %v2320
        %v2329 = vld [vmem:[%s2170 + $0x2] sm:$0xff]
        %v2330 = vld [vmem:[%s2170 + $0x12] sm:$0xff]
        %v2331 = vld [vmem:[%s2170 + $0x22] sm:$0xff]
        %v2332 = vld [vmem:[%s2170 + $0x32] sm:$0xff]
        %v2333 = vld [vmem:[%s2170 + $0x42] sm:$0xff]
        %v2334 = vld [vmem:[%s2170 + $0x52] sm:$0xff]
        %v2335 = vld [vmem:[%s2170 + $0x62] sm:$0xff]
        %v2336 = vld [vmem:[%s2170 + $0x72] sm:$0xff]
        %v2337 = vlaneseq
        %v2338 = vshrl.u32 %v2337, 7
        %v2339 = vsub.s32 5, %v2338
        %v2340 = vrot.slane %v2187, %v2339
        %v2341 = vmul.f32 %v2329, %v2340
        %v2342 = vmul.f32 %v2330, %v2340
        %v2343 = vmul.f32 %v2331, %v2340
        %v2344 = vmul.f32 %v2332, %v2340
        %v2345 = vmul.f32 %v2333, %v2340
        %v2346 = vmul.f32 %v2334, %v2340
        %v2347 = vmul.f32 %v2335, %v2340
        %v2348 = vmul.f32 %v2336, %v2340
        %v2349 = vadd.f32 %v2321, %v2341
        %v2350 = vadd.f32 %v2322, %v2342
        %v2351 = vadd.f32 %v2323, %v2343
        %v2352 = vadd.f32 %v2324, %v2344
        %v2353 = vadd.f32 %v2325, %v2345
        %v2354 = vadd.f32 %v2326, %v2346
        %v2355 = vadd.f32 %v2327, %v2347
        %v2356 = vadd.f32 %v2328, %v2348
        %s2357 = scalar_lea.vmem [#allocation2], 32
        %v2358 = vld [vmem:[%s2357] sm:$0xff]
        %v2359 = vld [vmem:[%s2357 + $0x10] sm:$0xff]
        %v2360 = vld [vmem:[%s2357 + $0x20] sm:$0xff]
        %v2361 = vld [vmem:[%s2357 + $0x30] sm:$0xff]
        %v2362 = vld [vmem:[%s2357 + $0x40] sm:$0xff]
        %v2363 = vld [vmem:[%s2357 + $0x50] sm:$0xff]
        %v2364 = vld [vmem:[%s2357 + $0x60] sm:$0xff]
        %v2365 = vld [vmem:[%s2357 + $0x70] sm:$0xff]
        %v2366 = vlaneseq
        %v2367 = vshrl.u32 %v2366, 7
        %v2368 = vsub.s32 6, %v2367
        %v2369 = vrot.slane %v2187, %v2368
        %v2370 = vmul.f32 %v2358, %v2369
        %v2371 = vmul.f32 %v2359, %v2369
        %v2372 = vmul.f32 %v2360, %v2369
        %v2373 = vmul.f32 %v2361, %v2369
        %v2374 = vmul.f32 %v2362, %v2369
        %v2375 = vmul.f32 %v2363, %v2369
        %v2376 = vmul.f32 %v2364, %v2369
        %v2377 = vmul.f32 %v2365, %v2369
        %v2378 = vadd.f32 %v2349, %v2370
        %v2379 = vadd.f32 %v2350, %v2371
        %v2380 = vadd.f32 %v2351, %v2372
        %v2381 = vadd.f32 %v2352, %v2373
        %v2382 = vadd.f32 %v2353, %v2374
        %v2383 = vadd.f32 %v2354, %v2375
        %v2384 = vadd.f32 %v2355, %v2376
        %v2385 = vadd.f32 %v2356, %v2377
        %v2386 = vld [vmem:[%s2357 + $0x1] sm:$0xff]
        %v2387 = vld [vmem:[%s2357 + $0x11] sm:$0xff]
        %v2388 = vld [vmem:[%s2357 + $0x21] sm:$0xff]
        %v2389 = vld [vmem:[%s2357 + $0x31] sm:$0xff]
        %v2390 = vld [vmem:[%s2357 + $0x41] sm:$0xff]
        %v2391 = vld [vmem:[%s2357 + $0x51] sm:$0xff]
        %v2392 = vld [vmem:[%s2357 + $0x61] sm:$0xff]
        %v2393 = vld [vmem:[%s2357 + $0x71] sm:$0xff]
        %v2394 = vlaneseq
        %v2395 = vshrl.u32 %v2394, 7
        %v2396 = vsub.s32 7, %v2395
        %v2397 = vrot.slane %v2187, %v2396
        %v2398 = vmul.f32 %v2386, %v2397
        %v2399 = vmul.f32 %v2387, %v2397
        %v2400 = vmul.f32 %v2388, %v2397
        %v2401 = vmul.f32 %v2389, %v2397
        %v2402 = vmul.f32 %v2390, %v2397
        %v2403 = vmul.f32 %v2391, %v2397
        %v2404 = vmul.f32 %v2392, %v2397
        %v2405 = vmul.f32 %v2393, %v2397
        %v2406 = vadd.f32 %v2378, %v2398
        %v2407 = vadd.f32 %v2379, %v2399
        %v2408 = vadd.f32 %v2380, %v2400
        %v2409 = vadd.f32 %v2381, %v2401
        %v2410 = vadd.f32 %v2382, %v2402
        %v2411 = vadd.f32 %v2383, %v2403
        %v2412 = vadd.f32 %v2384, %v2404
        %v2413 = vadd.f32 %v2385, %v2405
        %v2414 = vld [vmem:[%s2357 + $0x2] sm:$0xff]
        %v2415 = vld [vmem:[%s2357 + $0x12] sm:$0xff]
        %v2416 = vld [vmem:[%s2357 + $0x22] sm:$0xff]
        %v2417 = vld [vmem:[%s2357 + $0x32] sm:$0xff]
        %v2418 = vld [vmem:[%s2357 + $0x42] sm:$0xff]
        %v2419 = vld [vmem:[%s2357 + $0x52] sm:$0xff]
        %v2420 = vld [vmem:[%s2357 + $0x62] sm:$0xff]
        %v2421 = vld [vmem:[%s2357 + $0x72] sm:$0xff]
        %v2422 = vlaneseq
        %v2423 = vshrl.u32 %v2422, 7
        %v2424 = vsub.s32 0, %v2423
        %v2425 = vrot.slane %v2188, %v2424
        %v2426 = vmul.f32 %v2414, %v2425
        %v2427 = vmul.f32 %v2415, %v2425
        %v2428 = vmul.f32 %v2416, %v2425
        %v2429 = vmul.f32 %v2417, %v2425
        %v2430 = vmul.f32 %v2418, %v2425
        %v2431 = vmul.f32 %v2419, %v2425
        %v2432 = vmul.f32 %v2420, %v2425
        %v2433 = vmul.f32 %v2421, %v2425
        %v2434 = vadd.f32 %v2406, %v2426
        %v2435 = vadd.f32 %v2407, %v2427
        %v2436 = vadd.f32 %v2408, %v2428
        %v2437 = vadd.f32 %v2409, %v2429
        %v2438 = vadd.f32 %v2410, %v2430
        %v2439 = vadd.f32 %v2411, %v2431
        %v2440 = vadd.f32 %v2412, %v2432
        %v2441 = vadd.f32 %v2413, %v2433
        %v2442 = vld [vmem:[%s6] sm:$0x1]
        %v2444 = vlaneseq
        %v2445 = vshrl.u32 %v2444, 7
        %v2446 = vsub.s32 0, %v2445
        %v2447 = vrot.slane %v2442, %v2446
        %v2449 = vadd.f32 %v2434, %v2447
        %v2450 = vadd.f32 %v2435, %v2447
        %v2451 = vadd.f32 %v2436, %v2447
        %v2452 = vadd.f32 %v2437, %v2447
        %v2453 = vadd.f32 %v2438, %v2447
        %v2454 = vadd.f32 %v2439, %v2447
        %v2455 = vadd.f32 %v2440, %v2447
        %v2456 = vadd.f32 %v2441, %v2447
        %v2457 = vsel %vm2122, %v2449, 0.0
        %2458 = vadd.xlane.f32.xlu0 %v2457
        %v2459 = vpop.xlane.xlu0 %2458
        %v2460 = vsel %vm2122, %v2450, 0.0
        %2461 = vadd.xlane.f32.xlu0 %v2460
        %v2462 = vpop.xlane.xlu0 %2461
        %v2463 = vsel %vm2122, %v2451, 0.0
        %2464 = vadd.xlane.f32.xlu0 %v2463
        %v2465 = vpop.xlane.xlu0 %2464
        %v2466 = vsel %vm2122, %v2452, 0.0
        %2467 = vadd.xlane.f32.xlu0 %v2466
        %v2468 = vpop.xlane.xlu0 %2467
        %v2469 = vsel %vm2122, %v2453, 0.0
        %2470 = vadd.xlane.f32.xlu0 %v2469
        %v2471 = vpop.xlane.xlu0 %2470
        %v2472 = vsel %vm2122, %v2454, 0.0
        %2473 = vadd.xlane.f32.xlu0 %v2472
        %v2474 = vpop.xlane.xlu0 %2473
        %v2475 = vsel %vm2122, %v2455, 0.0
        %2476 = vadd.xlane.f32.xlu0 %v2475
        %v2477 = vpop.xlane.xlu0 %2476
        %v2478 = vsel %vm2122, %v2456, 0.0
        %2479 = vadd.xlane.f32.xlu0 %v2478
        %v2480 = vpop.xlane.xlu0 %2479
        %v2481 = vrcp.pop 32.0
        %v2482 = vmul.f32 %v2459, %v2481
        %v2483 = vmul.f32 %v2462, %v2481
        %v2484 = vmul.f32 %v2465, %v2481
        %v2485 = vmul.f32 %v2468, %v2481
        %v2486 = vmul.f32 %v2471, %v2481
        %v2487 = vmul.f32 %v2474, %v2481
        %v2488 = vmul.f32 %v2477, %v2481
        %v2489 = vmul.f32 %v2480, %v2481
        %v2490 = vsub.f32 %v2449, %v2482
        %v2491 = vsub.f32 %v2450, %v2483
        %v2492 = vsub.f32 %v2451, %v2484
        %v2493 = vsub.f32 %v2452, %v2485
        %v2494 = vsub.f32 %v2453, %v2486
        %v2495 = vsub.f32 %v2454, %v2487
        %v2496 = vsub.f32 %v2455, %v2488
        %v2497 = vsub.f32 %v2456, %v2489
        %v2498 = vmul.f32 %v2490, %v2490
        %v2499 = vmul.f32 %v2491, %v2491
        %v2500 = vmul.f32 %v2492, %v2492
        %v2501 = vmul.f32 %v2493, %v2493
        %v2502 = vmul.f32 %v2494, %v2494
        %v2503 = vmul.f32 %v2495, %v2495
        %v2504 = vmul.f32 %v2496, %v2496
        %v2505 = vmul.f32 %v2497, %v2497
        %v2506 = vsel %vm2122, %v2498, 0.0
        %2507 = vadd.xlane.f32.xlu0 %v2506
        %v2508 = vpop.xlane.xlu0 %2507
        %v2509 = vsel %vm2122, %v2499, 0.0
        %2510 = vadd.xlane.f32.xlu0 %v2509
        %v2511 = vpop.xlane.xlu0 %2510
        %v2512 = vsel %vm2122, %v2500, 0.0
        %2513 = vadd.xlane.f32.xlu0 %v2512
        %v2514 = vpop.xlane.xlu0 %2513
        %v2515 = vsel %vm2122, %v2501, 0.0
        %2516 = vadd.xlane.f32.xlu0 %v2515
        %v2517 = vpop.xlane.xlu0 %2516
        %v2518 = vsel %vm2122, %v2502, 0.0
        %2519 = vadd.xlane.f32.xlu0 %v2518
        %v2520 = vpop.xlane.xlu0 %2519
        %v2521 = vsel %vm2122, %v2503, 0.0
        %2522 = vadd.xlane.f32.xlu0 %v2521
        %v2523 = vpop.xlane.xlu0 %2522
        %v2524 = vsel %vm2122, %v2504, 0.0
        %2525 = vadd.xlane.f32.xlu0 %v2524
        %v2526 = vpop.xlane.xlu0 %2525
        %v2527 = vsel %vm2122, %v2505, 0.0
        %2528 = vadd.xlane.f32.xlu0 %v2527
        %v2529 = vpop.xlane.xlu0 %2528
        %v2530 = vmul.f32 %v2508, %v2481
        %v2531 = vmul.f32 %v2511, %v2481
        %v2532 = vmul.f32 %v2514, %v2481
        %v2533 = vmul.f32 %v2517, %v2481
        %v2534 = vmul.f32 %v2520, %v2481
        %v2535 = vmul.f32 %v2523, %v2481
        %v2536 = vmul.f32 %v2526, %v2481
        %v2537 = vmul.f32 %v2529, %v2481
        %v2538 = vadd.f32 %v2530, 1e-05
        %v2539 = vadd.f32 %v2531, 1e-05
        %v2540 = vadd.f32 %v2532, 1e-05
        %v2541 = vadd.f32 %v2533, 1e-05
        %v2542 = vadd.f32 %v2534, 1e-05
        %v2543 = vadd.f32 %v2535, 1e-05
        %v2544 = vadd.f32 %v2536, 1e-05
        %v2545 = vadd.f32 %v2537, 1e-05
        %v2546 = vrsqrt.pop %v2538
        %v2547 = vrsqrt.pop %v2539
        %v2548 = vrsqrt.pop %v2540
        %v2549 = vrsqrt.pop %v2541
        %v2550 = vrsqrt.pop %v2542
        %v2551 = vrsqrt.pop %v2543
        %v2552 = vrsqrt.pop %v2544
        %v2553 = vrsqrt.pop %v2545
        %v2554 = vmul.f32 %v2490, %v2546
        %v2555 = vmul.f32 %v2491, %v2547
        %v2556 = vmul.f32 %v2492, %v2548
        %v2557 = vmul.f32 %v2493, %v2549
        %v2558 = vmul.f32 %v2494, %v2550
        %v2559 = vmul.f32 %v2495, %v2551
        %v2560 = vmul.f32 %v2496, %v2552
        %v2561 = vmul.f32 %v2497, %v2553
        %v2562 = vld [vmem:[%s7] sm:$0x1]
        %v2564 = vlaneseq
        %v2565 = vshrl.u32 %v2564, 7
        %v2566 = vsub.s32 0, %v2565
        %v2567 = vrot.slane %v2562, %v2566
        %v2569 = vmul.f32 %v2554, %v2567
        %v2570 = vmul.f32 %v2555, %v2567
        %v2571 = vmul.f32 %v2556, %v2567
        %v2572 = vmul.f32 %v2557, %v2567
        %v2573 = vmul.f32 %v2558, %v2567
        %v2574 = vmul.f32 %v2559, %v2567
        %v2575 = vmul.f32 %v2560, %v2567
        %v2576 = vmul.f32 %v2561, %v2567
        %v2577 = vld [vmem:[%s8] sm:$0x1]
        %v2579 = vlaneseq
        %v2580 = vshrl.u32 %v2579, 7
        %v2581 = vsub.s32 0, %v2580
        %v2582 = vrot.slane %v2577, %v2581
        %v2584 = vadd.f32 %v2569, %v2582
        %v2585 = vadd.f32 %v2570, %v2582
        %v2586 = vadd.f32 %v2571, %v2582
        %v2587 = vadd.f32 %v2572, %v2582
        %v2588 = vadd.f32 %v2573, %v2582
        %v2589 = vadd.f32 %v2574, %v2582
        %v2590 = vadd.f32 %v2575, %v2582
        %v2591 = vadd.f32 %v2576, %v2582
        %v2592 = vpack.c.bf16 %v2585, %v2584
        %v2593 = vpack.c.bf16 %v2587, %v2586
        %v2594 = vpack.c.bf16 %v2589, %v2588
        %v2595 = vpack.c.bf16 %v2591, %v2590
        %v2596 = vld [vmem:[%s9] sm:$0xf]
        %v2597 = vld [vmem:[%s9 + $0x4] sm:$0xf]
        %v2598 = vld [vmem:[%s9 + $0x8] sm:$0xf]
        %v2599 = vld [vmem:[%s9 + $0xc] sm:$0xf]
        %v2604 = vunpack.c.l.b16 %v2596
        %v2605 = vunpack.c.l.b16 %v2597
        %v2606 = vunpack.c.l.b16 %v2598
        %v2607 = vunpack.c.l.b16 %v2599
        %v2608 = vpack.c.b16 %v2605, %v2604
        %v2609 = vpack.c.b16 %v2607, %v2606
        %v2613 = vsel %vm2122, %v2592, 0
        %v2616 = vsel %vm2122, %v2593, 0
        %v2619 = vsel %vm2122, %v2594, 0
        %v2622 = vsel %vm2122, %v2595, 0
        %2624 = vmatprep.subr.bf16.mxu0 0
        %2625 = vmatpush1.bf16.msra.mxu0 0
        %2626 = vmatprep.subr.bf16.mxu0 0
        %2627 = vmatpush1.bf16.msra.mxu0 0
        %2628 = vmatprep.subr.bf16.mxu0 0
        %2629 = vmatpush1.bf16.msra.mxu0 0
        %2630 = vmatprep.subr.bf16.mxu0 0
        %2631 = vmatpush1.bf16.msra.mxu0 0
        %2632 = vmatprep.subr.bf16.mxu0 0
        %2633 = vmatpush1.bf16.msra.mxu0 0
        %2634 = vmatprep.subr.bf16.mxu0 0
        %2635 = vmatpush1.bf16.msra.mxu0 0
        %2636 = vmatprep.subr.bf16.mxu0 0
        %2637 = vmatpush1.bf16.msra.mxu0 %v2609
        %2638 = vmatprep.subr.bf16.mxu0 0
        %2639 = vmatpush1.bf16.msra.mxu0 %v2608
        %2640 = vmatprep.subr.bf16.mxu0 0
        %2641 = vmatpush2.bf16.msra.mxu0 0
        %2642 = vmatprep.subr.bf16.mxu0 0
        %2643 = vmatpush2.bf16.msra.mxu0 0
        %2644 = vmatprep.subr.bf16.mxu0 0
        %2645 = vmatpush2.bf16.msra.mxu0 0
        %2646 = vmatprep.subr.bf16.mxu0 0
        %2647 = vmatpush2.bf16.msra.mxu0 0
        %2648 = vmatprep.subr.bf16.mxu0 0
        %2649 = vmatpush2.bf16.msra.mxu0 0
        %2650 = vmatprep.subr.bf16.mxu0 0
        %2651 = vmatpush2.bf16.msra.mxu0 0
        %2652 = vmatprep.subr.bf16.mxu0 0
        %2653 = vmatpush2.bf16.msra.mxu0 0
        %2654 = vmatprep.subr.bf16.mxu0 0
        %2655 = vmatpush2.bf16.msra.mxu0 0
        %2656 = vmatprep.mubr.bf16.mxu0 0
        %2657 = vmatmul.mubr.bf16.gmra.mxu0 %v2613
        %v2658 = vpop.f32.mrf.mxu0
        %v2659 = vadd.f32 0.0, %v2658
        %v2660 = vpop.f32.mrf.mxu0
        %v2661 = vpop.f32.mrf.mxu0
        %v2662 = vadd.f32 0.0, %v2661
        %v2663 = vpop.f32.mrf.mxu0
        %2664 = vmatprep.mubr.bf16.mxu0 0
        %2665 = vmatmul.mubr.bf16.gmra.mxu0 %v2616
        %v2666 = vpop.f32.mrf.mxu0
        %v2667 = vadd.f32 0.0, %v2666
        %v2668 = vpop.f32.mrf.mxu0
        %v2669 = vpop.f32.mrf.mxu0
        %v2670 = vadd.f32 0.0, %v2669
        %v2671 = vpop.f32.mrf.mxu0
        %2672 = vmatprep.mubr.bf16.mxu0 0
        %2673 = vmatmul.mubr.bf16.gmra.mxu0 %v2619
        %v2674 = vpop.f32.mrf.mxu0
        %v2675 = vadd.f32 0.0, %v2674
        %v2676 = vpop.f32.mrf.mxu0
        %v2677 = vpop.f32.mrf.mxu0
        %v2678 = vadd.f32 0.0, %v2677
        %v2679 = vpop.f32.mrf.mxu0
        %2680 = vmatprep.mubr.bf16.mxu0 0
        %2681 = vmatmul.mubr.bf16.gmra.mxu0 %v2622
        %v2682 = vpop.f32.mrf.mxu0
        %v2683 = vadd.f32 0.0, %v2682
        %v2684 = vpop.f32.mrf.mxu0
        %v2685 = vpop.f32.mrf.mxu0
        %v2686 = vadd.f32 0.0, %v2685
        %v2687 = vpop.f32.mrf.mxu0
        %2688 = vdwg.mxu0
        %2697 = vrot.lane.b32.xlu0 %v2659, 96
        %v2698 = vpop.permute.xlu0 %2697
        %2699 = vrot.lane.b32.xlu0 %v2662, 96
        %v2700 = vpop.permute.xlu0 %2699
        %2701 = vrot.lane.b32.xlu0 %v2667, 96
        %v2702 = vpop.permute.xlu0 %2701
        %2703 = vrot.lane.b32.xlu0 %v2670, 96
        %v2704 = vpop.permute.xlu0 %2703
        %2705 = vrot.lane.b32.xlu0 %v2675, 96
        %v2706 = vpop.permute.xlu0 %2705
        %2707 = vrot.lane.b32.xlu0 %v2678, 96
        %v2708 = vpop.permute.xlu0 %2707
        %2709 = vrot.lane.b32.xlu0 %v2683, 96
        %v2710 = vpop.permute.xlu0 %2709
        %2711 = vrot.lane.b32.xlu0 %v2686, 96
        %v2712 = vpop.permute.xlu0 %2711
        %vm2713 = vcmask 64512
        %v2714 = vsel %vm2713, %v2659, 0
        %v2716 = vsel %vm2713, %v2662, 0
        %v2718 = vsel %vm2713, %v2667, 0
        %v2720 = vsel %vm2713, %v2670, 0
        %v2722 = vsel %vm2713, %v2675, 0
        %v2724 = vsel %vm2713, %v2678, 0
        %v2726 = vsel %vm2713, %v2683, 0
        %v2728 = vsel %vm2713, %v2686, 0
        %v2730 = vsel %vm2713, %v2698, 0
        %v2732 = vsel %vm2713, %v2700, 0
        %v2734 = vsel %vm2713, %v2702, 0
        %v2736 = vsel %vm2713, %v2704, 0
        %v2738 = vsel %vm2713, %v2706, 0
        %v2740 = vsel %vm2713, %v2708, 0
        %v2742 = vsel %vm2713, %v2710, 0
        %v2744 = vsel %vm2713, %v2712, 0
        %2746 = vmatprep.subr.mxu0 0.0
        %2747 = vmatpush1.xpose.msra.mxu0 0.0
        %2748 = vmatprep.subr.mxu0 0.0
        %2749 = vmatpush1.xpose.msra.mxu0 0.0
        %2750 = vmatprep.subr.mxu0 0.0
        %2751 = vmatpush1.xpose.msra.mxu0 0.0
        %2752 = vmatprep.subr.mxu0 0.0
        %2753 = vmatpush1.xpose.msra.mxu0 0.0
        %2754 = vmatprep.subr.mxu0 0.0
        %2755 = vmatpush1.xpose.msra.mxu0 0.0
        %2756 = vmatprep.subr.mxu0 0.0
        %2757 = vmatpush1.xpose.msra.mxu0 0.0
        %2758 = vmatprep.subr.mxu0 0.0
        %2759 = vmatpush1.xpose.msra.mxu0 0.0
        %2760 = vmatprep.subr.mxu0 0.0
        %2761 = vmatpush1.xpose.msra.mxu0 0.0
        %2762 = vmatprep.subr.mxu0 0.0
        %2763 = vmatpush1.xpose.msra.mxu0 %v2744
        %2764 = vmatprep.subr.mxu0 0.0
        %2765 = vmatpush1.xpose.msra.mxu0 %v2742
        %2766 = vmatprep.subr.mxu0 0.0
        %2767 = vmatpush1.xpose.msra.mxu0 %v2740
        %2768 = vmatprep.subr.mxu0 0.0
        %2769 = vmatpush1.xpose.msra.mxu0 %v2738
        %2770 = vmatprep.subr.mxu0 0.0
        %2771 = vmatpush1.xpose.msra.mxu0 %v2736
        %2772 = vmatprep.subr.mxu0 0.0
        %2773 = vmatpush1.xpose.msra.mxu0 %v2734
        %2774 = vmatprep.subr.mxu0 0.0
        %2775 = vmatpush1.xpose.msra.mxu0 %v2732
        %2776 = vmatprep.subr.mxu0 0.0
        %2777 = vmatpush1.xpose.msra.mxu0 %v2730
        %2778 = vmatprep.subr.mxu0 0.0
        %2779 = vmatpush2.xpose.msra.mxu0 0.0
        %2780 = vmatprep.subr.mxu0 0.0
        %2781 = vmatpush2.xpose.msra.mxu0 0.0
        %2782 = vmatprep.subr.mxu0 0.0
        %2783 = vmatpush2.xpose.msra.mxu0 0.0
        %2784 = vmatprep.subr.mxu0 0.0
        %2785 = vmatpush2.xpose.msra.mxu0 0.0
        %2786 = vmatprep.subr.mxu0 0.0
        %2787 = vmatpush2.xpose.msra.mxu0 0.0
        %2788 = vmatprep.subr.mxu0 0.0
        %2789 = vmatpush2.xpose.msra.mxu0 0.0
        %2790 = vmatprep.subr.mxu0 0.0
        %2791 = vmatpush2.xpose.msra.mxu0 0.0
        %2792 = vmatprep.subr.mxu0 0.0
        %2793 = vmatpush2.xpose.msra.mxu0 0.0
        %2794 = vmatprep.subr.mxu0 0.0
        %2795 = vmatpush2.xpose.msra.mxu0 0.0
        %2796 = vmatprep.subr.mxu0 0.0
        %2797 = vmatpush2.xpose.msra.mxu0 0.0
        %2798 = vmatprep.subr.mxu0 0.0
        %2799 = vmatpush2.xpose.msra.mxu0 0.0
        %2800 = vmatprep.subr.mxu0 0.0
        %2801 = vmatpush2.xpose.msra.mxu0 0.0
        %2802 = vmatprep.subr.mxu0 0.0
        %2803 = vmatpush2.xpose.msra.mxu0 0.0
        %2804 = vmatprep.subr.mxu0 0.0
        %2805 = vmatpush2.xpose.msra.mxu0 0.0
        %2806 = vmatprep.subr.mxu0 0.0
        %2807 = vmatpush2.xpose.msra.mxu0 0.0
        %2808 = vmatprep.subr.mxu0 0.0
        %2809 = vmatpush2.xpose.msra.mxu0 0.0
        %2810 = vmatprep.mubr.f32.mxu0 0.0
        %2811 = vmatmul.mubr.f32.gmra.mxu0 %v2714
        %v2812 = vpop.f32.mrf.mxu0
        %v2813 = vadd.f32 0.0, %v2812
        %v2814 = vpop.f32.mrf.mxu0
        %2815 = vmatprep.mubr.f32.mxu0 0.0
        %2816 = vmatmul.mubr.f32.gmra.mxu0 %v2716
        %v2817 = vpop.f32.mrf.mxu0
        %v2818 = vadd.f32 0.0, %v2817
        %v2819 = vpop.f32.mrf.mxu0
        %2820 = vmatprep.mubr.f32.mxu0 0.0
        %2821 = vmatmul.mubr.f32.gmra.mxu0 %v2718
        %v2822 = vpop.f32.mrf.mxu0
        %v2823 = vadd.f32 0.0, %v2822
        %v2824 = vpop.f32.mrf.mxu0
        %2825 = vmatprep.mubr.f32.mxu0 0.0
        %2826 = vmatmul.mubr.f32.gmra.mxu0 %v2720
        %v2827 = vpop.f32.mrf.mxu0
        %v2828 = vadd.f32 0.0, %v2827
        %v2829 = vpop.f32.mrf.mxu0
        %2830 = vmatprep.mubr.f32.mxu0 0.0
        %2831 = vmatmul.mubr.f32.gmra.mxu0 %v2722
        %v2832 = vpop.f32.mrf.mxu0
        %v2833 = vadd.f32 0.0, %v2832
        %v2834 = vpop.f32.mrf.mxu0
        %2835 = vmatprep.mubr.f32.mxu0 0.0
        %2836 = vmatmul.mubr.f32.gmra.mxu0 %v2724
        %v2837 = vpop.f32.mrf.mxu0
        %v2838 = vadd.f32 0.0, %v2837
        %v2839 = vpop.f32.mrf.mxu0
        %2840 = vmatprep.mubr.f32.mxu0 0.0
        %2841 = vmatmul.mubr.f32.gmra.mxu0 %v2726
        %v2842 = vpop.f32.mrf.mxu0
        %v2843 = vadd.f32 0.0, %v2842
        %v2844 = vpop.f32.mrf.mxu0
        %2845 = vmatprep.mubr.f32.mxu0 0.0
        %2846 = vmatmul.mubr.f32.gmra.mxu0 %v2728
        %v2847 = vpop.f32.mrf.mxu0
        %v2848 = vadd.f32 0.0, %v2847
        %v2849 = vpop.f32.mrf.mxu0
        %2850 = vdwg.mxu0
        %vm2851 = vcmask 523264
        %v2852 = vsel %vm2851, %v2813, -inf
        %2853 = vmax.xlane.f32.xlu0 %v2852
        %v2854 = vpop.xlane.xlu0 %2853
        %v2855 = vsel %vm2851, %v2818, -inf
        %2856 = vmax.xlane.f32.xlu0 %v2855
        %v2857 = vpop.xlane.xlu0 %2856
        %v2858 = vsel %vm2851, %v2823, -inf
        %2859 = vmax.xlane.f32.xlu0 %v2858
        %v2860 = vpop.xlane.xlu0 %2859
        %v2861 = vsel %vm2851, %v2828, -inf
        %2862 = vmax.xlane.f32.xlu0 %v2861
        %v2863 = vpop.xlane.xlu0 %2862
        %v2864 = vsel %vm2851, %v2833, -inf
        %2865 = vmax.xlane.f32.xlu0 %v2864
        %v2866 = vpop.xlane.xlu0 %2865
        %v2867 = vsel %vm2851, %v2838, -inf
        %2868 = vmax.xlane.f32.xlu0 %v2867
        %v2869 = vpop.xlane.xlu0 %2868
        %v2870 = vsel %vm2851, %v2843, -inf
        %2871 = vmax.xlane.f32.xlu0 %v2870
        %v2872 = vpop.xlane.xlu0 %2871
        %v2873 = vsel %vm2851, %v2848, -inf
        %2874 = vmax.xlane.f32.xlu0 %v2873
        %v2875 = vpop.xlane.xlu0 %2874
        %v2876 = vsub.f32 %v2813, %v2854
        %v2877 = vsub.f32 %v2818, %v2857
        %v2878 = vsub.f32 %v2823, %v2860
        %v2879 = vsub.f32 %v2828, %v2863
        %v2880 = vsub.f32 %v2833, %v2866
        %v2881 = vsub.f32 %v2838, %v2869
        %v2882 = vsub.f32 %v2843, %v2872
        %v2883 = vsub.f32 %v2848, %v2875
        %v2884 = vmul.f32 %v2876, 1.442695
        %v2885 = vpow.pop %v2884
        %v2886 = vmul.f32 %v2877, 1.442695
        %v2887 = vpow.pop %v2886
        %v2888 = vmul.f32 %v2878, 1.442695
        %v2889 = vpow.pop %v2888
        %v2890 = vmul.f32 %v2879, 1.442695
        %v2891 = vpow.pop %v2890
        %v2892 = vmul.f32 %v2880, 1.442695
        %v2893 = vpow.pop %v2892
        %v2894 = vmul.f32 %v2881, 1.442695
        %v2895 = vpow.pop %v2894
        %v2896 = vmul.f32 %v2882, 1.442695
        %v2897 = vpow.pop %v2896
        %v2898 = vmul.f32 %v2883, 1.442695
        %v2899 = vpow.pop %v2898
        %v2900 = vsel %vm2851, %v2885, 0.0
        %2901 = vadd.xlane.f32.xlu0 %v2900
        %v2902 = vpop.xlane.xlu0 %2901
        %v2903 = vsel %vm2851, %v2887, 0.0
        %2904 = vadd.xlane.f32.xlu0 %v2903
        %v2905 = vpop.xlane.xlu0 %2904
        %v2906 = vsel %vm2851, %v2889, 0.0
        %2907 = vadd.xlane.f32.xlu0 %v2906
        %v2908 = vpop.xlane.xlu0 %2907
        %v2909 = vsel %vm2851, %v2891, 0.0
        %2910 = vadd.xlane.f32.xlu0 %v2909
        %v2911 = vpop.xlane.xlu0 %2910
        %v2912 = vsel %vm2851, %v2893, 0.0
        %2913 = vadd.xlane.f32.xlu0 %v2912
        %v2914 = vpop.xlane.xlu0 %2913
        %v2915 = vsel %vm2851, %v2895, 0.0
        %2916 = vadd.xlane.f32.xlu0 %v2915
        %v2917 = vpop.xlane.xlu0 %2916
        %v2918 = vsel %vm2851, %v2897, 0.0
        %2919 = vadd.xlane.f32.xlu0 %v2918
        %v2920 = vpop.xlane.xlu0 %2919
        %v2921 = vsel %vm2851, %v2899, 0.0
        %2922 = vadd.xlane.f32.xlu0 %v2921
        %v2923 = vpop.xlane.xlu0 %2922
        %v2924 = vrcp.pop %v2902
        %v2925 = vrcp.pop %v2905
        %v2926 = vrcp.pop %v2908
        %v2927 = vrcp.pop %v2911
        %v2928 = vrcp.pop %v2914
        %v2929 = vrcp.pop %v2917
        %v2930 = vrcp.pop %v2920
        %v2931 = vrcp.pop %v2923
        %v2932 = vmul.f32 %v2885, %v2924
        %v2933 = vmul.f32 %v2887, %v2925
        %v2934 = vmul.f32 %v2889, %v2926
        %v2935 = vmul.f32 %v2891, %v2927
        %v2936 = vmul.f32 %v2893, %v2928
        %v2937 = vmul.f32 %v2895, %v2929
        %v2938 = vmul.f32 %v2897, %v2930
        %v2939 = vmul.f32 %v2899, %v2931
        %v2940 = vpack.c.bf16 %v2933, %v2932
        %v2941 = vpack.c.bf16 %v2935, %v2934
        %v2942 = vpack.c.bf16 %v2937, %v2936
        %v2943 = vpack.c.bf16 %v2939, %v2938
        %v2944 = vpack.c.bf16 %v2662, %v2659
        %v2945 = vpack.c.bf16 %v2670, %v2667
        %v2946 = vpack.c.bf16 %v2678, %v2675
        %v2947 = vpack.c.bf16 %v2686, %v2683
        %2952 = vrot.lane.b32.xlu0 %v2944, 64
        %v2953 = vpop.permute.xlu0 %2952
        %2954 = vrot.lane.b32.xlu0 %v2945, 64
        %v2955 = vpop.permute.xlu0 %2954
        %2956 = vrot.lane.b32.xlu0 %v2946, 64
        %v2957 = vpop.permute.xlu0 %2956
        %2958 = vrot.lane.b32.xlu0 %v2947, 64
        %v2959 = vpop.permute.xlu0 %2958
        %v2965 = vsel %vm2851, %v2940, 0
        %v2968 = vsel %vm2851, %v2941, 0
        %v2971 = vsel %vm2851, %v2942, 0
        %v2974 = vsel %vm2851, %v2943, 0
        %2976 = vmatprep.subr.bf16.mxu0 0
        %2977 = vmatpush1.bf16.msra.mxu0 0
        %2978 = vmatprep.subr.bf16.mxu0 0
        %2979 = vmatpush1.bf16.msra.mxu0 0
        %2980 = vmatprep.subr.bf16.mxu0 0
        %2981 = vmatpush1.bf16.msra.mxu0 0
        %2982 = vmatprep.subr.bf16.mxu0 0
        %2983 = vmatpush1.bf16.msra.mxu0 0
        %2984 = vmatprep.subr.bf16.mxu0 0
        %2985 = vmatpush1.bf16.msra.mxu0 %v2959
        %2986 = vmatprep.subr.bf16.mxu0 0
        %2987 = vmatpush1.bf16.msra.mxu0 %v2957
        %2988 = vmatprep.subr.bf16.mxu0 0
        %2989 = vmatpush1.bf16.msra.mxu0 %v2955
        %2990 = vmatprep.subr.bf16.mxu0 0
        %2991 = vmatpush1.bf16.msra.mxu0 %v2953
        %2992 = vmatprep.subr.bf16.mxu0 0
        %2993 = vmatpush2.bf16.msra.mxu0 0
        %2994 = vmatprep.subr.bf16.mxu0 0
        %2995 = vmatpush2.bf16.msra.mxu0 0
        %2996 = vmatprep.subr.bf16.mxu0 0
        %2997 = vmatpush2.bf16.msra.mxu0 0
        %2998 = vmatprep.subr.bf16.mxu0 0
        %2999 = vmatpush2.bf16.msra.mxu0 0
        %3000 = vmatprep.subr.bf16.mxu0 0
        %3001 = vmatpush2.bf16.msra.mxu0 0
        %3002 = vmatprep.subr.bf16.mxu0 0
        %3003 = vmatpush2.bf16.msra.mxu0 0
        %3004 = vmatprep.subr.bf16.mxu0 0
        %3005 = vmatpush2.bf16.msra.mxu0 0
        %3006 = vmatprep.subr.bf16.mxu0 0
        %3007 = vmatpush2.bf16.msra.mxu0 0
        %3008 = vmatprep.mubr.bf16.mxu0 0
        %3009 = vmatmul.mubr.bf16.gmra.mxu0 %v2965
        %v3010 = vpop.f32.mrf.mxu0
        %v3011 = vadd.f32 0.0, %v3010
        %v3012 = vpop.f32.mrf.mxu0
        %v3013 = vpop.f32.mrf.mxu0
        %v3014 = vadd.f32 0.0, %v3013
        %v3015 = vpop.f32.mrf.mxu0
        %3016 = vmatprep.mubr.bf16.mxu0 0
        %3017 = vmatmul.mubr.bf16.gmra.mxu0 %v2968
        %v3018 = vpop.f32.mrf.mxu0
        %v3019 = vadd.f32 0.0, %v3018
        %v3020 = vpop.f32.mrf.mxu0
        %v3021 = vpop.f32.mrf.mxu0
        %v3022 = vadd.f32 0.0, %v3021
        %v3023 = vpop.f32.mrf.mxu0
        %3024 = vmatprep.mubr.bf16.mxu0 0
        %3025 = vmatmul.mubr.bf16.gmra.mxu0 %v2971
        %v3026 = vpop.f32.mrf.mxu0
        %v3027 = vadd.f32 0.0, %v3026
        %v3028 = vpop.f32.mrf.mxu0
        %v3029 = vpop.f32.mrf.mxu0
        %v3030 = vadd.f32 0.0, %v3029
        %v3031 = vpop.f32.mrf.mxu0
        %3032 = vmatprep.mubr.bf16.mxu0 0
        %3033 = vmatmul.mubr.bf16.gmra.mxu0 %v2974
        %v3034 = vpop.f32.mrf.mxu0
        %v3035 = vadd.f32 0.0, %v3034
        %v3036 = vpop.f32.mrf.mxu0
        %v3037 = vpop.f32.mrf.mxu0
        %v3038 = vadd.f32 0.0, %v3037
        %v3039 = vpop.f32.mrf.mxu0
        %3040 = vdwg.mxu0
        %3041 = vrot.lane.b32.xlu0 %v2659, 120
        %v3042 = vpop.permute.xlu0 %3041
        %3043 = vrot.lane.b32.xlu0 %v2662, 120
        %v3044 = vpop.permute.xlu0 %3043
        %3045 = vrot.lane.b32.xlu0 %v2667, 120
        %v3046 = vpop.permute.xlu0 %3045
        %3047 = vrot.lane.b32.xlu0 %v2670, 120
        %v3048 = vpop.permute.xlu0 %3047
        %3049 = vrot.lane.b32.xlu0 %v2675, 120
        %v3050 = vpop.permute.xlu0 %3049
        %3051 = vrot.lane.b32.xlu0 %v2678, 120
        %v3052 = vpop.permute.xlu0 %3051
        %3053 = vrot.lane.b32.xlu0 %v2683, 120
        %v3054 = vpop.permute.xlu0 %3053
        %3055 = vrot.lane.b32.xlu0 %v2686, 120
        %v3056 = vpop.permute.xlu0 %3055
        %3057 = vrot.lane.b32.xlu0 %v2659, 88
        %v3058 = vpop.permute.xlu0 %3057
        %3059 = vrot.lane.b32.xlu0 %v2662, 88
        %v3060 = vpop.permute.xlu0 %3059
        %3061 = vrot.lane.b32.xlu0 %v2667, 88
        %v3062 = vpop.permute.xlu0 %3061
        %3063 = vrot.lane.b32.xlu0 %v2670, 88
        %v3064 = vpop.permute.xlu0 %3063
        %3065 = vrot.lane.b32.xlu0 %v2675, 88
        %v3066 = vpop.permute.xlu0 %3065
        %3067 = vrot.lane.b32.xlu0 %v2678, 88
        %v3068 = vpop.permute.xlu0 %3067
        %3069 = vrot.lane.b32.xlu0 %v2683, 88
        %v3070 = vpop.permute.xlu0 %3069
        %3071 = vrot.lane.b32.xlu0 %v2686, 88
        %v3072 = vpop.permute.xlu0 %3071
        %v3073 = vsel %vm2713, %v3042, 0
        %v3075 = vsel %vm2713, %v3044, 0
        %v3077 = vsel %vm2713, %v3046, 0
        %v3079 = vsel %vm2713, %v3048, 0
        %v3081 = vsel %vm2713, %v3050, 0
        %v3083 = vsel %vm2713, %v3052, 0
        %v3085 = vsel %vm2713, %v3054, 0
        %v3087 = vsel %vm2713, %v3056, 0
        %v3089 = vsel %vm2713, %v3058, 0
        %v3091 = vsel %vm2713, %v3060, 0
        %v3093 = vsel %vm2713, %v3062, 0
        %v3095 = vsel %vm2713, %v3064, 0
        %v3097 = vsel %vm2713, %v3066, 0
        %v3099 = vsel %vm2713, %v3068, 0
        %v3101 = vsel %vm2713, %v3070, 0
        %v3103 = vsel %vm2713, %v3072, 0
        %3105 = vmatprep.subr.mxu0 0.0
        %3106 = vmatpush1.xpose.msra.mxu0 0.0
        %3107 = vmatprep.subr.mxu0 0.0
        %3108 = vmatpush1.xpose.msra.mxu0 0.0
        %3109 = vmatprep.subr.mxu0 0.0
        %3110 = vmatpush1.xpose.msra.mxu0 0.0
        %3111 = vmatprep.subr.mxu0 0.0
        %3112 = vmatpush1.xpose.msra.mxu0 0.0
        %3113 = vmatprep.subr.mxu0 0.0
        %3114 = vmatpush1.xpose.msra.mxu0 0.0
        %3115 = vmatprep.subr.mxu0 0.0
        %3116 = vmatpush1.xpose.msra.mxu0 0.0
        %3117 = vmatprep.subr.mxu0 0.0
        %3118 = vmatpush1.xpose.msra.mxu0 0.0
        %3119 = vmatprep.subr.mxu0 0.0
        %3120 = vmatpush1.xpose.msra.mxu0 0.0
        %3121 = vmatprep.subr.mxu0 0.0
        %3122 = vmatpush1.xpose.msra.mxu0 %v3103
        %3123 = vmatprep.subr.mxu0 0.0
        %3124 = vmatpush1.xpose.msra.mxu0 %v3101
        %3125 = vmatprep.subr.mxu0 0.0
        %3126 = vmatpush1.xpose.msra.mxu0 %v3099
        %3127 = vmatprep.subr.mxu0 0.0
        %3128 = vmatpush1.xpose.msra.mxu0 %v3097
        %3129 = vmatprep.subr.mxu0 0.0
        %3130 = vmatpush1.xpose.msra.mxu0 %v3095
        %3131 = vmatprep.subr.mxu0 0.0
        %3132 = vmatpush1.xpose.msra.mxu0 %v3093
        %3133 = vmatprep.subr.mxu0 0.0
        %3134 = vmatpush1.xpose.msra.mxu0 %v3091
        %3135 = vmatprep.subr.mxu0 0.0
        %3136 = vmatpush1.xpose.msra.mxu0 %v3089
        %3137 = vmatprep.subr.mxu0 0.0
        %3138 = vmatpush2.xpose.msra.mxu0 0.0
        %3139 = vmatprep.subr.mxu0 0.0
        %3140 = vmatpush2.xpose.msra.mxu0 0.0
        %3141 = vmatprep.subr.mxu0 0.0
        %3142 = vmatpush2.xpose.msra.mxu0 0.0
        %3143 = vmatprep.subr.mxu0 0.0
        %3144 = vmatpush2.xpose.msra.mxu0 0.0
        %3145 = vmatprep.subr.mxu0 0.0
        %3146 = vmatpush2.xpose.msra.mxu0 0.0
        %3147 = vmatprep.subr.mxu0 0.0
        %3148 = vmatpush2.xpose.msra.mxu0 0.0
        %3149 = vmatprep.subr.mxu0 0.0
        %3150 = vmatpush2.xpose.msra.mxu0 0.0
        %3151 = vmatprep.subr.mxu0 0.0
        %3152 = vmatpush2.xpose.msra.mxu0 0.0
        %3153 = vmatprep.subr.mxu0 0.0
        %3154 = vmatpush2.xpose.msra.mxu0 0.0
        %3155 = vmatprep.subr.mxu0 0.0
        %3156 = vmatpush2.xpose.msra.mxu0 0.0
        %3157 = vmatprep.subr.mxu0 0.0
        %3158 = vmatpush2.xpose.msra.mxu0 0.0
        %3159 = vmatprep.subr.mxu0 0.0
        %3160 = vmatpush2.xpose.msra.mxu0 0.0
        %3161 = vmatprep.subr.mxu0 0.0
        %3162 = vmatpush2.xpose.msra.mxu0 0.0
        %3163 = vmatprep.subr.mxu0 0.0
        %3164 = vmatpush2.xpose.msra.mxu0 0.0
        %3165 = vmatprep.subr.mxu0 0.0
        %3166 = vmatpush2.xpose.msra.mxu0 0.0
        %3167 = vmatprep.subr.mxu0 0.0
        %3168 = vmatpush2.xpose.msra.mxu0 0.0
        %3169 = vmatprep.mubr.f32.mxu0 0.0
        %3170 = vmatmul.mubr.f32.gmra.mxu0 %v3073
        %v3171 = vpop.f32.mrf.mxu0
        %v3172 = vadd.f32 0.0, %v3171
        %v3173 = vpop.f32.mrf.mxu0
        %3174 = vmatprep.mubr.f32.mxu0 0.0
        %3175 = vmatmul.mubr.f32.gmra.mxu0 %v3075
        %v3176 = vpop.f32.mrf.mxu0
        %v3177 = vadd.f32 0.0, %v3176
        %v3178 = vpop.f32.mrf.mxu0
        %3179 = vmatprep.mubr.f32.mxu0 0.0
        %3180 = vmatmul.mubr.f32.gmra.mxu0 %v3077
        %v3181 = vpop.f32.mrf.mxu0
        %v3182 = vadd.f32 0.0, %v3181
        %v3183 = vpop.f32.mrf.mxu0
        %3184 = vmatprep.mubr.f32.mxu0 0.0
        %3185 = vmatmul.mubr.f32.gmra.mxu0 %v3079
        %v3186 = vpop.f32.mrf.mxu0
        %v3187 = vadd.f32 0.0, %v3186
        %v3188 = vpop.f32.mrf.mxu0
        %3189 = vmatprep.mubr.f32.mxu0 0.0
        %3190 = vmatmul.mubr.f32.gmra.mxu0 %v3081
        %v3191 = vpop.f32.mrf.mxu0
        %v3192 = vadd.f32 0.0, %v3191
        %v3193 = vpop.f32.mrf.mxu0
        %3194 = vmatprep.mubr.f32.mxu0 0.0
        %3195 = vmatmul.mubr.f32.gmra.mxu0 %v3083
        %v3196 = vpop.f32.mrf.mxu0
        %v3197 = vadd.f32 0.0, %v3196
        %v3198 = vpop.f32.mrf.mxu0
        %3199 = vmatprep.mubr.f32.mxu0 0.0
        %3200 = vmatmul.mubr.f32.gmra.mxu0 %v3085
        %v3201 = vpop.f32.mrf.mxu0
        %v3202 = vadd.f32 0.0, %v3201
        %v3203 = vpop.f32.mrf.mxu0
        %3204 = vmatprep.mubr.f32.mxu0 0.0
        %3205 = vmatmul.mubr.f32.gmra.mxu0 %v3087
        %v3206 = vpop.f32.mrf.mxu0
        %v3207 = vadd.f32 0.0, %v3206
        %v3208 = vpop.f32.mrf.mxu0
        %3209 = vdwg.mxu0
        %v3210 = vsel %vm2851, %v3172, -inf
        %3211 = vmax.xlane.f32.xlu0 %v3210
        %v3212 = vpop.xlane.xlu0 %3211
        %v3213 = vsel %vm2851, %v3177, -inf
        %3214 = vmax.xlane.f32.xlu0 %v3213
        %v3215 = vpop.xlane.xlu0 %3214
        %v3216 = vsel %vm2851, %v3182, -inf
        %3217 = vmax.xlane.f32.xlu0 %v3216
        %v3218 = vpop.xlane.xlu0 %3217
        %v3219 = vsel %vm2851, %v3187, -inf
        %3220 = vmax.xlane.f32.xlu0 %v3219
        %v3221 = vpop.xlane.xlu0 %3220
        %v3222 = vsel %vm2851, %v3192, -inf
        %3223 = vmax.xlane.f32.xlu0 %v3222
        %v3224 = vpop.xlane.xlu0 %3223
        %v3225 = vsel %vm2851, %v3197, -inf
        %3226 = vmax.xlane.f32.xlu0 %v3225
        %v3227 = vpop.xlane.xlu0 %3226
        %v3228 = vsel %vm2851, %v3202, -inf
        %3229 = vmax.xlane.f32.xlu0 %v3228
        %v3230 = vpop.xlane.xlu0 %3229
        %v3231 = vsel %vm2851, %v3207, -inf
        %3232 = vmax.xlane.f32.xlu0 %v3231
        %v3233 = vpop.xlane.xlu0 %3232
        %v3234 = vsub.f32 %v3172, %v3212
        %v3235 = vsub.f32 %v3177, %v3215
        %v3236 = vsub.f32 %v3182, %v3218
        %v3237 = vsub.f32 %v3187, %v3221
        %v3238 = vsub.f32 %v3192, %v3224
        %v3239 = vsub.f32 %v3197, %v3227
        %v3240 = vsub.f32 %v3202, %v3230
        %v3241 = vsub.f32 %v3207, %v3233
        %v3242 = vmul.f32 %v3234, 1.442695
        %v3243 = vpow.pop %v3242
        %v3244 = vmul.f32 %v3235, 1.442695
        %v3245 = vpow.pop %v3244
        %v3246 = vmul.f32 %v3236, 1.442695
        %v3247 = vpow.pop %v3246
        %v3248 = vmul.f32 %v3237, 1.442695
        %v3249 = vpow.pop %v3248
        %v3250 = vmul.f32 %v3238, 1.442695
        %v3251 = vpow.pop %v3250
        %v3252 = vmul.f32 %v3239, 1.442695
        %v3253 = vpow.pop %v3252
        %v3254 = vmul.f32 %v3240, 1.442695
        %v3255 = vpow.pop %v3254
        %v3256 = vmul.f32 %v3241, 1.442695
        %v3257 = vpow.pop %v3256
        %v3258 = vsel %vm2851, %v3243, 0.0
        %3259 = vadd.xlane.f32.xlu0 %v3258
        %v3260 = vpop.xlane.xlu0 %3259
        %v3261 = vsel %vm2851, %v3245, 0.0
        %3262 = vadd.xlane.f32.xlu0 %v3261
        %v3263 = vpop.xlane.xlu0 %3262
        %v3264 = vsel %vm2851, %v3247, 0.0
        %3265 = vadd.xlane.f32.xlu0 %v3264
        %v3266 = vpop.xlane.xlu0 %3265
        %v3267 = vsel %vm2851, %v3249, 0.0
        %3268 = vadd.xlane.f32.xlu0 %v3267
        %v3269 = vpop.xlane.xlu0 %3268
        %v3270 = vsel %vm2851, %v3251, 0.0
        %3271 = vadd.xlane.f32.xlu0 %v3270
        %v3272 = vpop.xlane.xlu0 %3271
        %v3273 = vsel %vm2851, %v3253, 0.0
        %3274 = vadd.xlane.f32.xlu0 %v3273
        %v3275 = vpop.xlane.xlu0 %3274
        %v3276 = vsel %vm2851, %v3255, 0.0
        %3277 = vadd.xlane.f32.xlu0 %v3276
        %v3278 = vpop.xlane.xlu0 %3277
        %v3279 = vsel %vm2851, %v3257, 0.0
        %3280 = vadd.xlane.f32.xlu0 %v3279
        %v3281 = vpop.xlane.xlu0 %3280
        %v3282 = vrcp.pop %v3260
        %v3283 = vrcp.pop %v3263
        %v3284 = vrcp.pop %v3266
        %v3285 = vrcp.pop %v3269
        %v3286 = vrcp.pop %v3272
        %v3287 = vrcp.pop %v3275
        %v3288 = vrcp.pop %v3278
        %v3289 = vrcp.pop %v3281
        %v3290 = vmul.f32 %v3243, %v3282
        %v3291 = vmul.f32 %v3245, %v3283
        %v3292 = vmul.f32 %v3247, %v3284
        %v3293 = vmul.f32 %v3249, %v3285
        %v3294 = vmul.f32 %v3251, %v3286
        %v3295 = vmul.f32 %v3253, %v3287
        %v3296 = vmul.f32 %v3255, %v3288
        %v3297 = vmul.f32 %v3257, %v3289
        %v3298 = vpack.c.bf16 %v3291, %v3290
        %v3299 = vpack.c.bf16 %v3293, %v3292
        %v3300 = vpack.c.bf16 %v3295, %v3294
        %v3301 = vpack.c.bf16 %v3297, %v3296
        %3302 = vrot.lane.b32.xlu0 %v2944, 56
        %v3303 = vpop.permute.xlu0 %3302
        %3304 = vrot.lane.b32.xlu0 %v2945, 56
        %v3305 = vpop.permute.xlu0 %3304
        %3306 = vrot.lane.b32.xlu0 %v2946, 56
        %v3307 = vpop.permute.xlu0 %3306
        %3308 = vrot.lane.b32.xlu0 %v2947, 56
        %v3309 = vpop.permute.xlu0 %3308
        %v3315 = vsel %vm2851, %v3298, 0
        %v3318 = vsel %vm2851, %v3299, 0
        %v3321 = vsel %vm2851, %v3300, 0
        %v3324 = vsel %vm2851, %v3301, 0
        %3326 = vmatprep.subr.bf16.mxu0 0
        %3327 = vmatpush1.bf16.msra.mxu0 0
        %3328 = vmatprep.subr.bf16.mxu0 0
        %3329 = vmatpush1.bf16.msra.mxu0 0
        %3330 = vmatprep.subr.bf16.mxu0 0
        %3331 = vmatpush1.bf16.msra.mxu0 0
        %3332 = vmatprep.subr.bf16.mxu0 0
        %3333 = vmatpush1.bf16.msra.mxu0 0
        %3334 = vmatprep.subr.bf16.mxu0 0
        %3335 = vmatpush1.bf16.msra.mxu0 %v3309
        %3336 = vmatprep.subr.bf16.mxu0 0
        %3337 = vmatpush1.bf16.msra.mxu0 %v3307
        %3338 = vmatprep.subr.bf16.mxu0 0
        %3339 = vmatpush1.bf16.msra.mxu0 %v3305
        %3340 = vmatprep.subr.bf16.mxu0 0
        %3341 = vmatpush1.bf16.msra.mxu0 %v3303
        %3342 = vmatprep.subr.bf16.mxu0 0
        %3343 = vmatpush2.bf16.msra.mxu0 0
        %3344 = vmatprep.subr.bf16.mxu0 0
        %3345 = vmatpush2.bf16.msra.mxu0 0
        %3346 = vmatprep.subr.bf16.mxu0 0
        %3347 = vmatpush2.bf16.msra.mxu0 0
        %3348 = vmatprep.subr.bf16.mxu0 0
        %3349 = vmatpush2.bf16.msra.mxu0 0
        %3350 = vmatprep.subr.bf16.mxu0 0
        %3351 = vmatpush2.bf16.msra.mxu0 0
        %3352 = vmatprep.subr.bf16.mxu0 0
        %3353 = vmatpush2.bf16.msra.mxu0 0
        %3354 = vmatprep.subr.bf16.mxu0 0
        %3355 = vmatpush2.bf16.msra.mxu0 0
        %3356 = vmatprep.subr.bf16.mxu0 0
        %3357 = vmatpush2.bf16.msra.mxu0 0
        %3358 = vmatprep.mubr.bf16.mxu0 0
        %3359 = vmatmul.mubr.bf16.gmra.mxu0 %v3315
        %v3360 = vpop.f32.mrf.mxu0
        %v3361 = vadd.f32 0.0, %v3360
        %v3362 = vpop.f32.mrf.mxu0
        %v3363 = vpop.f32.mrf.mxu0
        %v3364 = vadd.f32 0.0, %v3363
        %v3365 = vpop.f32.mrf.mxu0
        %3366 = vmatprep.mubr.bf16.mxu0 0
        %3367 = vmatmul.mubr.bf16.gmra.mxu0 %v3318
        %v3368 = vpop.f32.mrf.mxu0
        %v3369 = vadd.f32 0.0, %v3368
        %v3370 = vpop.f32.mrf.mxu0
        %v3371 = vpop.f32.mrf.mxu0
        %v3372 = vadd.f32 0.0, %v3371
        %v3373 = vpop.f32.mrf.mxu0
        %3374 = vmatprep.mubr.bf16.mxu0 0
        %3375 = vmatmul.mubr.bf16.gmra.mxu0 %v3321
        %v3376 = vpop.f32.mrf.mxu0
        %v3377 = vadd.f32 0.0, %v3376
        %v3378 = vpop.f32.mrf.mxu0
        %v3379 = vpop.f32.mrf.mxu0
        %v3380 = vadd.f32 0.0, %v3379
        %v3381 = vpop.f32.mrf.mxu0
        %3382 = vmatprep.mubr.bf16.mxu0 0
        %3383 = vmatmul.mubr.bf16.gmra.mxu0 %v3324
        %v3384 = vpop.f32.mrf.mxu0
        %v3385 = vadd.f32 0.0, %v3384
        %v3386 = vpop.f32.mrf.mxu0
        %v3387 = vpop.f32.mrf.mxu0
        %v3388 = vadd.f32 0.0, %v3387
        %v3389 = vpop.f32.mrf.mxu0
        %3390 = vdwg.mxu0
        %3391 = vrot.lane.b32.xlu0 %v2659, 112
        %v3392 = vpop.permute.xlu0 %3391
        %3393 = vrot.lane.b32.xlu0 %v2662, 112
        %v3394 = vpop.permute.xlu0 %3393
        %3395 = vrot.lane.b32.xlu0 %v2667, 112
        %v3396 = vpop.permute.xlu0 %3395
        %3397 = vrot.lane.b32.xlu0 %v2670, 112
        %v3398 = vpop.permute.xlu0 %3397
        %3399 = vrot.lane.b32.xlu0 %v2675, 112
        %v3400 = vpop.permute.xlu0 %3399
        %3401 = vrot.lane.b32.xlu0 %v2678, 112
        %v3402 = vpop.permute.xlu0 %3401
        %3403 = vrot.lane.b32.xlu0 %v2683, 112
        %v3404 = vpop.permute.xlu0 %3403
        %3405 = vrot.lane.b32.xlu0 %v2686, 112
        %v3406 = vpop.permute.xlu0 %3405
        %3407 = vrot.lane.b32.xlu0 %v2659, 80
        %v3408 = vpop.permute.xlu0 %3407
        %3409 = vrot.lane.b32.xlu0 %v2662, 80
        %v3410 = vpop.permute.xlu0 %3409
        %3411 = vrot.lane.b32.xlu0 %v2667, 80
        %v3412 = vpop.permute.xlu0 %3411
        %3413 = vrot.lane.b32.xlu0 %v2670, 80
        %v3414 = vpop.permute.xlu0 %3413
        %3415 = vrot.lane.b32.xlu0 %v2675, 80
        %v3416 = vpop.permute.xlu0 %3415
        %3417 = vrot.lane.b32.xlu0 %v2678, 80
        %v3418 = vpop.permute.xlu0 %3417
        %3419 = vrot.lane.b32.xlu0 %v2683, 80
        %v3420 = vpop.permute.xlu0 %3419
        %3421 = vrot.lane.b32.xlu0 %v2686, 80
        %v3422 = vpop.permute.xlu0 %3421
        %v3423 = vsel %vm2713, %v3392, 0
        %v3425 = vsel %vm2713, %v3394, 0
        %v3427 = vsel %vm2713, %v3396, 0
        %v3429 = vsel %vm2713, %v3398, 0
        %v3431 = vsel %vm2713, %v3400, 0
        %v3433 = vsel %vm2713, %v3402, 0
        %v3435 = vsel %vm2713, %v3404, 0
        %v3437 = vsel %vm2713, %v3406, 0
        %v3439 = vsel %vm2713, %v3408, 0
        %v3441 = vsel %vm2713, %v3410, 0
        %v3443 = vsel %vm2713, %v3412, 0
        %v3445 = vsel %vm2713, %v3414, 0
        %v3447 = vsel %vm2713, %v3416, 0
        %v3449 = vsel %vm2713, %v3418, 0
        %v3451 = vsel %vm2713, %v3420, 0
        %v3453 = vsel %vm2713, %v3422, 0
        %3455 = vmatprep.subr.mxu0 0.0
        %3456 = vmatpush1.xpose.msra.mxu0 0.0
        %3457 = vmatprep.subr.mxu0 0.0
        %3458 = vmatpush1.xpose.msra.mxu0 0.0
        %3459 = vmatprep.subr.mxu0 0.0
        %3460 = vmatpush1.xpose.msra.mxu0 0.0
        %3461 = vmatprep.subr.mxu0 0.0
        %3462 = vmatpush1.xpose.msra.mxu0 0.0
        %3463 = vmatprep.subr.mxu0 0.0
        %3464 = vmatpush1.xpose.msra.mxu0 0.0
        %3465 = vmatprep.subr.mxu0 0.0
        %3466 = vmatpush1.xpose.msra.mxu0 0.0
        %3467 = vmatprep.subr.mxu0 0.0
        %3468 = vmatpush1.xpose.msra.mxu0 0.0
        %3469 = vmatprep.subr.mxu0 0.0
        %3470 = vmatpush1.xpose.msra.mxu0 0.0
        %3471 = vmatprep.subr.mxu0 0.0
        %3472 = vmatpush1.xpose.msra.mxu0 %v3453
        %3473 = vmatprep.subr.mxu0 0.0
        %3474 = vmatpush1.xpose.msra.mxu0 %v3451
        %3475 = vmatprep.subr.mxu0 0.0
        %3476 = vmatpush1.xpose.msra.mxu0 %v3449
        %3477 = vmatprep.subr.mxu0 0.0
        %3478 = vmatpush1.xpose.msra.mxu0 %v3447
        %3479 = vmatprep.subr.mxu0 0.0
        %3480 = vmatpush1.xpose.msra.mxu0 %v3445
        %3481 = vmatprep.subr.mxu0 0.0
        %3482 = vmatpush1.xpose.msra.mxu0 %v3443
        %3483 = vmatprep.subr.mxu0 0.0
        %3484 = vmatpush1.xpose.msra.mxu0 %v3441
        %3485 = vmatprep.subr.mxu0 0.0
        %3486 = vmatpush1.xpose.msra.mxu0 %v3439
        %3487 = vmatprep.subr.mxu0 0.0
        %3488 = vmatpush2.xpose.msra.mxu0 0.0
        %3489 = vmatprep.subr.mxu0 0.0
        %3490 = vmatpush2.xpose.msra.mxu0 0.0
        %3491 = vmatprep.subr.mxu0 0.0
        %3492 = vmatpush2.xpose.msra.mxu0 0.0
        %3493 = vmatprep.subr.mxu0 0.0
        %3494 = vmatpush2.xpose.msra.mxu0 0.0
        %3495 = vmatprep.subr.mxu0 0.0
        %3496 = vmatpush2.xpose.msra.mxu0 0.0
        %3497 = vmatprep.subr.mxu0 0.0
        %3498 = vmatpush2.xpose.msra.mxu0 0.0
        %3499 = vmatprep.subr.mxu0 0.0
        %3500 = vmatpush2.xpose.msra.mxu0 0.0
        %3501 = vmatprep.subr.mxu0 0.0
        %3502 = vmatpush2.xpose.msra.mxu0 0.0
        %3503 = vmatprep.subr.mxu0 0.0
        %3504 = vmatpush2.xpose.msra.mxu0 0.0
        %3505 = vmatprep.subr.mxu0 0.0
        %3506 = vmatpush2.xpose.msra.mxu0 0.0
        %3507 = vmatprep.subr.mxu0 0.0
        %3508 = vmatpush2.xpose.msra.mxu0 0.0
        %3509 = vmatprep.subr.mxu0 0.0
        %3510 = vmatpush2.xpose.msra.mxu0 0.0
        %3511 = vmatprep.subr.mxu0 0.0
        %3512 = vmatpush2.xpose.msra.mxu0 0.0
        %3513 = vmatprep.subr.mxu0 0.0
        %3514 = vmatpush2.xpose.msra.mxu0 0.0
        %3515 = vmatprep.subr.mxu0 0.0
        %3516 = vmatpush2.xpose.msra.mxu0 0.0
        %3517 = vmatprep.subr.mxu0 0.0
        %3518 = vmatpush2.xpose.msra.mxu0 0.0
        %3519 = vmatprep.mubr.f32.mxu0 0.0
        %3520 = vmatmul.mubr.f32.gmra.mxu0 %v3423
        %v3521 = vpop.f32.mrf.mxu0
        %v3522 = vadd.f32 0.0, %v3521
        %v3523 = vpop.f32.mrf.mxu0
        %3524 = vmatprep.mubr.f32.mxu0 0.0
        %3525 = vmatmul.mubr.f32.gmra.mxu0 %v3425
        %v3526 = vpop.f32.mrf.mxu0
        %v3527 = vadd.f32 0.0, %v3526
        %v3528 = vpop.f32.mrf.mxu0
        %3529 = vmatprep.mubr.f32.mxu0 0.0
        %3530 = vmatmul.mubr.f32.gmra.mxu0 %v3427
        %v3531 = vpop.f32.mrf.mxu0
        %v3532 = vadd.f32 0.0, %v3531
        %v3533 = vpop.f32.mrf.mxu0
        %3534 = vmatprep.mubr.f32.mxu0 0.0
        %3535 = vmatmul.mubr.f32.gmra.mxu0 %v3429
        %v3536 = vpop.f32.mrf.mxu0
        %v3537 = vadd.f32 0.0, %v3536
        %v3538 = vpop.f32.mrf.mxu0
        %3539 = vmatprep.mubr.f32.mxu0 0.0
        %3540 = vmatmul.mubr.f32.gmra.mxu0 %v3431
        %v3541 = vpop.f32.mrf.mxu0
        %v3542 = vadd.f32 0.0, %v3541
        %v3543 = vpop.f32.mrf.mxu0
        %3544 = vmatprep.mubr.f32.mxu0 0.0
        %3545 = vmatmul.mubr.f32.gmra.mxu0 %v3433
        %v3546 = vpop.f32.mrf.mxu0
        %v3547 = vadd.f32 0.0, %v3546
        %v3548 = vpop.f32.mrf.mxu0
        %3549 = vmatprep.mubr.f32.mxu0 0.0
        %3550 = vmatmul.mubr.f32.gmra.mxu0 %v3435
        %v3551 = vpop.f32.mrf.mxu0
        %v3552 = vadd.f32 0.0, %v3551
        %v3553 = vpop.f32.mrf.mxu0
        %3554 = vmatprep.mubr.f32.mxu0 0.0
        %3555 = vmatmul.mubr.f32.gmra.mxu0 %v3437
        %v3556 = vpop.f32.mrf.mxu0
        %v3557 = vadd.f32 0.0, %v3556
        %v3558 = vpop.f32.mrf.mxu0
        %3559 = vdwg.mxu0
        %v3560 = vsel %vm2851, %v3522, -inf
        %3561 = vmax.xlane.f32.xlu0 %v3560
        %v3562 = vpop.xlane.xlu0 %3561
        %v3563 = vsel %vm2851, %v3527, -inf
        %3564 = vmax.xlane.f32.xlu0 %v3563
        %v3565 = vpop.xlane.xlu0 %3564
        %v3566 = vsel %vm2851, %v3532, -inf
        %3567 = vmax.xlane.f32.xlu0 %v3566
        %v3568 = vpop.xlane.xlu0 %3567
        %v3569 = vsel %vm2851, %v3537, -inf
        %3570 = vmax.xlane.f32.xlu0 %v3569
        %v3571 = vpop.xlane.xlu0 %3570
        %v3572 = vsel %vm2851, %v3542, -inf
        %3573 = vmax.xlane.f32.xlu0 %v3572
        %v3574 = vpop.xlane.xlu0 %3573
        %v3575 = vsel %vm2851, %v3547, -inf
        %3576 = vmax.xlane.f32.xlu0 %v3575
        %v3577 = vpop.xlane.xlu0 %3576
        %v3578 = vsel %vm2851, %v3552, -inf
        %3579 = vmax.xlane.f32.xlu0 %v3578
        %v3580 = vpop.xlane.xlu0 %3579
        %v3581 = vsel %vm2851, %v3557, -inf
        %3582 = vmax.xlane.f32.xlu0 %v3581
        %v3583 = vpop.xlane.xlu0 %3582
        %v3584 = vsub.f32 %v3522, %v3562
        %v3585 = vsub.f32 %v3527, %v3565
        %v3586 = vsub.f32 %v3532, %v3568
        %v3587 = vsub.f32 %v3537, %v3571
        %v3588 = vsub.f32 %v3542, %v3574
        %v3589 = vsub.f32 %v3547, %v3577
        %v3590 = vsub.f32 %v3552, %v3580
        %v3591 = vsub.f32 %v3557, %v3583
        %v3592 = vmul.f32 %v3584, 1.442695
        %v3593 = vpow.pop %v3592
        %v3594 = vmul.f32 %v3585, 1.442695
        %v3595 = vpow.pop %v3594
        %v3596 = vmul.f32 %v3586, 1.442695
        %v3597 = vpow.pop %v3596
        %v3598 = vmul.f32 %v3587, 1.442695
        %v3599 = vpow.pop %v3598
        %v3600 = vmul.f32 %v3588, 1.442695
        %v3601 = vpow.pop %v3600
        %v3602 = vmul.f32 %v3589, 1.442695
        %v3603 = vpow.pop %v3602
        %v3604 = vmul.f32 %v3590, 1.442695
        %v3605 = vpow.pop %v3604
        %v3606 = vmul.f32 %v3591, 1.442695
        %v3607 = vpow.pop %v3606
        %v3608 = vsel %vm2851, %v3593, 0.0
        %3609 = vadd.xlane.f32.xlu0 %v3608
        %v3610 = vpop.xlane.xlu0 %3609
        %v3611 = vsel %vm2851, %v3595, 0.0
        %3612 = vadd.xlane.f32.xlu0 %v3611
        %v3613 = vpop.xlane.xlu0 %3612
        %v3614 = vsel %vm2851, %v3597, 0.0
        %3615 = vadd.xlane.f32.xlu0 %v3614
        %v3616 = vpop.xlane.xlu0 %3615
        %v3617 = vsel %vm2851, %v3599, 0.0
        %3618 = vadd.xlane.f32.xlu0 %v3617
        %v3619 = vpop.xlane.xlu0 %3618
        %v3620 = vsel %vm2851, %v3601, 0.0
        %3621 = vadd.xlane.f32.xlu0 %v3620
        %v3622 = vpop.xlane.xlu0 %3621
        %v3623 = vsel %vm2851, %v3603, 0.0
        %3624 = vadd.xlane.f32.xlu0 %v3623
        %v3625 = vpop.xlane.xlu0 %3624
        %v3626 = vsel %vm2851, %v3605, 0.0
        %3627 = vadd.xlane.f32.xlu0 %v3626
        %v3628 = vpop.xlane.xlu0 %3627
        %v3629 = vsel %vm2851, %v3607, 0.0
        %3630 = vadd.xlane.f32.xlu0 %v3629
        %v3631 = vpop.xlane.xlu0 %3630
        %v3632 = vrcp.pop %v3610
        %v3633 = vrcp.pop %v3613
        %v3634 = vrcp.pop %v3616
        %v3635 = vrcp.pop %v3619
        %v3636 = vrcp.pop %v3622
        %v3637 = vrcp.pop %v3625
        %v3638 = vrcp.pop %v3628
        %v3639 = vrcp.pop %v3631
        %v3640 = vmul.f32 %v3593, %v3632
        %v3641 = vmul.f32 %v3595, %v3633
        %v3642 = vmul.f32 %v3597, %v3634
        %v3643 = vmul.f32 %v3599, %v3635
        %v3644 = vmul.f32 %v3601, %v3636
        %v3645 = vmul.f32 %v3603, %v3637
        %v3646 = vmul.f32 %v3605, %v3638
        %v3647 = vmul.f32 %v3607, %v3639
        %v3648 = vpack.c.bf16 %v3641, %v3640
        %v3649 = vpack.c.bf16 %v3643, %v3642
        %v3650 = vpack.c.bf16 %v3645, %v3644
        %v3651 = vpack.c.bf16 %v3647, %v3646
        %3652 = vrot.lane.b32.xlu0 %v2944, 48
        %v3653 = vpop.permute.xlu0 %3652
        %3654 = vrot.lane.b32.xlu0 %v2945, 48
        %v3655 = vpop.permute.xlu0 %3654
        %3656 = vrot.lane.b32.xlu0 %v2946, 48
        %v3657 = vpop.permute.xlu0 %3656
        %3658 = vrot.lane.b32.xlu0 %v2947, 48
        %v3659 = vpop.permute.xlu0 %3658
        %v3665 = vsel %vm2851, %v3648, 0
        %v3668 = vsel %vm2851, %v3649, 0
        %v3671 = vsel %vm2851, %v3650, 0
        %v3674 = vsel %vm2851, %v3651, 0
        %3676 = vmatprep.subr.bf16.mxu0 0
        %3677 = vmatpush1.bf16.msra.mxu0 0
        %3678 = vmatprep.subr.bf16.mxu0 0
        %3679 = vmatpush1.bf16.msra.mxu0 0
        %3680 = vmatprep.subr.bf16.mxu0 0
        %3681 = vmatpush1.bf16.msra.mxu0 0
        %3682 = vmatprep.subr.bf16.mxu0 0
        %3683 = vmatpush1.bf16.msra.mxu0 0
        %3684 = vmatprep.subr.bf16.mxu0 0
        %3685 = vmatpush1.bf16.msra.mxu0 %v3659
        %3686 = vmatprep.subr.bf16.mxu0 0
        %3687 = vmatpush1.bf16.msra.mxu0 %v3657
        %3688 = vmatprep.subr.bf16.mxu0 0
        %3689 = vmatpush1.bf16.msra.mxu0 %v3655
        %3690 = vmatprep.subr.bf16.mxu0 0
        %3691 = vmatpush1.bf16.msra.mxu0 %v3653
        %3692 = vmatprep.subr.bf16.mxu0 0
        %3693 = vmatpush2.bf16.msra.mxu0 0
        %3694 = vmatprep.subr.bf16.mxu0 0
        %3695 = vmatpush2.bf16.msra.mxu0 0
        %3696 = vmatprep.subr.bf16.mxu0 0
        %3697 = vmatpush2.bf16.msra.mxu0 0
        %3698 = vmatprep.subr.bf16.mxu0 0
        %3699 = vmatpush2.bf16.msra.mxu0 0
        %3700 = vmatprep.subr.bf16.mxu0 0
        %3701 = vmatpush2.bf16.msra.mxu0 0
        %3702 = vmatprep.subr.bf16.mxu0 0
        %3703 = vmatpush2.bf16.msra.mxu0 0
        %3704 = vmatprep.subr.bf16.mxu0 0
        %3705 = vmatpush2.bf16.msra.mxu0 0
        %3706 = vmatprep.subr.bf16.mxu0 0
        %3707 = vmatpush2.bf16.msra.mxu0 0
        %3708 = vmatprep.mubr.bf16.mxu0 0
        %3709 = vmatmul.mubr.bf16.gmra.mxu0 %v3665
        %v3710 = vpop.f32.mrf.mxu0
        %v3711 = vadd.f32 0.0, %v3710
        %v3712 = vpop.f32.mrf.mxu0
        %v3713 = vpop.f32.mrf.mxu0
        %v3714 = vadd.f32 0.0, %v3713
        %v3715 = vpop.f32.mrf.mxu0
        %3716 = vmatprep.mubr.bf16.mxu0 0
        %3717 = vmatmul.mubr.bf16.gmra.mxu0 %v3668
        %v3718 = vpop.f32.mrf.mxu0
        %v3719 = vadd.f32 0.0, %v3718
        %v3720 = vpop.f32.mrf.mxu0
        %v3721 = vpop.f32.mrf.mxu0
        %v3722 = vadd.f32 0.0, %v3721
        %v3723 = vpop.f32.mrf.mxu0
        %3724 = vmatprep.mubr.bf16.mxu0 0
        %3725 = vmatmul.mubr.bf16.gmra.mxu0 %v3671
        %v3726 = vpop.f32.mrf.mxu0
        %v3727 = vadd.f32 0.0, %v3726
        %v3728 = vpop.f32.mrf.mxu0
        %v3729 = vpop.f32.mrf.mxu0
        %v3730 = vadd.f32 0.0, %v3729
        %v3731 = vpop.f32.mrf.mxu0
        %3732 = vmatprep.mubr.bf16.mxu0 0
        %3733 = vmatmul.mubr.bf16.gmra.mxu0 %v3674
        %v3734 = vpop.f32.mrf.mxu0
        %v3735 = vadd.f32 0.0, %v3734
        %v3736 = vpop.f32.mrf.mxu0
        %v3737 = vpop.f32.mrf.mxu0
        %v3738 = vadd.f32 0.0, %v3737
        %v3739 = vpop.f32.mrf.mxu0
        %3740 = vdwg.mxu0
        %3741 = vrot.lane.b32.xlu0 %v2659, 104
        %v3742 = vpop.permute.xlu0 %3741
        %3743 = vrot.lane.b32.xlu0 %v2662, 104
        %v3744 = vpop.permute.xlu0 %3743
        %3745 = vrot.lane.b32.xlu0 %v2667, 104
        %v3746 = vpop.permute.xlu0 %3745
        %3747 = vrot.lane.b32.xlu0 %v2670, 104
        %v3748 = vpop.permute.xlu0 %3747
        %3749 = vrot.lane.b32.xlu0 %v2675, 104
        %v3750 = vpop.permute.xlu0 %3749
        %3751 = vrot.lane.b32.xlu0 %v2678, 104
        %v3752 = vpop.permute.xlu0 %3751
        %3753 = vrot.lane.b32.xlu0 %v2683, 104
        %v3754 = vpop.permute.xlu0 %3753
        %3755 = vrot.lane.b32.xlu0 %v2686, 104
        %v3756 = vpop.permute.xlu0 %3755
        %3757 = vrot.lane.b32.xlu0 %v2659, 72
        %v3758 = vpop.permute.xlu0 %3757
        %3759 = vrot.lane.b32.xlu0 %v2662, 72
        %v3760 = vpop.permute.xlu0 %3759
        %3761 = vrot.lane.b32.xlu0 %v2667, 72
        %v3762 = vpop.permute.xlu0 %3761
        %3763 = vrot.lane.b32.xlu0 %v2670, 72
        %v3764 = vpop.permute.xlu0 %3763
        %3765 = vrot.lane.b32.xlu0 %v2675, 72
        %v3766 = vpop.permute.xlu0 %3765
        %3767 = vrot.lane.b32.xlu0 %v2678, 72
        %v3768 = vpop.permute.xlu0 %3767
        %3769 = vrot.lane.b32.xlu0 %v2683, 72
        %v3770 = vpop.permute.xlu0 %3769
        %3771 = vrot.lane.b32.xlu0 %v2686, 72
        %v3772 = vpop.permute.xlu0 %3771
        %v3773 = vsel %vm2713, %v3742, 0
        %v3775 = vsel %vm2713, %v3744, 0
        %v3777 = vsel %vm2713, %v3746, 0
        %v3779 = vsel %vm2713, %v3748, 0
        %v3781 = vsel %vm2713, %v3750, 0
        %v3783 = vsel %vm2713, %v3752, 0
        %v3785 = vsel %vm2713, %v3754, 0
        %v3787 = vsel %vm2713, %v3756, 0
        %v3789 = vsel %vm2713, %v3758, 0
        %v3791 = vsel %vm2713, %v3760, 0
        %v3793 = vsel %vm2713, %v3762, 0
        %v3795 = vsel %vm2713, %v3764, 0
        %v3797 = vsel %vm2713, %v3766, 0
        %v3799 = vsel %vm2713, %v3768, 0
        %v3801 = vsel %vm2713, %v3770, 0
        %v3803 = vsel %vm2713, %v3772, 0
        %3805 = vmatprep.subr.mxu0 0.0
        %3806 = vmatpush1.xpose.msra.mxu0 0.0
        %3807 = vmatprep.subr.mxu0 0.0
        %3808 = vmatpush1.xpose.msra.mxu0 0.0
        %3809 = vmatprep.subr.mxu0 0.0
        %3810 = vmatpush1.xpose.msra.mxu0 0.0
        %3811 = vmatprep.subr.mxu0 0.0
        %3812 = vmatpush1.xpose.msra.mxu0 0.0
        %3813 = vmatprep.subr.mxu0 0.0
        %3814 = vmatpush1.xpose.msra.mxu0 0.0
        %3815 = vmatprep.subr.mxu0 0.0
        %3816 = vmatpush1.xpose.msra.mxu0 0.0
        %3817 = vmatprep.subr.mxu0 0.0
        %3818 = vmatpush1.xpose.msra.mxu0 0.0
        %3819 = vmatprep.subr.mxu0 0.0
        %3820 = vmatpush1.xpose.msra.mxu0 0.0
        %3821 = vmatprep.subr.mxu0 0.0
        %3822 = vmatpush1.xpose.msra.mxu0 %v3803
        %3823 = vmatprep.subr.mxu0 0.0
        %3824 = vmatpush1.xpose.msra.mxu0 %v3801
        %3825 = vmatprep.subr.mxu0 0.0
        %3826 = vmatpush1.xpose.msra.mxu0 %v3799
        %3827 = vmatprep.subr.mxu0 0.0
        %3828 = vmatpush1.xpose.msra.mxu0 %v3797
        %3829 = vmatprep.subr.mxu0 0.0
        %3830 = vmatpush1.xpose.msra.mxu0 %v3795
        %3831 = vmatprep.subr.mxu0 0.0
        %3832 = vmatpush1.xpose.msra.mxu0 %v3793
        %3833 = vmatprep.subr.mxu0 0.0
        %3834 = vmatpush1.xpose.msra.mxu0 %v3791
        %3835 = vmatprep.subr.mxu0 0.0
        %3836 = vmatpush1.xpose.msra.mxu0 %v3789
        %3837 = vmatprep.subr.mxu0 0.0
        %3838 = vmatpush2.xpose.msra.mxu0 0.0
        %3839 = vmatprep.subr.mxu0 0.0
        %3840 = vmatpush2.xpose.msra.mxu0 0.0
        %3841 = vmatprep.subr.mxu0 0.0
        %3842 = vmatpush2.xpose.msra.mxu0 0.0
        %3843 = vmatprep.subr.mxu0 0.0
        %3844 = vmatpush2.xpose.msra.mxu0 0.0
        %3845 = vmatprep.subr.mxu0 0.0
        %3846 = vmatpush2.xpose.msra.mxu0 0.0
        %3847 = vmatprep.subr.mxu0 0.0
        %3848 = vmatpush2.xpose.msra.mxu0 0.0
        %3849 = vmatprep.subr.mxu0 0.0
        %3850 = vmatpush2.xpose.msra.mxu0 0.0
        %3851 = vmatprep.subr.mxu0 0.0
        %3852 = vmatpush2.xpose.msra.mxu0 0.0
        %3853 = vmatprep.subr.mxu0 0.0
        %3854 = vmatpush2.xpose.msra.mxu0 0.0
        %3855 = vmatprep.subr.mxu0 0.0
        %3856 = vmatpush2.xpose.msra.mxu0 0.0
        %3857 = vmatprep.subr.mxu0 0.0
        %3858 = vmatpush2.xpose.msra.mxu0 0.0
        %3859 = vmatprep.subr.mxu0 0.0
        %3860 = vmatpush2.xpose.msra.mxu0 0.0
        %3861 = vmatprep.subr.mxu0 0.0
        %3862 = vmatpush2.xpose.msra.mxu0 0.0
        %3863 = vmatprep.subr.mxu0 0.0
        %3864 = vmatpush2.xpose.msra.mxu0 0.0
        %3865 = vmatprep.subr.mxu0 0.0
        %3866 = vmatpush2.xpose.msra.mxu0 0.0
        %3867 = vmatprep.subr.mxu0 0.0
        %3868 = vmatpush2.xpose.msra.mxu0 0.0
        %3869 = vmatprep.mubr.f32.mxu0 0.0
        %3870 = vmatmul.mubr.f32.gmra.mxu0 %v3773
        %v3871 = vpop.f32.mrf.mxu0
        %v3872 = vadd.f32 0.0, %v3871
        %v3873 = vpop.f32.mrf.mxu0
        %3874 = vmatprep.mubr.f32.mxu0 0.0
        %3875 = vmatmul.mubr.f32.gmra.mxu0 %v3775
        %v3876 = vpop.f32.mrf.mxu0
        %v3877 = vadd.f32 0.0, %v3876
        %v3878 = vpop.f32.mrf.mxu0
        %3879 = vmatprep.mubr.f32.mxu0 0.0
        %3880 = vmatmul.mubr.f32.gmra.mxu0 %v3777
        %v3881 = vpop.f32.mrf.mxu0
        %v3882 = vadd.f32 0.0, %v3881
        %v3883 = vpop.f32.mrf.mxu0
        %3884 = vmatprep.mubr.f32.mxu0 0.0
        %3885 = vmatmul.mubr.f32.gmra.mxu0 %v3779
        %v3886 = vpop.f32.mrf.mxu0
        %v3887 = vadd.f32 0.0, %v3886
        %v3888 = vpop.f32.mrf.mxu0
        %3889 = vmatprep.mubr.f32.mxu0 0.0
        %3890 = vmatmul.mubr.f32.gmra.mxu0 %v3781
        %v3891 = vpop.f32.mrf.mxu0
        %v3892 = vadd.f32 0.0, %v3891
        %v3893 = vpop.f32.mrf.mxu0
        %3894 = vmatprep.mubr.f32.mxu0 0.0
        %3895 = vmatmul.mubr.f32.gmra.mxu0 %v3783
        %v3896 = vpop.f32.mrf.mxu0
        %v3897 = vadd.f32 0.0, %v3896
        %v3898 = vpop.f32.mrf.mxu0
        %3899 = vmatprep.mubr.f32.mxu0 0.0
        %3900 = vmatmul.mubr.f32.gmra.mxu0 %v3785
        %v3901 = vpop.f32.mrf.mxu0
        %v3902 = vadd.f32 0.0, %v3901
        %v3903 = vpop.f32.mrf.mxu0
        %3904 = vmatprep.mubr.f32.mxu0 0.0
        %3905 = vmatmul.mubr.f32.gmra.mxu0 %v3787
        %v3906 = vpop.f32.mrf.mxu0
        %v3907 = vadd.f32 0.0, %v3906
        %v3908 = vpop.f32.mrf.mxu0
        %3909 = vdwg.mxu0
        %v3910 = vsel %vm2851, %v3872, -inf
        %3911 = vmax.xlane.f32.xlu0 %v3910
        %v3912 = vpop.xlane.xlu0 %3911
        %v3913 = vsel %vm2851, %v3877, -inf
        %3914 = vmax.xlane.f32.xlu0 %v3913
        %v3915 = vpop.xlane.xlu0 %3914
        %v3916 = vsel %vm2851, %v3882, -inf
        %3917 = vmax.xlane.f32.xlu0 %v3916
        %v3918 = vpop.xlane.xlu0 %3917
        %v3919 = vsel %vm2851, %v3887, -inf
        %3920 = vmax.xlane.f32.xlu0 %v3919
        %v3921 = vpop.xlane.xlu0 %3920
        %v3922 = vsel %vm2851, %v3892, -inf
        %3923 = vmax.xlane.f32.xlu0 %v3922
        %v3924 = vpop.xlane.xlu0 %3923
        %v3925 = vsel %vm2851, %v3897, -inf
        %3926 = vmax.xlane.f32.xlu0 %v3925
        %v3927 = vpop.xlane.xlu0 %3926
        %v3928 = vsel %vm2851, %v3902, -inf
        %3929 = vmax.xlane.f32.xlu0 %v3928
        %v3930 = vpop.xlane.xlu0 %3929
        %v3931 = vsel %vm2851, %v3907, -inf
        %3932 = vmax.xlane.f32.xlu0 %v3931
        %v3933 = vpop.xlane.xlu0 %3932
        %v3934 = vsub.f32 %v3872, %v3912
        %v3935 = vsub.f32 %v3877, %v3915
        %v3936 = vsub.f32 %v3882, %v3918
        %v3937 = vsub.f32 %v3887, %v3921
        %v3938 = vsub.f32 %v3892, %v3924
        %v3939 = vsub.f32 %v3897, %v3927
        %v3940 = vsub.f32 %v3902, %v3930
        %v3941 = vsub.f32 %v3907, %v3933
        %v3942 = vmul.f32 %v3934, 1.442695
        %v3943 = vpow.pop %v3942
        %v3944 = vmul.f32 %v3935, 1.442695
        %v3945 = vpow.pop %v3944
        %v3946 = vmul.f32 %v3936, 1.442695
        %v3947 = vpow.pop %v3946
        %v3948 = vmul.f32 %v3937, 1.442695
        %v3949 = vpow.pop %v3948
        %v3950 = vmul.f32 %v3938, 1.442695
        %v3951 = vpow.pop %v3950
        %v3952 = vmul.f32 %v3939, 1.442695
        %v3953 = vpow.pop %v3952
        %v3954 = vmul.f32 %v3940, 1.442695
        %v3955 = vpow.pop %v3954
        %v3956 = vmul.f32 %v3941, 1.442695
        %v3957 = vpow.pop %v3956
        %v3958 = vsel %vm2851, %v3943, 0.0
        %3959 = vadd.xlane.f32.xlu0 %v3958
        %v3960 = vpop.xlane.xlu0 %3959
        %v3961 = vsel %vm2851, %v3945, 0.0
        %3962 = vadd.xlane.f32.xlu0 %v3961
        %v3963 = vpop.xlane.xlu0 %3962
        %v3964 = vsel %vm2851, %v3947, 0.0
        %3965 = vadd.xlane.f32.xlu0 %v3964
        %v3966 = vpop.xlane.xlu0 %3965
        %v3967 = vsel %vm2851, %v3949, 0.0
        %3968 = vadd.xlane.f32.xlu0 %v3967
        %v3969 = vpop.xlane.xlu0 %3968
        %v3970 = vsel %vm2851, %v3951, 0.0
        %3971 = vadd.xlane.f32.xlu0 %v3970
        %v3972 = vpop.xlane.xlu0 %3971
        %v3973 = vsel %vm2851, %v3953, 0.0
        %3974 = vadd.xlane.f32.xlu0 %v3973
        %v3975 = vpop.xlane.xlu0 %3974
        %v3976 = vsel %vm2851, %v3955, 0.0
        %3977 = vadd.xlane.f32.xlu0 %v3976
        %v3978 = vpop.xlane.xlu0 %3977
        %v3979 = vsel %vm2851, %v3957, 0.0
        %3980 = vadd.xlane.f32.xlu0 %v3979
        %v3981 = vpop.xlane.xlu0 %3980
        %v3982 = vrcp.pop %v3960
        %v3983 = vrcp.pop %v3963
        %v3984 = vrcp.pop %v3966
        %v3985 = vrcp.pop %v3969
        %v3986 = vrcp.pop %v3972
        %v3987 = vrcp.pop %v3975
        %v3988 = vrcp.pop %v3978
        %v3989 = vrcp.pop %v3981
        %v3990 = vmul.f32 %v3943, %v3982
        %v3991 = vmul.f32 %v3945, %v3983
        %v3992 = vmul.f32 %v3947, %v3984
        %v3993 = vmul.f32 %v3949, %v3985
        %v3994 = vmul.f32 %v3951, %v3986
        %v3995 = vmul.f32 %v3953, %v3987
        %v3996 = vmul.f32 %v3955, %v3988
        %v3997 = vmul.f32 %v3957, %v3989
        %v3998 = vpack.c.bf16 %v3991, %v3990
        %v3999 = vpack.c.bf16 %v3993, %v3992
        %v4000 = vpack.c.bf16 %v3995, %v3994
        %v4001 = vpack.c.bf16 %v3997, %v3996
        %4002 = vrot.lane.b32.xlu0 %v2944, 40
        %v4003 = vpop.permute.xlu0 %4002
        %4004 = vrot.lane.b32.xlu0 %v2945, 40
        %v4005 = vpop.permute.xlu0 %4004
        %4006 = vrot.lane.b32.xlu0 %v2946, 40
        %v4007 = vpop.permute.xlu0 %4006
        %4008 = vrot.lane.b32.xlu0 %v2947, 40
        %v4009 = vpop.permute.xlu0 %4008
        %v4015 = vsel %vm2851, %v3998, 0
        %v4018 = vsel %vm2851, %v3999, 0
        %v4021 = vsel %vm2851, %v4000, 0
        %v4024 = vsel %vm2851, %v4001, 0
        %4026 = vmatprep.subr.bf16.mxu0 0
        %4027 = vmatpush1.bf16.msra.mxu0 0
        %4028 = vmatprep.subr.bf16.mxu0 0
        %4029 = vmatpush1.bf16.msra.mxu0 0
        %4030 = vmatprep.subr.bf16.mxu0 0
        %4031 = vmatpush1.bf16.msra.mxu0 0
        %4032 = vmatprep.subr.bf16.mxu0 0
        %4033 = vmatpush1.bf16.msra.mxu0 0
        %4034 = vmatprep.subr.bf16.mxu0 0
        %4035 = vmatpush1.bf16.msra.mxu0 %v4009
        %4036 = vmatprep.subr.bf16.mxu0 0
        %4037 = vmatpush1.bf16.msra.mxu0 %v4007
        %4038 = vmatprep.subr.bf16.mxu0 0
        %4039 = vmatpush1.bf16.msra.mxu0 %v4005
        %4040 = vmatprep.subr.bf16.mxu0 0
        %4041 = vmatpush1.bf16.msra.mxu0 %v4003
        %4042 = vmatprep.subr.bf16.mxu0 0
        %4043 = vmatpush2.bf16.msra.mxu0 0
        %4044 = vmatprep.subr.bf16.mxu0 0
        %4045 = vmatpush2.bf16.msra.mxu0 0
        %4046 = vmatprep.subr.bf16.mxu0 0
        %4047 = vmatpush2.bf16.msra.mxu0 0
        %4048 = vmatprep.subr.bf16.mxu0 0
        %4049 = vmatpush2.bf16.msra.mxu0 0
        %4050 = vmatprep.subr.bf16.mxu0 0
        %4051 = vmatpush2.bf16.msra.mxu0 0
        %4052 = vmatprep.subr.bf16.mxu0 0
        %4053 = vmatpush2.bf16.msra.mxu0 0
        %4054 = vmatprep.subr.bf16.mxu0 0
        %4055 = vmatpush2.bf16.msra.mxu0 0
        %4056 = vmatprep.subr.bf16.mxu0 0
        %4057 = vmatpush2.bf16.msra.mxu0 0
        %4058 = vmatprep.mubr.bf16.mxu0 0
        %4059 = vmatmul.mubr.bf16.gmra.mxu0 %v4015
        %v4060 = vpop.f32.mrf.mxu0
        %v4061 = vadd.f32 0.0, %v4060
        %v4062 = vpop.f32.mrf.mxu0
        %v4063 = vpop.f32.mrf.mxu0
        %v4064 = vadd.f32 0.0, %v4063
        %v4065 = vpop.f32.mrf.mxu0
        %4066 = vmatprep.mubr.bf16.mxu0 0
        %4067 = vmatmul.mubr.bf16.gmra.mxu0 %v4018
        %v4068 = vpop.f32.mrf.mxu0
        %v4069 = vadd.f32 0.0, %v4068
        %v4070 = vpop.f32.mrf.mxu0
        %v4071 = vpop.f32.mrf.mxu0
        %v4072 = vadd.f32 0.0, %v4071
        %v4073 = vpop.f32.mrf.mxu0
        %4074 = vmatprep.mubr.bf16.mxu0 0
        %4075 = vmatmul.mubr.bf16.gmra.mxu0 %v4021
        %v4076 = vpop.f32.mrf.mxu0
        %v4077 = vadd.f32 0.0, %v4076
        %v4078 = vpop.f32.mrf.mxu0
        %v4079 = vpop.f32.mrf.mxu0
        %v4080 = vadd.f32 0.0, %v4079
        %v4081 = vpop.f32.mrf.mxu0
        %4082 = vmatprep.mubr.bf16.mxu0 0
        %4083 = vmatmul.mubr.bf16.gmra.mxu0 %v4024
        %v4084 = vpop.f32.mrf.mxu0
        %v4085 = vadd.f32 0.0, %v4084
        %v4086 = vpop.f32.mrf.mxu0
        %v4087 = vpop.f32.mrf.mxu0
        %v4088 = vadd.f32 0.0, %v4087
        %v4089 = vpop.f32.mrf.mxu0
        %4090 = vdwg.mxu0
        %4099 = vrot.lane.b32.xlu0 %v3361, 8
        %v4100 = vpop.permute.xlu0 %4099
        %4101 = vrot.lane.b32.xlu0 %v3364, 8
        %v4102 = vpop.permute.xlu0 %4101
        %4103 = vrot.lane.b32.xlu0 %v3369, 8
        %v4104 = vpop.permute.xlu0 %4103
        %4105 = vrot.lane.b32.xlu0 %v3372, 8
        %v4106 = vpop.permute.xlu0 %4105
        %4107 = vrot.lane.b32.xlu0 %v3377, 8
        %v4108 = vpop.permute.xlu0 %4107
        %4109 = vrot.lane.b32.xlu0 %v3380, 8
        %v4110 = vpop.permute.xlu0 %4109
        %4111 = vrot.lane.b32.xlu0 %v3385, 8
        %v4112 = vpop.permute.xlu0 %4111
        %4113 = vrot.lane.b32.xlu0 %v3388, 8
        %v4114 = vpop.permute.xlu0 %4113
        %4131 = vrot.lane.b32.xlu0 %v3711, 16
        %v4132 = vpop.permute.xlu0 %4131
        %4133 = vrot.lane.b32.xlu0 %v3714, 16
        %v4134 = vpop.permute.xlu0 %4133
        %4135 = vrot.lane.b32.xlu0 %v3719, 16
        %v4136 = vpop.permute.xlu0 %4135
        %4137 = vrot.lane.b32.xlu0 %v3722, 16
        %v4138 = vpop.permute.xlu0 %4137
        %4139 = vrot.lane.b32.xlu0 %v3727, 16
        %v4140 = vpop.permute.xlu0 %4139
        %4141 = vrot.lane.b32.xlu0 %v3730, 16
        %v4142 = vpop.permute.xlu0 %4141
        %4143 = vrot.lane.b32.xlu0 %v3735, 16
        %v4144 = vpop.permute.xlu0 %4143
        %4145 = vrot.lane.b32.xlu0 %v3738, 16
        %v4146 = vpop.permute.xlu0 %4145
        %4163 = vrot.lane.b32.xlu0 %v4061, 24
        %v4164 = vpop.permute.xlu0 %4163
        %4165 = vrot.lane.b32.xlu0 %v4064, 24
        %v4166 = vpop.permute.xlu0 %4165
        %4167 = vrot.lane.b32.xlu0 %v4069, 24
        %v4168 = vpop.permute.xlu0 %4167
        %4169 = vrot.lane.b32.xlu0 %v4072, 24
        %v4170 = vpop.permute.xlu0 %4169
        %4171 = vrot.lane.b32.xlu0 %v4077, 24
        %v4172 = vpop.permute.xlu0 %4171
        %4173 = vrot.lane.b32.xlu0 %v4080, 24
        %v4174 = vpop.permute.xlu0 %4173
        %4175 = vrot.lane.b32.xlu0 %v4085, 24
        %v4176 = vpop.permute.xlu0 %4175
        %4177 = vrot.lane.b32.xlu0 %v4088, 24
        %v4178 = vpop.permute.xlu0 %4177
        %v4187 = vsel %vm2713, %v3011, %v4100
        %v4188 = vsel %vm2713, %v3014, %v4102
        %v4189 = vsel %vm2713, %v3019, %v4104
        %v4190 = vsel %vm2713, %v3022, %v4106
        %v4191 = vsel %vm2713, %v3027, %v4108
        %v4192 = vsel %vm2713, %v3030, %v4110
        %v4193 = vsel %vm2713, %v3035, %v4112
        %v4194 = vsel %vm2713, %v3038, %v4114
        %v4195 = vsel %vm2036, %v4187, %v4132
        %v4196 = vsel %vm2036, %v4188, %v4134
        %v4197 = vsel %vm2036, %v4189, %v4136
        %v4198 = vsel %vm2036, %v4190, %v4138
        %v4199 = vsel %vm2036, %v4191, %v4140
        %v4200 = vsel %vm2036, %v4192, %v4142
        %v4201 = vsel %vm2036, %v4193, %v4144
        %v4202 = vsel %vm2036, %v4194, %v4146
        %vm4203 = vcmask 195584
        %v4204 = vsel %vm4203, %v4195, %v4164
        %v4205 = vsel %vm4203, %v4196, %v4166
        %v4206 = vsel %vm4203, %v4197, %v4168
        %v4207 = vsel %vm4203, %v4198, %v4170
        %v4208 = vsel %vm4203, %v4199, %v4172
        %v4209 = vsel %vm4203, %v4200, %v4174
        %v4210 = vsel %vm4203, %v4201, %v4176
        %v4211 = vsel %vm4203, %v4202, %v4178
        %v4212 = vpack.c.bf16 %v4205, %v4204
        %v4213 = vpack.c.bf16 %v4207, %v4206
        %v4214 = vpack.c.bf16 %v4209, %v4208
        %v4215 = vpack.c.bf16 %v4211, %v4210
        %v4216 = vld [vmem:[%s10] sm:$0xf]
        %v4217 = vld [vmem:[%s10 + $0x4] sm:$0xf]
        %v4218 = vld [vmem:[%s10 + $0x8] sm:$0xf]
        %v4219 = vld [vmem:[%s10 + $0xc] sm:$0xf]
        %v4220 = vld [vmem:[%s11] sm:$0x1]
        %v4222 = vlaneseq
        %v4223 = vshrl.u32 %v4222, 7
        %v4224 = vsub.s32 0, %v4223
        %v4225 = vrot.slane %v4220, %v4224
        %v4231 = vunpack.c.l.b16 %v4216
        %v4232 = vunpack.c.l.b16 %v4217
        %v4233 = vunpack.c.l.b16 %v4218
        %v4234 = vunpack.c.l.b16 %v4219
        %v4235 = vpack.c.b16 %v4232, %v4231
        %v4236 = vpack.c.b16 %v4234, %v4233
        %v4240 = vsel %vm2122, %v4212, 0
        %v4243 = vsel %vm2122, %v4213, 0
        %v4246 = vsel %vm2122, %v4214, 0
        %v4249 = vsel %vm2122, %v4215, 0
        %4251 = vmatprep.subr.bf16.mxu0 0
        %4252 = vmatpush1.bf16.msra.mxu0 0
        %4253 = vmatprep.subr.bf16.mxu0 0
        %4254 = vmatpush1.bf16.msra.mxu0 0
        %4255 = vmatprep.subr.bf16.mxu0 0
        %4256 = vmatpush1.bf16.msra.mxu0 0
        %4257 = vmatprep.subr.bf16.mxu0 0
        %4258 = vmatpush1.bf16.msra.mxu0 0
        %4259 = vmatprep.subr.bf16.mxu0 0
        %4260 = vmatpush1.bf16.msra.mxu0 0
        %4261 = vmatprep.subr.bf16.mxu0 0
        %4262 = vmatpush1.bf16.msra.mxu0 0
        %4263 = vmatprep.subr.bf16.mxu0 0
        %4264 = vmatpush1.bf16.msra.mxu0 %v4236
        %4265 = vmatprep.subr.bf16.mxu0 0
        %4266 = vmatpush1.bf16.msra.mxu0 %v4235
        %4267 = vmatprep.subr.bf16.mxu0 0
        %4268 = vmatpush2.bf16.msra.mxu0 0
        %4269 = vmatprep.subr.bf16.mxu0 0
        %4270 = vmatpush2.bf16.msra.mxu0 0
        %4271 = vmatprep.subr.bf16.mxu0 0
        %4272 = vmatpush2.bf16.msra.mxu0 0
        %4273 = vmatprep.subr.bf16.mxu0 0
        %4274 = vmatpush2.bf16.msra.mxu0 0
        %4275 = vmatprep.subr.bf16.mxu0 0
        %4276 = vmatpush2.bf16.msra.mxu0 0
        %4277 = vmatprep.subr.bf16.mxu0 0
        %4278 = vmatpush2.bf16.msra.mxu0 0
        %4279 = vmatprep.subr.bf16.mxu0 0
        %4280 = vmatpush2.bf16.msra.mxu0 0
        %4281 = vmatprep.subr.bf16.mxu0 0
        %4282 = vmatpush2.bf16.msra.mxu0 0
        %4283 = vmatprep.mubr.bf16.mxu0 0
        %4284 = vmatmul.mubr.bf16.gmra.mxu0 %v4240
        %v4285 = vpop.f32.mrf.mxu0
        %v4286 = vadd.f32 %v4225, %v4285
        %v4287 = vpop.f32.mrf.mxu0
        %v4288 = vpop.f32.mrf.mxu0
        %v4289 = vadd.f32 %v4225, %v4288
        %v4290 = vpop.f32.mrf.mxu0
        %4291 = vmatprep.mubr.bf16.mxu0 0
        %4292 = vmatmul.mubr.bf16.gmra.mxu0 %v4243
        %v4293 = vpop.f32.mrf.mxu0
        %v4294 = vadd.f32 %v4225, %v4293
        %v4295 = vpop.f32.mrf.mxu0
        %v4296 = vpop.f32.mrf.mxu0
        %v4297 = vadd.f32 %v4225, %v4296
        %v4298 = vpop.f32.mrf.mxu0
        %4299 = vmatprep.mubr.bf16.mxu0 0
        %4300 = vmatmul.mubr.bf16.gmra.mxu0 %v4246
        %v4301 = vpop.f32.mrf.mxu0
        %v4302 = vadd.f32 %v4225, %v4301
        %v4303 = vpop.f32.mrf.mxu0
        %v4304 = vpop.f32.mrf.mxu0
        %v4305 = vadd.f32 %v4225, %v4304
        %v4306 = vpop.f32.mrf.mxu0
        %4307 = vmatprep.mubr.bf16.mxu0 0
        %4308 = vmatmul.mubr.bf16.gmra.mxu0 %v4249
        %v4309 = vpop.f32.mrf.mxu0
        %v4310 = vadd.f32 %v4225, %v4309
        %v4311 = vpop.f32.mrf.mxu0
        %v4312 = vpop.f32.mrf.mxu0
        %v4313 = vadd.f32 %v4225, %v4312
        %v4314 = vpop.f32.mrf.mxu0
        %4315 = vdwg.mxu0
        %4316 = vst.msk [vmem:[#allocation3] sm:$0xff] %vm2122, 0.0
        %vm4317 = vcmask 259072
        %4318 = vst.msk [vmem:[#allocation3 + $0x8] sm:$0x3f] %vm4317, 0.0
        %4319 = vst.msk [vmem:[#allocation3 + $0x10] sm:$0xff] %vm2122, 0.0
        %4320 = vst.msk [vmem:[#allocation3 + $0x18] sm:$0x3f] %vm4317, 0.0
        %4321 = vst.msk [vmem:[#allocation3 + $0x20] sm:$0xff] %vm2122, 0.0
        %4322 = vst.msk [vmem:[#allocation3 + $0x28] sm:$0x3f] %vm4317, 0.0
        %s4323 = scalar_lea.vmem [#allocation3], 176
        %4324 = vst.msk [vmem:[%s4323] sm:$0xff] %vm2122, 0.0
        %4325 = vst.msk [vmem:[%s4323 + $0x8] sm:$0x3f] %vm4317, 0.0
        %4326 = vst.msk [vmem:[%s4323 + $0x10] sm:$0xff] %vm2122, 0.0
        %4327 = vst.msk [vmem:[%s4323 + $0x18] sm:$0x3f] %vm4317, 0.0
        %4328 = vst.msk [vmem:[%s4323 + $0x20] sm:$0xff] %vm2122, 0.0
        %4329 = vst.msk [vmem:[%s4323 + $0x28] sm:$0x3f] %vm4317, 0.0
        %v4338 = vrot.slane %v4286, 5
        %v4339 = vrot.slane %v4289, 5
        %v4340 = vrot.slane %v4294, 5
        %v4341 = vrot.slane %v4297, 5
        %v4342 = vrot.slane %v4302, 5
        %v4343 = vrot.slane %v4305, 5
        %v4344 = vrot.slane %v4310, 5
        %v4345 = vrot.slane %v4313, 5
        %vm4354 = vcmask 1042432
        %v4355 = vsel %vm4354, 0.0, %v4338
        %v4356 = vsel %vm4354, 0.0, %v4339
        %v4357 = vsel %vm4354, 0.0, %v4340
        %v4358 = vsel %vm4354, 0.0, %v4341
        %v4359 = vsel %vm4354, 0.0, %v4342
        %v4360 = vsel %vm4354, 0.0, %v4343
        %v4361 = vsel %vm4354, 0.0, %v4344
        %v4362 = vsel %vm4354, 0.0, %v4345
        %v4363 = vsel %vm4354, %v4338, 0.0
        %v4364 = vsel %vm4354, %v4339, 0.0
        %v4365 = vsel %vm4354, %v4340, 0.0
        %v4366 = vsel %vm4354, %v4341, 0.0
        %v4367 = vsel %vm4354, %v4342, 0.0
        %v4368 = vsel %vm4354, %v4343, 0.0
        %v4369 = vsel %vm4354, %v4344, 0.0
        %v4370 = vsel %vm4354, %v4345, 0.0
        %s4371 = scalar_lea.vmem [#allocation3], 48
        %4372 = vst.msk [vmem:[%s4371] sm:$0xff] %vm2122, %v4355
        %4373 = vst.msk [vmem:[%s4371 + $0x8] sm:$0x3f] %vm4317, %v4363
        %4374 = vst.msk [vmem:[%s4371 + $0x10] sm:$0xff] %vm2122, %v4356
        %4375 = vst.msk [vmem:[%s4371 + $0x18] sm:$0x3f] %vm4317, %v4364
        %4376 = vst.msk [vmem:[%s4371 + $0x20] sm:$0xff] %vm2122, %v4357
        %4377 = vst.msk [vmem:[%s4371 + $0x28] sm:$0x3f] %vm4317, %v4365
        %4378 = vst.msk [vmem:[%s4371 + $0x30] sm:$0xff] %vm2122, %v4358
        %4379 = vst.msk [vmem:[%s4371 + $0x38] sm:$0x3f] %vm4317, %v4366
        %4380 = vst.msk [vmem:[%s4371 + $0x40] sm:$0xff] %vm2122, %v4359
        %4381 = vst.msk [vmem:[%s4371 + $0x48] sm:$0x3f] %vm4317, %v4367
        %4382 = vst.msk [vmem:[%s4371 + $0x50] sm:$0xff] %vm2122, %v4360
        %4383 = vst.msk [vmem:[%s4371 + $0x58] sm:$0x3f] %vm4317, %v4368
        %4384 = vst.msk [vmem:[%s4371 + $0x60] sm:$0xff] %vm2122, %v4361
        %4385 = vst.msk [vmem:[%s4371 + $0x68] sm:$0x3f] %vm4317, %v4369
        %4386 = vst.msk [vmem:[%s4371 + $0x70] sm:$0xff] %vm2122, %v4362
        %4387 = vst.msk [vmem:[%s4371 + $0x78] sm:$0x3f] %vm4317, %v4370
        %v4388 = vld [vmem:[%s12] sm:$0xff]
        %v4389 = vld [vmem:[%s12 + $0x8] sm:$0xff]
        %v4390 = vld [vmem:[%s12 + $0x10] sm:$0xff]
        %v4391 = vld [vmem:[%s12 + $0x18] sm:$0xff]
        %v4392 = vld [vmem:[%s12 + $0x20] sm:$0xff]
        %v4393 = vld [vmem:[%s12 + $0x28] sm:$0xff]
        %v4394 = vld [vmem:[%s12 + $0x30] sm:$0x1]
        %v4395 = vld [vmem:[#allocation3] sm:$0xff]
        %v4396 = vld [vmem:[#allocation3 + $0x10] sm:$0xff]
        %v4397 = vld [vmem:[#allocation3 + $0x20] sm:$0xff]
        %v4398 = vld [vmem:[#allocation3 + $0x30] sm:$0xff]
        %v4399 = vld [vmem:[#allocation3 + $0x40] sm:$0xff]
        %v4400 = vld [vmem:[#allocation3 + $0x50] sm:$0xff]
        %v4401 = vld [vmem:[#allocation3 + $0x60] sm:$0xff]
        %v4402 = vld [vmem:[#allocation3 + $0x70] sm:$0xff]
        %v4403 = vlaneseq
        %v4404 = vshrl.u32 %v4403, 7
        %v4405 = vsub.s32 0, %v4404
        %v4406 = vrot.slane %v4388, %v4405
        %v4407 = vmul.f32 %v4395, %v4406
        %v4408 = vmul.f32 %v4396, %v4406
        %v4409 = vmul.f32 %v4397, %v4406
        %v4410 = vmul.f32 %v4398, %v4406
        %v4411 = vmul.f32 %v4399, %v4406
        %v4412 = vmul.f32 %v4400, %v4406
        %v4413 = vmul.f32 %v4401, %v4406
        %v4414 = vmul.f32 %v4402, %v4406
        %v4415 = vadd.f32 %v4407, 0.0
        %v4416 = vadd.f32 %v4408, 0.0
        %v4417 = vadd.f32 %v4409, 0.0
        %v4418 = vadd.f32 %v4410, 0.0
        %v4419 = vadd.f32 %v4411, 0.0
        %v4420 = vadd.f32 %v4412, 0.0
        %v4421 = vadd.f32 %v4413, 0.0
        %v4422 = vadd.f32 %v4414, 0.0
        %v4423 = vld [vmem:[#allocation3 + $0x1] sm:$0xff]
        %v4424 = vld [vmem:[#allocation3 + $0x11] sm:$0xff]
        %v4425 = vld [vmem:[#allocation3 + $0x21] sm:$0xff]
        %v4426 = vld [vmem:[#allocation3 + $0x31] sm:$0xff]
        %v4427 = vld [vmem:[#allocation3 + $0x41] sm:$0xff]
        %v4428 = vld [vmem:[#allocation3 + $0x51] sm:$0xff]
        %v4429 = vld [vmem:[#allocation3 + $0x61] sm:$0xff]
        %v4430 = vld [vmem:[#allocation3 + $0x71] sm:$0xff]
        %v4431 = vlaneseq
        %v4432 = vshrl.u32 %v4431, 7
        %v4433 = vsub.s32 1, %v4432
        %v4434 = vrot.slane %v4388, %v4433
        %v4435 = vmul.f32 %v4423, %v4434
        %v4436 = vmul.f32 %v4424, %v4434
        %v4437 = vmul.f32 %v4425, %v4434
        %v4438 = vmul.f32 %v4426, %v4434
        %v4439 = vmul.f32 %v4427, %v4434
        %v4440 = vmul.f32 %v4428, %v4434
        %v4441 = vmul.f32 %v4429, %v4434
        %v4442 = vmul.f32 %v4430, %v4434
        %v4443 = vadd.f32 %v4415, %v4435
        %v4444 = vadd.f32 %v4416, %v4436
        %v4445 = vadd.f32 %v4417, %v4437
        %v4446 = vadd.f32 %v4418, %v4438
        %v4447 = vadd.f32 %v4419, %v4439
        %v4448 = vadd.f32 %v4420, %v4440
        %v4449 = vadd.f32 %v4421, %v4441
        %v4450 = vadd.f32 %v4422, %v4442
        %v4451 = vld [vmem:[#allocation3 + $0x2] sm:$0xff]
        %v4452 = vld [vmem:[#allocation3 + $0x12] sm:$0xff]
        %v4453 = vld [vmem:[#allocation3 + $0x22] sm:$0xff]
        %v4454 = vld [vmem:[#allocation3 + $0x32] sm:$0xff]
        %v4455 = vld [vmem:[#allocation3 + $0x42] sm:$0xff]
        %v4456 = vld [vmem:[#allocation3 + $0x52] sm:$0xff]
        %v4457 = vld [vmem:[#allocation3 + $0x62] sm:$0xff]
        %v4458 = vld [vmem:[#allocation3 + $0x72] sm:$0xff]
        %v4459 = vlaneseq
        %v4460 = vshrl.u32 %v4459, 7
        %v4461 = vsub.s32 2, %v4460
        %v4462 = vrot.slane %v4388, %v4461
        %v4463 = vmul.f32 %v4451, %v4462
        %v4464 = vmul.f32 %v4452, %v4462
        %v4465 = vmul.f32 %v4453, %v4462
        %v4466 = vmul.f32 %v4454, %v4462
        %v4467 = vmul.f32 %v4455, %v4462
        %v4468 = vmul.f32 %v4456, %v4462
        %v4469 = vmul.f32 %v4457, %v4462
        %v4470 = vmul.f32 %v4458, %v4462
        %v4471 = vadd.f32 %v4443, %v4463
        %v4472 = vadd.f32 %v4444, %v4464
        %v4473 = vadd.f32 %v4445, %v4465
        %v4474 = vadd.f32 %v4446, %v4466
        %v4475 = vadd.f32 %v4447, %v4467
        %v4476 = vadd.f32 %v4448, %v4468
        %v4477 = vadd.f32 %v4449, %v4469
        %v4478 = vadd.f32 %v4450, %v4470
        %v4479 = vld [vmem:[#allocation3 + $0x3] sm:$0xff]
        %v4480 = vld [vmem:[#allocation3 + $0x13] sm:$0xff]
        %v4481 = vld [vmem:[#allocation3 + $0x23] sm:$0xff]
        %v4482 = vld [vmem:[#allocation3 + $0x33] sm:$0xff]
        %v4483 = vld [vmem:[#allocation3 + $0x43] sm:$0xff]
        %v4484 = vld [vmem:[#allocation3 + $0x53] sm:$0xff]
        %v4485 = vld [vmem:[#allocation3 + $0x63] sm:$0xff]
        %v4486 = vld [vmem:[#allocation3 + $0x73] sm:$0xff]
        %v4487 = vlaneseq
        %v4488 = vshrl.u32 %v4487, 7
        %v4489 = vsub.s32 3, %v4488
        %v4490 = vrot.slane %v4388, %v4489
        %v4491 = vmul.f32 %v4479, %v4490
        %v4492 = vmul.f32 %v4480, %v4490
        %v4493 = vmul.f32 %v4481, %v4490
        %v4494 = vmul.f32 %v4482, %v4490
        %v4495 = vmul.f32 %v4483, %v4490
        %v4496 = vmul.f32 %v4484, %v4490
        %v4497 = vmul.f32 %v4485, %v4490
        %v4498 = vmul.f32 %v4486, %v4490
        %v4499 = vadd.f32 %v4471, %v4491
        %v4500 = vadd.f32 %v4472, %v4492
        %v4501 = vadd.f32 %v4473, %v4493
        %v4502 = vadd.f32 %v4474, %v4494
        %v4503 = vadd.f32 %v4475, %v4495
        %v4504 = vadd.f32 %v4476, %v4496
        %v4505 = vadd.f32 %v4477, %v4497
        %v4506 = vadd.f32 %v4478, %v4498
        %v4507 = vld [vmem:[#allocation3 + $0x4] sm:$0xff]
        %v4508 = vld [vmem:[#allocation3 + $0x14] sm:$0xff]
        %v4509 = vld [vmem:[#allocation3 + $0x24] sm:$0xff]
        %v4510 = vld [vmem:[#allocation3 + $0x34] sm:$0xff]
        %v4511 = vld [vmem:[#allocation3 + $0x44] sm:$0xff]
        %v4512 = vld [vmem:[#allocation3 + $0x54] sm:$0xff]
        %v4513 = vld [vmem:[#allocation3 + $0x64] sm:$0xff]
        %v4514 = vld [vmem:[#allocation3 + $0x74] sm:$0xff]
        %v4515 = vlaneseq
        %v4516 = vshrl.u32 %v4515, 7
        %v4517 = vsub.s32 4, %v4516
        %v4518 = vrot.slane %v4388, %v4517
        %v4519 = vmul.f32 %v4507, %v4518
        %v4520 = vmul.f32 %v4508, %v4518
        %v4521 = vmul.f32 %v4509, %v4518
        %v4522 = vmul.f32 %v4510, %v4518
        %v4523 = vmul.f32 %v4511, %v4518
        %v4524 = vmul.f32 %v4512, %v4518
        %v4525 = vmul.f32 %v4513, %v4518
        %v4526 = vmul.f32 %v4514, %v4518
        %v4527 = vadd.f32 %v4499, %v4519
        %v4528 = vadd.f32 %v4500, %v4520
        %v4529 = vadd.f32 %v4501, %v4521
        %v4530 = vadd.f32 %v4502, %v4522
        %v4531 = vadd.f32 %v4503, %v4523
        %v4532 = vadd.f32 %v4504, %v4524
        %v4533 = vadd.f32 %v4505, %v4525
        %v4534 = vadd.f32 %v4506, %v4526
        %v4535 = vld [vmem:[#allocation3 + $0x5] sm:$0xff]
        %v4536 = vld [vmem:[#allocation3 + $0x15] sm:$0xff]
        %v4537 = vld [vmem:[#allocation3 + $0x25] sm:$0xff]
        %v4538 = vld [vmem:[#allocation3 + $0x35] sm:$0xff]
        %v4539 = vld [vmem:[#allocation3 + $0x45] sm:$0xff]
        %v4540 = vld [vmem:[#allocation3 + $0x55] sm:$0xff]
        %v4541 = vld [vmem:[#allocation3 + $0x65] sm:$0xff]
        %v4542 = vld [vmem:[#allocation3 + $0x75] sm:$0xff]
        %v4543 = vlaneseq
        %v4544 = vshrl.u32 %v4543, 7
        %v4545 = vsub.s32 5, %v4544
        %v4546 = vrot.slane %v4388, %v4545
        %v4547 = vmul.f32 %v4535, %v4546
        %v4548 = vmul.f32 %v4536, %v4546
        %v4549 = vmul.f32 %v4537, %v4546
        %v4550 = vmul.f32 %v4538, %v4546
        %v4551 = vmul.f32 %v4539, %v4546
        %v4552 = vmul.f32 %v4540, %v4546
        %v4553 = vmul.f32 %v4541, %v4546
        %v4554 = vmul.f32 %v4542, %v4546
        %v4555 = vadd.f32 %v4527, %v4547
        %v4556 = vadd.f32 %v4528, %v4548
        %v4557 = vadd.f32 %v4529, %v4549
        %v4558 = vadd.f32 %v4530, %v4550
        %v4559 = vadd.f32 %v4531, %v4551
        %v4560 = vadd.f32 %v4532, %v4552
        %v4561 = vadd.f32 %v4533, %v4553
        %v4562 = vadd.f32 %v4534, %v4554
        %v4563 = vld [vmem:[#allocation3 + $0x6] sm:$0xff]
        %v4564 = vld [vmem:[#allocation3 + $0x16] sm:$0xff]
        %v4565 = vld [vmem:[#allocation3 + $0x26] sm:$0xff]
        %v4566 = vld [vmem:[#allocation3 + $0x36] sm:$0xff]
        %v4567 = vld [vmem:[#allocation3 + $0x46] sm:$0xff]
        %v4568 = vld [vmem:[#allocation3 + $0x56] sm:$0xff]
        %v4569 = vld [vmem:[#allocation3 + $0x66] sm:$0xff]
        %v4570 = vld [vmem:[#allocation3 + $0x76] sm:$0xff]
        %v4571 = vlaneseq
        %v4572 = vshrl.u32 %v4571, 7
        %v4573 = vsub.s32 6, %v4572
        %v4574 = vrot.slane %v4388, %v4573
        %v4575 = vmul.f32 %v4563, %v4574
        %v4576 = vmul.f32 %v4564, %v4574
        %v4577 = vmul.f32 %v4565, %v4574
        %v4578 = vmul.f32 %v4566, %v4574
        %v4579 = vmul.f32 %v4567, %v4574
        %v4580 = vmul.f32 %v4568, %v4574
        %v4581 = vmul.f32 %v4569, %v4574
        %v4582 = vmul.f32 %v4570, %v4574
        %v4583 = vadd.f32 %v4555, %v4575
        %v4584 = vadd.f32 %v4556, %v4576
        %v4585 = vadd.f32 %v4557, %v4577
        %v4586 = vadd.f32 %v4558, %v4578
        %v4587 = vadd.f32 %v4559, %v4579
        %v4588 = vadd.f32 %v4560, %v4580
        %v4589 = vadd.f32 %v4561, %v4581
        %v4590 = vadd.f32 %v4562, %v4582
        %s4591 = scalar_lea.vmem [#allocation3], 16
        %v4592 = vld [vmem:[%s4591] sm:$0xff]
        %v4593 = vld [vmem:[%s4591 + $0x10] sm:$0xff]
        %v4594 = vld [vmem:[%s4591 + $0x20] sm:$0xff]
        %v4595 = vld [vmem:[%s4591 + $0x30] sm:$0xff]
        %v4596 = vld [vmem:[%s4591 + $0x40] sm:$0xff]
        %v4597 = vld [vmem:[%s4591 + $0x50] sm:$0xff]
        %v4598 = vld [vmem:[%s4591 + $0x60] sm:$0xff]
        %v4599 = vld [vmem:[%s4591 + $0x70] sm:$0xff]
        %v4600 = vlaneseq
        %v4601 = vshrl.u32 %v4600, 7
        %v4602 = vsub.s32 7, %v4601
        %v4603 = vrot.slane %v4388, %v4602
        %v4604 = vmul.f32 %v4592, %v4603
        %v4605 = vmul.f32 %v4593, %v4603
        %v4606 = vmul.f32 %v4594, %v4603
        %v4607 = vmul.f32 %v4595, %v4603
        %v4608 = vmul.f32 %v4596, %v4603
        %v4609 = vmul.f32 %v4597, %v4603
        %v4610 = vmul.f32 %v4598, %v4603
        %v4611 = vmul.f32 %v4599, %v4603
        %v4612 = vadd.f32 %v4583, %v4604
        %v4613 = vadd.f32 %v4584, %v4605
        %v4614 = vadd.f32 %v4585, %v4606
        %v4615 = vadd.f32 %v4586, %v4607
        %v4616 = vadd.f32 %v4587, %v4608
        %v4617 = vadd.f32 %v4588, %v4609
        %v4618 = vadd.f32 %v4589, %v4610
        %v4619 = vadd.f32 %v4590, %v4611
        %v4620 = vld [vmem:[%s4591 + $0x1] sm:$0xff]
        %v4621 = vld [vmem:[%s4591 + $0x11] sm:$0xff]
        %v4622 = vld [vmem:[%s4591 + $0x21] sm:$0xff]
        %v4623 = vld [vmem:[%s4591 + $0x31] sm:$0xff]
        %v4624 = vld [vmem:[%s4591 + $0x41] sm:$0xff]
        %v4625 = vld [vmem:[%s4591 + $0x51] sm:$0xff]
        %v4626 = vld [vmem:[%s4591 + $0x61] sm:$0xff]
        %v4627 = vld [vmem:[%s4591 + $0x71] sm:$0xff]
        %v4628 = vlaneseq
        %v4629 = vshrl.u32 %v4628, 7
        %v4630 = vsub.s32 0, %v4629
        %v4631 = vrot.slane %v4389, %v4630
        %v4632 = vmul.f32 %v4620, %v4631
        %v4633 = vmul.f32 %v4621, %v4631
        %v4634 = vmul.f32 %v4622, %v4631
        %v4635 = vmul.f32 %v4623, %v4631
        %v4636 = vmul.f32 %v4624, %v4631
        %v4637 = vmul.f32 %v4625, %v4631
        %v4638 = vmul.f32 %v4626, %v4631
        %v4639 = vmul.f32 %v4627, %v4631
        %v4640 = vadd.f32 %v4612, %v4632
        %v4641 = vadd.f32 %v4613, %v4633
        %v4642 = vadd.f32 %v4614, %v4634
        %v4643 = vadd.f32 %v4615, %v4635
        %v4644 = vadd.f32 %v4616, %v4636
        %v4645 = vadd.f32 %v4617, %v4637
        %v4646 = vadd.f32 %v4618, %v4638
        %v4647 = vadd.f32 %v4619, %v4639
        %v4648 = vld [vmem:[%s4591 + $0x2] sm:$0xff]
        %v4649 = vld [vmem:[%s4591 + $0x12] sm:$0xff]
        %v4650 = vld [vmem:[%s4591 + $0x22] sm:$0xff]
        %v4651 = vld [vmem:[%s4591 + $0x32] sm:$0xff]
        %v4652 = vld [vmem:[%s4591 + $0x42] sm:$0xff]
        %v4653 = vld [vmem:[%s4591 + $0x52] sm:$0xff]
        %v4654 = vld [vmem:[%s4591 + $0x62] sm:$0xff]
        %v4655 = vld [vmem:[%s4591 + $0x72] sm:$0xff]
        %v4656 = vlaneseq
        %v4657 = vshrl.u32 %v4656, 7
        %v4658 = vsub.s32 1, %v4657
        %v4659 = vrot.slane %v4389, %v4658
        %v4660 = vmul.f32 %v4648, %v4659
        %v4661 = vmul.f32 %v4649, %v4659
        %v4662 = vmul.f32 %v4650, %v4659
        %v4663 = vmul.f32 %v4651, %v4659
        %v4664 = vmul.f32 %v4652, %v4659
        %v4665 = vmul.f32 %v4653, %v4659
        %v4666 = vmul.f32 %v4654, %v4659
        %v4667 = vmul.f32 %v4655, %v4659
        %v4668 = vadd.f32 %v4640, %v4660
        %v4669 = vadd.f32 %v4641, %v4661
        %v4670 = vadd.f32 %v4642, %v4662
        %v4671 = vadd.f32 %v4643, %v4663
        %v4672 = vadd.f32 %v4644, %v4664
        %v4673 = vadd.f32 %v4645, %v4665
        %v4674 = vadd.f32 %v4646, %v4666
        %v4675 = vadd.f32 %v4647, %v4667
        %v4676 = vld [vmem:[%s4591 + $0x3] sm:$0xff]
        %v4677 = vld [vmem:[%s4591 + $0x13] sm:$0xff]
        %v4678 = vld [vmem:[%s4591 + $0x23] sm:$0xff]
        %v4679 = vld [vmem:[%s4591 + $0x33] sm:$0xff]
        %v4680 = vld [vmem:[%s4591 + $0x43] sm:$0xff]
        %v4681 = vld [vmem:[%s4591 + $0x53] sm:$0xff]
        %v4682 = vld [vmem:[%s4591 + $0x63] sm:$0xff]
        %v4683 = vld [vmem:[%s4591 + $0x73] sm:$0xff]
        %v4684 = vlaneseq
        %v4685 = vshrl.u32 %v4684, 7
        %v4686 = vsub.s32 2, %v4685
        %v4687 = vrot.slane %v4389, %v4686
        %v4688 = vmul.f32 %v4676, %v4687
        %v4689 = vmul.f32 %v4677, %v4687
        %v4690 = vmul.f32 %v4678, %v4687
        %v4691 = vmul.f32 %v4679, %v4687
        %v4692 = vmul.f32 %v4680, %v4687
        %v4693 = vmul.f32 %v4681, %v4687
        %v4694 = vmul.f32 %v4682, %v4687
        %v4695 = vmul.f32 %v4683, %v4687
        %v4696 = vadd.f32 %v4668, %v4688
        %v4697 = vadd.f32 %v4669, %v4689
        %v4698 = vadd.f32 %v4670, %v4690
        %v4699 = vadd.f32 %v4671, %v4691
        %v4700 = vadd.f32 %v4672, %v4692
        %v4701 = vadd.f32 %v4673, %v4693
        %v4702 = vadd.f32 %v4674, %v4694
        %v4703 = vadd.f32 %v4675, %v4695
        %v4704 = vld [vmem:[%s4591 + $0x4] sm:$0xff]
        %v4705 = vld [vmem:[%s4591 + $0x14] sm:$0xff]
        %v4706 = vld [vmem:[%s4591 + $0x24] sm:$0xff]
        %v4707 = vld [vmem:[%s4591 + $0x34] sm:$0xff]
        %v4708 = vld [vmem:[%s4591 + $0x44] sm:$0xff]
        %v4709 = vld [vmem:[%s4591 + $0x54] sm:$0xff]
        %v4710 = vld [vmem:[%s4591 + $0x64] sm:$0xff]
        %v4711 = vld [vmem:[%s4591 + $0x74] sm:$0xff]
        %v4712 = vlaneseq
        %v4713 = vshrl.u32 %v4712, 7
        %v4714 = vsub.s32 3, %v4713
        %v4715 = vrot.slane %v4389, %v4714
        %v4716 = vmul.f32 %v4704, %v4715
        %v4717 = vmul.f32 %v4705, %v4715
        %v4718 = vmul.f32 %v4706, %v4715
        %v4719 = vmul.f32 %v4707, %v4715
        %v4720 = vmul.f32 %v4708, %v4715
        %v4721 = vmul.f32 %v4709, %v4715
        %v4722 = vmul.f32 %v4710, %v4715
        %v4723 = vmul.f32 %v4711, %v4715
        %v4724 = vadd.f32 %v4696, %v4716
        %v4725 = vadd.f32 %v4697, %v4717
        %v4726 = vadd.f32 %v4698, %v4718
        %v4727 = vadd.f32 %v4699, %v4719
        %v4728 = vadd.f32 %v4700, %v4720
        %v4729 = vadd.f32 %v4701, %v4721
        %v4730 = vadd.f32 %v4702, %v4722
        %v4731 = vadd.f32 %v4703, %v4723
        %v4732 = vld [vmem:[%s4591 + $0x5] sm:$0xff]
        %v4733 = vld [vmem:[%s4591 + $0x15] sm:$0xff]
        %v4734 = vld [vmem:[%s4591 + $0x25] sm:$0xff]
        %v4735 = vld [vmem:[%s4591 + $0x35] sm:$0xff]
        %v4736 = vld [vmem:[%s4591 + $0x45] sm:$0xff]
        %v4737 = vld [vmem:[%s4591 + $0x55] sm:$0xff]
        %v4738 = vld [vmem:[%s4591 + $0x65] sm:$0xff]
        %v4739 = vld [vmem:[%s4591 + $0x75] sm:$0xff]
        %v4740 = vlaneseq
        %v4741 = vshrl.u32 %v4740, 7
        %v4742 = vsub.s32 4, %v4741
        %v4743 = vrot.slane %v4389, %v4742
        %v4744 = vmul.f32 %v4732, %v4743
        %v4745 = vmul.f32 %v4733, %v4743
        %v4746 = vmul.f32 %v4734, %v4743
        %v4747 = vmul.f32 %v4735, %v4743
        %v4748 = vmul.f32 %v4736, %v4743
        %v4749 = vmul.f32 %v4737, %v4743
        %v4750 = vmul.f32 %v4738, %v4743
        %v4751 = vmul.f32 %v4739, %v4743
        %v4752 = vadd.f32 %v4724, %v4744
        %v4753 = vadd.f32 %v4725, %v4745
        %v4754 = vadd.f32 %v4726, %v4746
        %v4755 = vadd.f32 %v4727, %v4747
        %v4756 = vadd.f32 %v4728, %v4748
        %v4757 = vadd.f32 %v4729, %v4749
        %v4758 = vadd.f32 %v4730, %v4750
        %v4759 = vadd.f32 %v4731, %v4751
        %v4760 = vld [vmem:[%s4591 + $0x6] sm:$0xff]
        %v4761 = vld [vmem:[%s4591 + $0x16] sm:$0xff]
        %v4762 = vld [vmem:[%s4591 + $0x26] sm:$0xff]
        %v4763 = vld [vmem:[%s4591 + $0x36] sm:$0xff]
        %v4764 = vld [vmem:[%s4591 + $0x46] sm:$0xff]
        %v4765 = vld [vmem:[%s4591 + $0x56] sm:$0xff]
        %v4766 = vld [vmem:[%s4591 + $0x66] sm:$0xff]
        %v4767 = vld [vmem:[%s4591 + $0x76] sm:$0xff]
        %v4768 = vlaneseq
        %v4769 = vshrl.u32 %v4768, 7
        %v4770 = vsub.s32 5, %v4769
        %v4771 = vrot.slane %v4389, %v4770
        %v4772 = vmul.f32 %v4760, %v4771
        %v4773 = vmul.f32 %v4761, %v4771
        %v4774 = vmul.f32 %v4762, %v4771
        %v4775 = vmul.f32 %v4763, %v4771
        %v4776 = vmul.f32 %v4764, %v4771
        %v4777 = vmul.f32 %v4765, %v4771
        %v4778 = vmul.f32 %v4766, %v4771
        %v4779 = vmul.f32 %v4767, %v4771
        %v4780 = vadd.f32 %v4752, %v4772
        %v4781 = vadd.f32 %v4753, %v4773
        %v4782 = vadd.f32 %v4754, %v4774
        %v4783 = vadd.f32 %v4755, %v4775
        %v4784 = vadd.f32 %v4756, %v4776
        %v4785 = vadd.f32 %v4757, %v4777
        %v4786 = vadd.f32 %v4758, %v4778
        %v4787 = vadd.f32 %v4759, %v4779
        %s4788 = scalar_lea.vmem [#allocation3], 32
        %v4789 = vld [vmem:[%s4788] sm:$0xff]
        %v4790 = vld [vmem:[%s4788 + $0x10] sm:$0xff]
        %v4791 = vld [vmem:[%s4788 + $0x20] sm:$0xff]
        %v4792 = vld [vmem:[%s4788 + $0x30] sm:$0xff]
        %v4793 = vld [vmem:[%s4788 + $0x40] sm:$0xff]
        %v4794 = vld [vmem:[%s4788 + $0x50] sm:$0xff]
        %v4795 = vld [vmem:[%s4788 + $0x60] sm:$0xff]
        %v4796 = vld [vmem:[%s4788 + $0x70] sm:$0xff]
        %v4797 = vlaneseq
        %v4798 = vshrl.u32 %v4797, 7
        %v4799 = vsub.s32 6, %v4798
        %v4800 = vrot.slane %v4389, %v4799
        %v4801 = vmul.f32 %v4789, %v4800
        %v4802 = vmul.f32 %v4790, %v4800
        %v4803 = vmul.f32 %v4791, %v4800
        %v4804 = vmul.f32 %v4792, %v4800
        %v4805 = vmul.f32 %v4793, %v4800
        %v4806 = vmul.f32 %v4794, %v4800
        %v4807 = vmul.f32 %v4795, %v4800
        %v4808 = vmul.f32 %v4796, %v4800
        %v4809 = vadd.f32 %v4780, %v4801
        %v4810 = vadd.f32 %v4781, %v4802
        %v4811 = vadd.f32 %v4782, %v4803
        %v4812 = vadd.f32 %v4783, %v4804
        %v4813 = vadd.f32 %v4784, %v4805
        %v4814 = vadd.f32 %v4785, %v4806
        %v4815 = vadd.f32 %v4786, %v4807
        %v4816 = vadd.f32 %v4787, %v4808
        %v4817 = vld [vmem:[%s4788 + $0x1] sm:$0xff]
        %v4818 = vld [vmem:[%s4788 + $0x11] sm:$0xff]
        %v4819 = vld [vmem:[%s4788 + $0x21] sm:$0xff]
        %v4820 = vld [vmem:[%s4788 + $0x31] sm:$0xff]
        %v4821 = vld [vmem:[%s4788 + $0x41] sm:$0xff]
        %v4822 = vld [vmem:[%s4788 + $0x51] sm:$0xff]
        %v4823 = vld [vmem:[%s4788 + $0x61] sm:$0xff]
        %v4824 = vld [vmem:[%s4788 + $0x71] sm:$0xff]
        %v4825 = vlaneseq
        %v4826 = vshrl.u32 %v4825, 7
        %v4827 = vsub.s32 7, %v4826
        %v4828 = vrot.slane %v4389, %v4827
        %v4829 = vmul.f32 %v4817, %v4828
        %v4830 = vmul.f32 %v4818, %v4828
        %v4831 = vmul.f32 %v4819, %v4828
        %v4832 = vmul.f32 %v4820, %v4828
        %v4833 = vmul.f32 %v4821, %v4828
        %v4834 = vmul.f32 %v4822, %v4828
        %v4835 = vmul.f32 %v4823, %v4828
        %v4836 = vmul.f32 %v4824, %v4828
        %v4837 = vadd.f32 %v4809, %v4829
        %v4838 = vadd.f32 %v4810, %v4830
        %v4839 = vadd.f32 %v4811, %v4831
        %v4840 = vadd.f32 %v4812, %v4832
        %v4841 = vadd.f32 %v4813, %v4833
        %v4842 = vadd.f32 %v4814, %v4834
        %v4843 = vadd.f32 %v4815, %v4835
        %v4844 = vadd.f32 %v4816, %v4836
        %v4845 = vld [vmem:[%s4788 + $0x2] sm:$0xff]
        %v4846 = vld [vmem:[%s4788 + $0x12] sm:$0xff]
        %v4847 = vld [vmem:[%s4788 + $0x22] sm:$0xff]
        %v4848 = vld [vmem:[%s4788 + $0x32] sm:$0xff]
        %v4849 = vld [vmem:[%s4788 + $0x42] sm:$0xff]
        %v4850 = vld [vmem:[%s4788 + $0x52] sm:$0xff]
        %v4851 = vld [vmem:[%s4788 + $0x62] sm:$0xff]
        %v4852 = vld [vmem:[%s4788 + $0x72] sm:$0xff]
        %v4853 = vlaneseq
        %v4854 = vshrl.u32 %v4853, 7
        %v4855 = vsub.s32 0, %v4854
        %v4856 = vrot.slane %v4390, %v4855
        %v4857 = vmul.f32 %v4845, %v4856
        %v4858 = vmul.f32 %v4846, %v4856
        %v4859 = vmul.f32 %v4847, %v4856
        %v4860 = vmul.f32 %v4848, %v4856
        %v4861 = vmul.f32 %v4849, %v4856
        %v4862 = vmul.f32 %v4850, %v4856
        %v4863 = vmul.f32 %v4851, %v4856
        %v4864 = vmul.f32 %v4852, %v4856
        %v4865 = vadd.f32 %v4837, %v4857
        %v4866 = vadd.f32 %v4838, %v4858
        %v4867 = vadd.f32 %v4839, %v4859
        %v4868 = vadd.f32 %v4840, %v4860
        %v4869 = vadd.f32 %v4841, %v4861
        %v4870 = vadd.f32 %v4842, %v4862
        %v4871 = vadd.f32 %v4843, %v4863
        %v4872 = vadd.f32 %v4844, %v4864
        %v4873 = vld [vmem:[%s4788 + $0x3] sm:$0xff]
        %v4874 = vld [vmem:[%s4788 + $0x13] sm:$0xff]
        %v4875 = vld [vmem:[%s4788 + $0x23] sm:$0xff]
        %v4876 = vld [vmem:[%s4788 + $0x33] sm:$0xff]
        %v4877 = vld [vmem:[%s4788 + $0x43] sm:$0xff]
        %v4878 = vld [vmem:[%s4788 + $0x53] sm:$0xff]
        %v4879 = vld [vmem:[%s4788 + $0x63] sm:$0xff]
        %v4880 = vld [vmem:[%s4788 + $0x73] sm:$0xff]
        %v4881 = vlaneseq
        %v4882 = vshrl.u32 %v4881, 7
        %v4883 = vsub.s32 1, %v4882
        %v4884 = vrot.slane %v4390, %v4883
        %v4885 = vmul.f32 %v4873, %v4884
        %v4886 = vmul.f32 %v4874, %v4884
        %v4887 = vmul.f32 %v4875, %v4884
        %v4888 = vmul.f32 %v4876, %v4884
        %v4889 = vmul.f32 %v4877, %v4884
        %v4890 = vmul.f32 %v4878, %v4884
        %v4891 = vmul.f32 %v4879, %v4884
        %v4892 = vmul.f32 %v4880, %v4884
        %v4893 = vadd.f32 %v4865, %v4885
        %v4894 = vadd.f32 %v4866, %v4886
        %v4895 = vadd.f32 %v4867, %v4887
        %v4896 = vadd.f32 %v4868, %v4888
        %v4897 = vadd.f32 %v4869, %v4889
        %v4898 = vadd.f32 %v4870, %v4890
        %v4899 = vadd.f32 %v4871, %v4891
        %v4900 = vadd.f32 %v4872, %v4892
        %v4901 = vld [vmem:[%s4788 + $0x4] sm:$0xff]
        %v4902 = vld [vmem:[%s4788 + $0x14] sm:$0xff]
        %v4903 = vld [vmem:[%s4788 + $0x24] sm:$0xff]
        %v4904 = vld [vmem:[%s4788 + $0x34] sm:$0xff]
        %v4905 = vld [vmem:[%s4788 + $0x44] sm:$0xff]
        %v4906 = vld [vmem:[%s4788 + $0x54] sm:$0xff]
        %v4907 = vld [vmem:[%s4788 + $0x64] sm:$0xff]
        %v4908 = vld [vmem:[%s4788 + $0x74] sm:$0xff]
        %v4909 = vlaneseq
        %v4910 = vshrl.u32 %v4909, 7
        %v4911 = vsub.s32 2, %v4910
        %v4912 = vrot.slane %v4390, %v4911
        %v4913 = vmul.f32 %v4901, %v4912
        %v4914 = vmul.f32 %v4902, %v4912
        %v4915 = vmul.f32 %v4903, %v4912
        %v4916 = vmul.f32 %v4904, %v4912
        %v4917 = vmul.f32 %v4905, %v4912
        %v4918 = vmul.f32 %v4906, %v4912
        %v4919 = vmul.f32 %v4907, %v4912
        %v4920 = vmul.f32 %v4908, %v4912
        %v4921 = vadd.f32 %v4893, %v4913
        %v4922 = vadd.f32 %v4894, %v4914
        %v4923 = vadd.f32 %v4895, %v4915
        %v4924 = vadd.f32 %v4896, %v4916
        %v4925 = vadd.f32 %v4897, %v4917
        %v4926 = vadd.f32 %v4898, %v4918
        %v4927 = vadd.f32 %v4899, %v4919
        %v4928 = vadd.f32 %v4900, %v4920
        %v4929 = vld [vmem:[%s4788 + $0x5] sm:$0xff]
        %v4930 = vld [vmem:[%s4788 + $0x15] sm:$0xff]
        %v4931 = vld [vmem:[%s4788 + $0x25] sm:$0xff]
        %v4932 = vld [vmem:[%s4788 + $0x35] sm:$0xff]
        %v4933 = vld [vmem:[%s4788 + $0x45] sm:$0xff]
        %v4934 = vld [vmem:[%s4788 + $0x55] sm:$0xff]
        %v4935 = vld [vmem:[%s4788 + $0x65] sm:$0xff]
        %v4936 = vld [vmem:[%s4788 + $0x75] sm:$0xff]
        %v4937 = vlaneseq
        %v4938 = vshrl.u32 %v4937, 7
        %v4939 = vsub.s32 3, %v4938
        %v4940 = vrot.slane %v4390, %v4939
        %v4941 = vmul.f32 %v4929, %v4940
        %v4942 = vmul.f32 %v4930, %v4940
        %v4943 = vmul.f32 %v4931, %v4940
        %v4944 = vmul.f32 %v4932, %v4940
        %v4945 = vmul.f32 %v4933, %v4940
        %v4946 = vmul.f32 %v4934, %v4940
        %v4947 = vmul.f32 %v4935, %v4940
        %v4948 = vmul.f32 %v4936, %v4940
        %v4949 = vadd.f32 %v4921, %v4941
        %v4950 = vadd.f32 %v4922, %v4942
        %v4951 = vadd.f32 %v4923, %v4943
        %v4952 = vadd.f32 %v4924, %v4944
        %v4953 = vadd.f32 %v4925, %v4945
        %v4954 = vadd.f32 %v4926, %v4946
        %v4955 = vadd.f32 %v4927, %v4947
        %v4956 = vadd.f32 %v4928, %v4948
        %v4957 = vld [vmem:[%s4788 + $0x6] sm:$0xff]
        %v4958 = vld [vmem:[%s4788 + $0x16] sm:$0xff]
        %v4959 = vld [vmem:[%s4788 + $0x26] sm:$0xff]
        %v4960 = vld [vmem:[%s4788 + $0x36] sm:$0xff]
        %v4961 = vld [vmem:[%s4788 + $0x46] sm:$0xff]
        %v4962 = vld [vmem:[%s4788 + $0x56] sm:$0xff]
        %v4963 = vld [vmem:[%s4788 + $0x66] sm:$0xff]
        %v4964 = vld [vmem:[%s4788 + $0x76] sm:$0xff]
        %v4965 = vlaneseq
        %v4966 = vshrl.u32 %v4965, 7
        %v4967 = vsub.s32 4, %v4966
        %v4968 = vrot.slane %v4390, %v4967
        %v4969 = vmul.f32 %v4957, %v4968
        %v4970 = vmul.f32 %v4958, %v4968
        %v4971 = vmul.f32 %v4959, %v4968
        %v4972 = vmul.f32 %v4960, %v4968
        %v4973 = vmul.f32 %v4961, %v4968
        %v4974 = vmul.f32 %v4962, %v4968
        %v4975 = vmul.f32 %v4963, %v4968
        %v4976 = vmul.f32 %v4964, %v4968
        %v4977 = vadd.f32 %v4949, %v4969
        %v4978 = vadd.f32 %v4950, %v4970
        %v4979 = vadd.f32 %v4951, %v4971
        %v4980 = vadd.f32 %v4952, %v4972
        %v4981 = vadd.f32 %v4953, %v4973
        %v4982 = vadd.f32 %v4954, %v4974
        %v4983 = vadd.f32 %v4955, %v4975
        %v4984 = vadd.f32 %v4956, %v4976
        %v4985 = vld [vmem:[%s4371] sm:$0xff]
        %v4986 = vld [vmem:[%s4371 + $0x10] sm:$0xff]
        %v4987 = vld [vmem:[%s4371 + $0x20] sm:$0xff]
        %v4988 = vld [vmem:[%s4371 + $0x30] sm:$0xff]
        %v4989 = vld [vmem:[%s4371 + $0x40] sm:$0xff]
        %v4990 = vld [vmem:[%s4371 + $0x50] sm:$0xff]
        %v4991 = vld [vmem:[%s4371 + $0x60] sm:$0xff]
        %v4992 = vld [vmem:[%s4371 + $0x70] sm:$0xff]
        %v4993 = vlaneseq
        %v4994 = vshrl.u32 %v4993, 7
        %v4995 = vsub.s32 5, %v4994
        %v4996 = vrot.slane %v4390, %v4995
        %v4997 = vmul.f32 %v4985, %v4996
        %v4998 = vmul.f32 %v4986, %v4996
        %v4999 = vmul.f32 %v4987, %v4996
        %v5000 = vmul.f32 %v4988, %v4996
        %v5001 = vmul.f32 %v4989, %v4996
        %v5002 = vmul.f32 %v4990, %v4996
        %v5003 = vmul.f32 %v4991, %v4996
        %v5004 = vmul.f32 %v4992, %v4996
        %v5005 = vadd.f32 %v4977, %v4997
        %v5006 = vadd.f32 %v4978, %v4998
        %v5007 = vadd.f32 %v4979, %v4999
        %v5008 = vadd.f32 %v4980, %v5000
        %v5009 = vadd.f32 %v4981, %v5001
        %v5010 = vadd.f32 %v4982, %v5002
        %v5011 = vadd.f32 %v4983, %v5003
        %v5012 = vadd.f32 %v4984, %v5004
        %v5013 = vld [vmem:[%s4371 + $0x1] sm:$0xff]
        %v5014 = vld [vmem:[%s4371 + $0x11] sm:$0xff]
        %v5015 = vld [vmem:[%s4371 + $0x21] sm:$0xff]
        %v5016 = vld [vmem:[%s4371 + $0x31] sm:$0xff]
        %v5017 = vld [vmem:[%s4371 + $0x41] sm:$0xff]
        %v5018 = vld [vmem:[%s4371 + $0x51] sm:$0xff]
        %v5019 = vld [vmem:[%s4371 + $0x61] sm:$0xff]
        %v5020 = vld [vmem:[%s4371 + $0x71] sm:$0xff]
        %v5021 = vlaneseq
        %v5022 = vshrl.u32 %v5021, 7
        %v5023 = vsub.s32 6, %v5022
        %v5024 = vrot.slane %v4390, %v5023
        %v5025 = vmul.f32 %v5013, %v5024
        %v5026 = vmul.f32 %v5014, %v5024
        %v5027 = vmul.f32 %v5015, %v5024
        %v5028 = vmul.f32 %v5016, %v5024
        %v5029 = vmul.f32 %v5017, %v5024
        %v5030 = vmul.f32 %v5018, %v5024
        %v5031 = vmul.f32 %v5019, %v5024
        %v5032 = vmul.f32 %v5020, %v5024
        %v5033 = vadd.f32 %v5005, %v5025
        %v5034 = vadd.f32 %v5006, %v5026
        %v5035 = vadd.f32 %v5007, %v5027
        %v5036 = vadd.f32 %v5008, %v5028
        %v5037 = vadd.f32 %v5009, %v5029
        %v5038 = vadd.f32 %v5010, %v5030
        %v5039 = vadd.f32 %v5011, %v5031
        %v5040 = vadd.f32 %v5012, %v5032
        %v5041 = vld [vmem:[%s4371 + $0x2] sm:$0xff]
        %v5042 = vld [vmem:[%s4371 + $0x12] sm:$0xff]
        %v5043 = vld [vmem:[%s4371 + $0x22] sm:$0xff]
        %v5044 = vld [vmem:[%s4371 + $0x32] sm:$0xff]
        %v5045 = vld [vmem:[%s4371 + $0x42] sm:$0xff]
        %v5046 = vld [vmem:[%s4371 + $0x52] sm:$0xff]
        %v5047 = vld [vmem:[%s4371 + $0x62] sm:$0xff]
        %v5048 = vld [vmem:[%s4371 + $0x72] sm:$0xff]
        %v5049 = vlaneseq
        %v5050 = vshrl.u32 %v5049, 7
        %v5051 = vsub.s32 7, %v5050
        %v5052 = vrot.slane %v4390, %v5051
        %v5053 = vmul.f32 %v5041, %v5052
        %v5054 = vmul.f32 %v5042, %v5052
        %v5055 = vmul.f32 %v5043, %v5052
        %v5056 = vmul.f32 %v5044, %v5052
        %v5057 = vmul.f32 %v5045, %v5052
        %v5058 = vmul.f32 %v5046, %v5052
        %v5059 = vmul.f32 %v5047, %v5052
        %v5060 = vmul.f32 %v5048, %v5052
        %v5061 = vadd.f32 %v5033, %v5053
        %v5062 = vadd.f32 %v5034, %v5054
        %v5063 = vadd.f32 %v5035, %v5055
        %v5064 = vadd.f32 %v5036, %v5056
        %v5065 = vadd.f32 %v5037, %v5057
        %v5066 = vadd.f32 %v5038, %v5058
        %v5067 = vadd.f32 %v5039, %v5059
        %v5068 = vadd.f32 %v5040, %v5060
        %v5069 = vld [vmem:[%s4371 + $0x3] sm:$0xff]
        %v5070 = vld [vmem:[%s4371 + $0x13] sm:$0xff]
        %v5071 = vld [vmem:[%s4371 + $0x23] sm:$0xff]
        %v5072 = vld [vmem:[%s4371 + $0x33] sm:$0xff]
        %v5073 = vld [vmem:[%s4371 + $0x43] sm:$0xff]
        %v5074 = vld [vmem:[%s4371 + $0x53] sm:$0xff]
        %v5075 = vld [vmem:[%s4371 + $0x63] sm:$0xff]
        %v5076 = vld [vmem:[%s4371 + $0x73] sm:$0xff]
        %v5077 = vlaneseq
        %v5078 = vshrl.u32 %v5077, 7
        %v5079 = vsub.s32 0, %v5078
        %v5080 = vrot.slane %v4391, %v5079
        %v5081 = vmul.f32 %v5069, %v5080
        %v5082 = vmul.f32 %v5070, %v5080
        %v5083 = vmul.f32 %v5071, %v5080
        %v5084 = vmul.f32 %v5072, %v5080
        %v5085 = vmul.f32 %v5073, %v5080
        %v5086 = vmul.f32 %v5074, %v5080
        %v5087 = vmul.f32 %v5075, %v5080
        %v5088 = vmul.f32 %v5076, %v5080
        %v5089 = vadd.f32 %v5061, %v5081
        %v5090 = vadd.f32 %v5062, %v5082
        %v5091 = vadd.f32 %v5063, %v5083
        %v5092 = vadd.f32 %v5064, %v5084
        %v5093 = vadd.f32 %v5065, %v5085
        %v5094 = vadd.f32 %v5066, %v5086
        %v5095 = vadd.f32 %v5067, %v5087
        %v5096 = vadd.f32 %v5068, %v5088
        %v5097 = vld [vmem:[%s4371 + $0x4] sm:$0xff]
        %v5098 = vld [vmem:[%s4371 + $0x14] sm:$0xff]
        %v5099 = vld [vmem:[%s4371 + $0x24] sm:$0xff]
        %v5100 = vld [vmem:[%s4371 + $0x34] sm:$0xff]
        %v5101 = vld [vmem:[%s4371 + $0x44] sm:$0xff]
        %v5102 = vld [vmem:[%s4371 + $0x54] sm:$0xff]
        %v5103 = vld [vmem:[%s4371 + $0x64] sm:$0xff]
        %v5104 = vld [vmem:[%s4371 + $0x74] sm:$0xff]
        %v5105 = vlaneseq
        %v5106 = vshrl.u32 %v5105, 7
        %v5107 = vsub.s32 1, %v5106
        %v5108 = vrot.slane %v4391, %v5107
        %v5109 = vmul.f32 %v5097, %v5108
        %v5110 = vmul.f32 %v5098, %v5108
        %v5111 = vmul.f32 %v5099, %v5108
        %v5112 = vmul.f32 %v5100, %v5108
        %v5113 = vmul.f32 %v5101, %v5108
        %v5114 = vmul.f32 %v5102, %v5108
        %v5115 = vmul.f32 %v5103, %v5108
        %v5116 = vmul.f32 %v5104, %v5108
        %v5117 = vadd.f32 %v5089, %v5109
        %v5118 = vadd.f32 %v5090, %v5110
        %v5119 = vadd.f32 %v5091, %v5111
        %v5120 = vadd.f32 %v5092, %v5112
        %v5121 = vadd.f32 %v5093, %v5113
        %v5122 = vadd.f32 %v5094, %v5114
        %v5123 = vadd.f32 %v5095, %v5115
        %v5124 = vadd.f32 %v5096, %v5116
        %v5125 = vld [vmem:[%s4371 + $0x5] sm:$0xff]
        %v5126 = vld [vmem:[%s4371 + $0x15] sm:$0xff]
        %v5127 = vld [vmem:[%s4371 + $0x25] sm:$0xff]
        %v5128 = vld [vmem:[%s4371 + $0x35] sm:$0xff]
        %v5129 = vld [vmem:[%s4371 + $0x45] sm:$0xff]
        %v5130 = vld [vmem:[%s4371 + $0x55] sm:$0xff]
        %v5131 = vld [vmem:[%s4371 + $0x65] sm:$0xff]
        %v5132 = vld [vmem:[%s4371 + $0x75] sm:$0xff]
        %v5133 = vlaneseq
        %v5134 = vshrl.u32 %v5133, 7
        %v5135 = vsub.s32 2, %v5134
        %v5136 = vrot.slane %v4391, %v5135
        %v5137 = vmul.f32 %v5125, %v5136
        %v5138 = vmul.f32 %v5126, %v5136
        %v5139 = vmul.f32 %v5127, %v5136
        %v5140 = vmul.f32 %v5128, %v5136
        %v5141 = vmul.f32 %v5129, %v5136
        %v5142 = vmul.f32 %v5130, %v5136
        %v5143 = vmul.f32 %v5131, %v5136
        %v5144 = vmul.f32 %v5132, %v5136
        %v5145 = vadd.f32 %v5117, %v5137
        %v5146 = vadd.f32 %v5118, %v5138
        %v5147 = vadd.f32 %v5119, %v5139
        %v5148 = vadd.f32 %v5120, %v5140
        %v5149 = vadd.f32 %v5121, %v5141
        %v5150 = vadd.f32 %v5122, %v5142
        %v5151 = vadd.f32 %v5123, %v5143
        %v5152 = vadd.f32 %v5124, %v5144
        %v5153 = vld [vmem:[%s4371 + $0x6] sm:$0xff]
        %v5154 = vld [vmem:[%s4371 + $0x16] sm:$0xff]
        %v5155 = vld [vmem:[%s4371 + $0x26] sm:$0xff]
        %v5156 = vld [vmem:[%s4371 + $0x36] sm:$0xff]
        %v5157 = vld [vmem:[%s4371 + $0x46] sm:$0xff]
        %v5158 = vld [vmem:[%s4371 + $0x56] sm:$0xff]
        %v5159 = vld [vmem:[%s4371 + $0x66] sm:$0xff]
        %v5160 = vld [vmem:[%s4371 + $0x76] sm:$0xff]
        %v5161 = vlaneseq
        %v5162 = vshrl.u32 %v5161, 7
        %v5163 = vsub.s32 3, %v5162
        %v5164 = vrot.slane %v4391, %v5163
        %v5165 = vmul.f32 %v5153, %v5164
        %v5166 = vmul.f32 %v5154, %v5164
        %v5167 = vmul.f32 %v5155, %v5164
        %v5168 = vmul.f32 %v5156, %v5164
        %v5169 = vmul.f32 %v5157, %v5164
        %v5170 = vmul.f32 %v5158, %v5164
        %v5171 = vmul.f32 %v5159, %v5164
        %v5172 = vmul.f32 %v5160, %v5164
        %v5173 = vadd.f32 %v5145, %v5165
        %v5174 = vadd.f32 %v5146, %v5166
        %v5175 = vadd.f32 %v5147, %v5167
        %v5176 = vadd.f32 %v5148, %v5168
        %v5177 = vadd.f32 %v5149, %v5169
        %v5178 = vadd.f32 %v5150, %v5170
        %v5179 = vadd.f32 %v5151, %v5171
        %v5180 = vadd.f32 %v5152, %v5172
        %s5181 = scalar_lea.vmem [#allocation3], 64
        %v5182 = vld [vmem:[%s5181] sm:$0xff]
        %v5183 = vld [vmem:[%s5181 + $0x10] sm:$0xff]
        %v5184 = vld [vmem:[%s5181 + $0x20] sm:$0xff]
        %v5185 = vld [vmem:[%s5181 + $0x30] sm:$0xff]
        %v5186 = vld [vmem:[%s5181 + $0x40] sm:$0xff]
        %v5187 = vld [vmem:[%s5181 + $0x50] sm:$0xff]
        %v5188 = vld [vmem:[%s5181 + $0x60] sm:$0xff]
        %v5189 = vld [vmem:[%s5181 + $0x70] sm:$0xff]
        %v5190 = vlaneseq
        %v5191 = vshrl.u32 %v5190, 7
        %v5192 = vsub.s32 4, %v5191
        %v5193 = vrot.slane %v4391, %v5192
        %v5194 = vmul.f32 %v5182, %v5193
        %v5195 = vmul.f32 %v5183, %v5193
        %v5196 = vmul.f32 %v5184, %v5193
        %v5197 = vmul.f32 %v5185, %v5193
        %v5198 = vmul.f32 %v5186, %v5193
        %v5199 = vmul.f32 %v5187, %v5193
        %v5200 = vmul.f32 %v5188, %v5193
        %v5201 = vmul.f32 %v5189, %v5193
        %v5202 = vadd.f32 %v5173, %v5194
        %v5203 = vadd.f32 %v5174, %v5195
        %v5204 = vadd.f32 %v5175, %v5196
        %v5205 = vadd.f32 %v5176, %v5197
        %v5206 = vadd.f32 %v5177, %v5198
        %v5207 = vadd.f32 %v5178, %v5199
        %v5208 = vadd.f32 %v5179, %v5200
        %v5209 = vadd.f32 %v5180, %v5201
        %v5210 = vld [vmem:[%s5181 + $0x1] sm:$0xff]
        %v5211 = vld [vmem:[%s5181 + $0x11] sm:$0xff]
        %v5212 = vld [vmem:[%s5181 + $0x21] sm:$0xff]
        %v5213 = vld [vmem:[%s5181 + $0x31] sm:$0xff]
        %v5214 = vld [vmem:[%s5181 + $0x41] sm:$0xff]
        %v5215 = vld [vmem:[%s5181 + $0x51] sm:$0xff]
        %v5216 = vld [vmem:[%s5181 + $0x61] sm:$0xff]
        %v5217 = vld [vmem:[%s5181 + $0x71] sm:$0xff]
        %v5218 = vlaneseq
        %v5219 = vshrl.u32 %v5218, 7
        %v5220 = vsub.s32 5, %v5219
        %v5221 = vrot.slane %v4391, %v5220
        %v5222 = vmul.f32 %v5210, %v5221
        %v5223 = vmul.f32 %v5211, %v5221
        %v5224 = vmul.f32 %v5212, %v5221
        %v5225 = vmul.f32 %v5213, %v5221
        %v5226 = vmul.f32 %v5214, %v5221
        %v5227 = vmul.f32 %v5215, %v5221
        %v5228 = vmul.f32 %v5216, %v5221
        %v5229 = vmul.f32 %v5217, %v5221
        %v5230 = vadd.f32 %v5202, %v5222
        %v5231 = vadd.f32 %v5203, %v5223
        %v5232 = vadd.f32 %v5204, %v5224
        %v5233 = vadd.f32 %v5205, %v5225
        %v5234 = vadd.f32 %v5206, %v5226
        %v5235 = vadd.f32 %v5207, %v5227
        %v5236 = vadd.f32 %v5208, %v5228
        %v5237 = vadd.f32 %v5209, %v5229
        %v5238 = vld [vmem:[%s5181 + $0x2] sm:$0xff]
        %v5239 = vld [vmem:[%s5181 + $0x12] sm:$0xff]
        %v5240 = vld [vmem:[%s5181 + $0x22] sm:$0xff]
        %v5241 = vld [vmem:[%s5181 + $0x32] sm:$0xff]
        %v5242 = vld [vmem:[%s5181 + $0x42] sm:$0xff]
        %v5243 = vld [vmem:[%s5181 + $0x52] sm:$0xff]
        %v5244 = vld [vmem:[%s5181 + $0x62] sm:$0xff]
        %v5245 = vld [vmem:[%s5181 + $0x72] sm:$0xff]
        %v5246 = vlaneseq
        %v5247 = vshrl.u32 %v5246, 7
        %v5248 = vsub.s32 6, %v5247
        %v5249 = vrot.slane %v4391, %v5248
        %v5250 = vmul.f32 %v5238, %v5249
        %v5251 = vmul.f32 %v5239, %v5249
        %v5252 = vmul.f32 %v5240, %v5249
        %v5253 = vmul.f32 %v5241, %v5249
        %v5254 = vmul.f32 %v5242, %v5249
        %v5255 = vmul.f32 %v5243, %v5249
        %v5256 = vmul.f32 %v5244, %v5249
        %v5257 = vmul.f32 %v5245, %v5249
        %v5258 = vadd.f32 %v5230, %v5250
        %v5259 = vadd.f32 %v5231, %v5251
        %v5260 = vadd.f32 %v5232, %v5252
        %v5261 = vadd.f32 %v5233, %v5253
        %v5262 = vadd.f32 %v5234, %v5254
        %v5263 = vadd.f32 %v5235, %v5255
        %v5264 = vadd.f32 %v5236, %v5256
        %v5265 = vadd.f32 %v5237, %v5257
        %v5266 = vld [vmem:[%s5181 + $0x3] sm:$0xff]
        %v5267 = vld [vmem:[%s5181 + $0x13] sm:$0xff]
        %v5268 = vld [vmem:[%s5181 + $0x23] sm:$0xff]
        %v5269 = vld [vmem:[%s5181 + $0x33] sm:$0xff]
        %v5270 = vld [vmem:[%s5181 + $0x43] sm:$0xff]
        %v5271 = vld [vmem:[%s5181 + $0x53] sm:$0xff]
        %v5272 = vld [vmem:[%s5181 + $0x63] sm:$0xff]
        %v5273 = vld [vmem:[%s5181 + $0x73] sm:$0xff]
        %v5274 = vlaneseq
        %v5275 = vshrl.u32 %v5274, 7
        %v5276 = vsub.s32 7, %v5275
        %v5277 = vrot.slane %v4391, %v5276
        %v5278 = vmul.f32 %v5266, %v5277
        %v5279 = vmul.f32 %v5267, %v5277
        %v5280 = vmul.f32 %v5268, %v5277
        %v5281 = vmul.f32 %v5269, %v5277
        %v5282 = vmul.f32 %v5270, %v5277
        %v5283 = vmul.f32 %v5271, %v5277
        %v5284 = vmul.f32 %v5272, %v5277
        %v5285 = vmul.f32 %v5273, %v5277
        %v5286 = vadd.f32 %v5258, %v5278
        %v5287 = vadd.f32 %v5259, %v5279
        %v5288 = vadd.f32 %v5260, %v5280
        %v5289 = vadd.f32 %v5261, %v5281
        %v5290 = vadd.f32 %v5262, %v5282
        %v5291 = vadd.f32 %v5263, %v5283
        %v5292 = vadd.f32 %v5264, %v5284
        %v5293 = vadd.f32 %v5265, %v5285
        %v5294 = vld [vmem:[%s5181 + $0x4] sm:$0xff]
        %v5295 = vld [vmem:[%s5181 + $0x14] sm:$0xff]
        %v5296 = vld [vmem:[%s5181 + $0x24] sm:$0xff]
        %v5297 = vld [vmem:[%s5181 + $0x34] sm:$0xff]
        %v5298 = vld [vmem:[%s5181 + $0x44] sm:$0xff]
        %v5299 = vld [vmem:[%s5181 + $0x54] sm:$0xff]
        %v5300 = vld [vmem:[%s5181 + $0x64] sm:$0xff]
        %v5301 = vld [vmem:[%s5181 + $0x74] sm:$0xff]
        %v5302 = vlaneseq
        %v5303 = vshrl.u32 %v5302, 7
        %v5304 = vsub.s32 0, %v5303
        %v5305 = vrot.slane %v4392, %v5304
        %v5306 = vmul.f32 %v5294, %v5305
        %v5307 = vmul.f32 %v5295, %v5305
        %v5308 = vmul.f32 %v5296, %v5305
        %v5309 = vmul.f32 %v5297, %v5305
        %v5310 = vmul.f32 %v5298, %v5305
        %v5311 = vmul.f32 %v5299, %v5305
        %v5312 = vmul.f32 %v5300, %v5305
        %v5313 = vmul.f32 %v5301, %v5305
        %v5314 = vadd.f32 %v5286, %v5306
        %v5315 = vadd.f32 %v5287, %v5307
        %v5316 = vadd.f32 %v5288, %v5308
        %v5317 = vadd.f32 %v5289, %v5309
        %v5318 = vadd.f32 %v5290, %v5310
        %v5319 = vadd.f32 %v5291, %v5311
        %v5320 = vadd.f32 %v5292, %v5312
        %v5321 = vadd.f32 %v5293, %v5313
        %v5322 = vld [vmem:[%s5181 + $0x5] sm:$0xff]
        %v5323 = vld [vmem:[%s5181 + $0x15] sm:$0xff]
        %v5324 = vld [vmem:[%s5181 + $0x25] sm:$0xff]
        %v5325 = vld [vmem:[%s5181 + $0x35] sm:$0xff]
        %v5326 = vld [vmem:[%s5181 + $0x45] sm:$0xff]
        %v5327 = vld [vmem:[%s5181 + $0x55] sm:$0xff]
        %v5328 = vld [vmem:[%s5181 + $0x65] sm:$0xff]
        %v5329 = vld [vmem:[%s5181 + $0x75] sm:$0xff]
        %v5330 = vlaneseq
        %v5331 = vshrl.u32 %v5330, 7
        %v5332 = vsub.s32 1, %v5331
        %v5333 = vrot.slane %v4392, %v5332
        %v5334 = vmul.f32 %v5322, %v5333
        %v5335 = vmul.f32 %v5323, %v5333
        %v5336 = vmul.f32 %v5324, %v5333
        %v5337 = vmul.f32 %v5325, %v5333
        %v5338 = vmul.f32 %v5326, %v5333
        %v5339 = vmul.f32 %v5327, %v5333
        %v5340 = vmul.f32 %v5328, %v5333
        %v5341 = vmul.f32 %v5329, %v5333
        %v5342 = vadd.f32 %v5314, %v5334
        %v5343 = vadd.f32 %v5315, %v5335
        %v5344 = vadd.f32 %v5316, %v5336
        %v5345 = vadd.f32 %v5317, %v5337
        %v5346 = vadd.f32 %v5318, %v5338
        %v5347 = vadd.f32 %v5319, %v5339
        %v5348 = vadd.f32 %v5320, %v5340
        %v5349 = vadd.f32 %v5321, %v5341
        %v5350 = vld [vmem:[%s5181 + $0x6] sm:$0xff]
        %v5351 = vld [vmem:[%s5181 + $0x16] sm:$0xff]
        %v5352 = vld [vmem:[%s5181 + $0x26] sm:$0xff]
        %v5353 = vld [vmem:[%s5181 + $0x36] sm:$0xff]
        %v5354 = vld [vmem:[%s5181 + $0x46] sm:$0xff]
        %v5355 = vld [vmem:[%s5181 + $0x56] sm:$0xff]
        %v5356 = vld [vmem:[%s5181 + $0x66] sm:$0xff]
        %v5357 = vld [vmem:[%s5181 + $0x76] sm:$0xff]
        %v5358 = vlaneseq
        %v5359 = vshrl.u32 %v5358, 7
        %v5360 = vsub.s32 2, %v5359
        %v5361 = vrot.slane %v4392, %v5360
        %v5362 = vmul.f32 %v5350, %v5361
        %v5363 = vmul.f32 %v5351, %v5361
        %v5364 = vmul.f32 %v5352, %v5361
        %v5365 = vmul.f32 %v5353, %v5361
        %v5366 = vmul.f32 %v5354, %v5361
        %v5367 = vmul.f32 %v5355, %v5361
        %v5368 = vmul.f32 %v5356, %v5361
        %v5369 = vmul.f32 %v5357, %v5361
        %v5370 = vadd.f32 %v5342, %v5362
        %v5371 = vadd.f32 %v5343, %v5363
        %v5372 = vadd.f32 %v5344, %v5364
        %v5373 = vadd.f32 %v5345, %v5365
        %v5374 = vadd.f32 %v5346, %v5366
        %v5375 = vadd.f32 %v5347, %v5367
        %v5376 = vadd.f32 %v5348, %v5368
        %v5377 = vadd.f32 %v5349, %v5369
        %s5378 = scalar_lea.vmem [#allocation3], 80
        %v5379 = vld [vmem:[%s5378] sm:$0xff]
        %v5380 = vld [vmem:[%s5378 + $0x10] sm:$0xff]
        %v5381 = vld [vmem:[%s5378 + $0x20] sm:$0xff]
        %v5382 = vld [vmem:[%s5378 + $0x30] sm:$0xff]
        %v5383 = vld [vmem:[%s5378 + $0x40] sm:$0xff]
        %v5384 = vld [vmem:[%s5378 + $0x50] sm:$0xff]
        %v5385 = vld [vmem:[%s5378 + $0x60] sm:$0xff]
        %v5386 = vld [vmem:[%s5378 + $0x70] sm:$0xff]
        %v5387 = vlaneseq
        %v5388 = vshrl.u32 %v5387, 7
        %v5389 = vsub.s32 3, %v5388
        %v5390 = vrot.slane %v4392, %v5389
        %v5391 = vmul.f32 %v5379, %v5390
        %v5392 = vmul.f32 %v5380, %v5390
        %v5393 = vmul.f32 %v5381, %v5390
        %v5394 = vmul.f32 %v5382, %v5390
        %v5395 = vmul.f32 %v5383, %v5390
        %v5396 = vmul.f32 %v5384, %v5390
        %v5397 = vmul.f32 %v5385, %v5390
        %v5398 = vmul.f32 %v5386, %v5390
        %v5399 = vadd.f32 %v5370, %v5391
        %v5400 = vadd.f32 %v5371, %v5392
        %v5401 = vadd.f32 %v5372, %v5393
        %v5402 = vadd.f32 %v5373, %v5394
        %v5403 = vadd.f32 %v5374, %v5395
        %v5404 = vadd.f32 %v5375, %v5396
        %v5405 = vadd.f32 %v5376, %v5397
        %v5406 = vadd.f32 %v5377, %v5398
        %v5407 = vld [vmem:[%s5378 + $0x1] sm:$0xff]
        %v5408 = vld [vmem:[%s5378 + $0x11] sm:$0xff]
        %v5409 = vld [vmem:[%s5378 + $0x21] sm:$0xff]
        %v5410 = vld [vmem:[%s5378 + $0x31] sm:$0xff]
        %v5411 = vld [vmem:[%s5378 + $0x41] sm:$0xff]
        %v5412 = vld [vmem:[%s5378 + $0x51] sm:$0xff]
        %v5413 = vld [vmem:[%s5378 + $0x61] sm:$0xff]
        %v5414 = vld [vmem:[%s5378 + $0x71] sm:$0xff]
        %v5415 = vlaneseq
        %v5416 = vshrl.u32 %v5415, 7
        %v5417 = vsub.s32 4, %v5416
        %v5418 = vrot.slane %v4392, %v5417
        %v5419 = vmul.f32 %v5407, %v5418
        %v5420 = vmul.f32 %v5408, %v5418
        %v5421 = vmul.f32 %v5409, %v5418
        %v5422 = vmul.f32 %v5410, %v5418
        %v5423 = vmul.f32 %v5411, %v5418
        %v5424 = vmul.f32 %v5412, %v5418
        %v5425 = vmul.f32 %v5413, %v5418
        %v5426 = vmul.f32 %v5414, %v5418
        %v5427 = vadd.f32 %v5399, %v5419
        %v5428 = vadd.f32 %v5400, %v5420
        %v5429 = vadd.f32 %v5401, %v5421
        %v5430 = vadd.f32 %v5402, %v5422
        %v5431 = vadd.f32 %v5403, %v5423
        %v5432 = vadd.f32 %v5404, %v5424
        %v5433 = vadd.f32 %v5405, %v5425
        %v5434 = vadd.f32 %v5406, %v5426
        %v5435 = vld [vmem:[%s5378 + $0x2] sm:$0xff]
        %v5436 = vld [vmem:[%s5378 + $0x12] sm:$0xff]
        %v5437 = vld [vmem:[%s5378 + $0x22] sm:$0xff]
        %v5438 = vld [vmem:[%s5378 + $0x32] sm:$0xff]
        %v5439 = vld [vmem:[%s5378 + $0x42] sm:$0xff]
        %v5440 = vld [vmem:[%s5378 + $0x52] sm:$0xff]
        %v5441 = vld [vmem:[%s5378 + $0x62] sm:$0xff]
        %v5442 = vld [vmem:[%s5378 + $0x72] sm:$0xff]
        %v5443 = vlaneseq
        %v5444 = vshrl.u32 %v5443, 7
        %v5445 = vsub.s32 5, %v5444
        %v5446 = vrot.slane %v4392, %v5445
        %v5447 = vmul.f32 %v5435, %v5446
        %v5448 = vmul.f32 %v5436, %v5446
        %v5449 = vmul.f32 %v5437, %v5446
        %v5450 = vmul.f32 %v5438, %v5446
        %v5451 = vmul.f32 %v5439, %v5446
        %v5452 = vmul.f32 %v5440, %v5446
        %v5453 = vmul.f32 %v5441, %v5446
        %v5454 = vmul.f32 %v5442, %v5446
        %v5455 = vadd.f32 %v5427, %v5447
        %v5456 = vadd.f32 %v5428, %v5448
        %v5457 = vadd.f32 %v5429, %v5449
        %v5458 = vadd.f32 %v5430, %v5450
        %v5459 = vadd.f32 %v5431, %v5451
        %v5460 = vadd.f32 %v5432, %v5452
        %v5461 = vadd.f32 %v5433, %v5453
        %v5462 = vadd.f32 %v5434, %v5454
        %v5463 = vld [vmem:[%s5378 + $0x3] sm:$0xff]
        %v5464 = vld [vmem:[%s5378 + $0x13] sm:$0xff]
        %v5465 = vld [vmem:[%s5378 + $0x23] sm:$0xff]
        %v5466 = vld [vmem:[%s5378 + $0x33] sm:$0xff]
        %v5467 = vld [vmem:[%s5378 + $0x43] sm:$0xff]
        %v5468 = vld [vmem:[%s5378 + $0x53] sm:$0xff]
        %v5469 = vld [vmem:[%s5378 + $0x63] sm:$0xff]
        %v5470 = vld [vmem:[%s5378 + $0x73] sm:$0xff]
        %v5471 = vlaneseq
        %v5472 = vshrl.u32 %v5471, 7
        %v5473 = vsub.s32 6, %v5472
        %v5474 = vrot.slane %v4392, %v5473
        %v5475 = vmul.f32 %v5463, %v5474
        %v5476 = vmul.f32 %v5464, %v5474
        %v5477 = vmul.f32 %v5465, %v5474
        %v5478 = vmul.f32 %v5466, %v5474
        %v5479 = vmul.f32 %v5467, %v5474
        %v5480 = vmul.f32 %v5468, %v5474
        %v5481 = vmul.f32 %v5469, %v5474
        %v5482 = vmul.f32 %v5470, %v5474
        %v5483 = vadd.f32 %v5455, %v5475
        %v5484 = vadd.f32 %v5456, %v5476
        %v5485 = vadd.f32 %v5457, %v5477
        %v5486 = vadd.f32 %v5458, %v5478
        %v5487 = vadd.f32 %v5459, %v5479
        %v5488 = vadd.f32 %v5460, %v5480
        %v5489 = vadd.f32 %v5461, %v5481
        %v5490 = vadd.f32 %v5462, %v5482
        %v5491 = vld [vmem:[%s5378 + $0x4] sm:$0xff]
        %v5492 = vld [vmem:[%s5378 + $0x14] sm:$0xff]
        %v5493 = vld [vmem:[%s5378 + $0x24] sm:$0xff]
        %v5494 = vld [vmem:[%s5378 + $0x34] sm:$0xff]
        %v5495 = vld [vmem:[%s5378 + $0x44] sm:$0xff]
        %v5496 = vld [vmem:[%s5378 + $0x54] sm:$0xff]
        %v5497 = vld [vmem:[%s5378 + $0x64] sm:$0xff]
        %v5498 = vld [vmem:[%s5378 + $0x74] sm:$0xff]
        %v5499 = vlaneseq
        %v5500 = vshrl.u32 %v5499, 7
        %v5501 = vsub.s32 7, %v5500
        %v5502 = vrot.slane %v4392, %v5501
        %v5503 = vmul.f32 %v5491, %v5502
        %v5504 = vmul.f32 %v5492, %v5502
        %v5505 = vmul.f32 %v5493, %v5502
        %v5506 = vmul.f32 %v5494, %v5502
        %v5507 = vmul.f32 %v5495, %v5502
        %v5508 = vmul.f32 %v5496, %v5502
        %v5509 = vmul.f32 %v5497, %v5502
        %v5510 = vmul.f32 %v5498, %v5502
        %v5511 = vadd.f32 %v5483, %v5503
        %v5512 = vadd.f32 %v5484, %v5504
        %v5513 = vadd.f32 %v5485, %v5505
        %v5514 = vadd.f32 %v5486, %v5506
        %v5515 = vadd.f32 %v5487, %v5507
        %v5516 = vadd.f32 %v5488, %v5508
        %v5517 = vadd.f32 %v5489, %v5509
        %v5518 = vadd.f32 %v5490, %v5510
        %v5519 = vld [vmem:[%s5378 + $0x5] sm:$0xff]
        %v5520 = vld [vmem:[%s5378 + $0x15] sm:$0xff]
        %v5521 = vld [vmem:[%s5378 + $0x25] sm:$0xff]
        %v5522 = vld [vmem:[%s5378 + $0x35] sm:$0xff]
        %v5523 = vld [vmem:[%s5378 + $0x45] sm:$0xff]
        %v5524 = vld [vmem:[%s5378 + $0x55] sm:$0xff]
        %v5525 = vld [vmem:[%s5378 + $0x65] sm:$0xff]
        %v5526 = vld [vmem:[%s5378 + $0x75] sm:$0xff]
        %v5527 = vlaneseq
        %v5528 = vshrl.u32 %v5527, 7
        %v5529 = vsub.s32 0, %v5528
        %v5530 = vrot.slane %v4393, %v5529
        %v5531 = vmul.f32 %v5519, %v5530
        %v5532 = vmul.f32 %v5520, %v5530
        %v5533 = vmul.f32 %v5521, %v5530
        %v5534 = vmul.f32 %v5522, %v5530
        %v5535 = vmul.f32 %v5523, %v5530
        %v5536 = vmul.f32 %v5524, %v5530
        %v5537 = vmul.f32 %v5525, %v5530
        %v5538 = vmul.f32 %v5526, %v5530
        %v5539 = vadd.f32 %v5511, %v5531
        %v5540 = vadd.f32 %v5512, %v5532
        %v5541 = vadd.f32 %v5513, %v5533
        %v5542 = vadd.f32 %v5514, %v5534
        %v5543 = vadd.f32 %v5515, %v5535
        %v5544 = vadd.f32 %v5516, %v5536
        %v5545 = vadd.f32 %v5517, %v5537
        %v5546 = vadd.f32 %v5518, %v5538
        %v5547 = vld [vmem:[%s5378 + $0x6] sm:$0xff]
        %v5548 = vld [vmem:[%s5378 + $0x16] sm:$0xff]
        %v5549 = vld [vmem:[%s5378 + $0x26] sm:$0xff]
        %v5550 = vld [vmem:[%s5378 + $0x36] sm:$0xff]
        %v5551 = vld [vmem:[%s5378 + $0x46] sm:$0xff]
        %v5552 = vld [vmem:[%s5378 + $0x56] sm:$0xff]
        %v5553 = vld [vmem:[%s5378 + $0x66] sm:$0xff]
        %v5554 = vld [vmem:[%s5378 + $0x76] sm:$0xff]
        %v5555 = vlaneseq
        %v5556 = vshrl.u32 %v5555, 7
        %v5557 = vsub.s32 1, %v5556
        %v5558 = vrot.slane %v4393, %v5557
        %v5559 = vmul.f32 %v5547, %v5558
        %v5560 = vmul.f32 %v5548, %v5558
        %v5561 = vmul.f32 %v5549, %v5558
        %v5562 = vmul.f32 %v5550, %v5558
        %v5563 = vmul.f32 %v5551, %v5558
        %v5564 = vmul.f32 %v5552, %v5558
        %v5565 = vmul.f32 %v5553, %v5558
        %v5566 = vmul.f32 %v5554, %v5558
        %v5567 = vadd.f32 %v5539, %v5559
        %v5568 = vadd.f32 %v5540, %v5560
        %v5569 = vadd.f32 %v5541, %v5561
        %v5570 = vadd.f32 %v5542, %v5562
        %v5571 = vadd.f32 %v5543, %v5563
        %v5572 = vadd.f32 %v5544, %v5564
        %v5573 = vadd.f32 %v5545, %v5565
        %v5574 = vadd.f32 %v5546, %v5566
        %s5575 = scalar_lea.vmem [#allocation3], 96
        %v5576 = vld [vmem:[%s5575] sm:$0xff]
        %v5577 = vld [vmem:[%s5575 + $0x10] sm:$0xff]
        %v5578 = vld [vmem:[%s5575 + $0x20] sm:$0xff]
        %v5579 = vld [vmem:[%s5575 + $0x30] sm:$0xff]
        %v5580 = vld [vmem:[%s5575 + $0x40] sm:$0xff]
        %v5581 = vld [vmem:[%s5575 + $0x50] sm:$0xff]
        %v5582 = vld [vmem:[%s5575 + $0x60] sm:$0xff]
        %v5583 = vld [vmem:[%s5575 + $0x70] sm:$0xff]
        %v5584 = vlaneseq
        %v5585 = vshrl.u32 %v5584, 7
        %v5586 = vsub.s32 2, %v5585
        %v5587 = vrot.slane %v4393, %v5586
        %v5588 = vmul.f32 %v5576, %v5587
        %v5589 = vmul.f32 %v5577, %v5587
        %v5590 = vmul.f32 %v5578, %v5587
        %v5591 = vmul.f32 %v5579, %v5587
        %v5592 = vmul.f32 %v5580, %v5587
        %v5593 = vmul.f32 %v5581, %v5587
        %v5594 = vmul.f32 %v5582, %v5587
        %v5595 = vmul.f32 %v5583, %v5587
        %v5596 = vadd.f32 %v5567, %v5588
        %v5597 = vadd.f32 %v5568, %v5589
        %v5598 = vadd.f32 %v5569, %v5590
        %v5599 = vadd.f32 %v5570, %v5591
        %v5600 = vadd.f32 %v5571, %v5592
        %v5601 = vadd.f32 %v5572, %v5593
        %v5602 = vadd.f32 %v5573, %v5594
        %v5603 = vadd.f32 %v5574, %v5595
        %v5604 = vld [vmem:[%s5575 + $0x1] sm:$0xff]
        %v5605 = vld [vmem:[%s5575 + $0x11] sm:$0xff]
        %v5606 = vld [vmem:[%s5575 + $0x21] sm:$0xff]
        %v5607 = vld [vmem:[%s5575 + $0x31] sm:$0xff]
        %v5608 = vld [vmem:[%s5575 + $0x41] sm:$0xff]
        %v5609 = vld [vmem:[%s5575 + $0x51] sm:$0xff]
        %v5610 = vld [vmem:[%s5575 + $0x61] sm:$0xff]
        %v5611 = vld [vmem:[%s5575 + $0x71] sm:$0xff]
        %v5612 = vlaneseq
        %v5613 = vshrl.u32 %v5612, 7
        %v5614 = vsub.s32 3, %v5613
        %v5615 = vrot.slane %v4393, %v5614
        %v5616 = vmul.f32 %v5604, %v5615
        %v5617 = vmul.f32 %v5605, %v5615
        %v5618 = vmul.f32 %v5606, %v5615
        %v5619 = vmul.f32 %v5607, %v5615
        %v5620 = vmul.f32 %v5608, %v5615
        %v5621 = vmul.f32 %v5609, %v5615
        %v5622 = vmul.f32 %v5610, %v5615
        %v5623 = vmul.f32 %v5611, %v5615
        %v5624 = vadd.f32 %v5596, %v5616
        %v5625 = vadd.f32 %v5597, %v5617
        %v5626 = vadd.f32 %v5598, %v5618
        %v5627 = vadd.f32 %v5599, %v5619
        %v5628 = vadd.f32 %v5600, %v5620
        %v5629 = vadd.f32 %v5601, %v5621
        %v5630 = vadd.f32 %v5602, %v5622
        %v5631 = vadd.f32 %v5603, %v5623
        %v5632 = vld [vmem:[%s5575 + $0x2] sm:$0xff]
        %v5633 = vld [vmem:[%s5575 + $0x12] sm:$0xff]
        %v5634 = vld [vmem:[%s5575 + $0x22] sm:$0xff]
        %v5635 = vld [vmem:[%s5575 + $0x32] sm:$0xff]
        %v5636 = vld [vmem:[%s5575 + $0x42] sm:$0xff]
        %v5637 = vld [vmem:[%s5575 + $0x52] sm:$0xff]
        %v5638 = vld [vmem:[%s5575 + $0x62] sm:$0xff]
        %v5639 = vld [vmem:[%s5575 + $0x72] sm:$0xff]
        %v5640 = vlaneseq
        %v5641 = vshrl.u32 %v5640, 7
        %v5642 = vsub.s32 4, %v5641
        %v5643 = vrot.slane %v4393, %v5642
        %v5644 = vmul.f32 %v5632, %v5643
        %v5645 = vmul.f32 %v5633, %v5643
        %v5646 = vmul.f32 %v5634, %v5643
        %v5647 = vmul.f32 %v5635, %v5643
        %v5648 = vmul.f32 %v5636, %v5643
        %v5649 = vmul.f32 %v5637, %v5643
        %v5650 = vmul.f32 %v5638, %v5643
        %v5651 = vmul.f32 %v5639, %v5643
        %v5652 = vadd.f32 %v5624, %v5644
        %v5653 = vadd.f32 %v5625, %v5645
        %v5654 = vadd.f32 %v5626, %v5646
        %v5655 = vadd.f32 %v5627, %v5647
        %v5656 = vadd.f32 %v5628, %v5648
        %v5657 = vadd.f32 %v5629, %v5649
        %v5658 = vadd.f32 %v5630, %v5650
        %v5659 = vadd.f32 %v5631, %v5651
        %v5660 = vld [vmem:[%s5575 + $0x3] sm:$0xff]
        %v5661 = vld [vmem:[%s5575 + $0x13] sm:$0xff]
        %v5662 = vld [vmem:[%s5575 + $0x23] sm:$0xff]
        %v5663 = vld [vmem:[%s5575 + $0x33] sm:$0xff]
        %v5664 = vld [vmem:[%s5575 + $0x43] sm:$0xff]
        %v5665 = vld [vmem:[%s5575 + $0x53] sm:$0xff]
        %v5666 = vld [vmem:[%s5575 + $0x63] sm:$0xff]
        %v5667 = vld [vmem:[%s5575 + $0x73] sm:$0xff]
        %v5668 = vlaneseq
        %v5669 = vshrl.u32 %v5668, 7
        %v5670 = vsub.s32 5, %v5669
        %v5671 = vrot.slane %v4393, %v5670
        %v5672 = vmul.f32 %v5660, %v5671
        %v5673 = vmul.f32 %v5661, %v5671
        %v5674 = vmul.f32 %v5662, %v5671
        %v5675 = vmul.f32 %v5663, %v5671
        %v5676 = vmul.f32 %v5664, %v5671
        %v5677 = vmul.f32 %v5665, %v5671
        %v5678 = vmul.f32 %v5666, %v5671
        %v5679 = vmul.f32 %v5667, %v5671
        %v5680 = vadd.f32 %v5652, %v5672
        %v5681 = vadd.f32 %v5653, %v5673
        %v5682 = vadd.f32 %v5654, %v5674
        %v5683 = vadd.f32 %v5655, %v5675
        %v5684 = vadd.f32 %v5656, %v5676
        %v5685 = vadd.f32 %v5657, %v5677
        %v5686 = vadd.f32 %v5658, %v5678
        %v5687 = vadd.f32 %v5659, %v5679
        %v5688 = vld [vmem:[%s5575 + $0x4] sm:$0xff]
        %v5689 = vld [vmem:[%s5575 + $0x14] sm:$0xff]
        %v5690 = vld [vmem:[%s5575 + $0x24] sm:$0xff]
        %v5691 = vld [vmem:[%s5575 + $0x34] sm:$0xff]
        %v5692 = vld [vmem:[%s5575 + $0x44] sm:$0xff]
        %v5693 = vld [vmem:[%s5575 + $0x54] sm:$0xff]
        %v5694 = vld [vmem:[%s5575 + $0x64] sm:$0xff]
        %v5695 = vld [vmem:[%s5575 + $0x74] sm:$0xff]
        %v5696 = vlaneseq
        %v5697 = vshrl.u32 %v5696, 7
        %v5698 = vsub.s32 6, %v5697
        %v5699 = vrot.slane %v4393, %v5698
        %v5700 = vmul.f32 %v5688, %v5699
        %v5701 = vmul.f32 %v5689, %v5699
        %v5702 = vmul.f32 %v5690, %v5699
        %v5703 = vmul.f32 %v5691, %v5699
        %v5704 = vmul.f32 %v5692, %v5699
        %v5705 = vmul.f32 %v5693, %v5699
        %v5706 = vmul.f32 %v5694, %v5699
        %v5707 = vmul.f32 %v5695, %v5699
        %v5708 = vadd.f32 %v5680, %v5700
        %v5709 = vadd.f32 %v5681, %v5701
        %v5710 = vadd.f32 %v5682, %v5702
        %v5711 = vadd.f32 %v5683, %v5703
        %v5712 = vadd.f32 %v5684, %v5704
        %v5713 = vadd.f32 %v5685, %v5705
        %v5714 = vadd.f32 %v5686, %v5706
        %v5715 = vadd.f32 %v5687, %v5707
        %v5716 = vld [vmem:[%s5575 + $0x5] sm:$0xff]
        %v5717 = vld [vmem:[%s5575 + $0x15] sm:$0xff]
        %v5718 = vld [vmem:[%s5575 + $0x25] sm:$0xff]
        %v5719 = vld [vmem:[%s5575 + $0x35] sm:$0xff]
        %v5720 = vld [vmem:[%s5575 + $0x45] sm:$0xff]
        %v5721 = vld [vmem:[%s5575 + $0x55] sm:$0xff]
        %v5722 = vld [vmem:[%s5575 + $0x65] sm:$0xff]
        %v5723 = vld [vmem:[%s5575 + $0x75] sm:$0xff]
        %v5724 = vlaneseq
        %v5725 = vshrl.u32 %v5724, 7
        %v5726 = vsub.s32 7, %v5725
        %v5727 = vrot.slane %v4393, %v5726
        %v5728 = vmul.f32 %v5716, %v5727
        %v5729 = vmul.f32 %v5717, %v5727
        %v5730 = vmul.f32 %v5718, %v5727
        %v5731 = vmul.f32 %v5719, %v5727
        %v5732 = vmul.f32 %v5720, %v5727
        %v5733 = vmul.f32 %v5721, %v5727
        %v5734 = vmul.f32 %v5722, %v5727
        %v5735 = vmul.f32 %v5723, %v5727
        %v5736 = vadd.f32 %v5708, %v5728
        %v5737 = vadd.f32 %v5709, %v5729
        %v5738 = vadd.f32 %v5710, %v5730
        %v5739 = vadd.f32 %v5711, %v5731
        %v5740 = vadd.f32 %v5712, %v5732
        %v5741 = vadd.f32 %v5713, %v5733
        %v5742 = vadd.f32 %v5714, %v5734
        %v5743 = vadd.f32 %v5715, %v5735
        %v5744 = vld [vmem:[%s5575 + $0x6] sm:$0xff]
        %v5745 = vld [vmem:[%s5575 + $0x16] sm:$0xff]
        %v5746 = vld [vmem:[%s5575 + $0x26] sm:$0xff]
        %v5747 = vld [vmem:[%s5575 + $0x36] sm:$0xff]
        %v5748 = vld [vmem:[%s5575 + $0x46] sm:$0xff]
        %v5749 = vld [vmem:[%s5575 + $0x56] sm:$0xff]
        %v5750 = vld [vmem:[%s5575 + $0x66] sm:$0xff]
        %v5751 = vld [vmem:[%s5575 + $0x76] sm:$0xff]
        %v5752 = vlaneseq
        %v5753 = vshrl.u32 %v5752, 7
        %v5754 = vsub.s32 0, %v5753
        %v5755 = vrot.slane %v4394, %v5754
        %v5756 = vmul.f32 %v5744, %v5755
        %v5757 = vmul.f32 %v5745, %v5755
        %v5758 = vmul.f32 %v5746, %v5755
        %v5759 = vmul.f32 %v5747, %v5755
        %v5760 = vmul.f32 %v5748, %v5755
        %v5761 = vmul.f32 %v5749, %v5755
        %v5762 = vmul.f32 %v5750, %v5755
        %v5763 = vmul.f32 %v5751, %v5755
        %v5764 = vadd.f32 %v5736, %v5756
        %v5765 = vadd.f32 %v5737, %v5757
        %v5766 = vadd.f32 %v5738, %v5758
        %v5767 = vadd.f32 %v5739, %v5759
        %v5768 = vadd.f32 %v5740, %v5760
        %v5769 = vadd.f32 %v5741, %v5761
        %v5770 = vadd.f32 %v5742, %v5762
        %v5771 = vadd.f32 %v5743, %v5763
        %v5772 = vld [vmem:[%s13] sm:$0x1]
        %v5774 = vlaneseq
        %v5775 = vshrl.u32 %v5774, 7
        %v5776 = vsub.s32 0, %v5775
        %v5777 = vrot.slane %v5772, %v5776
        %v5779 = vmul.f32 %v5764, %v5777
        %v5780 = vmul.f32 %v5765, %v5777
        %v5781 = vmul.f32 %v5766, %v5777
        %v5782 = vmul.f32 %v5767, %v5777
        %v5783 = vmul.f32 %v5768, %v5777
        %v5784 = vmul.f32 %v5769, %v5777
        %v5785 = vmul.f32 %v5770, %v5777
        %v5786 = vmul.f32 %v5771, %v5777
        %v5787 = vld [vmem:[%s14] sm:$0x1]
        %v5789 = vlaneseq
        %v5790 = vshrl.u32 %v5789, 7
        %v5791 = vsub.s32 0, %v5790
        %v5792 = vrot.slane %v5787, %v5791
        %v5794 = vadd.f32 %v5779, %v5792
        %v5795 = vadd.f32 %v5780, %v5792
        %v5796 = vadd.f32 %v5781, %v5792
        %v5797 = vadd.f32 %v5782, %v5792
        %v5798 = vadd.f32 %v5783, %v5792
        %v5799 = vadd.f32 %v5784, %v5792
        %v5800 = vadd.f32 %v5785, %v5792
        %v5801 = vadd.f32 %v5786, %v5792
        %v5802 = vpack.c.bf16 %v5795, %v5794
        %v5803 = vpack.c.bf16 %v5797, %v5796
        %v5804 = vpack.c.bf16 %v5799, %v5798
        %v5805 = vpack.c.bf16 %v5801, %v5800
        %v5806 = vld [vmem:[%s15] sm:$0xf]
        %v5807 = vld [vmem:[%s15 + $0x4] sm:$0xf]
        %v5808 = vld [vmem:[%s15 + $0x8] sm:$0xf]
        %v5809 = vld [vmem:[%s15 + $0xc] sm:$0xf]
        %v5810 = vld [vmem:[%s16] sm:$0x1]
        %v5812 = vlaneseq
        %v5813 = vshrl.u32 %v5812, 7
        %v5814 = vsub.s32 0, %v5813
        %v5815 = vrot.slane %v5810, %v5814
        %v5821 = vunpack.c.l.b16 %v5806
        %v5822 = vunpack.c.l.b16 %v5807
        %v5823 = vunpack.c.l.b16 %v5808
        %v5824 = vunpack.c.l.b16 %v5809
        %v5825 = vpack.c.b16 %v5822, %v5821
        %v5826 = vpack.c.b16 %v5824, %v5823
        %v5830 = vsel %vm2122, %v5802, 0
        %v5833 = vsel %vm2122, %v5803, 0
        %v5836 = vsel %vm2122, %v5804, 0
        %v5839 = vsel %vm2122, %v5805, 0
        %5841 = vmatprep.subr.bf16.mxu0 0
        %5842 = vmatpush1.bf16.msra.mxu0 0
        %5843 = vmatprep.subr.bf16.mxu0 0
        %5844 = vmatpush1.bf16.msra.mxu0 0
        %5845 = vmatprep.subr.bf16.mxu0 0
        %5846 = vmatpush1.bf16.msra.mxu0 0
        %5847 = vmatprep.subr.bf16.mxu0 0
        %5848 = vmatpush1.bf16.msra.mxu0 0
        %5849 = vmatprep.subr.bf16.mxu0 0
        %5850 = vmatpush1.bf16.msra.mxu0 0
        %5851 = vmatprep.subr.bf16.mxu0 0
        %5852 = vmatpush1.bf16.msra.mxu0 0
        %5853 = vmatprep.subr.bf16.mxu0 0
        %5854 = vmatpush1.bf16.msra.mxu0 %v5826
        %5855 = vmatprep.subr.bf16.mxu0 0
        %5856 = vmatpush1.bf16.msra.mxu0 %v5825
        %5857 = vmatprep.subr.bf16.mxu0 0
        %5858 = vmatpush2.bf16.msra.mxu0 0
        %5859 = vmatprep.subr.bf16.mxu0 0
        %5860 = vmatpush2.bf16.msra.mxu0 0
        %5861 = vmatprep.subr.bf16.mxu0 0
        %5862 = vmatpush2.bf16.msra.mxu0 0
        %5863 = vmatprep.subr.bf16.mxu0 0
        %5864 = vmatpush2.bf16.msra.mxu0 0
        %5865 = vmatprep.subr.bf16.mxu0 0
        %5866 = vmatpush2.bf16.msra.mxu0 0
        %5867 = vmatprep.subr.bf16.mxu0 0
        %5868 = vmatpush2.bf16.msra.mxu0 0
        %5869 = vmatprep.subr.bf16.mxu0 0
        %5870 = vmatpush2.bf16.msra.mxu0 0
        %5871 = vmatprep.subr.bf16.mxu0 0
        %5872 = vmatpush2.bf16.msra.mxu0 0
        %5873 = vmatprep.mubr.bf16.mxu0 0
        %5874 = vmatmul.mubr.bf16.gmra.mxu0 %v5830
        %v5875 = vpop.f32.mrf.mxu0
        %v5876 = vadd.f32 %v5815, %v5875
        %v5877 = vpop.f32.mrf.mxu0
        %v5878 = vpop.f32.mrf.mxu0
        %v5879 = vadd.f32 %v5815, %v5878
        %v5880 = vpop.f32.mrf.mxu0
        %5881 = vmatprep.mubr.bf16.mxu0 0
        %5882 = vmatmul.mubr.bf16.gmra.mxu0 %v5833
        %v5883 = vpop.f32.mrf.mxu0
        %v5884 = vadd.f32 %v5815, %v5883
        %v5885 = vpop.f32.mrf.mxu0
        %v5886 = vpop.f32.mrf.mxu0
        %v5887 = vadd.f32 %v5815, %v5886
        %v5888 = vpop.f32.mrf.mxu0
        %5889 = vmatprep.mubr.bf16.mxu0 0
        %5890 = vmatmul.mubr.bf16.gmra.mxu0 %v5836
        %v5891 = vpop.f32.mrf.mxu0
        %v5892 = vadd.f32 %v5815, %v5891
        %v5893 = vpop.f32.mrf.mxu0
        %v5894 = vpop.f32.mrf.mxu0
        %v5895 = vadd.f32 %v5815, %v5894
        %v5896 = vpop.f32.mrf.mxu0
        %5897 = vmatprep.mubr.bf16.mxu0 0
        %5898 = vmatmul.mubr.bf16.gmra.mxu0 %v5839
        %v5899 = vpop.f32.mrf.mxu0
        %v5900 = vadd.f32 %v5815, %v5899
        %v5901 = vpop.f32.mrf.mxu0
        %v5902 = vpop.f32.mrf.mxu0
        %v5903 = vadd.f32 %v5815, %v5902
        %v5904 = vpop.f32.mrf.mxu0
        %5905 = vdwg.mxu0
        %v5906 = vmax.f32 %v5876, 0.0
        %v5907 = vmax.f32 %v5879, 0.0
        %v5908 = vmax.f32 %v5884, 0.0
        %v5909 = vmax.f32 %v5887, 0.0
        %v5910 = vmax.f32 %v5892, 0.0
        %v5911 = vmax.f32 %v5895, 0.0
        %v5912 = vmax.f32 %v5900, 0.0
        %v5913 = vmax.f32 %v5903, 0.0
        %v5914 = vpack.c.bf16 %v5907, %v5906
        %v5915 = vpack.c.bf16 %v5909, %v5908
        %v5916 = vpack.c.bf16 %v5911, %v5910
        %v5917 = vpack.c.bf16 %v5913, %v5912
        %v5918 = vld [vmem:[%s17] sm:$0xf]
        %v5919 = vld [vmem:[%s17 + $0x4] sm:$0xf]
        %v5920 = vld [vmem:[%s17 + $0x8] sm:$0xf]
        %v5921 = vld [vmem:[%s17 + $0xc] sm:$0xf]
        %v5922 = vld [vmem:[%s17 + $0x10] sm:$0xf]
        %v5923 = vld [vmem:[%s17 + $0x14] sm:$0xf]
        %v5924 = vld [vmem:[%s17 + $0x18] sm:$0xf]
        %v5925 = vld [vmem:[%s17 + $0x1c] sm:$0xf]
        %v5926 = vld [vmem:[%s18] sm:$0x1]
        %v5928 = vlaneseq
        %v5929 = vshrl.u32 %v5928, 7
        %v5930 = vsub.s32 0, %v5929
        %v5931 = vrot.slane %v5926, %v5930
        %v5941 = vunpack.c.l.b16 %v5918
        %v5942 = vunpack.c.l.b16 %v5919
        %v5943 = vunpack.c.l.b16 %v5920
        %v5944 = vunpack.c.l.b16 %v5921
        %v5945 = vunpack.c.l.b16 %v5922
        %v5946 = vunpack.c.l.b16 %v5923
        %v5947 = vunpack.c.l.b16 %v5924
        %v5948 = vunpack.c.l.b16 %v5925
        %v5949 = vpack.c.b16 %v5942, %v5941
        %v5950 = vpack.c.b16 %v5944, %v5943
        %v5951 = vpack.c.b16 %v5946, %v5945
        %v5952 = vpack.c.b16 %v5948, %v5947
        %v5958 = vsel %vm2851, %v5914, 0
        %v5961 = vsel %vm2851, %v5915, 0
        %v5964 = vsel %vm2851, %v5916, 0
        %v5967 = vsel %vm2851, %v5917, 0
        %5969 = vmatprep.subr.bf16.mxu0 0
        %5970 = vmatpush1.bf16.msra.mxu0 0
        %5971 = vmatprep.subr.bf16.mxu0 0
        %5972 = vmatpush1.bf16.msra.mxu0 0
        %5973 = vmatprep.subr.bf16.mxu0 0
        %5974 = vmatpush1.bf16.msra.mxu0 0
        %5975 = vmatprep.subr.bf16.mxu0 0
        %5976 = vmatpush1.bf16.msra.mxu0 0
        %5977 = vmatprep.subr.bf16.mxu0 0
        %5978 = vmatpush1.bf16.msra.mxu0 %v5952
        %5979 = vmatprep.subr.bf16.mxu0 0
        %5980 = vmatpush1.bf16.msra.mxu0 %v5951
        %5981 = vmatprep.subr.bf16.mxu0 0
        %5982 = vmatpush1.bf16.msra.mxu0 %v5950
        %5983 = vmatprep.subr.bf16.mxu0 0
        %5984 = vmatpush1.bf16.msra.mxu0 %v5949
        %5985 = vmatprep.subr.bf16.mxu0 0
        %5986 = vmatpush2.bf16.msra.mxu0 0
        %5987 = vmatprep.subr.bf16.mxu0 0
        %5988 = vmatpush2.bf16.msra.mxu0 0
        %5989 = vmatprep.subr.bf16.mxu0 0
        %5990 = vmatpush2.bf16.msra.mxu0 0
        %5991 = vmatprep.subr.bf16.mxu0 0
        %5992 = vmatpush2.bf16.msra.mxu0 0
        %5993 = vmatprep.subr.bf16.mxu0 0
        %5994 = vmatpush2.bf16.msra.mxu0 0
        %5995 = vmatprep.subr.bf16.mxu0 0
        %5996 = vmatpush2.bf16.msra.mxu0 0
        %5997 = vmatprep.subr.bf16.mxu0 0
        %5998 = vmatpush2.bf16.msra.mxu0 0
        %5999 = vmatprep.subr.bf16.mxu0 0
        %6000 = vmatpush2.bf16.msra.mxu0 0
        %6001 = vmatprep.mubr.bf16.mxu0 0
        %6002 = vmatmul.mubr.bf16.gmra.mxu0 %v5958
        %v6003 = vpop.f32.mrf.mxu0
        %v6004 = vadd.f32 %v5931, %v6003
        %v6005 = vpop.f32.mrf.mxu0
        %v6006 = vpop.f32.mrf.mxu0
        %v6007 = vadd.f32 %v5931, %v6006
        %v6008 = vpop.f32.mrf.mxu0
        %6009 = vmatprep.mubr.bf16.mxu0 0
        %6010 = vmatmul.mubr.bf16.gmra.mxu0 %v5961
        %v6011 = vpop.f32.mrf.mxu0
        %v6012 = vadd.f32 %v5931, %v6011
        %v6013 = vpop.f32.mrf.mxu0
        %v6014 = vpop.f32.mrf.mxu0
        %v6015 = vadd.f32 %v5931, %v6014
        %v6016 = vpop.f32.mrf.mxu0
        %6017 = vmatprep.mubr.bf16.mxu0 0
        %6018 = vmatmul.mubr.bf16.gmra.mxu0 %v5964
        %v6019 = vpop.f32.mrf.mxu0
        %v6020 = vadd.f32 %v5931, %v6019
        %v6021 = vpop.f32.mrf.mxu0
        %v6022 = vpop.f32.mrf.mxu0
        %v6023 = vadd.f32 %v5931, %v6022
        %v6024 = vpop.f32.mrf.mxu0
        %6025 = vmatprep.mubr.bf16.mxu0 0
        %6026 = vmatmul.mubr.bf16.gmra.mxu0 %v5967
        %v6027 = vpop.f32.mrf.mxu0
        %v6028 = vadd.f32 %v5931, %v6027
        %v6029 = vpop.f32.mrf.mxu0
        %v6030 = vpop.f32.mrf.mxu0
        %v6031 = vadd.f32 %v5931, %v6030
        %v6032 = vpop.f32.mrf.mxu0
        %6033 = vdwg.mxu0
        %v6034 = vadd.f32 %v6004, %v4286
        %v6035 = vadd.f32 %v6007, %v4289
        %v6036 = vadd.f32 %v6012, %v4294
        %v6037 = vadd.f32 %v6015, %v4297
        %v6038 = vadd.f32 %v6020, %v4302
        %v6039 = vadd.f32 %v6023, %v4305
        %v6040 = vadd.f32 %v6028, %v4310
        %v6041 = vadd.f32 %v6031, %v4313
        %6042 = vst.msk [vmem:[%s595] sm:$0xff] %vm2122, %v6034
        %6043 = vst.msk [vmem:[%s595 + $0x8] sm:$0xff] %vm2122, %v6035
        %6044 = vst.msk [vmem:[%s595 + $0x10] sm:$0xff] %vm2122, %v6036
        %6045 = vst.msk [vmem:[%s595 + $0x18] sm:$0xff] %vm2122, %v6037
        %6046 = vst.msk [vmem:[%s595 + $0x20] sm:$0xff] %vm2122, %v6038
        %6047 = vst.msk [vmem:[%s595 + $0x28] sm:$0xff] %vm2122, %v6039
        %6048 = vst.msk [vmem:[%s595 + $0x30] sm:$0xff] %vm2122, %v6040
        %6049 = vst.msk [vmem:[%s595 + $0x38] sm:$0xff] %vm2122, %v6041
        %s6050 = sand.u32 %s445, 1
        %s6051 = scalar_lea.sflag [#allocation5], %s6050
        %s6052 = sand.u32 %s445, 1
        %s6053 = smul.addr %s6052, 64
        %s6054 = scalar_lea.vmem [#allocation4], %s6053
        // Predicated region
        $region97: #{dwon_stage_forward.1} parent=95 // pred_check
          %p6055 = pneg %p455
        $region98: #{dwon_stage_forward.1} parent=95 // pred_check_branch
          %6057 = sbr.rel (%p6055) target = $region100
        $region99: #{dwon_stage_forward.1} parent=95 // pred_region
          %s6059 = ssub.s32 1024, 1024
          %6060 = vsyncadd %s6051, %s6059
          %s6061 = smul.addr %s33, 8
          %s6062 = smul.addr %s6061, 128
          %s6063 = scalar_lea.hbm %s19, %s6062
          %s6064 = sshll.u32 %s6054, 4
          %s6065 = int_to_ptr.vmem [resolvable:$true] %s6064
          %6070 = dma.vmem_to_hbm [thread:$0]  %s6065, 1024, %s6063, %s6051, 128, 128, 8
        $region100: #{dwon_stage_forward.1} parent=95 // pred_fallthru
          _
      $region96: #{dwon_stage_forward.1} parent=5 // pred_fallthru
        _
      %p6071 = scmp.le.s32.totalorder 2, %s28
      // Predicated region
      $region101: #{dwon_stage_forward.1} parent=5 // pred_check
        %p6072 = pneg %p6071
      $region102: #{dwon_stage_forward.1} parent=5 // pred_check_branch
        %6074 = sbr.rel (%p6072) target = $region104
      $region103: #{dwon_stage_forward.1} parent=5 // pred_region
        %s6075 = ssub.s32 %s28, 2
        // Predicated region
        $region105: #{dwon_stage_forward.1} parent=103 // pred_check
          %p6076 = pneg %p461
        $region106: #{dwon_stage_forward.1} parent=103 // pred_check_branch
          %6078 = sbr.rel (%p6076) target = $region108
        $region107: #{dwon_stage_forward.1} parent=103 // pred_region
          %s6079 = sand.u32 %s446, 1
          %s6080 = scalar_lea.sflag [#allocation5], %s6079
          %s6081 = sand.u32 %s446, 1
          %s6082 = smul.addr %s6081, 64
          %s6083 = scalar_lea.vmem [#allocation4], %s6082
          %6084 = dma.done %s6080, 1024
        $region108: #{dwon_stage_forward.1} parent=103 // pred_fallthru
          _
      $region104: #{dwon_stage_forward.1} parent=5 // pred_fallthru
        _
    $region6: #{dwon_stage_forward.1} parent=1 // loop_footer
      %s32 = sadd.s32 1, %s28
    $region7: #{dwon_stage_forward.1} parent=1 // loop_footer_branch
      %27 = sbr.rel target = $region3
    $region8: #{dwon_stage_forward.1} parent=1 // loop_exit
      _
    %6085 = vsyncpa [#allocation5], 1
    %s6086 = scalar_lea.sflag [#allocation5], 1
    %6087 = vsyncpa %s6086, 1

</llo_original>
